<compile_context>
chip_gen: v7x
topology: tpu7x:2x2x1
jax: 0.10.0
libtpu: 0.0.40
codegen_flags: <defaults>
</compile_context>

<pallas_src>
import functools

import jax
import jax.numpy as jnp
from jax import lax
from jax.experimental import pallas as pl
from jax.experimental.pallas import tpu as pltpu

KSIZE = 31
STRIDE = 2
PAD = 15
LEAKY_SLOPE = 0.3


# --------------------------------------------------------------------------
# Single fused kernel.
# --------------------------------------------------------------------------
def _build_kernel(n_layers, batch, time_dim, eps):
    def kernel(*refs):
        # refs: A0, G, (M, bias_lanes, selC, selB, gamma, beta) * n_layers,
        #       W_head, b_head, out_ref
        a_ref, g_ref = refs[0], refs[1]
        pos = 2
        layer_refs = []
        for _ in range(n_layers):
            layer_refs.append(refs[pos:pos + 6])
            pos += 6
        wh_ref, bh_ref, out_ref = refs[pos], refs[pos + 1], refs[pos + 2]

        a = a_ref[...]            # (R, c0*T)  R = 2B rounded up to 8
        g_full = g_ref[...]       # (R, R)     per-row VBN reduction weights

        length = time_dim
        for (m_ref, b_ref, sc_ref, sb_ref, ga_ref, be_ref) in layer_refs:
            l_out = length // 2
            inv_n = 1.0 / float(batch * l_out)

            # Conv1d(k=31, s=2, p=15) for ALL streams: one MXU matmul.
            conv = jnp.dot(a, m_ref[...],
                           preferred_element_type=jnp.float32) + b_ref[...]

            # VBN stats on the MXU: per-channel time sums via selC, then the
            # batch-group reduction + x/ref blending via g_full.
            sq = conv * conv
            s1 = jnp.dot(conv, sc_ref[...], preferred_element_type=jnp.float32)
            s2 = jnp.dot(sq, sc_ref[...], preferred_element_type=jnp.float32)
            mean_rows = jnp.dot(g_full, s1,
                                preferred_element_type=jnp.float32) * inv_n
            msq_rows = jnp.dot(g_full, s2,
                               preferred_element_type=jnp.float32) * inv_n

            # scale/shift per (row, channel), then broadcast to lanes via selB.
            inv_std = lax.rsqrt(eps + msq_rows - mean_rows * mean_rows)
            scale_rows = ga_ref[...] * inv_std
            shift_rows = be_ref[...] - mean_rows * scale_rows
            scale_slab = jnp.dot(scale_rows, sb_ref[...],
                                 preferred_element_type=jnp.float32)
            shift_slab = jnp.dot(shift_rows, sb_ref[...],
                                 preferred_element_type=jnp.float32)

            y = conv * scale_slab + shift_slab
            a = jnp.where(y >= 0, y, LEAKY_SLOPE * y)   # LeakyReLU(0.3)
            length = l_out

        # Head: 1x1 conv + Linear fused into one matmul (output lane-padded
        # to 128 so this is a single unmasked store).
        out_ref[...] = jnp.dot(a, wh_ref[...],
                               preferred_element_type=jnp.float32) + bh_ref[...]

    return kernel


# --------------------------------------------------------------------------
# Host-side construction of the combined conv / selection matrices.
# --------------------------------------------------------------------------
def _conv_matrix(w, length):
    """w: (K, c_out, c_in). Returns M (c_in*L, c_out*l_out) and l_out, where
    A[s, ci*L+tau] @ M == Conv1d(k=31, s=2, p=15)(h)[s, co*l_out+t]."""
    k_total, c_out, c_in = w.shape
    l_out = (length + 2 * PAD - k_total) // STRIDE + 1
    tau = jnp.arange(length)
    t = jnp.arange(l_out)
    k = tau[:, None] - STRIDE * t[None, :] + PAD          # (L, l_out)
    valid = (k >= 0) & (k < k_total)
    kc = jnp.clip(k, 0, k_total - 1)
    wg = w[kc]                                            # (L, l_out, c_out, c_in)
    wg = jnp.where(valid[:, :, None, None], wg, 0.0)
    m = jnp.transpose(wg, (3, 0, 2, 1)).reshape(c_in * length, c_out * l_out)
    return m, l_out


# --------------------------------------------------------------------------
# Wrapper: one pallas_call for the whole forward pass.
# --------------------------------------------------------------------------
def segan_discriminator_forward(params, x, ref_batch, eps=1e-5):
    """x, ref_batch: (B, C0, T) float32 -> (B, n_out) float32."""
    batch, c0, time_dim = x.shape
    assert ref_batch.shape == x.shape, (ref_batch.shape, x.shape)
    dims = [int(c0)] + [int(blk["w"].shape[1]) for blk in params["blocks"]]
    n_layers = len(dims) - 1
    assert time_dim % (2 ** n_layers) == 0, \
        "time_dim_size must be divisible by 2**n_layers"
    n_out = int(params["wl"].shape[1])
    assert n_out <= 128

    n_rows = 2 * batch
    n_rows_pad = ((n_rows + 7) // 8) * 8                  # sublane-aligned rows

    # Stream-stacked, channel-major/time-minor activations (zero pad rows are
    # isolated: G never gives them weight, and they are sliced off at the end).
    a0 = jnp.concatenate(
        [x.reshape(batch, c0 * time_dim).astype(jnp.float32),
         ref_batch.reshape(batch, c0 * time_dim).astype(jnp.float32),
         jnp.zeros((n_rows_pad - n_rows, c0 * time_dim), jnp.float32)], axis=0)

    # Per-row VBN reduction weights: x rows blend x/ref stats, ref (and pad)
    # rows use pure ref stats.  new_c = 1/(B+1), old_c = B/(B+1).
    nc = 1.0 / (batch + 1.0)
    oc = 1.0 - nc
    pad = n_rows_pad - n_rows
    gx = [nc] * batch + [oc] * batch + [0.0] * pad
    gr = [0.0] * batch + [1.0] * batch + [0.0] * pad
    g_full = jnp.array([gx] * batch + [gr] * (n_rows_pad - batch),
                       dtype=jnp.float32)                 # (R, R)

    inputs = [a0, g_full]
    length = time_dim
    for blk in params["blocks"]:
        w = blk["w"]                                      # (K, c_out, c_in)
        _, c_out, _ = w.shape
        m, l_out = _conv_matrix(w, length)
        bias_lanes = jnp.broadcast_to(
            blk["b"], (c_out, l_out)).reshape(1, c_out * l_out)
        co = jnp.arange(c_out)
        sel_b = (co[:, None] == jnp.repeat(co, l_out)[None, :]
                 ).astype(jnp.float32)                    # (c_out, c_out*l_out)
        sel_c = sel_b.T                                   # (c_out*l_out, c_out)
        gamma = blk["gamma"][0, :, 0][None, :]
        beta = blk["beta"][0, :, 0][None, :]
        inputs += [m, bias_lanes, sel_c, sel_b, gamma, beta]
        length = l_out

    # Fused head: out = A_x @ W_head + b_head with
    #   W_head[c*l_f + t, o] = wc[c] * wl[t, o],  b_head = bc * sum_t wl + bl.
    l_f = length
    c_last = dims[-1]
    npad = ((n_out + 127) // 128) * 128
    w_head = (params["wc"][0][:, None, None]
              * params["wl"][None, :, :]).reshape(c_last * l_f, n_out)
    w_head = jnp.pad(w_head, ((0, 0), (0, npad - n_out)))
    b_head = params["bc"][0, 0] * jnp.sum(params["wl"], axis=0) + params["bl"][0]
    b_head = jnp.pad(b_head, (0, npad - n_out))[None, :]
    inputs += [w_head, b_head]

    kernel = _build_kernel(n_layers, int(batch), int(time_dim), float(eps))
    out = pl.pallas_call(
        kernel,
        out_shape=jax.ShapeDtypeStruct((n_rows_pad, npad), jnp.float32),
        compiler_params=pltpu.CompilerParams(
            vmem_limit_bytes=48 * 1024 * 1024),
    )(*inputs)
    return out[:batch, :n_out]


# --------------------------------------------------------------------------
# Parameter init (deterministic, synthetic).
# --------------------------------------------------------------------------
def init_params(key, dims, time_dim, n_out):
    params = {"blocks": []}
    n_layers = len(dims) - 1
    for i in range(n_layers):
        c_in, c_out = dims[i], dims[i + 1]
        key, k1, k2, k3 = jax.random.split(key, 4)
        wstd = 1.0 / float(c_in * KSIZE) ** 0.5
        params["blocks"].append(dict(
            w=jax.random.normal(k1, (KSIZE, c_out, c_in), jnp.float32) * wstd,
            b=jax.random.normal(k2, (c_out, 1), jnp.float32) * wstd,
            gamma=1.0 + 0.02 * jax.random.normal(k3, (1, c_out, 1), jnp.float32),
            beta=jnp.zeros((1, c_out, 1), jnp.float32),
        ))
    l_final = time_dim // (2 ** n_layers)
    c_last = dims[-1]
    key, k1, k2, k3, k4 = jax.random.split(key, 5)
    params["wc"] = jax.random.normal(k1, (1, c_last), jnp.float32) / float(c_last) ** 0.5
    params["bc"] = jax.random.normal(k2, (1, 1), jnp.float32) * 0.1
    params["wl"] = jax.random.normal(k3, (l_final, n_out), jnp.float32) / float(l_final) ** 0.5
    params["bl"] = jax.random.normal(k4, (1, n_out), jnp.float32) * 0.1
    return params


# --------------------------------------------------------------------------
# Pure-JAX reference (correctness check only).
# --------------------------------------------------------------------------
def reference_forward(params, x, ref_batch, eps=1e-5):
    def conv(a, w, b):
        wt = jnp.transpose(w, (1, 2, 0))  # (C_out, C_in, K)
        y = lax.conv_general_dilated(a, wt, window_strides=(STRIDE,),
                                     padding=[(PAD, PAD)],
                                     dimension_numbers=("NCH", "OIH", "NCH"),
                                     precision=lax.Precision.HIGHEST)
        return y + b[None]

    def stats(y):
        m = jnp.mean(jnp.mean(y, axis=2, keepdims=True), axis=0, keepdims=True)
        ms = jnp.mean(jnp.mean(y * y, axis=2, keepdims=True), axis=0, keepdims=True)
        return m, ms

    def normalize(y, m, ms, g, be):
        return (y - m) / jnp.sqrt(eps + ms - m * m) * g + be

    def leaky(y):
        return jnp.where(y >= 0, y, LEAKY_SLOPE * y)

    ref = ref_batch
    ref_stats = []
    for blk in params["blocks"]:
        ref = conv(ref, blk["w"], blk["b"])
        m, ms = stats(ref)
        ref = leaky(normalize(ref, m, ms, blk["gamma"], blk["beta"]))
        ref_stats.append((m, ms))
    h = x
    B = x.shape[0]
    nc = 1.0 / (B + 1.0)
    oc = 1.0 - nc
    for blk, (rm, rms) in zip(params["blocks"], ref_stats):
        h = conv(h, blk["w"], blk["b"])
        m, ms = stats(h)
        m = nc * m + oc * rm
        ms = nc * ms + oc * rms
        h = leaky(normalize(h, m, ms, blk["gamma"], blk["beta"]))
    z = jnp.sum(params["wc"][0][None, :, None] * h, axis=1) + params["bc"]
    return jnp.dot(z, params["wl"], precision=lax.Precision.HIGHEST) + params["bl"]


if __name__ == "__main__":
    # Small config consistent with the module:
    #   batch_size=2, time_dim_size=128, discriminator_dimensions=[2,16,32,64],
    #   n_out_features=1, vbn_epsilon=1e-5
    B, T = 2, 128
    dims = [2, 16, 32, 64]
    n_out = 1
    eps = 1e-5

    key = jax.random.PRNGKey(0)
    kp, kx, kr = jax.random.split(key, 3)
    params = init_params(kp, dims, T, n_out)
    x = jax.random.normal(kx, (B, dims[0], T), jnp.float32)
    ref_batch = jax.random.normal(kr, (B, dims[0], T), jnp.float32)

    fwd = jax.jit(functools.partial(segan_discriminator_forward, eps=eps))
    out = jax.block_until_ready(fwd(params, x, ref_batch))

    expected = reference_forward(params, x, ref_batch, eps=eps)
    assert out.shape == (B, n_out), out.shape
    err = float(jnp.max(jnp.abs(out - expected)))
    assert jnp.allclose(out, expected, atol=3e-3, rtol=3e-3), (out, expected, err)
    print("KERNEL_OK")
</pallas_src>

<mosaic_0001>
module attributes {stable_mosaic.version = 11 : i64} {
  func.func @kernel(%arg0: memref<8x256xf32, #tpu.memory_space<vmem>>, %arg1: memref<8x8xf32, #tpu.memory_space<vmem>>, %arg2: memref<256x1024xf32, #tpu.memory_space<vmem>>, %arg3: memref<1x1024xf32, #tpu.memory_space<vmem>>, %arg4: memref<1024x16xf32, #tpu.memory_space<vmem>>, %arg5: memref<16x1024xf32, #tpu.memory_space<vmem>>, %arg6: memref<1x16xf32, #tpu.memory_space<vmem>>, %arg7: memref<1x16xf32, #tpu.memory_space<vmem>>, %arg8: memref<1024x1024xf32, #tpu.memory_space<vmem>>, %arg9: memref<1x1024xf32, #tpu.memory_space<vmem>>, %arg10: memref<1024x32xf32, #tpu.memory_space<vmem>>, %arg11: memref<32x1024xf32, #tpu.memory_space<vmem>>, %arg12: memref<1x32xf32, #tpu.memory_space<vmem>>, %arg13: memref<1x32xf32, #tpu.memory_space<vmem>>, %arg14: memref<1024x1024xf32, #tpu.memory_space<vmem>>, %arg15: memref<1x1024xf32, #tpu.memory_space<vmem>>, %arg16: memref<1024x64xf32, #tpu.memory_space<vmem>>, %arg17: memref<64x1024xf32, #tpu.memory_space<vmem>>, %arg18: memref<1x64xf32, #tpu.memory_space<vmem>>, %arg19: memref<1x64xf32, #tpu.memory_space<vmem>>, %arg20: memref<1024x128xf32, #tpu.memory_space<vmem>>, %arg21: memref<1x128xf32, #tpu.memory_space<vmem>>, %arg22: memref<8x128xf32, #tpu.memory_space<vmem>>) attributes {dimension_semantics = [], scalar_prefetch = 0 : i64, scratch_operands = 0 : i64, tpu.core_type = #tpu.core_type<tc>} {
    %c0 = arith.constant 0 : index
    %c0_0 = arith.constant 0 : index
    %0 = vector.load %arg0[%c0, %c0_0] : memref<8x256xf32, #tpu.memory_space<vmem>>, vector<8x256xf32>
    %c0_1 = arith.constant 0 : index
    %c0_2 = arith.constant 0 : index
    %1 = vector.load %arg1[%c0_1, %c0_2] : memref<8x8xf32, #tpu.memory_space<vmem>>, vector<8x8xf32>
    %c0_3 = arith.constant 0 : index
    %c0_4 = arith.constant 0 : index
    %2 = vector.load %arg2[%c0_3, %c0_4] : memref<256x1024xf32, #tpu.memory_space<vmem>>, vector<256x1024xf32>
    %cst = arith.constant dense<0.000000e+00> : vector<8x1024xf32>
    %3 = tpu.matmul %0, %2, %cst {dimension_numbers = #tpu.dot_dimension_numbers<[1], [0], [0], [1], [0, 0, 1, 1], [], []>} : vector<8x256xf32>, vector<256x1024xf32>, vector<8x1024xf32> -> vector<8x1024xf32>
    %c0_5 = arith.constant 0 : index
    %c0_6 = arith.constant 0 : index
    %4 = vector.load %arg3[%c0_5, %c0_6] : memref<1x1024xf32, #tpu.memory_space<vmem>>, vector<1x1024xf32>
    %5 = vector.broadcast %4 : vector<1x1024xf32> to vector<8x1024xf32>
    %6 = arith.addf %3, %5 : vector<8x1024xf32>
    %7 = arith.mulf %6, %6 : vector<8x1024xf32>
    %c0_7 = arith.constant 0 : index
    %c0_8 = arith.constant 0 : index
    %8 = vector.load %arg4[%c0_7, %c0_8] : memref<1024x16xf32, #tpu.memory_space<vmem>>, vector<1024x16xf32>
    %cst_9 = arith.constant dense<0.000000e+00> : vector<8x16xf32>
    %9 = tpu.matmul %6, %8, %cst_9 {dimension_numbers = #tpu.dot_dimension_numbers<[1], [0], [0], [1], [0, 0, 1, 1], [], []>} : vector<8x1024xf32>, vector<1024x16xf32>, vector<8x16xf32> -> vector<8x16xf32>
    %c0_10 = arith.constant 0 : index
    %c0_11 = arith.constant 0 : index
    %10 = vector.load %arg4[%c0_10, %c0_11] : memref<1024x16xf32, #tpu.memory_space<vmem>>, vector<1024x16xf32>
    %cst_12 = arith.constant dense<0.000000e+00> : vector<8x16xf32>
    %11 = tpu.matmul %7, %10, %cst_12 {dimension_numbers = #tpu.dot_dimension_numbers<[1], [0], [0], [1], [0, 0, 1, 1], [], []>} : vector<8x1024xf32>, vector<1024x16xf32>, vector<8x16xf32> -> vector<8x16xf32>
    %cst_13 = arith.constant dense<0.000000e+00> : vector<8x16xf32>
    %12 = tpu.matmul %1, %9, %cst_13 {dimension_numbers = #tpu.dot_dimension_numbers<[1], [0], [0], [1], [0, 0, 1, 1], [], []>} : vector<8x8xf32>, vector<8x16xf32>, vector<8x16xf32> -> vector<8x16xf32>
    %cst_14 = arith.constant 7.812500e-03 : f32
    %13 = vector.broadcast %cst_14 : f32 to vector<8x16xf32>
    %14 = arith.mulf %12, %13 : vector<8x16xf32>
    %cst_15 = arith.constant dense<0.000000e+00> : vector<8x16xf32>
    %15 = tpu.matmul %1, %11, %cst_15 {dimension_numbers = #tpu.dot_dimension_numbers<[1], [0], [0], [1], [0, 0, 1, 1], [], []>} : vector<8x8xf32>, vector<8x16xf32>, vector<8x16xf32> -> vector<8x16xf32>
    %cst_16 = arith.constant 7.812500e-03 : f32
    %16 = vector.broadcast %cst_16 : f32 to vector<8x16xf32>
    %17 = arith.mulf %15, %16 : vector<8x16xf32>
    %cst_17 = arith.constant 9.99999974E-6 : f32
    %18 = vector.broadcast %cst_17 : f32 to vector<8x16xf32>
    %19 = arith.addf %18, %17 : vector<8x16xf32>
    %20 = arith.mulf %14, %14 : vector<8x16xf32>
    %21 = arith.subf %19, %20 : vector<8x16xf32>
    %22 = math.rsqrt %21 : vector<8x16xf32>
    %c0_18 = arith.constant 0 : index
    %c0_19 = arith.constant 0 : index
    %23 = vector.load %arg6[%c0_18, %c0_19] : memref<1x16xf32, #tpu.memory_space<vmem>>, vector<1x16xf32>
    %24 = vector.broadcast %23 : vector<1x16xf32> to vector<8x16xf32>
    %25 = arith.mulf %24, %22 : vector<8x16xf32>
    %c0_20 = arith.constant 0 : index
    %c0_21 = arith.constant 0 : index
    %26 = vector.load %arg7[%c0_20, %c0_21] : memref<1x16xf32, #tpu.memory_space<vmem>>, vector<1x16xf32>
    %27 = arith.mulf %14, %25 : vector<8x16xf32>
    %28 = vector.broadcast %26 : vector<1x16xf32> to vector<8x16xf32>
    %29 = arith.subf %28, %27 : vector<8x16xf32>
    %c0_22 = arith.constant 0 : index
    %c0_23 = arith.constant 0 : index
    %30 = vector.load %arg5[%c0_22, %c0_23] : memref<16x1024xf32, #tpu.memory_space<vmem>>, vector<16x1024xf32>
    %cst_24 = arith.constant dense<0.000000e+00> : vector<8x1024xf32>
    %31 = tpu.matmul %25, %30, %cst_24 {dimension_numbers = #tpu.dot_dimension_numbers<[1], [0], [0], [1], [0, 0, 1, 1], [], []>} : vector<8x16xf32>, vector<16x1024xf32>, vector<8x1024xf32> -> vector<8x1024xf32>
    %c0_25 = arith.constant 0 : index
    %c0_26 = arith.constant 0 : index
    %32 = vector.load %arg5[%c0_25, %c0_26] : memref<16x1024xf32, #tpu.memory_space<vmem>>, vector<16x1024xf32>
    %cst_27 = arith.constant dense<0.000000e+00> : vector<8x1024xf32>
    %33 = tpu.matmul %29, %32, %cst_27 {dimension_numbers = #tpu.dot_dimension_numbers<[1], [0], [0], [1], [0, 0, 1, 1], [], []>} : vector<8x16xf32>, vector<16x1024xf32>, vector<8x1024xf32> -> vector<8x1024xf32>
    %34 = arith.mulf %6, %31 : vector<8x1024xf32>
    %35 = arith.addf %34, %33 : vector<8x1024xf32>
    %cst_28 = arith.constant 0.000000e+00 : f32
    %36 = vector.broadcast %cst_28 : f32 to vector<8x1024xf32>
    %37 = arith.cmpf oge, %35, %36 : vector<8x1024xf32>
    %cst_29 = arith.constant 3.000000e-01 : f32
    %38 = vector.broadcast %cst_29 : f32 to vector<8x1024xf32>
    %39 = arith.mulf %38, %35 : vector<8x1024xf32>
    %40 = arith.select %37, %35, %39 : vector<8x1024xi1>, vector<8x1024xf32>
    %c0_30 = arith.constant 0 : index
    %c0_31 = arith.constant 0 : index
    %41 = vector.load %arg8[%c0_30, %c0_31] : memref<1024x1024xf32, #tpu.memory_space<vmem>>, vector<1024x1024xf32>
    %cst_32 = arith.constant dense<0.000000e+00> : vector<8x1024xf32>
    %42 = tpu.matmul %40, %41, %cst_32 {dimension_numbers = #tpu.dot_dimension_numbers<[1], [0], [0], [1], [0, 0, 1, 1], [], []>} : vector<8x1024xf32>, vector<1024x1024xf32>, vector<8x1024xf32> -> vector<8x1024xf32>
    %c0_33 = arith.constant 0 : index
    %c0_34 = arith.constant 0 : index
    %43 = vector.load %arg9[%c0_33, %c0_34] : memref<1x1024xf32, #tpu.memory_space<vmem>>, vector<1x1024xf32>
    %44 = vector.broadcast %43 : vector<1x1024xf32> to vector<8x1024xf32>
    %45 = arith.addf %42, %44 : vector<8x1024xf32>
    %46 = arith.mulf %45, %45 : vector<8x1024xf32>
    %c0_35 = arith.constant 0 : index
    %c0_36 = arith.constant 0 : index
    %47 = vector.load %arg10[%c0_35, %c0_36] : memref<1024x32xf32, #tpu.memory_space<vmem>>, vector<1024x32xf32>
    %cst_37 = arith.constant dense<0.000000e+00> : vector<8x32xf32>
    %48 = tpu.matmul %45, %47, %cst_37 {dimension_numbers = #tpu.dot_dimension_numbers<[1], [0], [0], [1], [0, 0, 1, 1], [], []>} : vector<8x1024xf32>, vector<1024x32xf32>, vector<8x32xf32> -> vector<8x32xf32>
    %c0_38 = arith.constant 0 : index
    %c0_39 = arith.constant 0 : index
    %49 = vector.load %arg10[%c0_38, %c0_39] : memref<1024x32xf32, #tpu.memory_space<vmem>>, vector<1024x32xf32>
    %cst_40 = arith.constant dense<0.000000e+00> : vector<8x32xf32>
    %50 = tpu.matmul %46, %49, %cst_40 {dimension_numbers = #tpu.dot_dimension_numbers<[1], [0], [0], [1], [0, 0, 1, 1], [], []>} : vector<8x1024xf32>, vector<1024x32xf32>, vector<8x32xf32> -> vector<8x32xf32>
    %cst_41 = arith.constant dense<0.000000e+00> : vector<8x32xf32>
    %51 = tpu.matmul %1, %48, %cst_41 {dimension_numbers = #tpu.dot_dimension_numbers<[1], [0], [0], [1], [0, 0, 1, 1], [], []>} : vector<8x8xf32>, vector<8x32xf32>, vector<8x32xf32> -> vector<8x32xf32>
    %cst_42 = arith.constant 1.562500e-02 : f32
    %52 = vector.broadcast %cst_42 : f32 to vector<8x32xf32>
    %53 = arith.mulf %51, %52 : vector<8x32xf32>
    %cst_43 = arith.constant dense<0.000000e+00> : vector<8x32xf32>
    %54 = tpu.matmul %1, %50, %cst_43 {dimension_numbers = #tpu.dot_dimension_numbers<[1], [0], [0], [1], [0, 0, 1, 1], [], []>} : vector<8x8xf32>, vector<8x32xf32>, vector<8x32xf32> -> vector<8x32xf32>
    %cst_44 = arith.constant 1.562500e-02 : f32
    %55 = vector.broadcast %cst_44 : f32 to vector<8x32xf32>
    %56 = arith.mulf %54, %55 : vector<8x32xf32>
    %cst_45 = arith.constant 9.99999974E-6 : f32
    %57 = vector.broadcast %cst_45 : f32 to vector<8x32xf32>
    %58 = arith.addf %57, %56 : vector<8x32xf32>
    %59 = arith.mulf %53, %53 : vector<8x32xf32>
    %60 = arith.subf %58, %59 : vector<8x32xf32>
    %61 = math.rsqrt %60 : vector<8x32xf32>
    %c0_46 = arith.constant 0 : index
    %c0_47 = arith.constant 0 : index
    %62 = vector.load %arg12[%c0_46, %c0_47] : memref<1x32xf32, #tpu.memory_space<vmem>>, vector<1x32xf32>
    %63 = vector.broadcast %62 : vector<1x32xf32> to vector<8x32xf32>
    %64 = arith.mulf %63, %61 : vector<8x32xf32>
    %c0_48 = arith.constant 0 : index
    %c0_49 = arith.constant 0 : index
    %65 = vector.load %arg13[%c0_48, %c0_49] : memref<1x32xf32, #tpu.memory_space<vmem>>, vector<1x32xf32>
    %66 = arith.mulf %53, %64 : vector<8x32xf32>
    %67 = vector.broadcast %65 : vector<1x32xf32> to vector<8x32xf32>
    %68 = arith.subf %67, %66 : vector<8x32xf32>
    %c0_50 = arith.constant 0 : index
    %c0_51 = arith.constant 0 : index
    %69 = vector.load %arg11[%c0_50, %c0_51] : memref<32x1024xf32, #tpu.memory_space<vmem>>, vector<32x1024xf32>
    %cst_52 = arith.constant dense<0.000000e+00> : vector<8x1024xf32>
    %70 = tpu.matmul %64, %69, %cst_52 {dimension_numbers = #tpu.dot_dimension_numbers<[1], [0], [0], [1], [0, 0, 1, 1], [], []>} : vector<8x32xf32>, vector<32x1024xf32>, vector<8x1024xf32> -> vector<8x1024xf32>
    %c0_53 = arith.constant 0 : index
    %c0_54 = arith.constant 0 : index
    %71 = vector.load %arg11[%c0_53, %c0_54] : memref<32x1024xf32, #tpu.memory_space<vmem>>, vector<32x1024xf32>
    %cst_55 = arith.constant dense<0.000000e+00> : vector<8x1024xf32>
    %72 = tpu.matmul %68, %71, %cst_55 {dimension_numbers = #tpu.dot_dimension_numbers<[1], [0], [0], [1], [0, 0, 1, 1], [], []>} : vector<8x32xf32>, vector<32x1024xf32>, vector<8x1024xf32> -> vector<8x1024xf32>
    %73 = arith.mulf %45, %70 : vector<8x1024xf32>
    %74 = arith.addf %73, %72 : vector<8x1024xf32>
    %cst_56 = arith.constant 0.000000e+00 : f32
    %75 = vector.broadcast %cst_56 : f32 to vector<8x1024xf32>
    %76 = arith.cmpf oge, %74, %75 : vector<8x1024xf32>
    %cst_57 = arith.constant 3.000000e-01 : f32
    %77 = vector.broadcast %cst_57 : f32 to vector<8x1024xf32>
    %78 = arith.mulf %77, %74 : vector<8x1024xf32>
    %79 = arith.select %76, %74, %78 : vector<8x1024xi1>, vector<8x1024xf32>
    %c0_58 = arith.constant 0 : index
    %c0_59 = arith.constant 0 : index
    %80 = vector.load %arg14[%c0_58, %c0_59] : memref<1024x1024xf32, #tpu.memory_space<vmem>>, vector<1024x1024xf32>
    %cst_60 = arith.constant dense<0.000000e+00> : vector<8x1024xf32>
    %81 = tpu.matmul %79, %80, %cst_60 {dimension_numbers = #tpu.dot_dimension_numbers<[1], [0], [0], [1], [0, 0, 1, 1], [], []>} : vector<8x1024xf32>, vector<1024x1024xf32>, vector<8x1024xf32> -> vector<8x1024xf32>
    %c0_61 = arith.constant 0 : index
    %c0_62 = arith.constant 0 : index
    %82 = vector.load %arg15[%c0_61, %c0_62] : memref<1x1024xf32, #tpu.memory_space<vmem>>, vector<1x1024xf32>
    %83 = vector.broadcast %82 : vector<1x1024xf32> to vector<8x1024xf32>
    %84 = arith.addf %81, %83 : vector<8x1024xf32>
    %85 = arith.mulf %84, %84 : vector<8x1024xf32>
    %c0_63 = arith.constant 0 : index
    %c0_64 = arith.constant 0 : index
    %86 = vector.load %arg16[%c0_63, %c0_64] : memref<1024x64xf32, #tpu.memory_space<vmem>>, vector<1024x64xf32>
    %cst_65 = arith.constant dense<0.000000e+00> : vector<8x64xf32>
    %87 = tpu.matmul %84, %86, %cst_65 {dimension_numbers = #tpu.dot_dimension_numbers<[1], [0], [0], [1], [0, 0, 1, 1], [], []>} : vector<8x1024xf32>, vector<1024x64xf32>, vector<8x64xf32> -> vector<8x64xf32>
    %c0_66 = arith.constant 0 : index
    %c0_67 = arith.constant 0 : index
    %88 = vector.load %arg16[%c0_66, %c0_67] : memref<1024x64xf32, #tpu.memory_space<vmem>>, vector<1024x64xf32>
    %cst_68 = arith.constant dense<0.000000e+00> : vector<8x64xf32>
    %89 = tpu.matmul %85, %88, %cst_68 {dimension_numbers = #tpu.dot_dimension_numbers<[1], [0], [0], [1], [0, 0, 1, 1], [], []>} : vector<8x1024xf32>, vector<1024x64xf32>, vector<8x64xf32> -> vector<8x64xf32>
    %cst_69 = arith.constant dense<0.000000e+00> : vector<8x64xf32>
    %90 = tpu.matmul %1, %87, %cst_69 {dimension_numbers = #tpu.dot_dimension_numbers<[1], [0], [0], [1], [0, 0, 1, 1], [], []>} : vector<8x8xf32>, vector<8x64xf32>, vector<8x64xf32> -> vector<8x64xf32>
    %cst_70 = arith.constant 3.125000e-02 : f32
    %91 = vector.broadcast %cst_70 : f32 to vector<8x64xf32>
    %92 = arith.mulf %90, %91 : vector<8x64xf32>
    %cst_71 = arith.constant dense<0.000000e+00> : vector<8x64xf32>
    %93 = tpu.matmul %1, %89, %cst_71 {dimension_numbers = #tpu.dot_dimension_numbers<[1], [0], [0], [1], [0, 0, 1, 1], [], []>} : vector<8x8xf32>, vector<8x64xf32>, vector<8x64xf32> -> vector<8x64xf32>
    %cst_72 = arith.constant 3.125000e-02 : f32
    %94 = vector.broadcast %cst_72 : f32 to vector<8x64xf32>
    %95 = arith.mulf %93, %94 : vector<8x64xf32>
    %cst_73 = arith.constant 9.99999974E-6 : f32
    %96 = vector.broadcast %cst_73 : f32 to vector<8x64xf32>
    %97 = arith.addf %96, %95 : vector<8x64xf32>
    %98 = arith.mulf %92, %92 : vector<8x64xf32>
    %99 = arith.subf %97, %98 : vector<8x64xf32>
    %100 = math.rsqrt %99 : vector<8x64xf32>
    %c0_74 = arith.constant 0 : index
    %c0_75 = arith.constant 0 : index
    %101 = vector.load %arg18[%c0_74, %c0_75] : memref<1x64xf32, #tpu.memory_space<vmem>>, vector<1x64xf32>
    %102 = vector.broadcast %101 : vector<1x64xf32> to vector<8x64xf32>
    %103 = arith.mulf %102, %100 : vector<8x64xf32>
    %c0_76 = arith.constant 0 : index
    %c0_77 = arith.constant 0 : index
    %104 = vector.load %arg19[%c0_76, %c0_77] : memref<1x64xf32, #tpu.memory_space<vmem>>, vector<1x64xf32>
    %105 = arith.mulf %92, %103 : vector<8x64xf32>
    %106 = vector.broadcast %104 : vector<1x64xf32> to vector<8x64xf32>
    %107 = arith.subf %106, %105 : vector<8x64xf32>
    %c0_78 = arith.constant 0 : index
    %c0_79 = arith.constant 0 : index
    %108 = vector.load %arg17[%c0_78, %c0_79] : memref<64x1024xf32, #tpu.memory_space<vmem>>, vector<64x1024xf32>
    %cst_80 = arith.constant dense<0.000000e+00> : vector<8x1024xf32>
    %109 = tpu.matmul %103, %108, %cst_80 {dimension_numbers = #tpu.dot_dimension_numbers<[1], [0], [0], [1], [0, 0, 1, 1], [], []>} : vector<8x64xf32>, vector<64x1024xf32>, vector<8x1024xf32> -> vector<8x1024xf32>
    %c0_81 = arith.constant 0 : index
    %c0_82 = arith.constant 0 : index
    %110 = vector.load %arg17[%c0_81, %c0_82] : memref<64x1024xf32, #tpu.memory_space<vmem>>, vector<64x1024xf32>
    %cst_83 = arith.constant dense<0.000000e+00> : vector<8x1024xf32>
    %111 = tpu.matmul %107, %110, %cst_83 {dimension_numbers = #tpu.dot_dimension_numbers<[1], [0], [0], [1], [0, 0, 1, 1], [], []>} : vector<8x64xf32>, vector<64x1024xf32>, vector<8x1024xf32> -> vector<8x1024xf32>
    %112 = arith.mulf %84, %109 : vector<8x1024xf32>
    %113 = arith.addf %112, %111 : vector<8x1024xf32>
    %cst_84 = arith.constant 0.000000e+00 : f32
    %114 = vector.broadcast %cst_84 : f32 to vector<8x1024xf32>
    %115 = arith.cmpf oge, %113, %114 : vector<8x1024xf32>
    %cst_85 = arith.constant 3.000000e-01 : f32
    %116 = vector.broadcast %cst_85 : f32 to vector<8x1024xf32>
    %117 = arith.mulf %116, %113 : vector<8x1024xf32>
    %118 = arith.select %115, %113, %117 : vector<8x1024xi1>, vector<8x1024xf32>
    %c0_86 = arith.constant 0 : index
    %c0_87 = arith.constant 0 : index
    %119 = vector.load %arg20[%c0_86, %c0_87] : memref<1024x128xf32, #tpu.memory_space<vmem>>, vector<1024x128xf32>
    %cst_88 = arith.constant dense<0.000000e+00> : vector<8x128xf32>
    %120 = tpu.matmul %118, %119, %cst_88 {dimension_numbers = #tpu.dot_dimension_numbers<[1], [0], [0], [1], [0, 0, 1, 1], [], []>} : vector<8x1024xf32>, vector<1024x128xf32>, vector<8x128xf32> -> vector<8x128xf32>
    %c0_89 = arith.constant 0 : index
    %c0_90 = arith.constant 0 : index
    %121 = vector.load %arg21[%c0_89, %c0_90] : memref<1x128xf32, #tpu.memory_space<vmem>>, vector<1x128xf32>
    %122 = vector.broadcast %121 : vector<1x128xf32> to vector<8x128xf32>
    %123 = arith.addf %120, %122 : vector<8x128xf32>
    %c0_91 = arith.constant 0 : index
    %c0_92 = arith.constant 0 : index
    %124 = vector.load %arg22[%c0_91, %c0_92] : memref<8x128xf32, #tpu.memory_space<vmem>>, vector<8x128xf32>
    tpu.vector_store %arg22[%c0_91, %c0_92], %123 {strides = array<i32>} : memref<8x128xf32, #tpu.memory_space<vmem>>, vector<8x128xf32>,
    return
  }
}

</mosaic_0001>

<llo_original>
// kernel: eq.39
$region0: #{eq.39}
  %s0 = inlined_call_operand.vmem [shape: s32[64,16], index: 0, kind: input, shape index: {}]
  %s1 = inlined_call_operand.vmem [shape: s32[1024], index: 1, kind: output, shape index: {}]
  %v2 = vld [vmem:[%s0] ss:$8 sm:$0xf]
  %v3 = vld [vmem:[%s0] ss:$8 sm:$0xf0]
  %vm4 = vcmask 1047556
  %v5 = vsel %vm4, %v3, %v2
  %vm6 = vcmask 130048
  %7 = vst.msk [vmem:[%s1] sm:$0xff] %vm6, %v5
  %s8 = scalar_lea.vmem %s0, 7
  %v9 = vld [vmem:[%s8] ss:$8 sm:$0xf]
  %s10 = scalar_lea.vmem %s0, 7
  %v11 = vld [vmem:[%s10] ss:$8 sm:$0xf0]
  %vm12 = vcmask 1047556
  %v13 = vsel %vm12, %v11, %v9
  %14 = vrot.lane.b32.xlu0 %v13, 112
  %v15 = vpop.permute.xlu0 %14
  %vm16 = vcmask 1048448
  %17 = vst.msk [vmem:[%s1] sm:$0xff] %vm16, %v15
  %s18 = scalar_lea.vmem %s0, 6
  %v19 = vld [vmem:[%s18] ss:$8 sm:$0xf]
  %s20 = scalar_lea.vmem %s0, 6
  %v21 = vld [vmem:[%s20] ss:$8 sm:$0xf0]
  %vm22 = vcmask 1047556
  %v23 = vsel %vm22, %v21, %v19
  %24 = vrot.lane.b32.xlu0 %v23, 96
  %v25 = vpop.permute.xlu0 %24
  %vm26 = vcmask 917248
  %27 = vst.msk [vmem:[%s1] sm:$0xff] %vm26, %v25
  %s28 = scalar_lea.vmem %s0, 5
  %v29 = vld [vmem:[%s28] ss:$8 sm:$0xf]
  %s30 = scalar_lea.vmem %s0, 5
  %v31 = vld [vmem:[%s30] ss:$8 sm:$0xf0]
  %vm32 = vcmask 1047556
  %v33 = vsel %vm32, %v31, %v29
  %34 = vrot.lane.b32.xlu0 %v33, 80
  %v35 = vpop.permute.xlu0 %34
  %vm36 = vcmask 786048
  %37 = vst.msk [vmem:[%s1] sm:$0xff] %vm36, %v35
  %s38 = scalar_lea.vmem %s0, 4
  %v39 = vld [vmem:[%s38] ss:$8 sm:$0xf]
  %s40 = scalar_lea.vmem %s0, 4
  %v41 = vld [vmem:[%s40] ss:$8 sm:$0xf0]
  %vm42 = vcmask 1047556
  %v43 = vsel %vm42, %v41, %v39
  %44 = vrot.lane.b32.xlu0 %v43, 64
  %v45 = vpop.permute.xlu0 %44
  %vm46 = vcmask 654848
  %47 = vst.msk [vmem:[%s1] sm:$0xff] %vm46, %v45
  %s48 = scalar_lea.vmem %s0, 3
  %v49 = vld [vmem:[%s48] ss:$8 sm:$0xf]
  %s50 = scalar_lea.vmem %s0, 3
  %v51 = vld [vmem:[%s50] ss:$8 sm:$0xf0]
  %vm52 = vcmask 1047556
  %v53 = vsel %vm52, %v51, %v49
  %54 = vrot.lane.b32.xlu0 %v53, 48
  %v55 = vpop.permute.xlu0 %54
  %vm56 = vcmask 523648
  %57 = vst.msk [vmem:[%s1] sm:$0xff] %vm56, %v55
  %s58 = scalar_lea.vmem %s0, 2
  %v59 = vld [vmem:[%s58] ss:$8 sm:$0xf]
  %s60 = scalar_lea.vmem %s0, 2
  %v61 = vld [vmem:[%s60] ss:$8 sm:$0xf0]
  %vm62 = vcmask 1047556
  %v63 = vsel %vm62, %v61, %v59
  %64 = vrot.lane.b32.xlu0 %v63, 32
  %v65 = vpop.permute.xlu0 %64
  %vm66 = vcmask 392448
  %67 = vst.msk [vmem:[%s1] sm:$0xff] %vm66, %v65
  %s68 = scalar_lea.vmem %s0, 1
  %v69 = vld [vmem:[%s68] ss:$8 sm:$0xf]
  %s70 = scalar_lea.vmem %s0, 1
  %v71 = vld [vmem:[%s70] ss:$8 sm:$0xf0]
  %vm72 = vcmask 1047556
  %v73 = vsel %vm72, %v71, %v69
  %74 = vrot.lane.b32.xlu0 %v73, 16
  %v75 = vpop.permute.xlu0 %74
  %vm76 = vcmask 261248
  %77 = vst.msk [vmem:[%s1] sm:$0xff] %vm76, %v75

// kernel: eq.32
$region0: #{eq.32}
  %s0 = inlined_call_operand.vmem [shape: s32[32,32], index: 0, kind: input, shape index: {}]
  %s1 = inlined_call_operand.vmem [shape: s32[1024], index: 1, kind: output, shape index: {}]
  %v2 = vld [vmem:[%s0] ss:$4 sm:$0xff]
  %vm3 = vcmask 261120
  %4 = vst.msk [vmem:[%s1] sm:$0xff] %vm3, %v2
  %s5 = scalar_lea.vmem %s0, 3
  %v6 = vld [vmem:[%s5] ss:$4 sm:$0xff]
  %7 = vrot.lane.b32.xlu0 %v6, 96
  %v8 = vpop.permute.xlu0 %7
  %vm9 = vcmask 1048320
  %10 = vst.msk [vmem:[%s1] sm:$0xff] %vm9, %v8
  %s11 = scalar_lea.vmem %s0, 2
  %v12 = vld [vmem:[%s11] ss:$4 sm:$0xff]
  %13 = vrot.lane.b32.xlu0 %v12, 64
  %v14 = vpop.permute.xlu0 %13
  %vm15 = vcmask 785920
  %16 = vst.msk [vmem:[%s1] sm:$0xff] %vm15, %v14
  %s17 = scalar_lea.vmem %s0, 1
  %v18 = vld [vmem:[%s17] ss:$4 sm:$0xff]
  %19 = vrot.lane.b32.xlu0 %v18, 32
  %v20 = vpop.permute.xlu0 %19
  %vm21 = vcmask 523520
  %22 = vst.msk [vmem:[%s1] sm:$0xff] %vm21, %v20

// kernel: eq.25
$region0: #{eq.25}
  %s0 = inlined_call_operand.vmem [shape: s32[16,64], index: 0, kind: input, shape index: {}]
  %s1 = inlined_call_operand.vmem [shape: s32[1024], index: 1, kind: output, shape index: {}]
  %v2 = vld [vmem:[%s0] ss:$2 sm:$0xff]
  %vm3 = vcmask 523264
  %4 = vst.msk [vmem:[%s1] sm:$0xff] %vm3, %v2
  %s5 = scalar_lea.vmem %s0, 1
  %v6 = vld [vmem:[%s5] ss:$2 sm:$0xff]
  %7 = vrot.lane.b32.xlu0 %v6, 64
  %v8 = vpop.permute.xlu0 %7
  %vm9 = vcmask 1048064
  %10 = vst.msk [vmem:[%s1] sm:$0xff] %vm9, %v8

// kernel: mul.36
$region0: #{mul.36}
  #allocation0 [shape = 's32[1]{0}', space=sflag, size = 0x4, scoped, tag = 'scoped memory for mul.36']
  %s0 = inlined_call_operand.vmem [shape: f32[1024,1], index: 0, kind: input, shape index: {}]
  %s1 = inlined_call_operand.vmem [shape: f32[1024,1], index: 1, kind: input, shape index: {}]
  %s2 = inlined_call_operand.vmem [shape: f32[1024,1], index: 2, kind: output, shape index: {}]
  %v3 = vld [vmem:[%s0] sm:$0x1]
  %v4 = vld [vmem:[%s1] sm:$0x1]
  %5 = xla_tuple %v3, %v4
  %6 = xla_tuple %5
  %v7 = vmul.f32 %v3, %v4
  %8 = xla_tuple %v7
  %9 = vst [vmem:[%s2] sm:$0x1] %v7
  %s10 = scalar_lea.vmem %s0, 1
  %v11 = vld [vmem:[%s10] sm:$0x1]
  %s12 = scalar_lea.vmem %s1, 1
  %v13 = vld [vmem:[%s12] sm:$0x1]
  %14 = xla_tuple %v11, %v13
  %15 = xla_tuple %14
  %v16 = vmul.f32 %v11, %v13
  %17 = xla_tuple %v16
  %s18 = scalar_lea.vmem %s2, 1
  %19 = vst [vmem:[%s18] sm:$0x1] %v16
  %s20 = scalar_lea.vmem %s0, 2
  %v21 = vld [vmem:[%s20] sm:$0x1]
  %s22 = scalar_lea.vmem %s1, 2
  %v23 = vld [vmem:[%s22] sm:$0x1]
  %24 = xla_tuple %v21, %v23
  %25 = xla_tuple %24
  %v26 = vmul.f32 %v21, %v23
  %27 = xla_tuple %v26
  %s28 = scalar_lea.vmem %s2, 2
  %29 = vst [vmem:[%s28] sm:$0x1] %v26
  %s30 = scalar_lea.vmem %s0, 3
  %v31 = vld [vmem:[%s30] sm:$0x1]
  %s32 = scalar_lea.vmem %s1, 3
  %v33 = vld [vmem:[%s32] sm:$0x1]
  %34 = xla_tuple %v31, %v33
  %35 = xla_tuple %34
  %v36 = vmul.f32 %v31, %v33
  %37 = xla_tuple %v36
  %s38 = scalar_lea.vmem %s2, 3
  %39 = vst [vmem:[%s38] sm:$0x1] %v36
  %s40 = scalar_lea.vmem %s0, 4
  %v41 = vld [vmem:[%s40] sm:$0x1]
  %s42 = scalar_lea.vmem %s1, 4
  %v43 = vld [vmem:[%s42] sm:$0x1]
  %44 = xla_tuple %v41, %v43
  %45 = xla_tuple %44
  %v46 = vmul.f32 %v41, %v43
  %47 = xla_tuple %v46
  %s48 = scalar_lea.vmem %s2, 4
  %49 = vst [vmem:[%s48] sm:$0x1] %v46
  %s50 = scalar_lea.vmem %s0, 5
  %v51 = vld [vmem:[%s50] sm:$0x1]
  %s52 = scalar_lea.vmem %s1, 5
  %v53 = vld [vmem:[%s52] sm:$0x1]
  %54 = xla_tuple %v51, %v53
  %55 = xla_tuple %54
  %v56 = vmul.f32 %v51, %v53
  %57 = xla_tuple %v56
  %s58 = scalar_lea.vmem %s2, 5
  %59 = vst [vmem:[%s58] sm:$0x1] %v56
  %s60 = scalar_lea.vmem %s0, 6
  %v61 = vld [vmem:[%s60] sm:$0x1]
  %s62 = scalar_lea.vmem %s1, 6
  %v63 = vld [vmem:[%s62] sm:$0x1]
  %64 = xla_tuple %v61, %v63
  %65 = xla_tuple %64
  %v66 = vmul.f32 %v61, %v63
  %67 = xla_tuple %v66
  %s68 = scalar_lea.vmem %s2, 6
  %69 = vst [vmem:[%s68] sm:$0x1] %v66
  %s70 = scalar_lea.vmem %s0, 7
  %v71 = vld [vmem:[%s70] sm:$0x1]
  %s72 = scalar_lea.vmem %s1, 7
  %v73 = vld [vmem:[%s72] sm:$0x1]
  %74 = xla_tuple %v71, %v73
  %75 = xla_tuple %74
  %v76 = vmul.f32 %v71, %v73
  %77 = xla_tuple %v76
  %s78 = scalar_lea.vmem %s2, 7
  %79 = vst [vmem:[%s78] sm:$0x1] %v76

// kernel: segan_discriminator_forward.1
$region0: #{segan_discriminator_forward.1}
  #allocation0 [shape = 'u32[]', space=smem, size = 0x4, offset = 0x4, fixed_abs, tag = 'smem constant byte address 0x4 - core index']
  #allocation1 [shape = 'u32[144,128]{1,0:T(1,128)}', space=vmem, size = 0x12000, scoped, tag = 'internal scratch']
  %s0 = inlined_call_operand.vmem [shape: f32[8,256], index: 0, kind: input, shape index: {}]
  %s1 = inlined_call_operand.vmem [shape: f32[8,8], index: 1, kind: input, shape index: {}]
  %s2 = inlined_call_operand.vmem [shape: f32[256,1024], index: 2, kind: input, shape index: {}]
  %s3 = inlined_call_operand.vmem [shape: f32[1,1024], index: 3, kind: input, shape index: {}]
  %s4 = inlined_call_operand.vmem [shape: f32[1024,16], index: 4, kind: input, shape index: {}]
  %s5 = inlined_call_operand.vmem [shape: f32[16,1024], index: 5, kind: input, shape index: {}]
  %s6 = inlined_call_operand.vmem [shape: f32[1,16], index: 6, kind: input, shape index: {}]
  %s7 = inlined_call_operand.vmem [shape: f32[1,16], index: 7, kind: input, shape index: {}]
  %s8 = inlined_call_operand.vmem [shape: f32[1024,1024], index: 8, kind: input, shape index: {}]
  %s9 = inlined_call_operand.vmem [shape: f32[1,1024], index: 9, kind: input, shape index: {}]
  %s10 = inlined_call_operand.vmem [shape: f32[1024,32], index: 10, kind: input, shape index: {}]
  %s11 = inlined_call_operand.vmem [shape: f32[32,1024], index: 11, kind: input, shape index: {}]
  %s12 = inlined_call_operand.vmem [shape: f32[1,32], index: 12, kind: input, shape index: {}]
  %s13 = inlined_call_operand.vmem [shape: f32[1,32], index: 13, kind: input, shape index: {}]
  %s14 = inlined_call_operand.vmem [shape: f32[1024,1024], index: 14, kind: input, shape index: {}]
  %s15 = inlined_call_operand.vmem [shape: f32[1,1024], index: 15, kind: input, shape index: {}]
  %s16 = inlined_call_operand.vmem [shape: f32[1024,64], index: 16, kind: input, shape index: {}]
  %s17 = inlined_call_operand.vmem [shape: f32[64,1024], index: 17, kind: input, shape index: {}]
  %s18 = inlined_call_operand.vmem [shape: f32[1,64], index: 18, kind: input, shape index: {}]
  %s19 = inlined_call_operand.vmem [shape: f32[1,64], index: 19, kind: input, shape index: {}]
  %s20 = inlined_call_operand.vmem [shape: f32[1024,128], index: 20, kind: input, shape index: {}]
  %s21 = inlined_call_operand.vmem [shape: f32[1,128], index: 21, kind: input, shape index: {}]
  %s22 = inlined_call_operand.vmem [shape: f32[8,128], index: 22, kind: output, shape index: {}]
  %s23 = sld [smem:[#allocation0]]
  $region98: #{segan_discriminator_forward.1} parent=0
    _
  %s25 = ssub.s32 1, %s23
  %s26 = scalar_select 0, %s25, %s23
  // Predicated region
  $region2: #{segan_discriminator_forward.1} parent=0 // pred_check
    _
  $region3: #{segan_discriminator_forward.1} parent=0 // pred_check_branch
    %28 = sbr.rel (0) target = $region5
  $region4: #{segan_discriminator_forward.1} parent=0 // pred_region
    _
  $region5: #{segan_discriminator_forward.1} parent=0 // pred_fallthru
    _
  // Predicated region
  $region6: #{segan_discriminator_forward.1} parent=0 // pred_check
    _
  $region7: #{segan_discriminator_forward.1} parent=0 // pred_check_branch
    %30 = sbr.rel (0) target = $region9
  $region8: #{segan_discriminator_forward.1} parent=0 // pred_region
    _
  $region9: #{segan_discriminator_forward.1} parent=0 // pred_fallthru
    _
  // Predicated region
  $region10: #{segan_discriminator_forward.1} parent=0 // pred_check
    _
  $region11: #{segan_discriminator_forward.1} parent=0 // pred_check_branch
    %32 = sbr.rel (0) target = $region13
  $region12: #{segan_discriminator_forward.1} parent=0 // pred_region
    _
  $region13: #{segan_discriminator_forward.1} parent=0 // pred_fallthru
    _
  // Predicated region
  $region14: #{segan_discriminator_forward.1} parent=0 // pred_check
    _
  $region15: #{segan_discriminator_forward.1} parent=0 // pred_check_branch
    %34 = sbr.rel (0) target = $region17
  $region16: #{segan_discriminator_forward.1} parent=0 // pred_region
    _
  $region17: #{segan_discriminator_forward.1} parent=0 // pred_fallthru
    _
  // Predicated region
  $region18: #{segan_discriminator_forward.1} parent=0 // pred_check
    _
  $region19: #{segan_discriminator_forward.1} parent=0 // pred_check_branch
    %36 = sbr.rel (0) target = $region21
  $region20: #{segan_discriminator_forward.1} parent=0 // pred_region
    _
  $region21: #{segan_discriminator_forward.1} parent=0 // pred_fallthru
    _
  // Predicated region
  $region22: #{segan_discriminator_forward.1} parent=0 // pred_check
    _
  $region23: #{segan_discriminator_forward.1} parent=0 // pred_check_branch
    %38 = sbr.rel (0) target = $region25
  $region24: #{segan_discriminator_forward.1} parent=0 // pred_region
    _
  $region25: #{segan_discriminator_forward.1} parent=0 // pred_fallthru
    _
  // Predicated region
  $region26: #{segan_discriminator_forward.1} parent=0 // pred_check
    _
  $region27: #{segan_discriminator_forward.1} parent=0 // pred_check_branch
    %40 = sbr.rel (0) target = $region29
  $region28: #{segan_discriminator_forward.1} parent=0 // pred_region
    _
  $region29: #{segan_discriminator_forward.1} parent=0 // pred_fallthru
    _
  // Predicated region
  $region30: #{segan_discriminator_forward.1} parent=0 // pred_check
    _
  $region31: #{segan_discriminator_forward.1} parent=0 // pred_check_branch
    %42 = sbr.rel (0) target = $region33
  $region32: #{segan_discriminator_forward.1} parent=0 // pred_region
    _
  $region33: #{segan_discriminator_forward.1} parent=0 // pred_fallthru
    _
  // Predicated region
  $region34: #{segan_discriminator_forward.1} parent=0 // pred_check
    _
  $region35: #{segan_discriminator_forward.1} parent=0 // pred_check_branch
    %44 = sbr.rel (0) target = $region37
  $region36: #{segan_discriminator_forward.1} parent=0 // pred_region
    _
  $region37: #{segan_discriminator_forward.1} parent=0 // pred_fallthru
    _
  // Predicated region
  $region38: #{segan_discriminator_forward.1} parent=0 // pred_check
    _
  $region39: #{segan_discriminator_forward.1} parent=0 // pred_check_branch
    %46 = sbr.rel (0) target = $region41
  $region40: #{segan_discriminator_forward.1} parent=0 // pred_region
    _
  $region41: #{segan_discriminator_forward.1} parent=0 // pred_fallthru
    _
  // Predicated region
  $region42: #{segan_discriminator_forward.1} parent=0 // pred_check
    _
  $region43: #{segan_discriminator_forward.1} parent=0 // pred_check_branch
    %48 = sbr.rel (0) target = $region45
  $region44: #{segan_discriminator_forward.1} parent=0 // pred_region
    _
  $region45: #{segan_discriminator_forward.1} parent=0 // pred_fallthru
    _
  // Predicated region
  $region46: #{segan_discriminator_forward.1} parent=0 // pred_check
    _
  $region47: #{segan_discriminator_forward.1} parent=0 // pred_check_branch
    %50 = sbr.rel (0) target = $region49
  $region48: #{segan_discriminator_forward.1} parent=0 // pred_region
    _
  $region49: #{segan_discriminator_forward.1} parent=0 // pred_fallthru
    _
  // Predicated region
  $region50: #{segan_discriminator_forward.1} parent=0 // pred_check
    _
  $region51: #{segan_discriminator_forward.1} parent=0 // pred_check_branch
    %52 = sbr.rel (0) target = $region53
  $region52: #{segan_discriminator_forward.1} parent=0 // pred_region
    _
  $region53: #{segan_discriminator_forward.1} parent=0 // pred_fallthru
    _
  // Predicated region
  $region54: #{segan_discriminator_forward.1} parent=0 // pred_check
    _
  $region55: #{segan_discriminator_forward.1} parent=0 // pred_check_branch
    %54 = sbr.rel (0) target = $region57
  $region56: #{segan_discriminator_forward.1} parent=0 // pred_region
    _
  $region57: #{segan_discriminator_forward.1} parent=0 // pred_fallthru
    _
  // Predicated region
  $region58: #{segan_discriminator_forward.1} parent=0 // pred_check
    _
  $region59: #{segan_discriminator_forward.1} parent=0 // pred_check_branch
    %56 = sbr.rel (0) target = $region61
  $region60: #{segan_discriminator_forward.1} parent=0 // pred_region
    _
  $region61: #{segan_discriminator_forward.1} parent=0 // pred_fallthru
    _
  // Predicated region
  $region62: #{segan_discriminator_forward.1} parent=0 // pred_check
    _
  $region63: #{segan_discriminator_forward.1} parent=0 // pred_check_branch
    %58 = sbr.rel (0) target = $region65
  $region64: #{segan_discriminator_forward.1} parent=0 // pred_region
    _
  $region65: #{segan_discriminator_forward.1} parent=0 // pred_fallthru
    _
  // Predicated region
  $region66: #{segan_discriminator_forward.1} parent=0 // pred_check
    _
  $region67: #{segan_discriminator_forward.1} parent=0 // pred_check_branch
    %60 = sbr.rel (0) target = $region69
  $region68: #{segan_discriminator_forward.1} parent=0 // pred_region
    _
  $region69: #{segan_discriminator_forward.1} parent=0 // pred_fallthru
    _
  // Predicated region
  $region70: #{segan_discriminator_forward.1} parent=0 // pred_check
    _
  $region71: #{segan_discriminator_forward.1} parent=0 // pred_check_branch
    %62 = sbr.rel (0) target = $region73
  $region72: #{segan_discriminator_forward.1} parent=0 // pred_region
    _
  $region73: #{segan_discriminator_forward.1} parent=0 // pred_fallthru
    _
  // Predicated region
  $region74: #{segan_discriminator_forward.1} parent=0 // pred_check
    _
  $region75: #{segan_discriminator_forward.1} parent=0 // pred_check_branch
    %64 = sbr.rel (0) target = $region77
  $region76: #{segan_discriminator_forward.1} parent=0 // pred_region
    _
  $region77: #{segan_discriminator_forward.1} parent=0 // pred_fallthru
    _
  // Predicated region
  $region78: #{segan_discriminator_forward.1} parent=0 // pred_check
    _
  $region79: #{segan_discriminator_forward.1} parent=0 // pred_check_branch
    %66 = sbr.rel (0) target = $region81
  $region80: #{segan_discriminator_forward.1} parent=0 // pred_region
    _
  $region81: #{segan_discriminator_forward.1} parent=0 // pred_fallthru
    _
  // Predicated region
  $region82: #{segan_discriminator_forward.1} parent=0 // pred_check
    _
  $region83: #{segan_discriminator_forward.1} parent=0 // pred_check_branch
    %68 = sbr.rel (0) target = $region85
  $region84: #{segan_discriminator_forward.1} parent=0 // pred_region
    _
  $region85: #{segan_discriminator_forward.1} parent=0 // pred_fallthru
    _
  // Predicated region
  $region86: #{segan_discriminator_forward.1} parent=0 // pred_check
    _
  $region87: #{segan_discriminator_forward.1} parent=0 // pred_check_branch
    %70 = sbr.rel (0) target = $region89
  $region88: #{segan_discriminator_forward.1} parent=0 // pred_region
    _
  $region89: #{segan_discriminator_forward.1} parent=0 // pred_fallthru
    _
  %v71 = vld [vmem:[%s0] sm:$0xff]
  %v72 = vld [vmem:[%s0 + $0x8] sm:$0xff]
  %v73 = vld [vmem:[%s1] sm:$0xff]
  %v74 = vld [vmem:[%s2] sm:$0xff]
  %v75 = vld [vmem:[%s2 + $0x8] sm:$0xff]
  %v76 = vld [vmem:[%s2 + $0x10] sm:$0xff]
  %v77 = vld [vmem:[%s2 + $0x18] sm:$0xff]
  %v78 = vld [vmem:[%s2 + $0x20] sm:$0xff]
  %v79 = vld [vmem:[%s2 + $0x28] sm:$0xff]
  %v80 = vld [vmem:[%s2 + $0x30] sm:$0xff]
  %v81 = vld [vmem:[%s2 + $0x38] sm:$0xff]
  %v82 = vld [vmem:[%s2 + $0x40] sm:$0xff]
  %v83 = vld [vmem:[%s2 + $0x48] sm:$0xff]
  %v84 = vld [vmem:[%s2 + $0x50] sm:$0xff]
  %v85 = vld [vmem:[%s2 + $0x58] sm:$0xff]
  %v86 = vld [vmem:[%s2 + $0x60] sm:$0xff]
  %v87 = vld [vmem:[%s2 + $0x68] sm:$0xff]
  %v88 = vld [vmem:[%s2 + $0x70] sm:$0xff]
  %v89 = vld [vmem:[%s2 + $0x78] sm:$0xff]
  %v90 = vld [vmem:[%s2 + $0x80] sm:$0xff]
  %v91 = vld [vmem:[%s2 + $0x88] sm:$0xff]
  %v92 = vld [vmem:[%s2 + $0x90] sm:$0xff]
  %v93 = vld [vmem:[%s2 + $0x98] sm:$0xff]
  %v94 = vld [vmem:[%s2 + $0xa0] sm:$0xff]
  %v95 = vld [vmem:[%s2 + $0xa8] sm:$0xff]
  %v96 = vld [vmem:[%s2 + $0xb0] sm:$0xff]
  %v97 = vld [vmem:[%s2 + $0xb8] sm:$0xff]
  %v98 = vld [vmem:[%s2 + $0xc0] sm:$0xff]
  %v99 = vld [vmem:[%s2 + $0xc8] sm:$0xff]
  %v100 = vld [vmem:[%s2 + $0xd0] sm:$0xff]
  %v101 = vld [vmem:[%s2 + $0xd8] sm:$0xff]
  %v102 = vld [vmem:[%s2 + $0xe0] sm:$0xff]
  %v103 = vld [vmem:[%s2 + $0xe8] sm:$0xff]
  %v104 = vld [vmem:[%s2 + $0xf0] sm:$0xff]
  %v105 = vld [vmem:[%s2 + $0xf8] sm:$0xff]
  %v106 = vld [vmem:[%s2 + $0x100] sm:$0xff]
  %v107 = vld [vmem:[%s2 + $0x108] sm:$0xff]
  %v108 = vld [vmem:[%s2 + $0x110] sm:$0xff]
  %v109 = vld [vmem:[%s2 + $0x118] sm:$0xff]
  %v110 = vld [vmem:[%s2 + $0x120] sm:$0xff]
  %v111 = vld [vmem:[%s2 + $0x128] sm:$0xff]
  %v112 = vld [vmem:[%s2 + $0x130] sm:$0xff]
  %v113 = vld [vmem:[%s2 + $0x138] sm:$0xff]
  %v114 = vld [vmem:[%s2 + $0x140] sm:$0xff]
  %v115 = vld [vmem:[%s2 + $0x148] sm:$0xff]
  %v116 = vld [vmem:[%s2 + $0x150] sm:$0xff]
  %v117 = vld [vmem:[%s2 + $0x158] sm:$0xff]
  %v118 = vld [vmem:[%s2 + $0x160] sm:$0xff]
  %v119 = vld [vmem:[%s2 + $0x168] sm:$0xff]
  %v120 = vld [vmem:[%s2 + $0x170] sm:$0xff]
  %v121 = vld [vmem:[%s2 + $0x178] sm:$0xff]
  %v122 = vld [vmem:[%s2 + $0x180] sm:$0xff]
  %v123 = vld [vmem:[%s2 + $0x188] sm:$0xff]
  %v124 = vld [vmem:[%s2 + $0x190] sm:$0xff]
  %v125 = vld [vmem:[%s2 + $0x198] sm:$0xff]
  %v126 = vld [vmem:[%s2 + $0x1a0] sm:$0xff]
  %v127 = vld [vmem:[%s2 + $0x1a8] sm:$0xff]
  %v128 = vld [vmem:[%s2 + $0x1b0] sm:$0xff]
  %v129 = vld [vmem:[%s2 + $0x1b8] sm:$0xff]
  %v130 = vld [vmem:[%s2 + $0x1c0] sm:$0xff]
  %v131 = vld [vmem:[%s2 + $0x1c8] sm:$0xff]
  %v132 = vld [vmem:[%s2 + $0x1d0] sm:$0xff]
  %v133 = vld [vmem:[%s2 + $0x1d8] sm:$0xff]
  %v134 = vld [vmem:[%s2 + $0x1e0] sm:$0xff]
  %v135 = vld [vmem:[%s2 + $0x1e8] sm:$0xff]
  %v136 = vld [vmem:[%s2 + $0x1f0] sm:$0xff]
  %v137 = vld [vmem:[%s2 + $0x1f8] sm:$0xff]
  %v138 = vld [vmem:[%s2 + $0x200] sm:$0xff]
  %v139 = vld [vmem:[%s2 + $0x208] sm:$0xff]
  %v140 = vld [vmem:[%s2 + $0x210] sm:$0xff]
  %v141 = vld [vmem:[%s2 + $0x218] sm:$0xff]
  %v142 = vld [vmem:[%s2 + $0x220] sm:$0xff]
  %v143 = vld [vmem:[%s2 + $0x228] sm:$0xff]
  %v144 = vld [vmem:[%s2 + $0x230] sm:$0xff]
  %v145 = vld [vmem:[%s2 + $0x238] sm:$0xff]
  %v146 = vld [vmem:[%s2 + $0x240] sm:$0xff]
  %v147 = vld [vmem:[%s2 + $0x248] sm:$0xff]
  %v148 = vld [vmem:[%s2 + $0x250] sm:$0xff]
  %v149 = vld [vmem:[%s2 + $0x258] sm:$0xff]
  %v150 = vld [vmem:[%s2 + $0x260] sm:$0xff]
  %v151 = vld [vmem:[%s2 + $0x268] sm:$0xff]
  %v152 = vld [vmem:[%s2 + $0x270] sm:$0xff]
  %v153 = vld [vmem:[%s2 + $0x278] sm:$0xff]
  %v154 = vld [vmem:[%s2 + $0x280] sm:$0xff]
  %v155 = vld [vmem:[%s2 + $0x288] sm:$0xff]
  %v156 = vld [vmem:[%s2 + $0x290] sm:$0xff]
  %v157 = vld [vmem:[%s2 + $0x298] sm:$0xff]
  %v158 = vld [vmem:[%s2 + $0x2a0] sm:$0xff]
  %v159 = vld [vmem:[%s2 + $0x2a8] sm:$0xff]
  %v160 = vld [vmem:[%s2 + $0x2b0] sm:$0xff]
  %v161 = vld [vmem:[%s2 + $0x2b8] sm:$0xff]
  %v162 = vld [vmem:[%s2 + $0x2c0] sm:$0xff]
  %v163 = vld [vmem:[%s2 + $0x2c8] sm:$0xff]
  %v164 = vld [vmem:[%s2 + $0x2d0] sm:$0xff]
  %v165 = vld [vmem:[%s2 + $0x2d8] sm:$0xff]
  %v166 = vld [vmem:[%s2 + $0x2e0] sm:$0xff]
  %v167 = vld [vmem:[%s2 + $0x2e8] sm:$0xff]
  %v168 = vld [vmem:[%s2 + $0x2f0] sm:$0xff]
  %v169 = vld [vmem:[%s2 + $0x2f8] sm:$0xff]
  %v170 = vld [vmem:[%s2 + $0x300] sm:$0xff]
  %v171 = vld [vmem:[%s2 + $0x308] sm:$0xff]
  %v172 = vld [vmem:[%s2 + $0x310] sm:$0xff]
  %v173 = vld [vmem:[%s2 + $0x318] sm:$0xff]
  %v174 = vld [vmem:[%s2 + $0x320] sm:$0xff]
  %v175 = vld [vmem:[%s2 + $0x328] sm:$0xff]
  %v176 = vld [vmem:[%s2 + $0x330] sm:$0xff]
  %v177 = vld [vmem:[%s2 + $0x338] sm:$0xff]
  %v178 = vld [vmem:[%s2 + $0x340] sm:$0xff]
  %v179 = vld [vmem:[%s2 + $0x348] sm:$0xff]
  %v180 = vld [vmem:[%s2 + $0x350] sm:$0xff]
  %v181 = vld [vmem:[%s2 + $0x358] sm:$0xff]
  %v182 = vld [vmem:[%s2 + $0x360] sm:$0xff]
  %v183 = vld [vmem:[%s2 + $0x368] sm:$0xff]
  %v184 = vld [vmem:[%s2 + $0x370] sm:$0xff]
  %v185 = vld [vmem:[%s2 + $0x378] sm:$0xff]
  %v186 = vld [vmem:[%s2 + $0x380] sm:$0xff]
  %v187 = vld [vmem:[%s2 + $0x388] sm:$0xff]
  %v188 = vld [vmem:[%s2 + $0x390] sm:$0xff]
  %v189 = vld [vmem:[%s2 + $0x398] sm:$0xff]
  %v190 = vld [vmem:[%s2 + $0x3a0] sm:$0xff]
  %v191 = vld [vmem:[%s2 + $0x3a8] sm:$0xff]
  %v192 = vld [vmem:[%s2 + $0x3b0] sm:$0xff]
  %v193 = vld [vmem:[%s2 + $0x3b8] sm:$0xff]
  %v194 = vld [vmem:[%s2 + $0x3c0] sm:$0xff]
  %v195 = vld [vmem:[%s2 + $0x3c8] sm:$0xff]
  %v196 = vld [vmem:[%s2 + $0x3d0] sm:$0xff]
  %v197 = vld [vmem:[%s2 + $0x3d8] sm:$0xff]
  %v198 = vld [vmem:[%s2 + $0x3e0] sm:$0xff]
  %v199 = vld [vmem:[%s2 + $0x3e8] sm:$0xff]
  %v200 = vld [vmem:[%s2 + $0x3f0] sm:$0xff]
  %v201 = vld [vmem:[%s2 + $0x3f8] sm:$0xff]
  %v202 = vld [vmem:[%s2 + $0x400] sm:$0xff]
  %v203 = vld [vmem:[%s2 + $0x408] sm:$0xff]
  %v204 = vld [vmem:[%s2 + $0x410] sm:$0xff]
  %v205 = vld [vmem:[%s2 + $0x418] sm:$0xff]
  %v206 = vld [vmem:[%s2 + $0x420] sm:$0xff]
  %v207 = vld [vmem:[%s2 + $0x428] sm:$0xff]
  %v208 = vld [vmem:[%s2 + $0x430] sm:$0xff]
  %v209 = vld [vmem:[%s2 + $0x438] sm:$0xff]
  %v210 = vld [vmem:[%s2 + $0x440] sm:$0xff]
  %v211 = vld [vmem:[%s2 + $0x448] sm:$0xff]
  %v212 = vld [vmem:[%s2 + $0x450] sm:$0xff]
  %v213 = vld [vmem:[%s2 + $0x458] sm:$0xff]
  %v214 = vld [vmem:[%s2 + $0x460] sm:$0xff]
  %v215 = vld [vmem:[%s2 + $0x468] sm:$0xff]
  %v216 = vld [vmem:[%s2 + $0x470] sm:$0xff]
  %v217 = vld [vmem:[%s2 + $0x478] sm:$0xff]
  %v218 = vld [vmem:[%s2 + $0x480] sm:$0xff]
  %v219 = vld [vmem:[%s2 + $0x488] sm:$0xff]
  %v220 = vld [vmem:[%s2 + $0x490] sm:$0xff]
  %v221 = vld [vmem:[%s2 + $0x498] sm:$0xff]
  %v222 = vld [vmem:[%s2 + $0x4a0] sm:$0xff]
  %v223 = vld [vmem:[%s2 + $0x4a8] sm:$0xff]
  %v224 = vld [vmem:[%s2 + $0x4b0] sm:$0xff]
  %v225 = vld [vmem:[%s2 + $0x4b8] sm:$0xff]
  %v226 = vld [vmem:[%s2 + $0x4c0] sm:$0xff]
  %v227 = vld [vmem:[%s2 + $0x4c8] sm:$0xff]
  %v228 = vld [vmem:[%s2 + $0x4d0] sm:$0xff]
  %v229 = vld [vmem:[%s2 + $0x4d8] sm:$0xff]
  %v230 = vld [vmem:[%s2 + $0x4e0] sm:$0xff]
  %v231 = vld [vmem:[%s2 + $0x4e8] sm:$0xff]
  %v232 = vld [vmem:[%s2 + $0x4f0] sm:$0xff]
  %v233 = vld [vmem:[%s2 + $0x4f8] sm:$0xff]
  %v234 = vld [vmem:[%s2 + $0x500] sm:$0xff]
  %v235 = vld [vmem:[%s2 + $0x508] sm:$0xff]
  %v236 = vld [vmem:[%s2 + $0x510] sm:$0xff]
  %v237 = vld [vmem:[%s2 + $0x518] sm:$0xff]
  %v238 = vld [vmem:[%s2 + $0x520] sm:$0xff]
  %v239 = vld [vmem:[%s2 + $0x528] sm:$0xff]
  %v240 = vld [vmem:[%s2 + $0x530] sm:$0xff]
  %v241 = vld [vmem:[%s2 + $0x538] sm:$0xff]
  %v242 = vld [vmem:[%s2 + $0x540] sm:$0xff]
  %v243 = vld [vmem:[%s2 + $0x548] sm:$0xff]
  %v244 = vld [vmem:[%s2 + $0x550] sm:$0xff]
  %v245 = vld [vmem:[%s2 + $0x558] sm:$0xff]
  %v246 = vld [vmem:[%s2 + $0x560] sm:$0xff]
  %v247 = vld [vmem:[%s2 + $0x568] sm:$0xff]
  %v248 = vld [vmem:[%s2 + $0x570] sm:$0xff]
  %v249 = vld [vmem:[%s2 + $0x578] sm:$0xff]
  %v250 = vld [vmem:[%s2 + $0x580] sm:$0xff]
  %v251 = vld [vmem:[%s2 + $0x588] sm:$0xff]
  %v252 = vld [vmem:[%s2 + $0x590] sm:$0xff]
  %v253 = vld [vmem:[%s2 + $0x598] sm:$0xff]
  %v254 = vld [vmem:[%s2 + $0x5a0] sm:$0xff]
  %v255 = vld [vmem:[%s2 + $0x5a8] sm:$0xff]
  %v256 = vld [vmem:[%s2 + $0x5b0] sm:$0xff]
  %v257 = vld [vmem:[%s2 + $0x5b8] sm:$0xff]
  %v258 = vld [vmem:[%s2 + $0x5c0] sm:$0xff]
  %v259 = vld [vmem:[%s2 + $0x5c8] sm:$0xff]
  %v260 = vld [vmem:[%s2 + $0x5d0] sm:$0xff]
  %v261 = vld [vmem:[%s2 + $0x5d8] sm:$0xff]
  %v262 = vld [vmem:[%s2 + $0x5e0] sm:$0xff]
  %v263 = vld [vmem:[%s2 + $0x5e8] sm:$0xff]
  %v264 = vld [vmem:[%s2 + $0x5f0] sm:$0xff]
  %v265 = vld [vmem:[%s2 + $0x5f8] sm:$0xff]
  %v266 = vld [vmem:[%s2 + $0x600] sm:$0xff]
  %v267 = vld [vmem:[%s2 + $0x608] sm:$0xff]
  %v268 = vld [vmem:[%s2 + $0x610] sm:$0xff]
  %v269 = vld [vmem:[%s2 + $0x618] sm:$0xff]
  %v270 = vld [vmem:[%s2 + $0x620] sm:$0xff]
  %v271 = vld [vmem:[%s2 + $0x628] sm:$0xff]
  %v272 = vld [vmem:[%s2 + $0x630] sm:$0xff]
  %v273 = vld [vmem:[%s2 + $0x638] sm:$0xff]
  %v274 = vld [vmem:[%s2 + $0x640] sm:$0xff]
  %v275 = vld [vmem:[%s2 + $0x648] sm:$0xff]
  %v276 = vld [vmem:[%s2 + $0x650] sm:$0xff]
  %v277 = vld [vmem:[%s2 + $0x658] sm:$0xff]
  %v278 = vld [vmem:[%s2 + $0x660] sm:$0xff]
  %v279 = vld [vmem:[%s2 + $0x668] sm:$0xff]
  %v280 = vld [vmem:[%s2 + $0x670] sm:$0xff]
  %v281 = vld [vmem:[%s2 + $0x678] sm:$0xff]
  %v282 = vld [vmem:[%s2 + $0x680] sm:$0xff]
  %v283 = vld [vmem:[%s2 + $0x688] sm:$0xff]
  %v284 = vld [vmem:[%s2 + $0x690] sm:$0xff]
  %v285 = vld [vmem:[%s2 + $0x698] sm:$0xff]
  %v286 = vld [vmem:[%s2 + $0x6a0] sm:$0xff]
  %v287 = vld [vmem:[%s2 + $0x6a8] sm:$0xff]
  %v288 = vld [vmem:[%s2 + $0x6b0] sm:$0xff]
  %v289 = vld [vmem:[%s2 + $0x6b8] sm:$0xff]
  %v290 = vld [vmem:[%s2 + $0x6c0] sm:$0xff]
  %v291 = vld [vmem:[%s2 + $0x6c8] sm:$0xff]
  %v292 = vld [vmem:[%s2 + $0x6d0] sm:$0xff]
  %v293 = vld [vmem:[%s2 + $0x6d8] sm:$0xff]
  %v294 = vld [vmem:[%s2 + $0x6e0] sm:$0xff]
  %v295 = vld [vmem:[%s2 + $0x6e8] sm:$0xff]
  %v296 = vld [vmem:[%s2 + $0x6f0] sm:$0xff]
  %v297 = vld [vmem:[%s2 + $0x6f8] sm:$0xff]
  %v298 = vld [vmem:[%s2 + $0x700] sm:$0xff]
  %v299 = vld [vmem:[%s2 + $0x708] sm:$0xff]
  %v300 = vld [vmem:[%s2 + $0x710] sm:$0xff]
  %v301 = vld [vmem:[%s2 + $0x718] sm:$0xff]
  %v302 = vld [vmem:[%s2 + $0x720] sm:$0xff]
  %v303 = vld [vmem:[%s2 + $0x728] sm:$0xff]
  %v304 = vld [vmem:[%s2 + $0x730] sm:$0xff]
  %v305 = vld [vmem:[%s2 + $0x738] sm:$0xff]
  %v306 = vld [vmem:[%s2 + $0x740] sm:$0xff]
  %v307 = vld [vmem:[%s2 + $0x748] sm:$0xff]
  %v308 = vld [vmem:[%s2 + $0x750] sm:$0xff]
  %v309 = vld [vmem:[%s2 + $0x758] sm:$0xff]
  %v310 = vld [vmem:[%s2 + $0x760] sm:$0xff]
  %v311 = vld [vmem:[%s2 + $0x768] sm:$0xff]
  %v312 = vld [vmem:[%s2 + $0x770] sm:$0xff]
  %v313 = vld [vmem:[%s2 + $0x778] sm:$0xff]
  %v314 = vld [vmem:[%s2 + $0x780] sm:$0xff]
  %v315 = vld [vmem:[%s2 + $0x788] sm:$0xff]
  %v316 = vld [vmem:[%s2 + $0x790] sm:$0xff]
  %v317 = vld [vmem:[%s2 + $0x798] sm:$0xff]
  %v318 = vld [vmem:[%s2 + $0x7a0] sm:$0xff]
  %v319 = vld [vmem:[%s2 + $0x7a8] sm:$0xff]
  %v320 = vld [vmem:[%s2 + $0x7b0] sm:$0xff]
  %v321 = vld [vmem:[%s2 + $0x7b8] sm:$0xff]
  %v322 = vld [vmem:[%s2 + $0x7c0] sm:$0xff]
  %v323 = vld [vmem:[%s2 + $0x7c8] sm:$0xff]
  %v324 = vld [vmem:[%s2 + $0x7d0] sm:$0xff]
  %v325 = vld [vmem:[%s2 + $0x7d8] sm:$0xff]
  %v326 = vld [vmem:[%s2 + $0x7e0] sm:$0xff]
  %v327 = vld [vmem:[%s2 + $0x7e8] sm:$0xff]
  %v328 = vld [vmem:[%s2 + $0x7f0] sm:$0xff]
  %v329 = vld [vmem:[%s2 + $0x7f8] sm:$0xff]
  %v330 = vld [vmem:[%s3] sm:$0xff]
  %v332 = vlaneseq
  %v333 = vshrl.u32 %v332, 7
  %v334 = vsub.s32 0, %v333
  %v335 = vrot.slane %v330, %v334
  %v336 = vlaneseq
  %v337 = vshrl.u32 %v336, 7
  %v338 = vsub.s32 1, %v337
  %v339 = vrot.slane %v330, %v338
  %v340 = vlaneseq
  %v341 = vshrl.u32 %v340, 7
  %v342 = vsub.s32 2, %v341
  %v343 = vrot.slane %v330, %v342
  %v344 = vlaneseq
  %v345 = vshrl.u32 %v344, 7
  %v346 = vsub.s32 3, %v345
  %v347 = vrot.slane %v330, %v346
  %v348 = vlaneseq
  %v349 = vshrl.u32 %v348, 7
  %v350 = vsub.s32 4, %v349
  %v351 = vrot.slane %v330, %v350
  %v352 = vlaneseq
  %v353 = vshrl.u32 %v352, 7
  %v354 = vsub.s32 5, %v353
  %v355 = vrot.slane %v330, %v354
  %v356 = vlaneseq
  %v357 = vshrl.u32 %v356, 7
  %v358 = vsub.s32 6, %v357
  %v359 = vrot.slane %v330, %v358
  %v360 = vlaneseq
  %v361 = vshrl.u32 %v360, 7
  %v362 = vsub.s32 7, %v361
  %v363 = vrot.slane %v330, %v362
  %372 = vmatprep.subr.mxu0 %v75
  %373 = vmatpush1.msra.mxu0 %v74
  %374 = vmatprep.subr.mxu0 %v83
  %375 = vmatpush1.msra.mxu0 %v82
  %376 = vmatprep.subr.mxu0 %v91
  %377 = vmatpush1.msra.mxu0 %v90
  %378 = vmatprep.subr.mxu0 %v99
  %379 = vmatpush1.msra.mxu0 %v98
  %380 = vmatprep.subr.mxu0 %v107
  %381 = vmatpush1.msra.mxu0 %v106
  %382 = vmatprep.subr.mxu0 %v115
  %383 = vmatpush1.msra.mxu0 %v114
  %384 = vmatprep.subr.mxu0 %v123
  %385 = vmatpush1.msra.mxu0 %v122
  %386 = vmatprep.subr.mxu0 %v131
  %387 = vmatpush1.msra.mxu0 %v130
  %388 = vmatprep.subr.mxu0 %v139
  %389 = vmatpush1.msra.mxu0 %v138
  %390 = vmatprep.subr.mxu0 %v147
  %391 = vmatpush1.msra.mxu0 %v146
  %392 = vmatprep.subr.mxu0 %v155
  %393 = vmatpush1.msra.mxu0 %v154
  %394 = vmatprep.subr.mxu0 %v163
  %395 = vmatpush1.msra.mxu0 %v162
  %396 = vmatprep.subr.mxu0 %v171
  %397 = vmatpush1.msra.mxu0 %v170
  %398 = vmatprep.subr.mxu0 %v179
  %399 = vmatpush1.msra.mxu0 %v178
  %400 = vmatprep.subr.mxu0 %v187
  %401 = vmatpush1.msra.mxu0 %v186
  %402 = vmatprep.subr.mxu0 %v195
  %403 = vmatpush1.msra.mxu0 %v194
  %404 = vmatprep.subr.mxu0 %v203
  %405 = vmatpush1.msra.mxu0 %v202
  %406 = vmatprep.subr.mxu0 %v211
  %407 = vmatpush1.msra.mxu0 %v210
  %408 = vmatprep.subr.mxu0 %v219
  %409 = vmatpush1.msra.mxu0 %v218
  %410 = vmatprep.subr.mxu0 %v227
  %411 = vmatpush1.msra.mxu0 %v226
  %412 = vmatprep.subr.mxu0 %v235
  %413 = vmatpush1.msra.mxu0 %v234
  %414 = vmatprep.subr.mxu0 %v243
  %415 = vmatpush1.msra.mxu0 %v242
  %416 = vmatprep.subr.mxu0 %v251
  %417 = vmatpush1.msra.mxu0 %v250
  %418 = vmatprep.subr.mxu0 %v259
  %419 = vmatpush1.msra.mxu0 %v258
  %420 = vmatprep.subr.mxu0 %v267
  %421 = vmatpush1.msra.mxu0 %v266
  %422 = vmatprep.subr.mxu0 %v275
  %423 = vmatpush1.msra.mxu0 %v274
  %424 = vmatprep.subr.mxu0 %v283
  %425 = vmatpush1.msra.mxu0 %v282
  %426 = vmatprep.subr.mxu0 %v291
  %427 = vmatpush1.msra.mxu0 %v290
  %428 = vmatprep.subr.mxu0 %v299
  %429 = vmatpush1.msra.mxu0 %v298
  %430 = vmatprep.subr.mxu0 %v307
  %431 = vmatpush1.msra.mxu0 %v306
  %432 = vmatprep.subr.mxu0 %v315
  %433 = vmatpush1.msra.mxu0 %v314
  %434 = vmatprep.subr.mxu0 %v323
  %435 = vmatpush1.msra.mxu0 %v322
  %436 = vmatprep.mubr.f32.mxu0 %v72
  %437 = vmatmul.mubr.f32.gmra.mrb[0].mxu0 %v71
  %v438 = vpop.f32.mrb[0].mxu0
  %v439 = vadd.f32 %v335, %v438
  %v440 = vpop.f32.mrb[0].mxu0
  %v441 = vadd.f32 %v339, %v440
  %442 = vdwg.mxu0
  %443 = vmatprep.subr.mxu0 %v77
  %444 = vmatpush1.msra.mxu0 %v76
  %445 = vmatprep.subr.mxu0 %v85
  %446 = vmatpush1.msra.mxu0 %v84
  %447 = vmatprep.subr.mxu0 %v93
  %448 = vmatpush1.msra.mxu0 %v92
  %449 = vmatprep.subr.mxu0 %v101
  %450 = vmatpush1.msra.mxu0 %v100
  %451 = vmatprep.subr.mxu0 %v109
  %452 = vmatpush1.msra.mxu0 %v108
  %453 = vmatprep.subr.mxu0 %v117
  %454 = vmatpush1.msra.mxu0 %v116
  %455 = vmatprep.subr.mxu0 %v125
  %456 = vmatpush1.msra.mxu0 %v124
  %457 = vmatprep.subr.mxu0 %v133
  %458 = vmatpush1.msra.mxu0 %v132
  %459 = vmatprep.subr.mxu0 %v141
  %460 = vmatpush1.msra.mxu0 %v140
  %461 = vmatprep.subr.mxu0 %v149
  %462 = vmatpush1.msra.mxu0 %v148
  %463 = vmatprep.subr.mxu0 %v157
  %464 = vmatpush1.msra.mxu0 %v156
  %465 = vmatprep.subr.mxu0 %v165
  %466 = vmatpush1.msra.mxu0 %v164
  %467 = vmatprep.subr.mxu0 %v173
  %468 = vmatpush1.msra.mxu0 %v172
  %469 = vmatprep.subr.mxu0 %v181
  %470 = vmatpush1.msra.mxu0 %v180
  %471 = vmatprep.subr.mxu0 %v189
  %472 = vmatpush1.msra.mxu0 %v188
  %473 = vmatprep.subr.mxu0 %v197
  %474 = vmatpush1.msra.mxu0 %v196
  %475 = vmatprep.subr.mxu0 %v205
  %476 = vmatpush1.msra.mxu0 %v204
  %477 = vmatprep.subr.mxu0 %v213
  %478 = vmatpush1.msra.mxu0 %v212
  %479 = vmatprep.subr.mxu0 %v221
  %480 = vmatpush1.msra.mxu0 %v220
  %481 = vmatprep.subr.mxu0 %v229
  %482 = vmatpush1.msra.mxu0 %v228
  %483 = vmatprep.subr.mxu0 %v237
  %484 = vmatpush1.msra.mxu0 %v236
  %485 = vmatprep.subr.mxu0 %v245
  %486 = vmatpush1.msra.mxu0 %v244
  %487 = vmatprep.subr.mxu0 %v253
  %488 = vmatpush1.msra.mxu0 %v252
  %489 = vmatprep.subr.mxu0 %v261
  %490 = vmatpush1.msra.mxu0 %v260
  %491 = vmatprep.subr.mxu0 %v269
  %492 = vmatpush1.msra.mxu0 %v268
  %493 = vmatprep.subr.mxu0 %v277
  %494 = vmatpush1.msra.mxu0 %v276
  %495 = vmatprep.subr.mxu0 %v285
  %496 = vmatpush1.msra.mxu0 %v284
  %497 = vmatprep.subr.mxu0 %v293
  %498 = vmatpush1.msra.mxu0 %v292
  %499 = vmatprep.subr.mxu0 %v301
  %500 = vmatpush1.msra.mxu0 %v300
  %501 = vmatprep.subr.mxu0 %v309
  %502 = vmatpush1.msra.mxu0 %v308
  %503 = vmatprep.subr.mxu0 %v317
  %504 = vmatpush1.msra.mxu0 %v316
  %505 = vmatprep.subr.mxu0 %v325
  %506 = vmatpush1.msra.mxu0 %v324
  %507 = vmatprep.mubr.f32.mxu0 %v72
  %508 = vmatmul.mubr.f32.gmra.mrb[0].mxu0 %v71
  %v509 = vpop.f32.mrb[0].mxu0
  %v510 = vadd.f32 %v343, %v509
  %v511 = vpop.f32.mrb[0].mxu0
  %v512 = vadd.f32 %v347, %v511
  %513 = vdwg.mxu0
  %514 = vmatprep.subr.mxu0 %v79
  %515 = vmatpush1.msra.mxu0 %v78
  %516 = vmatprep.subr.mxu0 %v87
  %517 = vmatpush1.msra.mxu0 %v86
  %518 = vmatprep.subr.mxu0 %v95
  %519 = vmatpush1.msra.mxu0 %v94
  %520 = vmatprep.subr.mxu0 %v103
  %521 = vmatpush1.msra.mxu0 %v102
  %522 = vmatprep.subr.mxu0 %v111
  %523 = vmatpush1.msra.mxu0 %v110
  %524 = vmatprep.subr.mxu0 %v119
  %525 = vmatpush1.msra.mxu0 %v118
  %526 = vmatprep.subr.mxu0 %v127
  %527 = vmatpush1.msra.mxu0 %v126
  %528 = vmatprep.subr.mxu0 %v135
  %529 = vmatpush1.msra.mxu0 %v134
  %530 = vmatprep.subr.mxu0 %v143
  %531 = vmatpush1.msra.mxu0 %v142
  %532 = vmatprep.subr.mxu0 %v151
  %533 = vmatpush1.msra.mxu0 %v150
  %534 = vmatprep.subr.mxu0 %v159
  %535 = vmatpush1.msra.mxu0 %v158
  %536 = vmatprep.subr.mxu0 %v167
  %537 = vmatpush1.msra.mxu0 %v166
  %538 = vmatprep.subr.mxu0 %v175
  %539 = vmatpush1.msra.mxu0 %v174
  %540 = vmatprep.subr.mxu0 %v183
  %541 = vmatpush1.msra.mxu0 %v182
  %542 = vmatprep.subr.mxu0 %v191
  %543 = vmatpush1.msra.mxu0 %v190
  %544 = vmatprep.subr.mxu0 %v199
  %545 = vmatpush1.msra.mxu0 %v198
  %546 = vmatprep.subr.mxu0 %v207
  %547 = vmatpush1.msra.mxu0 %v206
  %548 = vmatprep.subr.mxu0 %v215
  %549 = vmatpush1.msra.mxu0 %v214
  %550 = vmatprep.subr.mxu0 %v223
  %551 = vmatpush1.msra.mxu0 %v222
  %552 = vmatprep.subr.mxu0 %v231
  %553 = vmatpush1.msra.mxu0 %v230
  %554 = vmatprep.subr.mxu0 %v239
  %555 = vmatpush1.msra.mxu0 %v238
  %556 = vmatprep.subr.mxu0 %v247
  %557 = vmatpush1.msra.mxu0 %v246
  %558 = vmatprep.subr.mxu0 %v255
  %559 = vmatpush1.msra.mxu0 %v254
  %560 = vmatprep.subr.mxu0 %v263
  %561 = vmatpush1.msra.mxu0 %v262
  %562 = vmatprep.subr.mxu0 %v271
  %563 = vmatpush1.msra.mxu0 %v270
  %564 = vmatprep.subr.mxu0 %v279
  %565 = vmatpush1.msra.mxu0 %v278
  %566 = vmatprep.subr.mxu0 %v287
  %567 = vmatpush1.msra.mxu0 %v286
  %568 = vmatprep.subr.mxu0 %v295
  %569 = vmatpush1.msra.mxu0 %v294
  %570 = vmatprep.subr.mxu0 %v303
  %571 = vmatpush1.msra.mxu0 %v302
  %572 = vmatprep.subr.mxu0 %v311
  %573 = vmatpush1.msra.mxu0 %v310
  %574 = vmatprep.subr.mxu0 %v319
  %575 = vmatpush1.msra.mxu0 %v318
  %576 = vmatprep.subr.mxu0 %v327
  %577 = vmatpush1.msra.mxu0 %v326
  %578 = vmatprep.mubr.f32.mxu0 %v72
  %579 = vmatmul.mubr.f32.gmra.mrb[0].mxu0 %v71
  %v580 = vpop.f32.mrb[0].mxu0
  %v581 = vadd.f32 %v351, %v580
  %v582 = vpop.f32.mrb[0].mxu0
  %v583 = vadd.f32 %v355, %v582
  %584 = vdwg.mxu0
  %585 = vmatprep.subr.mxu0 %v81
  %586 = vmatpush1.msra.mxu0 %v80
  %587 = vmatprep.subr.mxu0 %v89
  %588 = vmatpush1.msra.mxu0 %v88
  %589 = vmatprep.subr.mxu0 %v97
  %590 = vmatpush1.msra.mxu0 %v96
  %591 = vmatprep.subr.mxu0 %v105
  %592 = vmatpush1.msra.mxu0 %v104
  %593 = vmatprep.subr.mxu0 %v113
  %594 = vmatpush1.msra.mxu0 %v112
  %595 = vmatprep.subr.mxu0 %v121
  %596 = vmatpush1.msra.mxu0 %v120
  %597 = vmatprep.subr.mxu0 %v129
  %598 = vmatpush1.msra.mxu0 %v128
  %599 = vmatprep.subr.mxu0 %v137
  %600 = vmatpush1.msra.mxu0 %v136
  %601 = vmatprep.subr.mxu0 %v145
  %602 = vmatpush1.msra.mxu0 %v144
  %603 = vmatprep.subr.mxu0 %v153
  %604 = vmatpush1.msra.mxu0 %v152
  %605 = vmatprep.subr.mxu0 %v161
  %606 = vmatpush1.msra.mxu0 %v160
  %607 = vmatprep.subr.mxu0 %v169
  %608 = vmatpush1.msra.mxu0 %v168
  %609 = vmatprep.subr.mxu0 %v177
  %610 = vmatpush1.msra.mxu0 %v176
  %611 = vmatprep.subr.mxu0 %v185
  %612 = vmatpush1.msra.mxu0 %v184
  %613 = vmatprep.subr.mxu0 %v193
  %614 = vmatpush1.msra.mxu0 %v192
  %615 = vmatprep.subr.mxu0 %v201
  %616 = vmatpush1.msra.mxu0 %v200
  %617 = vmatprep.subr.mxu0 %v209
  %618 = vmatpush1.msra.mxu0 %v208
  %619 = vmatprep.subr.mxu0 %v217
  %620 = vmatpush1.msra.mxu0 %v216
  %621 = vmatprep.subr.mxu0 %v225
  %622 = vmatpush1.msra.mxu0 %v224
  %623 = vmatprep.subr.mxu0 %v233
  %624 = vmatpush1.msra.mxu0 %v232
  %625 = vmatprep.subr.mxu0 %v241
  %626 = vmatpush1.msra.mxu0 %v240
  %627 = vmatprep.subr.mxu0 %v249
  %628 = vmatpush1.msra.mxu0 %v248
  %629 = vmatprep.subr.mxu0 %v257
  %630 = vmatpush1.msra.mxu0 %v256
  %631 = vmatprep.subr.mxu0 %v265
  %632 = vmatpush1.msra.mxu0 %v264
  %633 = vmatprep.subr.mxu0 %v273
  %634 = vmatpush1.msra.mxu0 %v272
  %635 = vmatprep.subr.mxu0 %v281
  %636 = vmatpush1.msra.mxu0 %v280
  %637 = vmatprep.subr.mxu0 %v289
  %638 = vmatpush1.msra.mxu0 %v288
  %639 = vmatprep.subr.mxu0 %v297
  %640 = vmatpush1.msra.mxu0 %v296
  %641 = vmatprep.subr.mxu0 %v305
  %642 = vmatpush1.msra.mxu0 %v304
  %643 = vmatprep.subr.mxu0 %v313
  %644 = vmatpush1.msra.mxu0 %v312
  %645 = vmatprep.subr.mxu0 %v321
  %646 = vmatpush1.msra.mxu0 %v320
  %647 = vmatprep.subr.mxu0 %v329
  %648 = vmatpush1.msra.mxu0 %v328
  %649 = vmatprep.mubr.f32.mxu0 %v72
  %650 = vmatmul.mubr.f32.gmra.mrb[0].mxu0 %v71
  %v651 = vpop.f32.mrb[0].mxu0
  %v652 = vadd.f32 %v359, %v651
  %v653 = vpop.f32.mrb[0].mxu0
  %v654 = vadd.f32 %v363, %v653
  %655 = vdwg.mxu0
  %v656 = vmul.f32 %v439, %v439
  %v657 = vmul.f32 %v441, %v441
  %v658 = vmul.f32 %v510, %v510
  %v659 = vmul.f32 %v512, %v512
  %v660 = vmul.f32 %v581, %v581
  %v661 = vmul.f32 %v583, %v583
  %v662 = vmul.f32 %v652, %v652
  %v663 = vmul.f32 %v654, %v654
  %v664 = vld [vmem:[%s4] sm:$0xff]
  %v665 = vld [vmem:[%s4 + $0x8] sm:$0xff]
  %v666 = vld [vmem:[%s4 + $0x10] sm:$0xff]
  %v667 = vld [vmem:[%s4 + $0x18] sm:$0xff]
  %v668 = vld [vmem:[%s4 + $0x20] sm:$0xff]
  %v669 = vld [vmem:[%s4 + $0x28] sm:$0xff]
  %v670 = vld [vmem:[%s4 + $0x30] sm:$0xff]
  %v671 = vld [vmem:[%s4 + $0x38] sm:$0xff]
  %v672 = vld [vmem:[%s4 + $0x40] sm:$0xff]
  %v673 = vld [vmem:[%s4 + $0x48] sm:$0xff]
  %v674 = vld [vmem:[%s4 + $0x50] sm:$0xff]
  %v675 = vld [vmem:[%s4 + $0x58] sm:$0xff]
  %v676 = vld [vmem:[%s4 + $0x60] sm:$0xff]
  %v677 = vld [vmem:[%s4 + $0x68] sm:$0xff]
  %v678 = vld [vmem:[%s4 + $0x70] sm:$0xff]
  %v679 = vld [vmem:[%s4 + $0x78] sm:$0xff]
  %v680 = vld [vmem:[%s4 + $0x80] sm:$0xff]
  %v681 = vld [vmem:[%s4 + $0x88] sm:$0xff]
  %v682 = vld [vmem:[%s4 + $0x90] sm:$0xff]
  %v683 = vld [vmem:[%s4 + $0x98] sm:$0xff]
  %v684 = vld [vmem:[%s4 + $0xa0] sm:$0xff]
  %v685 = vld [vmem:[%s4 + $0xa8] sm:$0xff]
  %v686 = vld [vmem:[%s4 + $0xb0] sm:$0xff]
  %v687 = vld [vmem:[%s4 + $0xb8] sm:$0xff]
  %v688 = vld [vmem:[%s4 + $0xc0] sm:$0xff]
  %v689 = vld [vmem:[%s4 + $0xc8] sm:$0xff]
  %v690 = vld [vmem:[%s4 + $0xd0] sm:$0xff]
  %v691 = vld [vmem:[%s4 + $0xd8] sm:$0xff]
  %v692 = vld [vmem:[%s4 + $0xe0] sm:$0xff]
  %v693 = vld [vmem:[%s4 + $0xe8] sm:$0xff]
  %v694 = vld [vmem:[%s4 + $0xf0] sm:$0xff]
  %v695 = vld [vmem:[%s4 + $0xf8] sm:$0xff]
  %v696 = vld [vmem:[%s4 + $0x100] sm:$0xff]
  %v697 = vld [vmem:[%s4 + $0x108] sm:$0xff]
  %v698 = vld [vmem:[%s4 + $0x110] sm:$0xff]
  %v699 = vld [vmem:[%s4 + $0x118] sm:$0xff]
  %v700 = vld [vmem:[%s4 + $0x120] sm:$0xff]
  %v701 = vld [vmem:[%s4 + $0x128] sm:$0xff]
  %v702 = vld [vmem:[%s4 + $0x130] sm:$0xff]
  %v703 = vld [vmem:[%s4 + $0x138] sm:$0xff]
  %v704 = vld [vmem:[%s4 + $0x140] sm:$0xff]
  %v705 = vld [vmem:[%s4 + $0x148] sm:$0xff]
  %v706 = vld [vmem:[%s4 + $0x150] sm:$0xff]
  %v707 = vld [vmem:[%s4 + $0x158] sm:$0xff]
  %v708 = vld [vmem:[%s4 + $0x160] sm:$0xff]
  %v709 = vld [vmem:[%s4 + $0x168] sm:$0xff]
  %v710 = vld [vmem:[%s4 + $0x170] sm:$0xff]
  %v711 = vld [vmem:[%s4 + $0x178] sm:$0xff]
  %v712 = vld [vmem:[%s4 + $0x180] sm:$0xff]
  %v713 = vld [vmem:[%s4 + $0x188] sm:$0xff]
  %v714 = vld [vmem:[%s4 + $0x190] sm:$0xff]
  %v715 = vld [vmem:[%s4 + $0x198] sm:$0xff]
  %v716 = vld [vmem:[%s4 + $0x1a0] sm:$0xff]
  %v717 = vld [vmem:[%s4 + $0x1a8] sm:$0xff]
  %v718 = vld [vmem:[%s4 + $0x1b0] sm:$0xff]
  %v719 = vld [vmem:[%s4 + $0x1b8] sm:$0xff]
  %v720 = vld [vmem:[%s4 + $0x1c0] sm:$0xff]
  %v721 = vld [vmem:[%s4 + $0x1c8] sm:$0xff]
  %v722 = vld [vmem:[%s4 + $0x1d0] sm:$0xff]
  %v723 = vld [vmem:[%s4 + $0x1d8] sm:$0xff]
  %v724 = vld [vmem:[%s4 + $0x1e0] sm:$0xff]
  %v725 = vld [vmem:[%s4 + $0x1e8] sm:$0xff]
  %v726 = vld [vmem:[%s4 + $0x1f0] sm:$0xff]
  %v727 = vld [vmem:[%s4 + $0x1f8] sm:$0xff]
  %v728 = vld [vmem:[%s4 + $0x200] sm:$0xff]
  %v729 = vld [vmem:[%s4 + $0x208] sm:$0xff]
  %v730 = vld [vmem:[%s4 + $0x210] sm:$0xff]
  %v731 = vld [vmem:[%s4 + $0x218] sm:$0xff]
  %v732 = vld [vmem:[%s4 + $0x220] sm:$0xff]
  %v733 = vld [vmem:[%s4 + $0x228] sm:$0xff]
  %v734 = vld [vmem:[%s4 + $0x230] sm:$0xff]
  %v735 = vld [vmem:[%s4 + $0x238] sm:$0xff]
  %v736 = vld [vmem:[%s4 + $0x240] sm:$0xff]
  %v737 = vld [vmem:[%s4 + $0x248] sm:$0xff]
  %v738 = vld [vmem:[%s4 + $0x250] sm:$0xff]
  %v739 = vld [vmem:[%s4 + $0x258] sm:$0xff]
  %v740 = vld [vmem:[%s4 + $0x260] sm:$0xff]
  %v741 = vld [vmem:[%s4 + $0x268] sm:$0xff]
  %v742 = vld [vmem:[%s4 + $0x270] sm:$0xff]
  %v743 = vld [vmem:[%s4 + $0x278] sm:$0xff]
  %v744 = vld [vmem:[%s4 + $0x280] sm:$0xff]
  %v745 = vld [vmem:[%s4 + $0x288] sm:$0xff]
  %v746 = vld [vmem:[%s4 + $0x290] sm:$0xff]
  %v747 = vld [vmem:[%s4 + $0x298] sm:$0xff]
  %v748 = vld [vmem:[%s4 + $0x2a0] sm:$0xff]
  %v749 = vld [vmem:[%s4 + $0x2a8] sm:$0xff]
  %v750 = vld [vmem:[%s4 + $0x2b0] sm:$0xff]
  %v751 = vld [vmem:[%s4 + $0x2b8] sm:$0xff]
  %v752 = vld [vmem:[%s4 + $0x2c0] sm:$0xff]
  %v753 = vld [vmem:[%s4 + $0x2c8] sm:$0xff]
  %v754 = vld [vmem:[%s4 + $0x2d0] sm:$0xff]
  %v755 = vld [vmem:[%s4 + $0x2d8] sm:$0xff]
  %v756 = vld [vmem:[%s4 + $0x2e0] sm:$0xff]
  %v757 = vld [vmem:[%s4 + $0x2e8] sm:$0xff]
  %v758 = vld [vmem:[%s4 + $0x2f0] sm:$0xff]
  %v759 = vld [vmem:[%s4 + $0x2f8] sm:$0xff]
  %v760 = vld [vmem:[%s4 + $0x300] sm:$0xff]
  %v761 = vld [vmem:[%s4 + $0x308] sm:$0xff]
  %v762 = vld [vmem:[%s4 + $0x310] sm:$0xff]
  %v763 = vld [vmem:[%s4 + $0x318] sm:$0xff]
  %v764 = vld [vmem:[%s4 + $0x320] sm:$0xff]
  %v765 = vld [vmem:[%s4 + $0x328] sm:$0xff]
  %v766 = vld [vmem:[%s4 + $0x330] sm:$0xff]
  %v767 = vld [vmem:[%s4 + $0x338] sm:$0xff]
  %v768 = vld [vmem:[%s4 + $0x340] sm:$0xff]
  %v769 = vld [vmem:[%s4 + $0x348] sm:$0xff]
  %v770 = vld [vmem:[%s4 + $0x350] sm:$0xff]
  %v771 = vld [vmem:[%s4 + $0x358] sm:$0xff]
  %v772 = vld [vmem:[%s4 + $0x360] sm:$0xff]
  %v773 = vld [vmem:[%s4 + $0x368] sm:$0xff]
  %v774 = vld [vmem:[%s4 + $0x370] sm:$0xff]
  %v775 = vld [vmem:[%s4 + $0x378] sm:$0xff]
  %v776 = vld [vmem:[%s4 + $0x380] sm:$0xff]
  %v777 = vld [vmem:[%s4 + $0x388] sm:$0xff]
  %v778 = vld [vmem:[%s4 + $0x390] sm:$0xff]
  %v779 = vld [vmem:[%s4 + $0x398] sm:$0xff]
  %v780 = vld [vmem:[%s4 + $0x3a0] sm:$0xff]
  %v781 = vld [vmem:[%s4 + $0x3a8] sm:$0xff]
  %v782 = vld [vmem:[%s4 + $0x3b0] sm:$0xff]
  %v783 = vld [vmem:[%s4 + $0x3b8] sm:$0xff]
  %v784 = vld [vmem:[%s4 + $0x3c0] sm:$0xff]
  %v785 = vld [vmem:[%s4 + $0x3c8] sm:$0xff]
  %v786 = vld [vmem:[%s4 + $0x3d0] sm:$0xff]
  %v787 = vld [vmem:[%s4 + $0x3d8] sm:$0xff]
  %v788 = vld [vmem:[%s4 + $0x3e0] sm:$0xff]
  %v789 = vld [vmem:[%s4 + $0x3e8] sm:$0xff]
  %v790 = vld [vmem:[%s4 + $0x3f0] sm:$0xff]
  %v791 = vld [vmem:[%s4 + $0x3f8] sm:$0xff]
  %792 = vmatprep.subr.mxu0 0.0
  %793 = vmatpush1.msra.mxu0 %v664
  %794 = vmatprep.subr.mxu0 0.0
  %795 = vmatpush1.msra.mxu0 %v665
  %796 = vmatprep.subr.mxu0 0.0
  %797 = vmatpush1.msra.mxu0 %v666
  %798 = vmatprep.subr.mxu0 0.0
  %799 = vmatpush1.msra.mxu0 %v667
  %800 = vmatprep.subr.mxu0 0.0
  %801 = vmatpush1.msra.mxu0 %v668
  %802 = vmatprep.subr.mxu0 0.0
  %803 = vmatpush1.msra.mxu0 %v669
  %804 = vmatprep.subr.mxu0 0.0
  %805 = vmatpush1.msra.mxu0 %v670
  %806 = vmatprep.subr.mxu0 0.0
  %807 = vmatpush1.msra.mxu0 %v671
  %808 = vmatprep.subr.mxu0 0.0
  %809 = vmatpush1.msra.mxu0 %v672
  %810 = vmatprep.subr.mxu0 0.0
  %811 = vmatpush1.msra.mxu0 %v673
  %812 = vmatprep.subr.mxu0 0.0
  %813 = vmatpush1.msra.mxu0 %v674
  %814 = vmatprep.subr.mxu0 0.0
  %815 = vmatpush1.msra.mxu0 %v675
  %816 = vmatprep.subr.mxu0 0.0
  %817 = vmatpush1.msra.mxu0 %v676
  %818 = vmatprep.subr.mxu0 0.0
  %819 = vmatpush1.msra.mxu0 %v677
  %820 = vmatprep.subr.mxu0 0.0
  %821 = vmatpush1.msra.mxu0 %v678
  %822 = vmatprep.subr.mxu0 0.0
  %823 = vmatpush1.msra.mxu0 %v679
  %824 = vmatprep.subr.mxu0 0.0
  %825 = vmatpush1.msra.mxu0 %v680
  %826 = vmatprep.subr.mxu0 0.0
  %827 = vmatpush1.msra.mxu0 %v681
  %828 = vmatprep.subr.mxu0 0.0
  %829 = vmatpush1.msra.mxu0 %v682
  %830 = vmatprep.subr.mxu0 0.0
  %831 = vmatpush1.msra.mxu0 %v683
  %832 = vmatprep.subr.mxu0 0.0
  %833 = vmatpush1.msra.mxu0 %v684
  %834 = vmatprep.subr.mxu0 0.0
  %835 = vmatpush1.msra.mxu0 %v685
  %836 = vmatprep.subr.mxu0 0.0
  %837 = vmatpush1.msra.mxu0 %v686
  %838 = vmatprep.subr.mxu0 0.0
  %839 = vmatpush1.msra.mxu0 %v687
  %840 = vmatprep.subr.mxu0 0.0
  %841 = vmatpush1.msra.mxu0 %v688
  %842 = vmatprep.subr.mxu0 0.0
  %843 = vmatpush1.msra.mxu0 %v689
  %844 = vmatprep.subr.mxu0 0.0
  %845 = vmatpush1.msra.mxu0 %v690
  %846 = vmatprep.subr.mxu0 0.0
  %847 = vmatpush1.msra.mxu0 %v691
  %848 = vmatprep.subr.mxu0 0.0
  %849 = vmatpush1.msra.mxu0 %v692
  %850 = vmatprep.subr.mxu0 0.0
  %851 = vmatpush1.msra.mxu0 %v693
  %852 = vmatprep.subr.mxu0 0.0
  %853 = vmatpush1.msra.mxu0 %v694
  %854 = vmatprep.subr.mxu0 0.0
  %855 = vmatpush1.msra.mxu0 %v695
  %856 = vmatprep.mubr.f32.mxu0 %v441
  %857 = vmatmul.mubr.f32.gmra.mrb[0].mxu0 %v439
  %v858 = vpop.f32.mrb[0].mxu0
  %v859 = vadd.f32 0.0, %v858
  %v860 = vpop.f32.mrb[0].mxu0
  %861 = vdwg.mxu0
  %862 = vmatprep.subr.mxu0 0.0
  %863 = vmatpush1.msra.mxu0 %v696
  %864 = vmatprep.subr.mxu0 0.0
  %865 = vmatpush1.msra.mxu0 %v697
  %866 = vmatprep.subr.mxu0 0.0
  %867 = vmatpush1.msra.mxu0 %v698
  %868 = vmatprep.subr.mxu0 0.0
  %869 = vmatpush1.msra.mxu0 %v699
  %870 = vmatprep.subr.mxu0 0.0
  %871 = vmatpush1.msra.mxu0 %v700
  %872 = vmatprep.subr.mxu0 0.0
  %873 = vmatpush1.msra.mxu0 %v701
  %874 = vmatprep.subr.mxu0 0.0
  %875 = vmatpush1.msra.mxu0 %v702
  %876 = vmatprep.subr.mxu0 0.0
  %877 = vmatpush1.msra.mxu0 %v703
  %878 = vmatprep.subr.mxu0 0.0
  %879 = vmatpush1.msra.mxu0 %v704
  %880 = vmatprep.subr.mxu0 0.0
  %881 = vmatpush1.msra.mxu0 %v705
  %882 = vmatprep.subr.mxu0 0.0
  %883 = vmatpush1.msra.mxu0 %v706
  %884 = vmatprep.subr.mxu0 0.0
  %885 = vmatpush1.msra.mxu0 %v707
  %886 = vmatprep.subr.mxu0 0.0
  %887 = vmatpush1.msra.mxu0 %v708
  %888 = vmatprep.subr.mxu0 0.0
  %889 = vmatpush1.msra.mxu0 %v709
  %890 = vmatprep.subr.mxu0 0.0
  %891 = vmatpush1.msra.mxu0 %v710
  %892 = vmatprep.subr.mxu0 0.0
  %893 = vmatpush1.msra.mxu0 %v711
  %894 = vmatprep.subr.mxu0 0.0
  %895 = vmatpush1.msra.mxu0 %v712
  %896 = vmatprep.subr.mxu0 0.0
  %897 = vmatpush1.msra.mxu0 %v713
  %898 = vmatprep.subr.mxu0 0.0
  %899 = vmatpush1.msra.mxu0 %v714
  %900 = vmatprep.subr.mxu0 0.0
  %901 = vmatpush1.msra.mxu0 %v715
  %902 = vmatprep.subr.mxu0 0.0
  %903 = vmatpush1.msra.mxu0 %v716
  %904 = vmatprep.subr.mxu0 0.0
  %905 = vmatpush1.msra.mxu0 %v717
  %906 = vmatprep.subr.mxu0 0.0
  %907 = vmatpush1.msra.mxu0 %v718
  %908 = vmatprep.subr.mxu0 0.0
  %909 = vmatpush1.msra.mxu0 %v719
  %910 = vmatprep.subr.mxu0 0.0
  %911 = vmatpush1.msra.mxu0 %v720
  %912 = vmatprep.subr.mxu0 0.0
  %913 = vmatpush1.msra.mxu0 %v721
  %914 = vmatprep.subr.mxu0 0.0
  %915 = vmatpush1.msra.mxu0 %v722
  %916 = vmatprep.subr.mxu0 0.0
  %917 = vmatpush1.msra.mxu0 %v723
  %918 = vmatprep.subr.mxu0 0.0
  %919 = vmatpush1.msra.mxu0 %v724
  %920 = vmatprep.subr.mxu0 0.0
  %921 = vmatpush1.msra.mxu0 %v725
  %922 = vmatprep.subr.mxu0 0.0
  %923 = vmatpush1.msra.mxu0 %v726
  %924 = vmatprep.subr.mxu0 0.0
  %925 = vmatpush1.msra.mxu0 %v727
  %926 = vmatprep.mubr.f32.mxu0 %v512
  %927 = vmatmul.mubr.f32.gmra.mrb[0].mxu0 %v510
  %v928 = vpop.f32.mrb[0].mxu0
  %v929 = vadd.f32 %v859, %v928
  %v930 = vpop.f32.mrb[0].mxu0
  %931 = vdwg.mxu0
  %932 = vmatprep.subr.mxu0 0.0
  %933 = vmatpush1.msra.mxu0 %v728
  %934 = vmatprep.subr.mxu0 0.0
  %935 = vmatpush1.msra.mxu0 %v729
  %936 = vmatprep.subr.mxu0 0.0
  %937 = vmatpush1.msra.mxu0 %v730
  %938 = vmatprep.subr.mxu0 0.0
  %939 = vmatpush1.msra.mxu0 %v731
  %940 = vmatprep.subr.mxu0 0.0
  %941 = vmatpush1.msra.mxu0 %v732
  %942 = vmatprep.subr.mxu0 0.0
  %943 = vmatpush1.msra.mxu0 %v733
  %944 = vmatprep.subr.mxu0 0.0
  %945 = vmatpush1.msra.mxu0 %v734
  %946 = vmatprep.subr.mxu0 0.0
  %947 = vmatpush1.msra.mxu0 %v735
  %948 = vmatprep.subr.mxu0 0.0
  %949 = vmatpush1.msra.mxu0 %v736
  %950 = vmatprep.subr.mxu0 0.0
  %951 = vmatpush1.msra.mxu0 %v737
  %952 = vmatprep.subr.mxu0 0.0
  %953 = vmatpush1.msra.mxu0 %v738
  %954 = vmatprep.subr.mxu0 0.0
  %955 = vmatpush1.msra.mxu0 %v739
  %956 = vmatprep.subr.mxu0 0.0
  %957 = vmatpush1.msra.mxu0 %v740
  %958 = vmatprep.subr.mxu0 0.0
  %959 = vmatpush1.msra.mxu0 %v741
  %960 = vmatprep.subr.mxu0 0.0
  %961 = vmatpush1.msra.mxu0 %v742
  %962 = vmatprep.subr.mxu0 0.0
  %963 = vmatpush1.msra.mxu0 %v743
  %964 = vmatprep.subr.mxu0 0.0
  %965 = vmatpush1.msra.mxu0 %v744
  %966 = vmatprep.subr.mxu0 0.0
  %967 = vmatpush1.msra.mxu0 %v745
  %968 = vmatprep.subr.mxu0 0.0
  %969 = vmatpush1.msra.mxu0 %v746
  %970 = vmatprep.subr.mxu0 0.0
  %971 = vmatpush1.msra.mxu0 %v747
  %972 = vmatprep.subr.mxu0 0.0
  %973 = vmatpush1.msra.mxu0 %v748
  %974 = vmatprep.subr.mxu0 0.0
  %975 = vmatpush1.msra.mxu0 %v749
  %976 = vmatprep.subr.mxu0 0.0
  %977 = vmatpush1.msra.mxu0 %v750
  %978 = vmatprep.subr.mxu0 0.0
  %979 = vmatpush1.msra.mxu0 %v751
  %980 = vmatprep.subr.mxu0 0.0
  %981 = vmatpush1.msra.mxu0 %v752
  %982 = vmatprep.subr.mxu0 0.0
  %983 = vmatpush1.msra.mxu0 %v753
  %984 = vmatprep.subr.mxu0 0.0
  %985 = vmatpush1.msra.mxu0 %v754
  %986 = vmatprep.subr.mxu0 0.0
  %987 = vmatpush1.msra.mxu0 %v755
  %988 = vmatprep.subr.mxu0 0.0
  %989 = vmatpush1.msra.mxu0 %v756
  %990 = vmatprep.subr.mxu0 0.0
  %991 = vmatpush1.msra.mxu0 %v757
  %992 = vmatprep.subr.mxu0 0.0
  %993 = vmatpush1.msra.mxu0 %v758
  %994 = vmatprep.subr.mxu0 0.0
  %995 = vmatpush1.msra.mxu0 %v759
  %996 = vmatprep.mubr.f32.mxu0 %v583
  %997 = vmatmul.mubr.f32.gmra.mrb[0].mxu0 %v581
  %v998 = vpop.f32.mrb[0].mxu0
  %v999 = vadd.f32 %v929, %v998
  %v1000 = vpop.f32.mrb[0].mxu0
  %1001 = vdwg.mxu0
  %1002 = vmatprep.subr.mxu0 0.0
  %1003 = vmatpush1.msra.mxu0 %v760
  %1004 = vmatprep.subr.mxu0 0.0
  %1005 = vmatpush1.msra.mxu0 %v761
  %1006 = vmatprep.subr.mxu0 0.0
  %1007 = vmatpush1.msra.mxu0 %v762
  %1008 = vmatprep.subr.mxu0 0.0
  %1009 = vmatpush1.msra.mxu0 %v763
  %1010 = vmatprep.subr.mxu0 0.0
  %1011 = vmatpush1.msra.mxu0 %v764
  %1012 = vmatprep.subr.mxu0 0.0
  %1013 = vmatpush1.msra.mxu0 %v765
  %1014 = vmatprep.subr.mxu0 0.0
  %1015 = vmatpush1.msra.mxu0 %v766
  %1016 = vmatprep.subr.mxu0 0.0
  %1017 = vmatpush1.msra.mxu0 %v767
  %1018 = vmatprep.subr.mxu0 0.0
  %1019 = vmatpush1.msra.mxu0 %v768
  %1020 = vmatprep.subr.mxu0 0.0
  %1021 = vmatpush1.msra.mxu0 %v769
  %1022 = vmatprep.subr.mxu0 0.0
  %1023 = vmatpush1.msra.mxu0 %v770
  %1024 = vmatprep.subr.mxu0 0.0
  %1025 = vmatpush1.msra.mxu0 %v771
  %1026 = vmatprep.subr.mxu0 0.0
  %1027 = vmatpush1.msra.mxu0 %v772
  %1028 = vmatprep.subr.mxu0 0.0
  %1029 = vmatpush1.msra.mxu0 %v773
  %1030 = vmatprep.subr.mxu0 0.0
  %1031 = vmatpush1.msra.mxu0 %v774
  %1032 = vmatprep.subr.mxu0 0.0
  %1033 = vmatpush1.msra.mxu0 %v775
  %1034 = vmatprep.subr.mxu0 0.0
  %1035 = vmatpush1.msra.mxu0 %v776
  %1036 = vmatprep.subr.mxu0 0.0
  %1037 = vmatpush1.msra.mxu0 %v777
  %1038 = vmatprep.subr.mxu0 0.0
  %1039 = vmatpush1.msra.mxu0 %v778
  %1040 = vmatprep.subr.mxu0 0.0
  %1041 = vmatpush1.msra.mxu0 %v779
  %1042 = vmatprep.subr.mxu0 0.0
  %1043 = vmatpush1.msra.mxu0 %v780
  %1044 = vmatprep.subr.mxu0 0.0
  %1045 = vmatpush1.msra.mxu0 %v781
  %1046 = vmatprep.subr.mxu0 0.0
  %1047 = vmatpush1.msra.mxu0 %v782
  %1048 = vmatprep.subr.mxu0 0.0
  %1049 = vmatpush1.msra.mxu0 %v783
  %1050 = vmatprep.subr.mxu0 0.0
  %1051 = vmatpush1.msra.mxu0 %v784
  %1052 = vmatprep.subr.mxu0 0.0
  %1053 = vmatpush1.msra.mxu0 %v785
  %1054 = vmatprep.subr.mxu0 0.0
  %1055 = vmatpush1.msra.mxu0 %v786
  %1056 = vmatprep.subr.mxu0 0.0
  %1057 = vmatpush1.msra.mxu0 %v787
  %1058 = vmatprep.subr.mxu0 0.0
  %1059 = vmatpush1.msra.mxu0 %v788
  %1060 = vmatprep.subr.mxu0 0.0
  %1061 = vmatpush1.msra.mxu0 %v789
  %1062 = vmatprep.subr.mxu0 0.0
  %1063 = vmatpush1.msra.mxu0 %v790
  %1064 = vmatprep.subr.mxu0 0.0
  %1065 = vmatpush1.msra.mxu0 %v791
  %1066 = vmatprep.mubr.f32.mxu0 %v654
  %1067 = vmatmul.mubr.f32.gmra.mrb[0].mxu0 %v652
  %v1068 = vpop.f32.mrb[0].mxu0
  %v1069 = vadd.f32 %v999, %v1068
  %v1070 = vpop.f32.mrb[0].mxu0
  %1071 = vdwg.mxu0
  %1072 = vmatprep.subr.mxu0 0.0
  %1073 = vmatpush1.msra.mxu0 %v664
  %1074 = vmatprep.subr.mxu0 0.0
  %1075 = vmatpush1.msra.mxu0 %v665
  %1076 = vmatprep.subr.mxu0 0.0
  %1077 = vmatpush1.msra.mxu0 %v666
  %1078 = vmatprep.subr.mxu0 0.0
  %1079 = vmatpush1.msra.mxu0 %v667
  %1080 = vmatprep.subr.mxu0 0.0
  %1081 = vmatpush1.msra.mxu0 %v668
  %1082 = vmatprep.subr.mxu0 0.0
  %1083 = vmatpush1.msra.mxu0 %v669
  %1084 = vmatprep.subr.mxu0 0.0
  %1085 = vmatpush1.msra.mxu0 %v670
  %1086 = vmatprep.subr.mxu0 0.0
  %1087 = vmatpush1.msra.mxu0 %v671
  %1088 = vmatprep.subr.mxu0 0.0
  %1089 = vmatpush1.msra.mxu0 %v672
  %1090 = vmatprep.subr.mxu0 0.0
  %1091 = vmatpush1.msra.mxu0 %v673
  %1092 = vmatprep.subr.mxu0 0.0
  %1093 = vmatpush1.msra.mxu0 %v674
  %1094 = vmatprep.subr.mxu0 0.0
  %1095 = vmatpush1.msra.mxu0 %v675
  %1096 = vmatprep.subr.mxu0 0.0
  %1097 = vmatpush1.msra.mxu0 %v676
  %1098 = vmatprep.subr.mxu0 0.0
  %1099 = vmatpush1.msra.mxu0 %v677
  %1100 = vmatprep.subr.mxu0 0.0
  %1101 = vmatpush1.msra.mxu0 %v678
  %1102 = vmatprep.subr.mxu0 0.0
  %1103 = vmatpush1.msra.mxu0 %v679
  %1104 = vmatprep.subr.mxu0 0.0
  %1105 = vmatpush1.msra.mxu0 %v680
  %1106 = vmatprep.subr.mxu0 0.0
  %1107 = vmatpush1.msra.mxu0 %v681
  %1108 = vmatprep.subr.mxu0 0.0
  %1109 = vmatpush1.msra.mxu0 %v682
  %1110 = vmatprep.subr.mxu0 0.0
  %1111 = vmatpush1.msra.mxu0 %v683
  %1112 = vmatprep.subr.mxu0 0.0
  %1113 = vmatpush1.msra.mxu0 %v684
  %1114 = vmatprep.subr.mxu0 0.0
  %1115 = vmatpush1.msra.mxu0 %v685
  %1116 = vmatprep.subr.mxu0 0.0
  %1117 = vmatpush1.msra.mxu0 %v686
  %1118 = vmatprep.subr.mxu0 0.0
  %1119 = vmatpush1.msra.mxu0 %v687
  %1120 = vmatprep.subr.mxu0 0.0
  %1121 = vmatpush1.msra.mxu0 %v688
  %1122 = vmatprep.subr.mxu0 0.0
  %1123 = vmatpush1.msra.mxu0 %v689
  %1124 = vmatprep.subr.mxu0 0.0
  %1125 = vmatpush1.msra.mxu0 %v690
  %1126 = vmatprep.subr.mxu0 0.0
  %1127 = vmatpush1.msra.mxu0 %v691
  %1128 = vmatprep.subr.mxu0 0.0
  %1129 = vmatpush1.msra.mxu0 %v692
  %1130 = vmatprep.subr.mxu0 0.0
  %1131 = vmatpush1.msra.mxu0 %v693
  %1132 = vmatprep.subr.mxu0 0.0
  %1133 = vmatpush1.msra.mxu0 %v694
  %1134 = vmatprep.subr.mxu0 0.0
  %1135 = vmatpush1.msra.mxu0 %v695
  %1136 = vmatprep.mubr.f32.mxu0 %v657
  %1137 = vmatmul.mubr.f32.gmra.mrb[0].mxu0 %v656
  %v1138 = vpop.f32.mrb[0].mxu0
  %v1139 = vadd.f32 0.0, %v1138
  %v1140 = vpop.f32.mrb[0].mxu0
  %1141 = vdwg.mxu0
  %1142 = vmatprep.subr.mxu0 0.0
  %1143 = vmatpush1.msra.mxu0 %v696
  %1144 = vmatprep.subr.mxu0 0.0
  %1145 = vmatpush1.msra.mxu0 %v697
  %1146 = vmatprep.subr.mxu0 0.0
  %1147 = vmatpush1.msra.mxu0 %v698
  %1148 = vmatprep.subr.mxu0 0.0
  %1149 = vmatpush1.msra.mxu0 %v699
  %1150 = vmatprep.subr.mxu0 0.0
  %1151 = vmatpush1.msra.mxu0 %v700
  %1152 = vmatprep.subr.mxu0 0.0
  %1153 = vmatpush1.msra.mxu0 %v701
  %1154 = vmatprep.subr.mxu0 0.0
  %1155 = vmatpush1.msra.mxu0 %v702
  %1156 = vmatprep.subr.mxu0 0.0
  %1157 = vmatpush1.msra.mxu0 %v703
  %1158 = vmatprep.subr.mxu0 0.0
  %1159 = vmatpush1.msra.mxu0 %v704
  %1160 = vmatprep.subr.mxu0 0.0
  %1161 = vmatpush1.msra.mxu0 %v705
  %1162 = vmatprep.subr.mxu0 0.0
  %1163 = vmatpush1.msra.mxu0 %v706
  %1164 = vmatprep.subr.mxu0 0.0
  %1165 = vmatpush1.msra.mxu0 %v707
  %1166 = vmatprep.subr.mxu0 0.0
  %1167 = vmatpush1.msra.mxu0 %v708
  %1168 = vmatprep.subr.mxu0 0.0
  %1169 = vmatpush1.msra.mxu0 %v709
  %1170 = vmatprep.subr.mxu0 0.0
  %1171 = vmatpush1.msra.mxu0 %v710
  %1172 = vmatprep.subr.mxu0 0.0
  %1173 = vmatpush1.msra.mxu0 %v711
  %1174 = vmatprep.subr.mxu0 0.0
  %1175 = vmatpush1.msra.mxu0 %v712
  %1176 = vmatprep.subr.mxu0 0.0
  %1177 = vmatpush1.msra.mxu0 %v713
  %1178 = vmatprep.subr.mxu0 0.0
  %1179 = vmatpush1.msra.mxu0 %v714
  %1180 = vmatprep.subr.mxu0 0.0
  %1181 = vmatpush1.msra.mxu0 %v715
  %1182 = vmatprep.subr.mxu0 0.0
  %1183 = vmatpush1.msra.mxu0 %v716
  %1184 = vmatprep.subr.mxu0 0.0
  %1185 = vmatpush1.msra.mxu0 %v717
  %1186 = vmatprep.subr.mxu0 0.0
  %1187 = vmatpush1.msra.mxu0 %v718
  %1188 = vmatprep.subr.mxu0 0.0
  %1189 = vmatpush1.msra.mxu0 %v719
  %1190 = vmatprep.subr.mxu0 0.0
  %1191 = vmatpush1.msra.mxu0 %v720
  %1192 = vmatprep.subr.mxu0 0.0
  %1193 = vmatpush1.msra.mxu0 %v721
  %1194 = vmatprep.subr.mxu0 0.0
  %1195 = vmatpush1.msra.mxu0 %v722
  %1196 = vmatprep.subr.mxu0 0.0
  %1197 = vmatpush1.msra.mxu0 %v723
  %1198 = vmatprep.subr.mxu0 0.0
  %1199 = vmatpush1.msra.mxu0 %v724
  %1200 = vmatprep.subr.mxu0 0.0
  %1201 = vmatpush1.msra.mxu0 %v725
  %1202 = vmatprep.subr.mxu0 0.0
  %1203 = vmatpush1.msra.mxu0 %v726
  %1204 = vmatprep.subr.mxu0 0.0
  %1205 = vmatpush1.msra.mxu0 %v727
  %1206 = vmatprep.mubr.f32.mxu0 %v659
  %1207 = vmatmul.mubr.f32.gmra.mrb[0].mxu0 %v658
  %v1208 = vpop.f32.mrb[0].mxu0
  %v1209 = vadd.f32 %v1139, %v1208
  %v1210 = vpop.f32.mrb[0].mxu0
  %1211 = vdwg.mxu0
  %1212 = vmatprep.subr.mxu0 0.0
  %1213 = vmatpush1.msra.mxu0 %v728
  %1214 = vmatprep.subr.mxu0 0.0
  %1215 = vmatpush1.msra.mxu0 %v729
  %1216 = vmatprep.subr.mxu0 0.0
  %1217 = vmatpush1.msra.mxu0 %v730
  %1218 = vmatprep.subr.mxu0 0.0
  %1219 = vmatpush1.msra.mxu0 %v731
  %1220 = vmatprep.subr.mxu0 0.0
  %1221 = vmatpush1.msra.mxu0 %v732
  %1222 = vmatprep.subr.mxu0 0.0
  %1223 = vmatpush1.msra.mxu0 %v733
  %1224 = vmatprep.subr.mxu0 0.0
  %1225 = vmatpush1.msra.mxu0 %v734
  %1226 = vmatprep.subr.mxu0 0.0
  %1227 = vmatpush1.msra.mxu0 %v735
  %1228 = vmatprep.subr.mxu0 0.0
  %1229 = vmatpush1.msra.mxu0 %v736
  %1230 = vmatprep.subr.mxu0 0.0
  %1231 = vmatpush1.msra.mxu0 %v737
  %1232 = vmatprep.subr.mxu0 0.0
  %1233 = vmatpush1.msra.mxu0 %v738
  %1234 = vmatprep.subr.mxu0 0.0
  %1235 = vmatpush1.msra.mxu0 %v739
  %1236 = vmatprep.subr.mxu0 0.0
  %1237 = vmatpush1.msra.mxu0 %v740
  %1238 = vmatprep.subr.mxu0 0.0
  %1239 = vmatpush1.msra.mxu0 %v741
  %1240 = vmatprep.subr.mxu0 0.0
  %1241 = vmatpush1.msra.mxu0 %v742
  %1242 = vmatprep.subr.mxu0 0.0
  %1243 = vmatpush1.msra.mxu0 %v743
  %1244 = vmatprep.subr.mxu0 0.0
  %1245 = vmatpush1.msra.mxu0 %v744
  %1246 = vmatprep.subr.mxu0 0.0
  %1247 = vmatpush1.msra.mxu0 %v745
  %1248 = vmatprep.subr.mxu0 0.0
  %1249 = vmatpush1.msra.mxu0 %v746
  %1250 = vmatprep.subr.mxu0 0.0
  %1251 = vmatpush1.msra.mxu0 %v747
  %1252 = vmatprep.subr.mxu0 0.0
  %1253 = vmatpush1.msra.mxu0 %v748
  %1254 = vmatprep.subr.mxu0 0.0
  %1255 = vmatpush1.msra.mxu0 %v749
  %1256 = vmatprep.subr.mxu0 0.0
  %1257 = vmatpush1.msra.mxu0 %v750
  %1258 = vmatprep.subr.mxu0 0.0
  %1259 = vmatpush1.msra.mxu0 %v751
  %1260 = vmatprep.subr.mxu0 0.0
  %1261 = vmatpush1.msra.mxu0 %v752
  %1262 = vmatprep.subr.mxu0 0.0
  %1263 = vmatpush1.msra.mxu0 %v753
  %1264 = vmatprep.subr.mxu0 0.0
  %1265 = vmatpush1.msra.mxu0 %v754
  %1266 = vmatprep.subr.mxu0 0.0
  %1267 = vmatpush1.msra.mxu0 %v755
  %1268 = vmatprep.subr.mxu0 0.0
  %1269 = vmatpush1.msra.mxu0 %v756
  %1270 = vmatprep.subr.mxu0 0.0
  %1271 = vmatpush1.msra.mxu0 %v757
  %1272 = vmatprep.subr.mxu0 0.0
  %1273 = vmatpush1.msra.mxu0 %v758
  %1274 = vmatprep.subr.mxu0 0.0
  %1275 = vmatpush1.msra.mxu0 %v759
  %1276 = vmatprep.mubr.f32.mxu0 %v661
  %1277 = vmatmul.mubr.f32.gmra.mrb[0].mxu0 %v660
  %v1278 = vpop.f32.mrb[0].mxu0
  %v1279 = vadd.f32 %v1209, %v1278
  %v1280 = vpop.f32.mrb[0].mxu0
  %1281 = vdwg.mxu0
  %1282 = vmatprep.subr.mxu0 0.0
  %1283 = vmatpush1.msra.mxu0 %v760
  %1284 = vmatprep.subr.mxu0 0.0
  %1285 = vmatpush1.msra.mxu0 %v761
  %1286 = vmatprep.subr.mxu0 0.0
  %1287 = vmatpush1.msra.mxu0 %v762
  %1288 = vmatprep.subr.mxu0 0.0
  %1289 = vmatpush1.msra.mxu0 %v763
  %1290 = vmatprep.subr.mxu0 0.0
  %1291 = vmatpush1.msra.mxu0 %v764
  %1292 = vmatprep.subr.mxu0 0.0
  %1293 = vmatpush1.msra.mxu0 %v765
  %1294 = vmatprep.subr.mxu0 0.0
  %1295 = vmatpush1.msra.mxu0 %v766
  %1296 = vmatprep.subr.mxu0 0.0
  %1297 = vmatpush1.msra.mxu0 %v767
  %1298 = vmatprep.subr.mxu0 0.0
  %1299 = vmatpush1.msra.mxu0 %v768
  %1300 = vmatprep.subr.mxu0 0.0
  %1301 = vmatpush1.msra.mxu0 %v769
  %1302 = vmatprep.subr.mxu0 0.0
  %1303 = vmatpush1.msra.mxu0 %v770
  %1304 = vmatprep.subr.mxu0 0.0
  %1305 = vmatpush1.msra.mxu0 %v771
  %1306 = vmatprep.subr.mxu0 0.0
  %1307 = vmatpush1.msra.mxu0 %v772
  %1308 = vmatprep.subr.mxu0 0.0
  %1309 = vmatpush1.msra.mxu0 %v773
  %1310 = vmatprep.subr.mxu0 0.0
  %1311 = vmatpush1.msra.mxu0 %v774
  %1312 = vmatprep.subr.mxu0 0.0
  %1313 = vmatpush1.msra.mxu0 %v775
  %1314 = vmatprep.subr.mxu0 0.0
  %1315 = vmatpush1.msra.mxu0 %v776
  %1316 = vmatprep.subr.mxu0 0.0
  %1317 = vmatpush1.msra.mxu0 %v777
  %1318 = vmatprep.subr.mxu0 0.0
  %1319 = vmatpush1.msra.mxu0 %v778
  %1320 = vmatprep.subr.mxu0 0.0
  %1321 = vmatpush1.msra.mxu0 %v779
  %1322 = vmatprep.subr.mxu0 0.0
  %1323 = vmatpush1.msra.mxu0 %v780
  %1324 = vmatprep.subr.mxu0 0.0
  %1325 = vmatpush1.msra.mxu0 %v781
  %1326 = vmatprep.subr.mxu0 0.0
  %1327 = vmatpush1.msra.mxu0 %v782
  %1328 = vmatprep.subr.mxu0 0.0
  %1329 = vmatpush1.msra.mxu0 %v783
  %1330 = vmatprep.subr.mxu0 0.0
  %1331 = vmatpush1.msra.mxu0 %v784
  %1332 = vmatprep.subr.mxu0 0.0
  %1333 = vmatpush1.msra.mxu0 %v785
  %1334 = vmatprep.subr.mxu0 0.0
  %1335 = vmatpush1.msra.mxu0 %v786
  %1336 = vmatprep.subr.mxu0 0.0
  %1337 = vmatpush1.msra.mxu0 %v787
  %1338 = vmatprep.subr.mxu0 0.0
  %1339 = vmatpush1.msra.mxu0 %v788
  %1340 = vmatprep.subr.mxu0 0.0
  %1341 = vmatpush1.msra.mxu0 %v789
  %1342 = vmatprep.subr.mxu0 0.0
  %1343 = vmatpush1.msra.mxu0 %v790
  %1344 = vmatprep.subr.mxu0 0.0
  %1345 = vmatpush1.msra.mxu0 %v791
  %1346 = vmatprep.mubr.f32.mxu0 %v663
  %1347 = vmatmul.mubr.f32.gmra.mrb[0].mxu0 %v662
  %v1348 = vpop.f32.mrb[0].mxu0
  %v1349 = vadd.f32 %v1279, %v1348
  %v1350 = vpop.f32.mrb[0].mxu0
  %1351 = vdwg.mxu0
  %vm1352 = vcmask 64512
  %v1354 = vsel %vm1352, %v73, 0
  %1356 = vmatprep.subr.mxu0 0.0
  %1357 = vmatpush1.msra.mxu0 %v1069
  %1358 = vmatprep.subr.mxu0 0.0
  %1359 = vmatpush1.msra.mxu0 0.0
  %1360 = vmatprep.subr.mxu0 0.0
  %1361 = vmatpush1.msra.mxu0 0.0
  %1362 = vmatprep.subr.mxu0 0.0
  %1363 = vmatpush1.msra.mxu0 0.0
  %1364 = vmatprep.subr.mxu0 0.0
  %1365 = vmatpush1.msra.mxu0 0.0
  %1366 = vmatprep.subr.mxu0 0.0
  %1367 = vmatpush1.msra.mxu0 0.0
  %1368 = vmatprep.subr.mxu0 0.0
  %1369 = vmatpush1.msra.mxu0 0.0
  %1370 = vmatprep.subr.mxu0 0.0
  %1371 = vmatpush1.msra.mxu0 0.0
  %1372 = vmatprep.subr.mxu0 0.0
  %1373 = vmatpush1.msra.mxu0 0.0
  %1374 = vmatprep.subr.mxu0 0.0
  %1375 = vmatpush1.msra.mxu0 0.0
  %1376 = vmatprep.subr.mxu0 0.0
  %1377 = vmatpush1.msra.mxu0 0.0
  %1378 = vmatprep.subr.mxu0 0.0
  %1379 = vmatpush1.msra.mxu0 0.0
  %1380 = vmatprep.subr.mxu0 0.0
  %1381 = vmatpush1.msra.mxu0 0.0
  %1382 = vmatprep.subr.mxu0 0.0
  %1383 = vmatpush1.msra.mxu0 0.0
  %1384 = vmatprep.subr.mxu0 0.0
  %1385 = vmatpush1.msra.mxu0 0.0
  %1386 = vmatprep.subr.mxu0 0.0
  %1387 = vmatpush1.msra.mxu0 0.0
  %1388 = vmatprep.subr.mxu0 0.0
  %1389 = vmatpush1.msra.mxu0 0.0
  %1390 = vmatprep.subr.mxu0 0.0
  %1391 = vmatpush1.msra.mxu0 0.0
  %1392 = vmatprep.subr.mxu0 0.0
  %1393 = vmatpush1.msra.mxu0 0.0
  %1394 = vmatprep.subr.mxu0 0.0
  %1395 = vmatpush1.msra.mxu0 0.0
  %1396 = vmatprep.subr.mxu0 0.0
  %1397 = vmatpush1.msra.mxu0 0.0
  %1398 = vmatprep.subr.mxu0 0.0
  %1399 = vmatpush1.msra.mxu0 0.0
  %1400 = vmatprep.subr.mxu0 0.0
  %1401 = vmatpush1.msra.mxu0 0.0
  %1402 = vmatprep.subr.mxu0 0.0
  %1403 = vmatpush1.msra.mxu0 0.0
  %1404 = vmatprep.subr.mxu0 0.0
  %1405 = vmatpush1.msra.mxu0 0.0
  %1406 = vmatprep.subr.mxu0 0.0
  %1407 = vmatpush1.msra.mxu0 0.0
  %1408 = vmatprep.subr.mxu0 0.0
  %1409 = vmatpush1.msra.mxu0 0.0
  %1410 = vmatprep.subr.mxu0 0.0
  %1411 = vmatpush1.msra.mxu0 0.0
  %1412 = vmatprep.subr.mxu0 0.0
  %1413 = vmatpush1.msra.mxu0 0.0
  %1414 = vmatprep.subr.mxu0 0.0
  %1415 = vmatpush1.msra.mxu0 0.0
  %1416 = vmatprep.subr.mxu0 0.0
  %1417 = vmatpush1.msra.mxu0 0.0
  %1418 = vmatprep.subr.mxu0 0.0
  %1419 = vmatpush1.msra.mxu0 0.0
  %1420 = vmatprep.mubr.f32.mxu0 0.0
  %1421 = vmatmul.mubr.f32.gmra.mrb[0].mxu0 %v1354
  %v1422 = vpop.f32.mrb[0].mxu0
  %v1423 = vadd.f32 0.0, %v1422
  %v1424 = vpop.f32.mrb[0].mxu0
  %1425 = vdwg.mxu0
  %v1426 = vmul.f32 %v1423, 0.0078125
  %1427 = vmatprep.subr.mxu0 0.0
  %1428 = vmatpush1.msra.mxu0 %v1349
  %1429 = vmatprep.subr.mxu0 0.0
  %1430 = vmatpush1.msra.mxu0 0.0
  %1431 = vmatprep.subr.mxu0 0.0
  %1432 = vmatpush1.msra.mxu0 0.0
  %1433 = vmatprep.subr.mxu0 0.0
  %1434 = vmatpush1.msra.mxu0 0.0
  %1435 = vmatprep.subr.mxu0 0.0
  %1436 = vmatpush1.msra.mxu0 0.0
  %1437 = vmatprep.subr.mxu0 0.0
  %1438 = vmatpush1.msra.mxu0 0.0
  %1439 = vmatprep.subr.mxu0 0.0
  %1440 = vmatpush1.msra.mxu0 0.0
  %1441 = vmatprep.subr.mxu0 0.0
  %1442 = vmatpush1.msra.mxu0 0.0
  %1443 = vmatprep.subr.mxu0 0.0
  %1444 = vmatpush1.msra.mxu0 0.0
  %1445 = vmatprep.subr.mxu0 0.0
  %1446 = vmatpush1.msra.mxu0 0.0
  %1447 = vmatprep.subr.mxu0 0.0
  %1448 = vmatpush1.msra.mxu0 0.0
  %1449 = vmatprep.subr.mxu0 0.0
  %1450 = vmatpush1.msra.mxu0 0.0
  %1451 = vmatprep.subr.mxu0 0.0
  %1452 = vmatpush1.msra.mxu0 0.0
  %1453 = vmatprep.subr.mxu0 0.0
  %1454 = vmatpush1.msra.mxu0 0.0
  %1455 = vmatprep.subr.mxu0 0.0
  %1456 = vmatpush1.msra.mxu0 0.0
  %1457 = vmatprep.subr.mxu0 0.0
  %1458 = vmatpush1.msra.mxu0 0.0
  %1459 = vmatprep.subr.mxu0 0.0
  %1460 = vmatpush1.msra.mxu0 0.0
  %1461 = vmatprep.subr.mxu0 0.0
  %1462 = vmatpush1.msra.mxu0 0.0
  %1463 = vmatprep.subr.mxu0 0.0
  %1464 = vmatpush1.msra.mxu0 0.0
  %1465 = vmatprep.subr.mxu0 0.0
  %1466 = vmatpush1.msra.mxu0 0.0
  %1467 = vmatprep.subr.mxu0 0.0
  %1468 = vmatpush1.msra.mxu0 0.0
  %1469 = vmatprep.subr.mxu0 0.0
  %1470 = vmatpush1.msra.mxu0 0.0
  %1471 = vmatprep.subr.mxu0 0.0
  %1472 = vmatpush1.msra.mxu0 0.0
  %1473 = vmatprep.subr.mxu0 0.0
  %1474 = vmatpush1.msra.mxu0 0.0
  %1475 = vmatprep.subr.mxu0 0.0
  %1476 = vmatpush1.msra.mxu0 0.0
  %1477 = vmatprep.subr.mxu0 0.0
  %1478 = vmatpush1.msra.mxu0 0.0
  %1479 = vmatprep.subr.mxu0 0.0
  %1480 = vmatpush1.msra.mxu0 0.0
  %1481 = vmatprep.subr.mxu0 0.0
  %1482 = vmatpush1.msra.mxu0 0.0
  %1483 = vmatprep.subr.mxu0 0.0
  %1484 = vmatpush1.msra.mxu0 0.0
  %1485 = vmatprep.subr.mxu0 0.0
  %1486 = vmatpush1.msra.mxu0 0.0
  %1487 = vmatprep.subr.mxu0 0.0
  %1488 = vmatpush1.msra.mxu0 0.0
  %1489 = vmatprep.subr.mxu0 0.0
  %1490 = vmatpush1.msra.mxu0 0.0
  %1491 = vmatprep.mubr.f32.mxu0 0.0
  %1492 = vmatmul.mubr.f32.gmra.mrb[0].mxu0 %v1354
  %v1493 = vpop.f32.mrb[0].mxu0
  %v1494 = vadd.f32 0.0, %v1493
  %v1495 = vpop.f32.mrb[0].mxu0
  %1496 = vdwg.mxu0
  %v1497 = vmul.f32 %v1494, 0.0078125
  %v1498 = vadd.f32 %v1497, 1e-05
  %v1499 = vmul.f32 %v1426, %v1426
  %v1500 = vsub.f32 %v1498, %v1499
  %v1501 = vrsqrt.pop %v1500
  %v1502 = vld [vmem:[%s6] sm:$0x1]
  %v1504 = vlaneseq
  %v1505 = vshrl.u32 %v1504, 7
  %v1506 = vsub.s32 0, %v1505
  %v1507 = vrot.slane %v1502, %v1506
  %v1509 = vmul.f32 %v1507, %v1501
  %v1510 = vld [vmem:[%s7] sm:$0x1]
  %v1511 = vmul.f32 %v1426, %v1509
  %v1513 = vlaneseq
  %v1514 = vshrl.u32 %v1513, 7
  %v1515 = vsub.s32 0, %v1514
  %v1516 = vrot.slane %v1510, %v1515
  %v1518 = vsub.f32 %v1516, %v1511
  %v1519 = vld [vmem:[%s5] sm:$0xff]
  %v1520 = vld [vmem:[%s5 + $0x8] sm:$0xff]
  %v1521 = vld [vmem:[%s5 + $0x10] sm:$0xff]
  %v1522 = vld [vmem:[%s5 + $0x18] sm:$0xff]
  %v1523 = vld [vmem:[%s5 + $0x20] sm:$0xff]
  %v1524 = vld [vmem:[%s5 + $0x28] sm:$0xff]
  %v1525 = vld [vmem:[%s5 + $0x30] sm:$0xff]
  %v1526 = vld [vmem:[%s5 + $0x38] sm:$0xff]
  %v1527 = vld [vmem:[%s5 + $0x40] sm:$0xff]
  %v1528 = vld [vmem:[%s5 + $0x48] sm:$0xff]
  %v1529 = vld [vmem:[%s5 + $0x50] sm:$0xff]
  %v1530 = vld [vmem:[%s5 + $0x58] sm:$0xff]
  %v1531 = vld [vmem:[%s5 + $0x60] sm:$0xff]
  %v1532 = vld [vmem:[%s5 + $0x68] sm:$0xff]
  %v1533 = vld [vmem:[%s5 + $0x70] sm:$0xff]
  %v1534 = vld [vmem:[%s5 + $0x78] sm:$0xff]
  %vm1535 = vcmask 130048
  %v1537 = vsel %vm1535, %v1509, 0
  %1539 = vmatprep.subr.mxu0 %v1520
  %1540 = vmatpush1.msra.mxu0 %v1519
  %1541 = vmatprep.subr.mxu0 %v1528
  %1542 = vmatpush1.msra.mxu0 %v1527
  %1543 = vmatprep.subr.mxu0 0.0
  %1544 = vmatpush1.msra.mxu0 0.0
  %1545 = vmatprep.subr.mxu0 0.0
  %1546 = vmatpush1.msra.mxu0 0.0
  %1547 = vmatprep.subr.mxu0 0.0
  %1548 = vmatpush1.msra.mxu0 0.0
  %1549 = vmatprep.subr.mxu0 0.0
  %1550 = vmatpush1.msra.mxu0 0.0
  %1551 = vmatprep.subr.mxu0 0.0
  %1552 = vmatpush1.msra.mxu0 0.0
  %1553 = vmatprep.subr.mxu0 0.0
  %1554 = vmatpush1.msra.mxu0 0.0
  %1555 = vmatprep.subr.mxu0 0.0
  %1556 = vmatpush1.msra.mxu0 0.0
  %1557 = vmatprep.subr.mxu0 0.0
  %1558 = vmatpush1.msra.mxu0 0.0
  %1559 = vmatprep.subr.mxu0 0.0
  %1560 = vmatpush1.msra.mxu0 0.0
  %1561 = vmatprep.subr.mxu0 0.0
  %1562 = vmatpush1.msra.mxu0 0.0
  %1563 = vmatprep.subr.mxu0 0.0
  %1564 = vmatpush1.msra.mxu0 0.0
  %1565 = vmatprep.subr.mxu0 0.0
  %1566 = vmatpush1.msra.mxu0 0.0
  %1567 = vmatprep.subr.mxu0 0.0
  %1568 = vmatpush1.msra.mxu0 0.0
  %1569 = vmatprep.subr.mxu0 0.0
  %1570 = vmatpush1.msra.mxu0 0.0
  %1571 = vmatprep.subr.mxu0 0.0
  %1572 = vmatpush1.msra.mxu0 0.0
  %1573 = vmatprep.subr.mxu0 0.0
  %1574 = vmatpush1.msra.mxu0 0.0
  %1575 = vmatprep.subr.mxu0 0.0
  %1576 = vmatpush1.msra.mxu0 0.0
  %1577 = vmatprep.subr.mxu0 0.0
  %1578 = vmatpush1.msra.mxu0 0.0
  %1579 = vmatprep.subr.mxu0 0.0
  %1580 = vmatpush1.msra.mxu0 0.0
  %1581 = vmatprep.subr.mxu0 0.0
  %1582 = vmatpush1.msra.mxu0 0.0
  %1583 = vmatprep.subr.mxu0 0.0
  %1584 = vmatpush1.msra.mxu0 0.0
  %1585 = vmatprep.subr.mxu0 0.0
  %1586 = vmatpush1.msra.mxu0 0.0
  %1587 = vmatprep.subr.mxu0 0.0
  %1588 = vmatpush1.msra.mxu0 0.0
  %1589 = vmatprep.subr.mxu0 0.0
  %1590 = vmatpush1.msra.mxu0 0.0
  %1591 = vmatprep.subr.mxu0 0.0
  %1592 = vmatpush1.msra.mxu0 0.0
  %1593 = vmatprep.subr.mxu0 0.0
  %1594 = vmatpush1.msra.mxu0 0.0
  %1595 = vmatprep.subr.mxu0 0.0
  %1596 = vmatpush1.msra.mxu0 0.0
  %1597 = vmatprep.subr.mxu0 0.0
  %1598 = vmatpush1.msra.mxu0 0.0
  %1599 = vmatprep.subr.mxu0 0.0
  %1600 = vmatpush1.msra.mxu0 0.0
  %1601 = vmatprep.subr.mxu0 0.0
  %1602 = vmatpush1.msra.mxu0 0.0
  %1603 = vmatprep.mubr.f32.mxu0 0.0
  %1604 = vmatmul.mubr.f32.gmra.mrb[0].mxu0 %v1537
  %v1605 = vpop.f32.mrb[0].mxu0
  %v1606 = vadd.f32 0.0, %v1605
  %v1607 = vpop.f32.mrb[0].mxu0
  %v1608 = vadd.f32 0.0, %v1607
  %1609 = vdwg.mxu0
  %1610 = vmatprep.subr.mxu0 %v1522
  %1611 = vmatpush1.msra.mxu0 %v1521
  %1612 = vmatprep.subr.mxu0 %v1530
  %1613 = vmatpush1.msra.mxu0 %v1529
  %1614 = vmatprep.subr.mxu0 0.0
  %1615 = vmatpush1.msra.mxu0 0.0
  %1616 = vmatprep.subr.mxu0 0.0
  %1617 = vmatpush1.msra.mxu0 0.0
  %1618 = vmatprep.subr.mxu0 0.0
  %1619 = vmatpush1.msra.mxu0 0.0
  %1620 = vmatprep.subr.mxu0 0.0
  %1621 = vmatpush1.msra.mxu0 0.0
  %1622 = vmatprep.subr.mxu0 0.0
  %1623 = vmatpush1.msra.mxu0 0.0
  %1624 = vmatprep.subr.mxu0 0.0
  %1625 = vmatpush1.msra.mxu0 0.0
  %1626 = vmatprep.subr.mxu0 0.0
  %1627 = vmatpush1.msra.mxu0 0.0
  %1628 = vmatprep.subr.mxu0 0.0
  %1629 = vmatpush1.msra.mxu0 0.0
  %1630 = vmatprep.subr.mxu0 0.0
  %1631 = vmatpush1.msra.mxu0 0.0
  %1632 = vmatprep.subr.mxu0 0.0
  %1633 = vmatpush1.msra.mxu0 0.0
  %1634 = vmatprep.subr.mxu0 0.0
  %1635 = vmatpush1.msra.mxu0 0.0
  %1636 = vmatprep.subr.mxu0 0.0
  %1637 = vmatpush1.msra.mxu0 0.0
  %1638 = vmatprep.subr.mxu0 0.0
  %1639 = vmatpush1.msra.mxu0 0.0
  %1640 = vmatprep.subr.mxu0 0.0
  %1641 = vmatpush1.msra.mxu0 0.0
  %1642 = vmatprep.subr.mxu0 0.0
  %1643 = vmatpush1.msra.mxu0 0.0
  %1644 = vmatprep.subr.mxu0 0.0
  %1645 = vmatpush1.msra.mxu0 0.0
  %1646 = vmatprep.subr.mxu0 0.0
  %1647 = vmatpush1.msra.mxu0 0.0
  %1648 = vmatprep.subr.mxu0 0.0
  %1649 = vmatpush1.msra.mxu0 0.0
  %1650 = vmatprep.subr.mxu0 0.0
  %1651 = vmatpush1.msra.mxu0 0.0
  %1652 = vmatprep.subr.mxu0 0.0
  %1653 = vmatpush1.msra.mxu0 0.0
  %1654 = vmatprep.subr.mxu0 0.0
  %1655 = vmatpush1.msra.mxu0 0.0
  %1656 = vmatprep.subr.mxu0 0.0
  %1657 = vmatpush1.msra.mxu0 0.0
  %1658 = vmatprep.subr.mxu0 0.0
  %1659 = vmatpush1.msra.mxu0 0.0
  %1660 = vmatprep.subr.mxu0 0.0
  %1661 = vmatpush1.msra.mxu0 0.0
  %1662 = vmatprep.subr.mxu0 0.0
  %1663 = vmatpush1.msra.mxu0 0.0
  %1664 = vmatprep.subr.mxu0 0.0
  %1665 = vmatpush1.msra.mxu0 0.0
  %1666 = vmatprep.subr.mxu0 0.0
  %1667 = vmatpush1.msra.mxu0 0.0
  %1668 = vmatprep.subr.mxu0 0.0
  %1669 = vmatpush1.msra.mxu0 0.0
  %1670 = vmatprep.subr.mxu0 0.0
  %1671 = vmatpush1.msra.mxu0 0.0
  %1672 = vmatprep.subr.mxu0 0.0
  %1673 = vmatpush1.msra.mxu0 0.0
  %1674 = vmatprep.mubr.f32.mxu0 0.0
  %1675 = vmatmul.mubr.f32.gmra.mrb[0].mxu0 %v1537
  %v1676 = vpop.f32.mrb[0].mxu0
  %v1677 = vadd.f32 0.0, %v1676
  %v1678 = vpop.f32.mrb[0].mxu0
  %v1679 = vadd.f32 0.0, %v1678
  %1680 = vdwg.mxu0
  %1681 = vmatprep.subr.mxu0 %v1524
  %1682 = vmatpush1.msra.mxu0 %v1523
  %1683 = vmatprep.subr.mxu0 %v1532
  %1684 = vmatpush1.msra.mxu0 %v1531
  %1685 = vmatprep.subr.mxu0 0.0
  %1686 = vmatpush1.msra.mxu0 0.0
  %1687 = vmatprep.subr.mxu0 0.0
  %1688 = vmatpush1.msra.mxu0 0.0
  %1689 = vmatprep.subr.mxu0 0.0
  %1690 = vmatpush1.msra.mxu0 0.0
  %1691 = vmatprep.subr.mxu0 0.0
  %1692 = vmatpush1.msra.mxu0 0.0
  %1693 = vmatprep.subr.mxu0 0.0
  %1694 = vmatpush1.msra.mxu0 0.0
  %1695 = vmatprep.subr.mxu0 0.0
  %1696 = vmatpush1.msra.mxu0 0.0
  %1697 = vmatprep.subr.mxu0 0.0
  %1698 = vmatpush1.msra.mxu0 0.0
  %1699 = vmatprep.subr.mxu0 0.0
  %1700 = vmatpush1.msra.mxu0 0.0
  %1701 = vmatprep.subr.mxu0 0.0
  %1702 = vmatpush1.msra.mxu0 0.0
  %1703 = vmatprep.subr.mxu0 0.0
  %1704 = vmatpush1.msra.mxu0 0.0
  %1705 = vmatprep.subr.mxu0 0.0
  %1706 = vmatpush1.msra.mxu0 0.0
  %1707 = vmatprep.subr.mxu0 0.0
  %1708 = vmatpush1.msra.mxu0 0.0
  %1709 = vmatprep.subr.mxu0 0.0
  %1710 = vmatpush1.msra.mxu0 0.0
  %1711 = vmatprep.subr.mxu0 0.0
  %1712 = vmatpush1.msra.mxu0 0.0
  %1713 = vmatprep.subr.mxu0 0.0
  %1714 = vmatpush1.msra.mxu0 0.0
  %1715 = vmatprep.subr.mxu0 0.0
  %1716 = vmatpush1.msra.mxu0 0.0
  %1717 = vmatprep.subr.mxu0 0.0
  %1718 = vmatpush1.msra.mxu0 0.0
  %1719 = vmatprep.subr.mxu0 0.0
  %1720 = vmatpush1.msra.mxu0 0.0
  %1721 = vmatprep.subr.mxu0 0.0
  %1722 = vmatpush1.msra.mxu0 0.0
  %1723 = vmatprep.subr.mxu0 0.0
  %1724 = vmatpush1.msra.mxu0 0.0
  %1725 = vmatprep.subr.mxu0 0.0
  %1726 = vmatpush1.msra.mxu0 0.0
  %1727 = vmatprep.subr.mxu0 0.0
  %1728 = vmatpush1.msra.mxu0 0.0
  %1729 = vmatprep.subr.mxu0 0.0
  %1730 = vmatpush1.msra.mxu0 0.0
  %1731 = vmatprep.subr.mxu0 0.0
  %1732 = vmatpush1.msra.mxu0 0.0
  %1733 = vmatprep.subr.mxu0 0.0
  %1734 = vmatpush1.msra.mxu0 0.0
  %1735 = vmatprep.subr.mxu0 0.0
  %1736 = vmatpush1.msra.mxu0 0.0
  %1737 = vmatprep.subr.mxu0 0.0
  %1738 = vmatpush1.msra.mxu0 0.0
  %1739 = vmatprep.subr.mxu0 0.0
  %1740 = vmatpush1.msra.mxu0 0.0
  %1741 = vmatprep.subr.mxu0 0.0
  %1742 = vmatpush1.msra.mxu0 0.0
  %1743 = vmatprep.subr.mxu0 0.0
  %1744 = vmatpush1.msra.mxu0 0.0
  %1745 = vmatprep.mubr.f32.mxu0 0.0
  %1746 = vmatmul.mubr.f32.gmra.mrb[0].mxu0 %v1537
  %v1747 = vpop.f32.mrb[0].mxu0
  %v1748 = vadd.f32 0.0, %v1747
  %v1749 = vpop.f32.mrb[0].mxu0
  %v1750 = vadd.f32 0.0, %v1749
  %1751 = vdwg.mxu0
  %1752 = vmatprep.subr.mxu0 %v1526
  %1753 = vmatpush1.msra.mxu0 %v1525
  %1754 = vmatprep.subr.mxu0 %v1534
  %1755 = vmatpush1.msra.mxu0 %v1533
  %1756 = vmatprep.subr.mxu0 0.0
  %1757 = vmatpush1.msra.mxu0 0.0
  %1758 = vmatprep.subr.mxu0 0.0
  %1759 = vmatpush1.msra.mxu0 0.0
  %1760 = vmatprep.subr.mxu0 0.0
  %1761 = vmatpush1.msra.mxu0 0.0
  %1762 = vmatprep.subr.mxu0 0.0
  %1763 = vmatpush1.msra.mxu0 0.0
  %1764 = vmatprep.subr.mxu0 0.0
  %1765 = vmatpush1.msra.mxu0 0.0
  %1766 = vmatprep.subr.mxu0 0.0
  %1767 = vmatpush1.msra.mxu0 0.0
  %1768 = vmatprep.subr.mxu0 0.0
  %1769 = vmatpush1.msra.mxu0 0.0
  %1770 = vmatprep.subr.mxu0 0.0
  %1771 = vmatpush1.msra.mxu0 0.0
  %1772 = vmatprep.subr.mxu0 0.0
  %1773 = vmatpush1.msra.mxu0 0.0
  %1774 = vmatprep.subr.mxu0 0.0
  %1775 = vmatpush1.msra.mxu0 0.0
  %1776 = vmatprep.subr.mxu0 0.0
  %1777 = vmatpush1.msra.mxu0 0.0
  %1778 = vmatprep.subr.mxu0 0.0
  %1779 = vmatpush1.msra.mxu0 0.0
  %1780 = vmatprep.subr.mxu0 0.0
  %1781 = vmatpush1.msra.mxu0 0.0
  %1782 = vmatprep.subr.mxu0 0.0
  %1783 = vmatpush1.msra.mxu0 0.0
  %1784 = vmatprep.subr.mxu0 0.0
  %1785 = vmatpush1.msra.mxu0 0.0
  %1786 = vmatprep.subr.mxu0 0.0
  %1787 = vmatpush1.msra.mxu0 0.0
  %1788 = vmatprep.subr.mxu0 0.0
  %1789 = vmatpush1.msra.mxu0 0.0
  %1790 = vmatprep.subr.mxu0 0.0
  %1791 = vmatpush1.msra.mxu0 0.0
  %1792 = vmatprep.subr.mxu0 0.0
  %1793 = vmatpush1.msra.mxu0 0.0
  %1794 = vmatprep.subr.mxu0 0.0
  %1795 = vmatpush1.msra.mxu0 0.0
  %1796 = vmatprep.subr.mxu0 0.0
  %1797 = vmatpush1.msra.mxu0 0.0
  %1798 = vmatprep.subr.mxu0 0.0
  %1799 = vmatpush1.msra.mxu0 0.0
  %1800 = vmatprep.subr.mxu0 0.0
  %1801 = vmatpush1.msra.mxu0 0.0
  %1802 = vmatprep.subr.mxu0 0.0
  %1803 = vmatpush1.msra.mxu0 0.0
  %1804 = vmatprep.subr.mxu0 0.0
  %1805 = vmatpush1.msra.mxu0 0.0
  %1806 = vmatprep.subr.mxu0 0.0
  %1807 = vmatpush1.msra.mxu0 0.0
  %1808 = vmatprep.subr.mxu0 0.0
  %1809 = vmatpush1.msra.mxu0 0.0
  %1810 = vmatprep.subr.mxu0 0.0
  %1811 = vmatpush1.msra.mxu0 0.0
  %1812 = vmatprep.subr.mxu0 0.0
  %1813 = vmatpush1.msra.mxu0 0.0
  %1814 = vmatprep.subr.mxu0 0.0
  %1815 = vmatpush1.msra.mxu0 0.0
  %1816 = vmatprep.mubr.f32.mxu0 0.0
  %1817 = vmatmul.mubr.f32.gmra.mrb[0].mxu0 %v1537
  %v1818 = vpop.f32.mrb[0].mxu0
  %v1819 = vadd.f32 0.0, %v1818
  %v1820 = vpop.f32.mrb[0].mxu0
  %v1821 = vadd.f32 0.0, %v1820
  %1822 = vdwg.mxu0
  %v1824 = vsel %vm1535, %v1518, 0
  %1826 = vmatprep.subr.mxu0 %v1520
  %1827 = vmatpush1.msra.mxu0 %v1519
  %1828 = vmatprep.subr.mxu0 %v1528
  %1829 = vmatpush1.msra.mxu0 %v1527
  %1830 = vmatprep.subr.mxu0 0.0
  %1831 = vmatpush1.msra.mxu0 0.0
  %1832 = vmatprep.subr.mxu0 0.0
  %1833 = vmatpush1.msra.mxu0 0.0
  %1834 = vmatprep.subr.mxu0 0.0
  %1835 = vmatpush1.msra.mxu0 0.0
  %1836 = vmatprep.subr.mxu0 0.0
  %1837 = vmatpush1.msra.mxu0 0.0
  %1838 = vmatprep.subr.mxu0 0.0
  %1839 = vmatpush1.msra.mxu0 0.0
  %1840 = vmatprep.subr.mxu0 0.0
  %1841 = vmatpush1.msra.mxu0 0.0
  %1842 = vmatprep.subr.mxu0 0.0
  %1843 = vmatpush1.msra.mxu0 0.0
  %1844 = vmatprep.subr.mxu0 0.0
  %1845 = vmatpush1.msra.mxu0 0.0
  %1846 = vmatprep.subr.mxu0 0.0
  %1847 = vmatpush1.msra.mxu0 0.0
  %1848 = vmatprep.subr.mxu0 0.0
  %1849 = vmatpush1.msra.mxu0 0.0
  %1850 = vmatprep.subr.mxu0 0.0
  %1851 = vmatpush1.msra.mxu0 0.0
  %1852 = vmatprep.subr.mxu0 0.0
  %1853 = vmatpush1.msra.mxu0 0.0
  %1854 = vmatprep.subr.mxu0 0.0
  %1855 = vmatpush1.msra.mxu0 0.0
  %1856 = vmatprep.subr.mxu0 0.0
  %1857 = vmatpush1.msra.mxu0 0.0
  %1858 = vmatprep.subr.mxu0 0.0
  %1859 = vmatpush1.msra.mxu0 0.0
  %1860 = vmatprep.subr.mxu0 0.0
  %1861 = vmatpush1.msra.mxu0 0.0
  %1862 = vmatprep.subr.mxu0 0.0
  %1863 = vmatpush1.msra.mxu0 0.0
  %1864 = vmatprep.subr.mxu0 0.0
  %1865 = vmatpush1.msra.mxu0 0.0
  %1866 = vmatprep.subr.mxu0 0.0
  %1867 = vmatpush1.msra.mxu0 0.0
  %1868 = vmatprep.subr.mxu0 0.0
  %1869 = vmatpush1.msra.mxu0 0.0
  %1870 = vmatprep.subr.mxu0 0.0
  %1871 = vmatpush1.msra.mxu0 0.0
  %1872 = vmatprep.subr.mxu0 0.0
  %1873 = vmatpush1.msra.mxu0 0.0
  %1874 = vmatprep.subr.mxu0 0.0
  %1875 = vmatpush1.msra.mxu0 0.0
  %1876 = vmatprep.subr.mxu0 0.0
  %1877 = vmatpush1.msra.mxu0 0.0
  %1878 = vmatprep.subr.mxu0 0.0
  %1879 = vmatpush1.msra.mxu0 0.0
  %1880 = vmatprep.subr.mxu0 0.0
  %1881 = vmatpush1.msra.mxu0 0.0
  %1882 = vmatprep.subr.mxu0 0.0
  %1883 = vmatpush1.msra.mxu0 0.0
  %1884 = vmatprep.subr.mxu0 0.0
  %1885 = vmatpush1.msra.mxu0 0.0
  %1886 = vmatprep.subr.mxu0 0.0
  %1887 = vmatpush1.msra.mxu0 0.0
  %1888 = vmatprep.subr.mxu0 0.0
  %1889 = vmatpush1.msra.mxu0 0.0
  %1890 = vmatprep.mubr.f32.mxu0 0.0
  %1891 = vmatmul.mubr.f32.gmra.mrb[0].mxu0 %v1824
  %v1892 = vpop.f32.mrb[0].mxu0
  %v1893 = vadd.f32 0.0, %v1892
  %v1894 = vpop.f32.mrb[0].mxu0
  %v1895 = vadd.f32 0.0, %v1894
  %1896 = vdwg.mxu0
  %1897 = vmatprep.subr.mxu0 %v1522
  %1898 = vmatpush1.msra.mxu0 %v1521
  %1899 = vmatprep.subr.mxu0 %v1530
  %1900 = vmatpush1.msra.mxu0 %v1529
  %1901 = vmatprep.subr.mxu0 0.0
  %1902 = vmatpush1.msra.mxu0 0.0
  %1903 = vmatprep.subr.mxu0 0.0
  %1904 = vmatpush1.msra.mxu0 0.0
  %1905 = vmatprep.subr.mxu0 0.0
  %1906 = vmatpush1.msra.mxu0 0.0
  %1907 = vmatprep.subr.mxu0 0.0
  %1908 = vmatpush1.msra.mxu0 0.0
  %1909 = vmatprep.subr.mxu0 0.0
  %1910 = vmatpush1.msra.mxu0 0.0
  %1911 = vmatprep.subr.mxu0 0.0
  %1912 = vmatpush1.msra.mxu0 0.0
  %1913 = vmatprep.subr.mxu0 0.0
  %1914 = vmatpush1.msra.mxu0 0.0
  %1915 = vmatprep.subr.mxu0 0.0
  %1916 = vmatpush1.msra.mxu0 0.0
  %1917 = vmatprep.subr.mxu0 0.0
  %1918 = vmatpush1.msra.mxu0 0.0
  %1919 = vmatprep.subr.mxu0 0.0
  %1920 = vmatpush1.msra.mxu0 0.0
  %1921 = vmatprep.subr.mxu0 0.0
  %1922 = vmatpush1.msra.mxu0 0.0
  %1923 = vmatprep.subr.mxu0 0.0
  %1924 = vmatpush1.msra.mxu0 0.0
  %1925 = vmatprep.subr.mxu0 0.0
  %1926 = vmatpush1.msra.mxu0 0.0
  %1927 = vmatprep.subr.mxu0 0.0
  %1928 = vmatpush1.msra.mxu0 0.0
  %1929 = vmatprep.subr.mxu0 0.0
  %1930 = vmatpush1.msra.mxu0 0.0
  %1931 = vmatprep.subr.mxu0 0.0
  %1932 = vmatpush1.msra.mxu0 0.0
  %1933 = vmatprep.subr.mxu0 0.0
  %1934 = vmatpush1.msra.mxu0 0.0
  %1935 = vmatprep.subr.mxu0 0.0
  %1936 = vmatpush1.msra.mxu0 0.0
  %1937 = vmatprep.subr.mxu0 0.0
  %1938 = vmatpush1.msra.mxu0 0.0
  %1939 = vmatprep.subr.mxu0 0.0
  %1940 = vmatpush1.msra.mxu0 0.0
  %1941 = vmatprep.subr.mxu0 0.0
  %1942 = vmatpush1.msra.mxu0 0.0
  %1943 = vmatprep.subr.mxu0 0.0
  %1944 = vmatpush1.msra.mxu0 0.0
  %1945 = vmatprep.subr.mxu0 0.0
  %1946 = vmatpush1.msra.mxu0 0.0
  %1947 = vmatprep.subr.mxu0 0.0
  %1948 = vmatpush1.msra.mxu0 0.0
  %1949 = vmatprep.subr.mxu0 0.0
  %1950 = vmatpush1.msra.mxu0 0.0
  %1951 = vmatprep.subr.mxu0 0.0
  %1952 = vmatpush1.msra.mxu0 0.0
  %1953 = vmatprep.subr.mxu0 0.0
  %1954 = vmatpush1.msra.mxu0 0.0
  %1955 = vmatprep.subr.mxu0 0.0
  %1956 = vmatpush1.msra.mxu0 0.0
  %1957 = vmatprep.subr.mxu0 0.0
  %1958 = vmatpush1.msra.mxu0 0.0
  %1959 = vmatprep.subr.mxu0 0.0
  %1960 = vmatpush1.msra.mxu0 0.0
  %1961 = vmatprep.mubr.f32.mxu0 0.0
  %1962 = vmatmul.mubr.f32.gmra.mrb[0].mxu0 %v1824
  %v1963 = vpop.f32.mrb[0].mxu0
  %v1964 = vadd.f32 0.0, %v1963
  %v1965 = vpop.f32.mrb[0].mxu0
  %v1966 = vadd.f32 0.0, %v1965
  %1967 = vdwg.mxu0
  %1968 = vmatprep.subr.mxu0 %v1524
  %1969 = vmatpush1.msra.mxu0 %v1523
  %1970 = vmatprep.subr.mxu0 %v1532
  %1971 = vmatpush1.msra.mxu0 %v1531
  %1972 = vmatprep.subr.mxu0 0.0
  %1973 = vmatpush1.msra.mxu0 0.0
  %1974 = vmatprep.subr.mxu0 0.0
  %1975 = vmatpush1.msra.mxu0 0.0
  %1976 = vmatprep.subr.mxu0 0.0
  %1977 = vmatpush1.msra.mxu0 0.0
  %1978 = vmatprep.subr.mxu0 0.0
  %1979 = vmatpush1.msra.mxu0 0.0
  %1980 = vmatprep.subr.mxu0 0.0
  %1981 = vmatpush1.msra.mxu0 0.0
  %1982 = vmatprep.subr.mxu0 0.0
  %1983 = vmatpush1.msra.mxu0 0.0
  %1984 = vmatprep.subr.mxu0 0.0
  %1985 = vmatpush1.msra.mxu0 0.0
  %1986 = vmatprep.subr.mxu0 0.0
  %1987 = vmatpush1.msra.mxu0 0.0
  %1988 = vmatprep.subr.mxu0 0.0
  %1989 = vmatpush1.msra.mxu0 0.0
  %1990 = vmatprep.subr.mxu0 0.0
  %1991 = vmatpush1.msra.mxu0 0.0
  %1992 = vmatprep.subr.mxu0 0.0
  %1993 = vmatpush1.msra.mxu0 0.0
  %1994 = vmatprep.subr.mxu0 0.0
  %1995 = vmatpush1.msra.mxu0 0.0
  %1996 = vmatprep.subr.mxu0 0.0
  %1997 = vmatpush1.msra.mxu0 0.0
  %1998 = vmatprep.subr.mxu0 0.0
  %1999 = vmatpush1.msra.mxu0 0.0
  %2000 = vmatprep.subr.mxu0 0.0
  %2001 = vmatpush1.msra.mxu0 0.0
  %2002 = vmatprep.subr.mxu0 0.0
  %2003 = vmatpush1.msra.mxu0 0.0
  %2004 = vmatprep.subr.mxu0 0.0
  %2005 = vmatpush1.msra.mxu0 0.0
  %2006 = vmatprep.subr.mxu0 0.0
  %2007 = vmatpush1.msra.mxu0 0.0
  %2008 = vmatprep.subr.mxu0 0.0
  %2009 = vmatpush1.msra.mxu0 0.0
  %2010 = vmatprep.subr.mxu0 0.0
  %2011 = vmatpush1.msra.mxu0 0.0
  %2012 = vmatprep.subr.mxu0 0.0
  %2013 = vmatpush1.msra.mxu0 0.0
  %2014 = vmatprep.subr.mxu0 0.0
  %2015 = vmatpush1.msra.mxu0 0.0
  %2016 = vmatprep.subr.mxu0 0.0
  %2017 = vmatpush1.msra.mxu0 0.0
  %2018 = vmatprep.subr.mxu0 0.0
  %2019 = vmatpush1.msra.mxu0 0.0
  %2020 = vmatprep.subr.mxu0 0.0
  %2021 = vmatpush1.msra.mxu0 0.0
  %2022 = vmatprep.subr.mxu0 0.0
  %2023 = vmatpush1.msra.mxu0 0.0
  %2024 = vmatprep.subr.mxu0 0.0
  %2025 = vmatpush1.msra.mxu0 0.0
  %2026 = vmatprep.subr.mxu0 0.0
  %2027 = vmatpush1.msra.mxu0 0.0
  %2028 = vmatprep.subr.mxu0 0.0
  %2029 = vmatpush1.msra.mxu0 0.0
  %2030 = vmatprep.subr.mxu0 0.0
  %2031 = vmatpush1.msra.mxu0 0.0
  %2032 = vmatprep.mubr.f32.mxu0 0.0
  %2033 = vmatmul.mubr.f32.gmra.mrb[0].mxu0 %v1824
  %v2034 = vpop.f32.mrb[0].mxu0
  %v2035 = vadd.f32 0.0, %v2034
  %v2036 = vpop.f32.mrb[0].mxu0
  %v2037 = vadd.f32 0.0, %v2036
  %2038 = vdwg.mxu0
  %2039 = vmatprep.subr.mxu0 %v1526
  %2040 = vmatpush1.msra.mxu0 %v1525
  %2041 = vmatprep.subr.mxu0 %v1534
  %2042 = vmatpush1.msra.mxu0 %v1533
  %2043 = vmatprep.subr.mxu0 0.0
  %2044 = vmatpush1.msra.mxu0 0.0
  %2045 = vmatprep.subr.mxu0 0.0
  %2046 = vmatpush1.msra.mxu0 0.0
  %2047 = vmatprep.subr.mxu0 0.0
  %2048 = vmatpush1.msra.mxu0 0.0
  %2049 = vmatprep.subr.mxu0 0.0
  %2050 = vmatpush1.msra.mxu0 0.0
  %2051 = vmatprep.subr.mxu0 0.0
  %2052 = vmatpush1.msra.mxu0 0.0
  %2053 = vmatprep.subr.mxu0 0.0
  %2054 = vmatpush1.msra.mxu0 0.0
  %2055 = vmatprep.subr.mxu0 0.0
  %2056 = vmatpush1.msra.mxu0 0.0
  %2057 = vmatprep.subr.mxu0 0.0
  %2058 = vmatpush1.msra.mxu0 0.0
  %2059 = vmatprep.subr.mxu0 0.0
  %2060 = vmatpush1.msra.mxu0 0.0
  %2061 = vmatprep.subr.mxu0 0.0
  %2062 = vmatpush1.msra.mxu0 0.0
  %2063 = vmatprep.subr.mxu0 0.0
  %2064 = vmatpush1.msra.mxu0 0.0
  %2065 = vmatprep.subr.mxu0 0.0
  %2066 = vmatpush1.msra.mxu0 0.0
  %2067 = vmatprep.subr.mxu0 0.0
  %2068 = vmatpush1.msra.mxu0 0.0
  %2069 = vmatprep.subr.mxu0 0.0
  %2070 = vmatpush1.msra.mxu0 0.0
  %2071 = vmatprep.subr.mxu0 0.0
  %2072 = vmatpush1.msra.mxu0 0.0
  %2073 = vmatprep.subr.mxu0 0.0
  %2074 = vmatpush1.msra.mxu0 0.0
  %2075 = vmatprep.subr.mxu0 0.0
  %2076 = vmatpush1.msra.mxu0 0.0
  %2077 = vmatprep.subr.mxu0 0.0
  %2078 = vmatpush1.msra.mxu0 0.0
  %2079 = vmatprep.subr.mxu0 0.0
  %2080 = vmatpush1.msra.mxu0 0.0
  %2081 = vmatprep.subr.mxu0 0.0
  %2082 = vmatpush1.msra.mxu0 0.0
  %2083 = vmatprep.subr.mxu0 0.0
  %2084 = vmatpush1.msra.mxu0 0.0
  %2085 = vmatprep.subr.mxu0 0.0
  %2086 = vmatpush1.msra.mxu0 0.0
  %2087 = vmatprep.subr.mxu0 0.0
  %2088 = vmatpush1.msra.mxu0 0.0
  %2089 = vmatprep.subr.mxu0 0.0
  %2090 = vmatpush1.msra.mxu0 0.0
  %2091 = vmatprep.subr.mxu0 0.0
  %2092 = vmatpush1.msra.mxu0 0.0
  %2093 = vmatprep.subr.mxu0 0.0
  %2094 = vmatpush1.msra.mxu0 0.0
  %2095 = vmatprep.subr.mxu0 0.0
  %2096 = vmatpush1.msra.mxu0 0.0
  %2097 = vmatprep.subr.mxu0 0.0
  %2098 = vmatpush1.msra.mxu0 0.0
  %2099 = vmatprep.subr.mxu0 0.0
  %2100 = vmatpush1.msra.mxu0 0.0
  %2101 = vmatprep.subr.mxu0 0.0
  %2102 = vmatpush1.msra.mxu0 0.0
  %2103 = vmatprep.mubr.f32.mxu0 0.0
  %2104 = vmatmul.mubr.f32.gmra.mrb[0].mxu0 %v1824
  %v2105 = vpop.f32.mrb[0].mxu0
  %v2106 = vadd.f32 0.0, %v2105
  %v2107 = vpop.f32.mrb[0].mxu0
  %v2108 = vadd.f32 0.0, %v2107
  %2109 = vdwg.mxu0
  %v2110 = vmul.f32 %v439, %v1606
  %v2111 = vmul.f32 %v441, %v1608
  %v2112 = vmul.f32 %v510, %v1677
  %v2113 = vmul.f32 %v512, %v1679
  %v2114 = vmul.f32 %v581, %v1748
  %v2115 = vmul.f32 %v583, %v1750
  %v2116 = vmul.f32 %v652, %v1819
  %v2117 = vmul.f32 %v654, %v1821
  %v2118 = vadd.f32 %v2110, %v1893
  %v2119 = vadd.f32 %v2111, %v1895
  %v2120 = vadd.f32 %v2112, %v1964
  %v2121 = vadd.f32 %v2113, %v1966
  %v2122 = vadd.f32 %v2114, %v2035
  %v2123 = vadd.f32 %v2115, %v2037
  %v2124 = vadd.f32 %v2116, %v2106
  %v2125 = vadd.f32 %v2117, %v2108
  %vm2126 = vcmp.ge.f32.partialorder %v2118, 0.0
  %vm2127 = vcmp.ge.f32.partialorder %v2119, 0.0
  %vm2128 = vcmp.ge.f32.partialorder %v2120, 0.0
  %vm2129 = vcmp.ge.f32.partialorder %v2121, 0.0
  %vm2130 = vcmp.ge.f32.partialorder %v2122, 0.0
  %vm2131 = vcmp.ge.f32.partialorder %v2123, 0.0
  %vm2132 = vcmp.ge.f32.partialorder %v2124, 0.0
  %vm2133 = vcmp.ge.f32.partialorder %v2125, 0.0
  %v2134 = vmul.f32 %v2118, 0.3
  %v2135 = vmul.f32 %v2119, 0.3
  %v2136 = vmul.f32 %v2120, 0.3
  %v2137 = vmul.f32 %v2121, 0.3
  %v2138 = vmul.f32 %v2122, 0.3
  %v2139 = vmul.f32 %v2123, 0.3
  %v2140 = vmul.f32 %v2124, 0.3
  %v2141 = vmul.f32 %v2125, 0.3
  %v2142 = vsel %vm2126, %v2118, %v2134
  %v2143 = vsel %vm2127, %v2119, %v2135
  %v2144 = vsel %vm2128, %v2120, %v2136
  %v2145 = vsel %vm2129, %v2121, %v2137
  %v2146 = vsel %vm2130, %v2122, %v2138
  %v2147 = vsel %vm2131, %v2123, %v2139
  %v2148 = vsel %vm2132, %v2124, %v2140
  %v2149 = vsel %vm2133, %v2125, %v2141
  %v2150 = vld [vmem:[%s8] sm:$0xff]
  %v2151 = vld [vmem:[%s8 + $0x8] sm:$0xff]
  %v2152 = vld [vmem:[%s8 + $0x10] sm:$0xff]
  %v2153 = vld [vmem:[%s8 + $0x18] sm:$0xff]
  %v2154 = vld [vmem:[%s8 + $0x20] sm:$0xff]
  %v2155 = vld [vmem:[%s8 + $0x28] sm:$0xff]
  %v2156 = vld [vmem:[%s8 + $0x30] sm:$0xff]
  %v2157 = vld [vmem:[%s8 + $0x38] sm:$0xff]
  %v2158 = vld [vmem:[%s8 + $0x40] sm:$0xff]
  %v2159 = vld [vmem:[%s8 + $0x48] sm:$0xff]
  %v2160 = vld [vmem:[%s8 + $0x50] sm:$0xff]
  %v2161 = vld [vmem:[%s8 + $0x58] sm:$0xff]
  %v2162 = vld [vmem:[%s8 + $0x60] sm:$0xff]
  %v2163 = vld [vmem:[%s8 + $0x68] sm:$0xff]
  %v2164 = vld [vmem:[%s8 + $0x70] sm:$0xff]
  %v2165 = vld [vmem:[%s8 + $0x78] sm:$0xff]
  %v2166 = vld [vmem:[%s8 + $0x80] sm:$0xff]
  %v2167 = vld [vmem:[%s8 + $0x88] sm:$0xff]
  %v2168 = vld [vmem:[%s8 + $0x90] sm:$0xff]
  %v2169 = vld [vmem:[%s8 + $0x98] sm:$0xff]
  %v2170 = vld [vmem:[%s8 + $0xa0] sm:$0xff]
  %v2171 = vld [vmem:[%s8 + $0xa8] sm:$0xff]
  %v2172 = vld [vmem:[%s8 + $0xb0] sm:$0xff]
  %v2173 = vld [vmem:[%s8 + $0xb8] sm:$0xff]
  %v2174 = vld [vmem:[%s8 + $0xc0] sm:$0xff]
  %v2175 = vld [vmem:[%s8 + $0xc8] sm:$0xff]
  %v2176 = vld [vmem:[%s8 + $0xd0] sm:$0xff]
  %v2177 = vld [vmem:[%s8 + $0xd8] sm:$0xff]
  %v2178 = vld [vmem:[%s8 + $0xe0] sm:$0xff]
  %v2179 = vld [vmem:[%s8 + $0xe8] sm:$0xff]
  %v2180 = vld [vmem:[%s8 + $0xf0] sm:$0xff]
  %v2181 = vld [vmem:[%s8 + $0xf8] sm:$0xff]
  %v2182 = vld [vmem:[%s8 + $0x100] sm:$0xff]
  %v2183 = vld [vmem:[%s8 + $0x108] sm:$0xff]
  %v2184 = vld [vmem:[%s8 + $0x110] sm:$0xff]
  %v2185 = vld [vmem:[%s8 + $0x118] sm:$0xff]
  %v2186 = vld [vmem:[%s8 + $0x120] sm:$0xff]
  %v2187 = vld [vmem:[%s8 + $0x128] sm:$0xff]
  %v2188 = vld [vmem:[%s8 + $0x130] sm:$0xff]
  %v2189 = vld [vmem:[%s8 + $0x138] sm:$0xff]
  %v2190 = vld [vmem:[%s8 + $0x140] sm:$0xff]
  %v2191 = vld [vmem:[%s8 + $0x148] sm:$0xff]
  %v2192 = vld [vmem:[%s8 + $0x150] sm:$0xff]
  %v2193 = vld [vmem:[%s8 + $0x158] sm:$0xff]
  %v2194 = vld [vmem:[%s8 + $0x160] sm:$0xff]
  %v2195 = vld [vmem:[%s8 + $0x168] sm:$0xff]
  %v2196 = vld [vmem:[%s8 + $0x170] sm:$0xff]
  %v2197 = vld [vmem:[%s8 + $0x178] sm:$0xff]
  %v2198 = vld [vmem:[%s8 + $0x180] sm:$0xff]
  %v2199 = vld [vmem:[%s8 + $0x188] sm:$0xff]
  %v2200 = vld [vmem:[%s8 + $0x190] sm:$0xff]
  %v2201 = vld [vmem:[%s8 + $0x198] sm:$0xff]
  %v2202 = vld [vmem:[%s8 + $0x1a0] sm:$0xff]
  %v2203 = vld [vmem:[%s8 + $0x1a8] sm:$0xff]
  %v2204 = vld [vmem:[%s8 + $0x1b0] sm:$0xff]
  %v2205 = vld [vmem:[%s8 + $0x1b8] sm:$0xff]
  %v2206 = vld [vmem:[%s8 + $0x1c0] sm:$0xff]
  %v2207 = vld [vmem:[%s8 + $0x1c8] sm:$0xff]
  %v2208 = vld [vmem:[%s8 + $0x1d0] sm:$0xff]
  %v2209 = vld [vmem:[%s8 + $0x1d8] sm:$0xff]
  %v2210 = vld [vmem:[%s8 + $0x1e0] sm:$0xff]
  %v2211 = vld [vmem:[%s8 + $0x1e8] sm:$0xff]
  %v2212 = vld [vmem:[%s8 + $0x1f0] sm:$0xff]
  %v2213 = vld [vmem:[%s8 + $0x1f8] sm:$0xff]
  %v2214 = vld [vmem:[%s8 + $0x200] sm:$0xff]
  %v2215 = vld [vmem:[%s8 + $0x208] sm:$0xff]
  %v2216 = vld [vmem:[%s8 + $0x210] sm:$0xff]
  %v2217 = vld [vmem:[%s8 + $0x218] sm:$0xff]
  %v2218 = vld [vmem:[%s8 + $0x220] sm:$0xff]
  %v2219 = vld [vmem:[%s8 + $0x228] sm:$0xff]
  %v2220 = vld [vmem:[%s8 + $0x230] sm:$0xff]
  %v2221 = vld [vmem:[%s8 + $0x238] sm:$0xff]
  %v2222 = vld [vmem:[%s8 + $0x240] sm:$0xff]
  %v2223 = vld [vmem:[%s8 + $0x248] sm:$0xff]
  %v2224 = vld [vmem:[%s8 + $0x250] sm:$0xff]
  %v2225 = vld [vmem:[%s8 + $0x258] sm:$0xff]
  %v2226 = vld [vmem:[%s8 + $0x260] sm:$0xff]
  %v2227 = vld [vmem:[%s8 + $0x268] sm:$0xff]
  %v2228 = vld [vmem:[%s8 + $0x270] sm:$0xff]
  %v2229 = vld [vmem:[%s8 + $0x278] sm:$0xff]
  %v2230 = vld [vmem:[%s8 + $0x280] sm:$0xff]
  %v2231 = vld [vmem:[%s8 + $0x288] sm:$0xff]
  %v2232 = vld [vmem:[%s8 + $0x290] sm:$0xff]
  %v2233 = vld [vmem:[%s8 + $0x298] sm:$0xff]
  %v2234 = vld [vmem:[%s8 + $0x2a0] sm:$0xff]
  %v2235 = vld [vmem:[%s8 + $0x2a8] sm:$0xff]
  %v2236 = vld [vmem:[%s8 + $0x2b0] sm:$0xff]
  %v2237 = vld [vmem:[%s8 + $0x2b8] sm:$0xff]
  %v2238 = vld [vmem:[%s8 + $0x2c0] sm:$0xff]
  %v2239 = vld [vmem:[%s8 + $0x2c8] sm:$0xff]
  %v2240 = vld [vmem:[%s8 + $0x2d0] sm:$0xff]
  %v2241 = vld [vmem:[%s8 + $0x2d8] sm:$0xff]
  %v2242 = vld [vmem:[%s8 + $0x2e0] sm:$0xff]
  %v2243 = vld [vmem:[%s8 + $0x2e8] sm:$0xff]
  %v2244 = vld [vmem:[%s8 + $0x2f0] sm:$0xff]
  %v2245 = vld [vmem:[%s8 + $0x2f8] sm:$0xff]
  %v2246 = vld [vmem:[%s8 + $0x300] sm:$0xff]
  %v2247 = vld [vmem:[%s8 + $0x308] sm:$0xff]
  %v2248 = vld [vmem:[%s8 + $0x310] sm:$0xff]
  %v2249 = vld [vmem:[%s8 + $0x318] sm:$0xff]
  %v2250 = vld [vmem:[%s8 + $0x320] sm:$0xff]
  %v2251 = vld [vmem:[%s8 + $0x328] sm:$0xff]
  %v2252 = vld [vmem:[%s8 + $0x330] sm:$0xff]
  %v2253 = vld [vmem:[%s8 + $0x338] sm:$0xff]
  %v2254 = vld [vmem:[%s8 + $0x340] sm:$0xff]
  %v2255 = vld [vmem:[%s8 + $0x348] sm:$0xff]
  %v2256 = vld [vmem:[%s8 + $0x350] sm:$0xff]
  %v2257 = vld [vmem:[%s8 + $0x358] sm:$0xff]
  %v2258 = vld [vmem:[%s8 + $0x360] sm:$0xff]
  %v2259 = vld [vmem:[%s8 + $0x368] sm:$0xff]
  %v2260 = vld [vmem:[%s8 + $0x370] sm:$0xff]
  %v2261 = vld [vmem:[%s8 + $0x378] sm:$0xff]
  %v2262 = vld [vmem:[%s8 + $0x380] sm:$0xff]
  %v2263 = vld [vmem:[%s8 + $0x388] sm:$0xff]
  %v2264 = vld [vmem:[%s8 + $0x390] sm:$0xff]
  %v2265 = vld [vmem:[%s8 + $0x398] sm:$0xff]
  %v2266 = vld [vmem:[%s8 + $0x3a0] sm:$0xff]
  %v2267 = vld [vmem:[%s8 + $0x3a8] sm:$0xff]
  %v2268 = vld [vmem:[%s8 + $0x3b0] sm:$0xff]
  %v2269 = vld [vmem:[%s8 + $0x3b8] sm:$0xff]
  %v2270 = vld [vmem:[%s8 + $0x3c0] sm:$0xff]
  %v2271 = vld [vmem:[%s8 + $0x3c8] sm:$0xff]
  %v2272 = vld [vmem:[%s8 + $0x3d0] sm:$0xff]
  %v2273 = vld [vmem:[%s8 + $0x3d8] sm:$0xff]
  %v2274 = vld [vmem:[%s8 + $0x3e0] sm:$0xff]
  %v2275 = vld [vmem:[%s8 + $0x3e8] sm:$0xff]
  %v2276 = vld [vmem:[%s8 + $0x3f0] sm:$0xff]
  %v2277 = vld [vmem:[%s8 + $0x3f8] sm:$0xff]
  %v2278 = vld [vmem:[%s8 + $0x400] sm:$0xff]
  %v2279 = vld [vmem:[%s8 + $0x408] sm:$0xff]
  %v2280 = vld [vmem:[%s8 + $0x410] sm:$0xff]
  %v2281 = vld [vmem:[%s8 + $0x418] sm:$0xff]
  %v2282 = vld [vmem:[%s8 + $0x420] sm:$0xff]
  %v2283 = vld [vmem:[%s8 + $0x428] sm:$0xff]
  %v2284 = vld [vmem:[%s8 + $0x430] sm:$0xff]
  %v2285 = vld [vmem:[%s8 + $0x438] sm:$0xff]
  %v2286 = vld [vmem:[%s8 + $0x440] sm:$0xff]
  %v2287 = vld [vmem:[%s8 + $0x448] sm:$0xff]
  %v2288 = vld [vmem:[%s8 + $0x450] sm:$0xff]
  %v2289 = vld [vmem:[%s8 + $0x458] sm:$0xff]
  %v2290 = vld [vmem:[%s8 + $0x460] sm:$0xff]
  %v2291 = vld [vmem:[%s8 + $0x468] sm:$0xff]
  %v2292 = vld [vmem:[%s8 + $0x470] sm:$0xff]
  %v2293 = vld [vmem:[%s8 + $0x478] sm:$0xff]
  %v2294 = vld [vmem:[%s8 + $0x480] sm:$0xff]
  %v2295 = vld [vmem:[%s8 + $0x488] sm:$0xff]
  %v2296 = vld [vmem:[%s8 + $0x490] sm:$0xff]
  %v2297 = vld [vmem:[%s8 + $0x498] sm:$0xff]
  %v2298 = vld [vmem:[%s8 + $0x4a0] sm:$0xff]
  %v2299 = vld [vmem:[%s8 + $0x4a8] sm:$0xff]
  %v2300 = vld [vmem:[%s8 + $0x4b0] sm:$0xff]
  %v2301 = vld [vmem:[%s8 + $0x4b8] sm:$0xff]
  %v2302 = vld [vmem:[%s8 + $0x4c0] sm:$0xff]
  %v2303 = vld [vmem:[%s8 + $0x4c8] sm:$0xff]
  %v2304 = vld [vmem:[%s8 + $0x4d0] sm:$0xff]
  %v2305 = vld [vmem:[%s8 + $0x4d8] sm:$0xff]
  %v2306 = vld [vmem:[%s8 + $0x4e0] sm:$0xff]
  %v2307 = vld [vmem:[%s8 + $0x4e8] sm:$0xff]
  %v2308 = vld [vmem:[%s8 + $0x4f0] sm:$0xff]
  %v2309 = vld [vmem:[%s8 + $0x4f8] sm:$0xff]
  %v2310 = vld [vmem:[%s8 + $0x500] sm:$0xff]
  %v2311 = vld [vmem:[%s8 + $0x508] sm:$0xff]
  %v2312 = vld [vmem:[%s8 + $0x510] sm:$0xff]
  %v2313 = vld [vmem:[%s8 + $0x518] sm:$0xff]
  %v2314 = vld [vmem:[%s8 + $0x520] sm:$0xff]
  %v2315 = vld [vmem:[%s8 + $0x528] sm:$0xff]
  %v2316 = vld [vmem:[%s8 + $0x530] sm:$0xff]
  %v2317 = vld [vmem:[%s8 + $0x538] sm:$0xff]
  %v2318 = vld [vmem:[%s8 + $0x540] sm:$0xff]
  %v2319 = vld [vmem:[%s8 + $0x548] sm:$0xff]
  %v2320 = vld [vmem:[%s8 + $0x550] sm:$0xff]
  %v2321 = vld [vmem:[%s8 + $0x558] sm:$0xff]
  %v2322 = vld [vmem:[%s8 + $0x560] sm:$0xff]
  %v2323 = vld [vmem:[%s8 + $0x568] sm:$0xff]
  %v2324 = vld [vmem:[%s8 + $0x570] sm:$0xff]
  %v2325 = vld [vmem:[%s8 + $0x578] sm:$0xff]
  %v2326 = vld [vmem:[%s8 + $0x580] sm:$0xff]
  %v2327 = vld [vmem:[%s8 + $0x588] sm:$0xff]
  %v2328 = vld [vmem:[%s8 + $0x590] sm:$0xff]
  %v2329 = vld [vmem:[%s8 + $0x598] sm:$0xff]
  %v2330 = vld [vmem:[%s8 + $0x5a0] sm:$0xff]
  %v2331 = vld [vmem:[%s8 + $0x5a8] sm:$0xff]
  %v2332 = vld [vmem:[%s8 + $0x5b0] sm:$0xff]
  %v2333 = vld [vmem:[%s8 + $0x5b8] sm:$0xff]
  %v2334 = vld [vmem:[%s8 + $0x5c0] sm:$0xff]
  %v2335 = vld [vmem:[%s8 + $0x5c8] sm:$0xff]
  %v2336 = vld [vmem:[%s8 + $0x5d0] sm:$0xff]
  %v2337 = vld [vmem:[%s8 + $0x5d8] sm:$0xff]
  %v2338 = vld [vmem:[%s8 + $0x5e0] sm:$0xff]
  %v2339 = vld [vmem:[%s8 + $0x5e8] sm:$0xff]
  %v2340 = vld [vmem:[%s8 + $0x5f0] sm:$0xff]
  %v2341 = vld [vmem:[%s8 + $0x5f8] sm:$0xff]
  %v2342 = vld [vmem:[%s8 + $0x600] sm:$0xff]
  %v2343 = vld [vmem:[%s8 + $0x608] sm:$0xff]
  %v2344 = vld [vmem:[%s8 + $0x610] sm:$0xff]
  %v2345 = vld [vmem:[%s8 + $0x618] sm:$0xff]
  %v2346 = vld [vmem:[%s8 + $0x620] sm:$0xff]
  %v2347 = vld [vmem:[%s8 + $0x628] sm:$0xff]
  %v2348 = vld [vmem:[%s8 + $0x630] sm:$0xff]
  %v2349 = vld [vmem:[%s8 + $0x638] sm:$0xff]
  %v2350 = vld [vmem:[%s8 + $0x640] sm:$0xff]
  %v2351 = vld [vmem:[%s8 + $0x648] sm:$0xff]
  %v2352 = vld [vmem:[%s8 + $0x650] sm:$0xff]
  %v2353 = vld [vmem:[%s8 + $0x658] sm:$0xff]
  %v2354 = vld [vmem:[%s8 + $0x660] sm:$0xff]
  %v2355 = vld [vmem:[%s8 + $0x668] sm:$0xff]
  %v2356 = vld [vmem:[%s8 + $0x670] sm:$0xff]
  %v2357 = vld [vmem:[%s8 + $0x678] sm:$0xff]
  %v2358 = vld [vmem:[%s8 + $0x680] sm:$0xff]
  %v2359 = vld [vmem:[%s8 + $0x688] sm:$0xff]
  %v2360 = vld [vmem:[%s8 + $0x690] sm:$0xff]
  %v2361 = vld [vmem:[%s8 + $0x698] sm:$0xff]
  %v2362 = vld [vmem:[%s8 + $0x6a0] sm:$0xff]
  %v2363 = vld [vmem:[%s8 + $0x6a8] sm:$0xff]
  %v2364 = vld [vmem:[%s8 + $0x6b0] sm:$0xff]
  %v2365 = vld [vmem:[%s8 + $0x6b8] sm:$0xff]
  %v2366 = vld [vmem:[%s8 + $0x6c0] sm:$0xff]
  %v2367 = vld [vmem:[%s8 + $0x6c8] sm:$0xff]
  %v2368 = vld [vmem:[%s8 + $0x6d0] sm:$0xff]
  %v2369 = vld [vmem:[%s8 + $0x6d8] sm:$0xff]
  %v2370 = vld [vmem:[%s8 + $0x6e0] sm:$0xff]
  %v2371 = vld [vmem:[%s8 + $0x6e8] sm:$0xff]
  %v2372 = vld [vmem:[%s8 + $0x6f0] sm:$0xff]
  %v2373 = vld [vmem:[%s8 + $0x6f8] sm:$0xff]
  %v2374 = vld [vmem:[%s8 + $0x700] sm:$0xff]
  %v2375 = vld [vmem:[%s8 + $0x708] sm:$0xff]
  %v2376 = vld [vmem:[%s8 + $0x710] sm:$0xff]
  %v2377 = vld [vmem:[%s8 + $0x718] sm:$0xff]
  %v2378 = vld [vmem:[%s8 + $0x720] sm:$0xff]
  %v2379 = vld [vmem:[%s8 + $0x728] sm:$0xff]
  %v2380 = vld [vmem:[%s8 + $0x730] sm:$0xff]
  %v2381 = vld [vmem:[%s8 + $0x738] sm:$0xff]
  %v2382 = vld [vmem:[%s8 + $0x740] sm:$0xff]
  %v2383 = vld [vmem:[%s8 + $0x748] sm:$0xff]
  %v2384 = vld [vmem:[%s8 + $0x750] sm:$0xff]
  %v2385 = vld [vmem:[%s8 + $0x758] sm:$0xff]
  %v2386 = vld [vmem:[%s8 + $0x760] sm:$0xff]
  %v2387 = vld [vmem:[%s8 + $0x768] sm:$0xff]
  %v2388 = vld [vmem:[%s8 + $0x770] sm:$0xff]
  %v2389 = vld [vmem:[%s8 + $0x778] sm:$0xff]
  %v2390 = vld [vmem:[%s8 + $0x780] sm:$0xff]
  %v2391 = vld [vmem:[%s8 + $0x788] sm:$0xff]
  %v2392 = vld [vmem:[%s8 + $0x790] sm:$0xff]
  %v2393 = vld [vmem:[%s8 + $0x798] sm:$0xff]
  %v2394 = vld [vmem:[%s8 + $0x7a0] sm:$0xff]
  %v2395 = vld [vmem:[%s8 + $0x7a8] sm:$0xff]
  %v2396 = vld [vmem:[%s8 + $0x7b0] sm:$0xff]
  %v2397 = vld [vmem:[%s8 + $0x7b8] sm:$0xff]
  %v2398 = vld [vmem:[%s8 + $0x7c0] sm:$0xff]
  %v2399 = vld [vmem:[%s8 + $0x7c8] sm:$0xff]
  %v2400 = vld [vmem:[%s8 + $0x7d0] sm:$0xff]
  %v2401 = vld [vmem:[%s8 + $0x7d8] sm:$0xff]
  %v2402 = vld [vmem:[%s8 + $0x7e0] sm:$0xff]
  %v2403 = vld [vmem:[%s8 + $0x7e8] sm:$0xff]
  %v2404 = vld [vmem:[%s8 + $0x7f0] sm:$0xff]
  %v2405 = vld [vmem:[%s8 + $0x7f8] sm:$0xff]
  %v2406 = vld [vmem:[%s8 + $0x800] sm:$0xff]
  %v2407 = vld [vmem:[%s8 + $0x808] sm:$0xff]
  %v2408 = vld [vmem:[%s8 + $0x810] sm:$0xff]
  %v2409 = vld [vmem:[%s8 + $0x818] sm:$0xff]
  %v2410 = vld [vmem:[%s8 + $0x820] sm:$0xff]
  %v2411 = vld [vmem:[%s8 + $0x828] sm:$0xff]
  %v2412 = vld [vmem:[%s8 + $0x830] sm:$0xff]
  %v2413 = vld [vmem:[%s8 + $0x838] sm:$0xff]
  %v2414 = vld [vmem:[%s8 + $0x840] sm:$0xff]
  %v2415 = vld [vmem:[%s8 + $0x848] sm:$0xff]
  %v2416 = vld [vmem:[%s8 + $0x850] sm:$0xff]
  %v2417 = vld [vmem:[%s8 + $0x858] sm:$0xff]
  %v2418 = vld [vmem:[%s8 + $0x860] sm:$0xff]
  %v2419 = vld [vmem:[%s8 + $0x868] sm:$0xff]
  %v2420 = vld [vmem:[%s8 + $0x870] sm:$0xff]
  %v2421 = vld [vmem:[%s8 + $0x878] sm:$0xff]
  %v2422 = vld [vmem:[%s8 + $0x880] sm:$0xff]
  %v2423 = vld [vmem:[%s8 + $0x888] sm:$0xff]
  %v2424 = vld [vmem:[%s8 + $0x890] sm:$0xff]
  %v2425 = vld [vmem:[%s8 + $0x898] sm:$0xff]
  %v2426 = vld [vmem:[%s8 + $0x8a0] sm:$0xff]
  %v2427 = vld [vmem:[%s8 + $0x8a8] sm:$0xff]
  %v2428 = vld [vmem:[%s8 + $0x8b0] sm:$0xff]
  %v2429 = vld [vmem:[%s8 + $0x8b8] sm:$0xff]
  %v2430 = vld [vmem:[%s8 + $0x8c0] sm:$0xff]
  %v2431 = vld [vmem:[%s8 + $0x8c8] sm:$0xff]
  %v2432 = vld [vmem:[%s8 + $0x8d0] sm:$0xff]
  %v2433 = vld [vmem:[%s8 + $0x8d8] sm:$0xff]
  %v2434 = vld [vmem:[%s8 + $0x8e0] sm:$0xff]
  %v2435 = vld [vmem:[%s8 + $0x8e8] sm:$0xff]
  %v2436 = vld [vmem:[%s8 + $0x8f0] sm:$0xff]
  %v2437 = vld [vmem:[%s8 + $0x8f8] sm:$0xff]
  %v2438 = vld [vmem:[%s8 + $0x900] sm:$0xff]
  %v2439 = vld [vmem:[%s8 + $0x908] sm:$0xff]
  %v2440 = vld [vmem:[%s8 + $0x910] sm:$0xff]
  %v2441 = vld [vmem:[%s8 + $0x918] sm:$0xff]
  %v2442 = vld [vmem:[%s8 + $0x920] sm:$0xff]
  %v2443 = vld [vmem:[%s8 + $0x928] sm:$0xff]
  %v2444 = vld [vmem:[%s8 + $0x930] sm:$0xff]
  %v2445 = vld [vmem:[%s8 + $0x938] sm:$0xff]
  %v2446 = vld [vmem:[%s8 + $0x940] sm:$0xff]
  %v2447 = vld [vmem:[%s8 + $0x948] sm:$0xff]
  %v2448 = vld [vmem:[%s8 + $0x950] sm:$0xff]
  %v2449 = vld [vmem:[%s8 + $0x958] sm:$0xff]
  %v2450 = vld [vmem:[%s8 + $0x960] sm:$0xff]
  %v2451 = vld [vmem:[%s8 + $0x968] sm:$0xff]
  %v2452 = vld [vmem:[%s8 + $0x970] sm:$0xff]
  %v2453 = vld [vmem:[%s8 + $0x978] sm:$0xff]
  %v2454 = vld [vmem:[%s8 + $0x980] sm:$0xff]
  %v2455 = vld [vmem:[%s8 + $0x988] sm:$0xff]
  %v2456 = vld [vmem:[%s8 + $0x990] sm:$0xff]
  %v2457 = vld [vmem:[%s8 + $0x998] sm:$0xff]
  %v2458 = vld [vmem:[%s8 + $0x9a0] sm:$0xff]
  %v2459 = vld [vmem:[%s8 + $0x9a8] sm:$0xff]
  %v2460 = vld [vmem:[%s8 + $0x9b0] sm:$0xff]
  %v2461 = vld [vmem:[%s8 + $0x9b8] sm:$0xff]
  %v2462 = vld [vmem:[%s8 + $0x9c0] sm:$0xff]
  %v2463 = vld [vmem:[%s8 + $0x9c8] sm:$0xff]
  %v2464 = vld [vmem:[%s8 + $0x9d0] sm:$0xff]
  %v2465 = vld [vmem:[%s8 + $0x9d8] sm:$0xff]
  %v2466 = vld [vmem:[%s8 + $0x9e0] sm:$0xff]
  %v2467 = vld [vmem:[%s8 + $0x9e8] sm:$0xff]
  %v2468 = vld [vmem:[%s8 + $0x9f0] sm:$0xff]
  %v2469 = vld [vmem:[%s8 + $0x9f8] sm:$0xff]
  %v2470 = vld [vmem:[%s8 + $0xa00] sm:$0xff]
  %v2471 = vld [vmem:[%s8 + $0xa08] sm:$0xff]
  %v2472 = vld [vmem:[%s8 + $0xa10] sm:$0xff]
  %v2473 = vld [vmem:[%s8 + $0xa18] sm:$0xff]
  %v2474 = vld [vmem:[%s8 + $0xa20] sm:$0xff]
  %v2475 = vld [vmem:[%s8 + $0xa28] sm:$0xff]
  %v2476 = vld [vmem:[%s8 + $0xa30] sm:$0xff]
  %v2477 = vld [vmem:[%s8 + $0xa38] sm:$0xff]
  %v2478 = vld [vmem:[%s8 + $0xa40] sm:$0xff]
  %v2479 = vld [vmem:[%s8 + $0xa48] sm:$0xff]
  %v2480 = vld [vmem:[%s8 + $0xa50] sm:$0xff]
  %v2481 = vld [vmem:[%s8 + $0xa58] sm:$0xff]
  %v2482 = vld [vmem:[%s8 + $0xa60] sm:$0xff]
  %v2483 = vld [vmem:[%s8 + $0xa68] sm:$0xff]
  %v2484 = vld [vmem:[%s8 + $0xa70] sm:$0xff]
  %v2485 = vld [vmem:[%s8 + $0xa78] sm:$0xff]
  %v2486 = vld [vmem:[%s8 + $0xa80] sm:$0xff]
  %v2487 = vld [vmem:[%s8 + $0xa88] sm:$0xff]
  %v2488 = vld [vmem:[%s8 + $0xa90] sm:$0xff]
  %v2489 = vld [vmem:[%s8 + $0xa98] sm:$0xff]
  %v2490 = vld [vmem:[%s8 + $0xaa0] sm:$0xff]
  %v2491 = vld [vmem:[%s8 + $0xaa8] sm:$0xff]
  %v2492 = vld [vmem:[%s8 + $0xab0] sm:$0xff]
  %v2493 = vld [vmem:[%s8 + $0xab8] sm:$0xff]
  %v2494 = vld [vmem:[%s8 + $0xac0] sm:$0xff]
  %v2495 = vld [vmem:[%s8 + $0xac8] sm:$0xff]
  %v2496 = vld [vmem:[%s8 + $0xad0] sm:$0xff]
  %v2497 = vld [vmem:[%s8 + $0xad8] sm:$0xff]
  %v2498 = vld [vmem:[%s8 + $0xae0] sm:$0xff]
  %v2499 = vld [vmem:[%s8 + $0xae8] sm:$0xff]
  %v2500 = vld [vmem:[%s8 + $0xaf0] sm:$0xff]
  %v2501 = vld [vmem:[%s8 + $0xaf8] sm:$0xff]
  %v2502 = vld [vmem:[%s8 + $0xb00] sm:$0xff]
  %v2503 = vld [vmem:[%s8 + $0xb08] sm:$0xff]
  %v2504 = vld [vmem:[%s8 + $0xb10] sm:$0xff]
  %v2505 = vld [vmem:[%s8 + $0xb18] sm:$0xff]
  %v2506 = vld [vmem:[%s8 + $0xb20] sm:$0xff]
  %v2507 = vld [vmem:[%s8 + $0xb28] sm:$0xff]
  %v2508 = vld [vmem:[%s8 + $0xb30] sm:$0xff]
  %v2509 = vld [vmem:[%s8 + $0xb38] sm:$0xff]
  %v2510 = vld [vmem:[%s8 + $0xb40] sm:$0xff]
  %v2511 = vld [vmem:[%s8 + $0xb48] sm:$0xff]
  %v2512 = vld [vmem:[%s8 + $0xb50] sm:$0xff]
  %v2513 = vld [vmem:[%s8 + $0xb58] sm:$0xff]
  %v2514 = vld [vmem:[%s8 + $0xb60] sm:$0xff]
  %v2515 = vld [vmem:[%s8 + $0xb68] sm:$0xff]
  %v2516 = vld [vmem:[%s8 + $0xb70] sm:$0xff]
  %v2517 = vld [vmem:[%s8 + $0xb78] sm:$0xff]
  %v2518 = vld [vmem:[%s8 + $0xb80] sm:$0xff]
  %v2519 = vld [vmem:[%s8 + $0xb88] sm:$0xff]
  %v2520 = vld [vmem:[%s8 + $0xb90] sm:$0xff]
  %v2521 = vld [vmem:[%s8 + $0xb98] sm:$0xff]
  %v2522 = vld [vmem:[%s8 + $0xba0] sm:$0xff]
  %v2523 = vld [vmem:[%s8 + $0xba8] sm:$0xff]
  %v2524 = vld [vmem:[%s8 + $0xbb0] sm:$0xff]
  %v2525 = vld [vmem:[%s8 + $0xbb8] sm:$0xff]
  %v2526 = vld [vmem:[%s8 + $0xbc0] sm:$0xff]
  %v2527 = vld [vmem:[%s8 + $0xbc8] sm:$0xff]
  %v2528 = vld [vmem:[%s8 + $0xbd0] sm:$0xff]
  %v2529 = vld [vmem:[%s8 + $0xbd8] sm:$0xff]
  %v2530 = vld [vmem:[%s8 + $0xbe0] sm:$0xff]
  %v2531 = vld [vmem:[%s8 + $0xbe8] sm:$0xff]
  %v2532 = vld [vmem:[%s8 + $0xbf0] sm:$0xff]
  %v2533 = vld [vmem:[%s8 + $0xbf8] sm:$0xff]
  %v2534 = vld [vmem:[%s8 + $0xc00] sm:$0xff]
  %v2535 = vld [vmem:[%s8 + $0xc08] sm:$0xff]
  %v2536 = vld [vmem:[%s8 + $0xc10] sm:$0xff]
  %v2537 = vld [vmem:[%s8 + $0xc18] sm:$0xff]
  %v2538 = vld [vmem:[%s8 + $0xc20] sm:$0xff]
  %v2539 = vld [vmem:[%s8 + $0xc28] sm:$0xff]
  %v2540 = vld [vmem:[%s8 + $0xc30] sm:$0xff]
  %v2541 = vld [vmem:[%s8 + $0xc38] sm:$0xff]
  %v2542 = vld [vmem:[%s8 + $0xc40] sm:$0xff]
  %v2543 = vld [vmem:[%s8 + $0xc48] sm:$0xff]
  %v2544 = vld [vmem:[%s8 + $0xc50] sm:$0xff]
  %v2545 = vld [vmem:[%s8 + $0xc58] sm:$0xff]
  %v2546 = vld [vmem:[%s8 + $0xc60] sm:$0xff]
  %v2547 = vld [vmem:[%s8 + $0xc68] sm:$0xff]
  %v2548 = vld [vmem:[%s8 + $0xc70] sm:$0xff]
  %v2549 = vld [vmem:[%s8 + $0xc78] sm:$0xff]
  %v2550 = vld [vmem:[%s8 + $0xc80] sm:$0xff]
  %v2551 = vld [vmem:[%s8 + $0xc88] sm:$0xff]
  %v2552 = vld [vmem:[%s8 + $0xc90] sm:$0xff]
  %v2553 = vld [vmem:[%s8 + $0xc98] sm:$0xff]
  %v2554 = vld [vmem:[%s8 + $0xca0] sm:$0xff]
  %v2555 = vld [vmem:[%s8 + $0xca8] sm:$0xff]
  %v2556 = vld [vmem:[%s8 + $0xcb0] sm:$0xff]
  %v2557 = vld [vmem:[%s8 + $0xcb8] sm:$0xff]
  %v2558 = vld [vmem:[%s8 + $0xcc0] sm:$0xff]
  %v2559 = vld [vmem:[%s8 + $0xcc8] sm:$0xff]
  %v2560 = vld [vmem:[%s8 + $0xcd0] sm:$0xff]
  %v2561 = vld [vmem:[%s8 + $0xcd8] sm:$0xff]
  %v2562 = vld [vmem:[%s8 + $0xce0] sm:$0xff]
  %v2563 = vld [vmem:[%s8 + $0xce8] sm:$0xff]
  %v2564 = vld [vmem:[%s8 + $0xcf0] sm:$0xff]
  %v2565 = vld [vmem:[%s8 + $0xcf8] sm:$0xff]
  %v2566 = vld [vmem:[%s8 + $0xd00] sm:$0xff]
  %v2567 = vld [vmem:[%s8 + $0xd08] sm:$0xff]
  %v2568 = vld [vmem:[%s8 + $0xd10] sm:$0xff]
  %v2569 = vld [vmem:[%s8 + $0xd18] sm:$0xff]
  %v2570 = vld [vmem:[%s8 + $0xd20] sm:$0xff]
  %v2571 = vld [vmem:[%s8 + $0xd28] sm:$0xff]
  %v2572 = vld [vmem:[%s8 + $0xd30] sm:$0xff]
  %v2573 = vld [vmem:[%s8 + $0xd38] sm:$0xff]
  %v2574 = vld [vmem:[%s8 + $0xd40] sm:$0xff]
  %v2575 = vld [vmem:[%s8 + $0xd48] sm:$0xff]
  %v2576 = vld [vmem:[%s8 + $0xd50] sm:$0xff]
  %v2577 = vld [vmem:[%s8 + $0xd58] sm:$0xff]
  %v2578 = vld [vmem:[%s8 + $0xd60] sm:$0xff]
  %v2579 = vld [vmem:[%s8 + $0xd68] sm:$0xff]
  %v2580 = vld [vmem:[%s8 + $0xd70] sm:$0xff]
  %v2581 = vld [vmem:[%s8 + $0xd78] sm:$0xff]
  %v2582 = vld [vmem:[%s8 + $0xd80] sm:$0xff]
  %v2583 = vld [vmem:[%s8 + $0xd88] sm:$0xff]
  %v2584 = vld [vmem:[%s8 + $0xd90] sm:$0xff]
  %v2585 = vld [vmem:[%s8 + $0xd98] sm:$0xff]
  %v2586 = vld [vmem:[%s8 + $0xda0] sm:$0xff]
  %v2587 = vld [vmem:[%s8 + $0xda8] sm:$0xff]
  %v2588 = vld [vmem:[%s8 + $0xdb0] sm:$0xff]
  %v2589 = vld [vmem:[%s8 + $0xdb8] sm:$0xff]
  %v2590 = vld [vmem:[%s8 + $0xdc0] sm:$0xff]
  %v2591 = vld [vmem:[%s8 + $0xdc8] sm:$0xff]
  %v2592 = vld [vmem:[%s8 + $0xdd0] sm:$0xff]
  %v2593 = vld [vmem:[%s8 + $0xdd8] sm:$0xff]
  %v2594 = vld [vmem:[%s8 + $0xde0] sm:$0xff]
  %v2595 = vld [vmem:[%s8 + $0xde8] sm:$0xff]
  %v2596 = vld [vmem:[%s8 + $0xdf0] sm:$0xff]
  %v2597 = vld [vmem:[%s8 + $0xdf8] sm:$0xff]
  %v2598 = vld [vmem:[%s8 + $0xe00] sm:$0xff]
  %v2599 = vld [vmem:[%s8 + $0xe08] sm:$0xff]
  %v2600 = vld [vmem:[%s8 + $0xe10] sm:$0xff]
  %v2601 = vld [vmem:[%s8 + $0xe18] sm:$0xff]
  %v2602 = vld [vmem:[%s8 + $0xe20] sm:$0xff]
  %v2603 = vld [vmem:[%s8 + $0xe28] sm:$0xff]
  %v2604 = vld [vmem:[%s8 + $0xe30] sm:$0xff]
  %v2605 = vld [vmem:[%s8 + $0xe38] sm:$0xff]
  %v2606 = vld [vmem:[%s8 + $0xe40] sm:$0xff]
  %v2607 = vld [vmem:[%s8 + $0xe48] sm:$0xff]
  %v2608 = vld [vmem:[%s8 + $0xe50] sm:$0xff]
  %v2609 = vld [vmem:[%s8 + $0xe58] sm:$0xff]
  %v2610 = vld [vmem:[%s8 + $0xe60] sm:$0xff]
  %v2611 = vld [vmem:[%s8 + $0xe68] sm:$0xff]
  %v2612 = vld [vmem:[%s8 + $0xe70] sm:$0xff]
  %v2613 = vld [vmem:[%s8 + $0xe78] sm:$0xff]
  %v2614 = vld [vmem:[%s8 + $0xe80] sm:$0xff]
  %v2615 = vld [vmem:[%s8 + $0xe88] sm:$0xff]
  %v2616 = vld [vmem:[%s8 + $0xe90] sm:$0xff]
  %v2617 = vld [vmem:[%s8 + $0xe98] sm:$0xff]
  %v2618 = vld [vmem:[%s8 + $0xea0] sm:$0xff]
  %v2619 = vld [vmem:[%s8 + $0xea8] sm:$0xff]
  %v2620 = vld [vmem:[%s8 + $0xeb0] sm:$0xff]
  %v2621 = vld [vmem:[%s8 + $0xeb8] sm:$0xff]
  %v2622 = vld [vmem:[%s8 + $0xec0] sm:$0xff]
  %v2623 = vld [vmem:[%s8 + $0xec8] sm:$0xff]
  %v2624 = vld [vmem:[%s8 + $0xed0] sm:$0xff]
  %v2625 = vld [vmem:[%s8 + $0xed8] sm:$0xff]
  %v2626 = vld [vmem:[%s8 + $0xee0] sm:$0xff]
  %v2627 = vld [vmem:[%s8 + $0xee8] sm:$0xff]
  %v2628 = vld [vmem:[%s8 + $0xef0] sm:$0xff]
  %v2629 = vld [vmem:[%s8 + $0xef8] sm:$0xff]
  %v2630 = vld [vmem:[%s8 + $0xf00] sm:$0xff]
  %v2631 = vld [vmem:[%s8 + $0xf08] sm:$0xff]
  %v2632 = vld [vmem:[%s8 + $0xf10] sm:$0xff]
  %v2633 = vld [vmem:[%s8 + $0xf18] sm:$0xff]
  %v2634 = vld [vmem:[%s8 + $0xf20] sm:$0xff]
  %v2635 = vld [vmem:[%s8 + $0xf28] sm:$0xff]
  %v2636 = vld [vmem:[%s8 + $0xf30] sm:$0xff]
  %v2637 = vld [vmem:[%s8 + $0xf38] sm:$0xff]
  %v2638 = vld [vmem:[%s8 + $0xf40] sm:$0xff]
  %v2639 = vld [vmem:[%s8 + $0xf48] sm:$0xff]
  %v2640 = vld [vmem:[%s8 + $0xf50] sm:$0xff]
  %v2641 = vld [vmem:[%s8 + $0xf58] sm:$0xff]
  %v2642 = vld [vmem:[%s8 + $0xf60] sm:$0xff]
  %v2643 = vld [vmem:[%s8 + $0xf68] sm:$0xff]
  %v2644 = vld [vmem:[%s8 + $0xf70] sm:$0xff]
  %v2645 = vld [vmem:[%s8 + $0xf78] sm:$0xff]
  %v2646 = vld [vmem:[%s8 + $0xf80] sm:$0xff]
  %v2647 = vld [vmem:[%s8 + $0xf88] sm:$0xff]
  %v2648 = vld [vmem:[%s8 + $0xf90] sm:$0xff]
  %v2649 = vld [vmem:[%s8 + $0xf98] sm:$0xff]
  %v2650 = vld [vmem:[%s8 + $0xfa0] sm:$0xff]
  %v2651 = vld [vmem:[%s8 + $0xfa8] sm:$0xff]
  %v2652 = vld [vmem:[%s8 + $0xfb0] sm:$0xff]
  %v2653 = vld [vmem:[%s8 + $0xfb8] sm:$0xff]
  %v2654 = vld [vmem:[%s8 + $0xfc0] sm:$0xff]
  %v2655 = vld [vmem:[%s8 + $0xfc8] sm:$0xff]
  %v2656 = vld [vmem:[%s8 + $0xfd0] sm:$0xff]
  %v2657 = vld [vmem:[%s8 + $0xfd8] sm:$0xff]
  %v2658 = vld [vmem:[%s8 + $0xfe0] sm:$0xff]
  %v2659 = vld [vmem:[%s8 + $0xfe8] sm:$0xff]
  %v2660 = vld [vmem:[%s8 + $0xff0] sm:$0xff]
  %v2661 = vld [vmem:[%s8 + $0xff8] sm:$0xff]
  %v2662 = vld [vmem:[%s8 + $0x1000] sm:$0xff]
  %v2663 = vld [vmem:[%s8 + $0x1008] sm:$0xff]
  %v2664 = vld [vmem:[%s8 + $0x1010] sm:$0xff]
  %v2665 = vld [vmem:[%s8 + $0x1018] sm:$0xff]
  %v2666 = vld [vmem:[%s8 + $0x1020] sm:$0xff]
  %v2667 = vld [vmem:[%s8 + $0x1028] sm:$0xff]
  %v2668 = vld [vmem:[%s8 + $0x1030] sm:$0xff]
  %v2669 = vld [vmem:[%s8 + $0x1038] sm:$0xff]
  %v2670 = vld [vmem:[%s8 + $0x1040] sm:$0xff]
  %v2671 = vld [vmem:[%s8 + $0x1048] sm:$0xff]
  %v2672 = vld [vmem:[%s8 + $0x1050] sm:$0xff]
  %v2673 = vld [vmem:[%s8 + $0x1058] sm:$0xff]
  %v2674 = vld [vmem:[%s8 + $0x1060] sm:$0xff]
  %v2675 = vld [vmem:[%s8 + $0x1068] sm:$0xff]
  %v2676 = vld [vmem:[%s8 + $0x1070] sm:$0xff]
  %v2677 = vld [vmem:[%s8 + $0x1078] sm:$0xff]
  %v2678 = vld [vmem:[%s8 + $0x1080] sm:$0xff]
  %v2679 = vld [vmem:[%s8 + $0x1088] sm:$0xff]
  %v2680 = vld [vmem:[%s8 + $0x1090] sm:$0xff]
  %v2681 = vld [vmem:[%s8 + $0x1098] sm:$0xff]
  %v2682 = vld [vmem:[%s8 + $0x10a0] sm:$0xff]
  %v2683 = vld [vmem:[%s8 + $0x10a8] sm:$0xff]
  %v2684 = vld [vmem:[%s8 + $0x10b0] sm:$0xff]
  %v2685 = vld [vmem:[%s8 + $0x10b8] sm:$0xff]
  %v2686 = vld [vmem:[%s8 + $0x10c0] sm:$0xff]
  %v2687 = vld [vmem:[%s8 + $0x10c8] sm:$0xff]
  %v2688 = vld [vmem:[%s8 + $0x10d0] sm:$0xff]
  %v2689 = vld [vmem:[%s8 + $0x10d8] sm:$0xff]
  %v2690 = vld [vmem:[%s8 + $0x10e0] sm:$0xff]
  %v2691 = vld [vmem:[%s8 + $0x10e8] sm:$0xff]
  %v2692 = vld [vmem:[%s8 + $0x10f0] sm:$0xff]
  %v2693 = vld [vmem:[%s8 + $0x10f8] sm:$0xff]
  %v2694 = vld [vmem:[%s8 + $0x1100] sm:$0xff]
  %v2695 = vld [vmem:[%s8 + $0x1108] sm:$0xff]
  %v2696 = vld [vmem:[%s8 + $0x1110] sm:$0xff]
  %v2697 = vld [vmem:[%s8 + $0x1118] sm:$0xff]
  %v2698 = vld [vmem:[%s8 + $0x1120] sm:$0xff]
  %v2699 = vld [vmem:[%s8 + $0x1128] sm:$0xff]
  %v2700 = vld [vmem:[%s8 + $0x1130] sm:$0xff]
  %v2701 = vld [vmem:[%s8 + $0x1138] sm:$0xff]
  %v2702 = vld [vmem:[%s8 + $0x1140] sm:$0xff]
  %v2703 = vld [vmem:[%s8 + $0x1148] sm:$0xff]
  %v2704 = vld [vmem:[%s8 + $0x1150] sm:$0xff]
  %v2705 = vld [vmem:[%s8 + $0x1158] sm:$0xff]
  %v2706 = vld [vmem:[%s8 + $0x1160] sm:$0xff]
  %v2707 = vld [vmem:[%s8 + $0x1168] sm:$0xff]
  %v2708 = vld [vmem:[%s8 + $0x1170] sm:$0xff]
  %v2709 = vld [vmem:[%s8 + $0x1178] sm:$0xff]
  %v2710 = vld [vmem:[%s8 + $0x1180] sm:$0xff]
  %v2711 = vld [vmem:[%s8 + $0x1188] sm:$0xff]
  %v2712 = vld [vmem:[%s8 + $0x1190] sm:$0xff]
  %v2713 = vld [vmem:[%s8 + $0x1198] sm:$0xff]
  %v2714 = vld [vmem:[%s8 + $0x11a0] sm:$0xff]
  %v2715 = vld [vmem:[%s8 + $0x11a8] sm:$0xff]
  %v2716 = vld [vmem:[%s8 + $0x11b0] sm:$0xff]
  %v2717 = vld [vmem:[%s8 + $0x11b8] sm:$0xff]
  %v2718 = vld [vmem:[%s8 + $0x11c0] sm:$0xff]
  %v2719 = vld [vmem:[%s8 + $0x11c8] sm:$0xff]
  %v2720 = vld [vmem:[%s8 + $0x11d0] sm:$0xff]
  %v2721 = vld [vmem:[%s8 + $0x11d8] sm:$0xff]
  %v2722 = vld [vmem:[%s8 + $0x11e0] sm:$0xff]
  %v2723 = vld [vmem:[%s8 + $0x11e8] sm:$0xff]
  %v2724 = vld [vmem:[%s8 + $0x11f0] sm:$0xff]
  %v2725 = vld [vmem:[%s8 + $0x11f8] sm:$0xff]
  %v2726 = vld [vmem:[%s8 + $0x1200] sm:$0xff]
  %v2727 = vld [vmem:[%s8 + $0x1208] sm:$0xff]
  %v2728 = vld [vmem:[%s8 + $0x1210] sm:$0xff]
  %v2729 = vld [vmem:[%s8 + $0x1218] sm:$0xff]
  %v2730 = vld [vmem:[%s8 + $0x1220] sm:$0xff]
  %v2731 = vld [vmem:[%s8 + $0x1228] sm:$0xff]
  %v2732 = vld [vmem:[%s8 + $0x1230] sm:$0xff]
  %v2733 = vld [vmem:[%s8 + $0x1238] sm:$0xff]
  %v2734 = vld [vmem:[%s8 + $0x1240] sm:$0xff]
  %v2735 = vld [vmem:[%s8 + $0x1248] sm:$0xff]
  %v2736 = vld [vmem:[%s8 + $0x1250] sm:$0xff]
  %v2737 = vld [vmem:[%s8 + $0x1258] sm:$0xff]
  %v2738 = vld [vmem:[%s8 + $0x1260] sm:$0xff]
  %v2739 = vld [vmem:[%s8 + $0x1268] sm:$0xff]
  %v2740 = vld [vmem:[%s8 + $0x1270] sm:$0xff]
  %v2741 = vld [vmem:[%s8 + $0x1278] sm:$0xff]
  %v2742 = vld [vmem:[%s8 + $0x1280] sm:$0xff]
  %v2743 = vld [vmem:[%s8 + $0x1288] sm:$0xff]
  %v2744 = vld [vmem:[%s8 + $0x1290] sm:$0xff]
  %v2745 = vld [vmem:[%s8 + $0x1298] sm:$0xff]
  %v2746 = vld [vmem:[%s8 + $0x12a0] sm:$0xff]
  %v2747 = vld [vmem:[%s8 + $0x12a8] sm:$0xff]
  %v2748 = vld [vmem:[%s8 + $0x12b0] sm:$0xff]
  %v2749 = vld [vmem:[%s8 + $0x12b8] sm:$0xff]
  %v2750 = vld [vmem:[%s8 + $0x12c0] sm:$0xff]
  %v2751 = vld [vmem:[%s8 + $0x12c8] sm:$0xff]
  %v2752 = vld [vmem:[%s8 + $0x12d0] sm:$0xff]
  %v2753 = vld [vmem:[%s8 + $0x12d8] sm:$0xff]
  %v2754 = vld [vmem:[%s8 + $0x12e0] sm:$0xff]
  %v2755 = vld [vmem:[%s8 + $0x12e8] sm:$0xff]
  %v2756 = vld [vmem:[%s8 + $0x12f0] sm:$0xff]
  %v2757 = vld [vmem:[%s8 + $0x12f8] sm:$0xff]
  %v2758 = vld [vmem:[%s8 + $0x1300] sm:$0xff]
  %v2759 = vld [vmem:[%s8 + $0x1308] sm:$0xff]
  %v2760 = vld [vmem:[%s8 + $0x1310] sm:$0xff]
  %v2761 = vld [vmem:[%s8 + $0x1318] sm:$0xff]
  %v2762 = vld [vmem:[%s8 + $0x1320] sm:$0xff]
  %v2763 = vld [vmem:[%s8 + $0x1328] sm:$0xff]
  %v2764 = vld [vmem:[%s8 + $0x1330] sm:$0xff]
  %v2765 = vld [vmem:[%s8 + $0x1338] sm:$0xff]
  %v2766 = vld [vmem:[%s8 + $0x1340] sm:$0xff]
  %v2767 = vld [vmem:[%s8 + $0x1348] sm:$0xff]
  %v2768 = vld [vmem:[%s8 + $0x1350] sm:$0xff]
  %v2769 = vld [vmem:[%s8 + $0x1358] sm:$0xff]
  %v2770 = vld [vmem:[%s8 + $0x1360] sm:$0xff]
  %v2771 = vld [vmem:[%s8 + $0x1368] sm:$0xff]
  %v2772 = vld [vmem:[%s8 + $0x1370] sm:$0xff]
  %v2773 = vld [vmem:[%s8 + $0x1378] sm:$0xff]
  %v2774 = vld [vmem:[%s8 + $0x1380] sm:$0xff]
  %v2775 = vld [vmem:[%s8 + $0x1388] sm:$0xff]
  %v2776 = vld [vmem:[%s8 + $0x1390] sm:$0xff]
  %v2777 = vld [vmem:[%s8 + $0x1398] sm:$0xff]
  %v2778 = vld [vmem:[%s8 + $0x13a0] sm:$0xff]
  %v2779 = vld [vmem:[%s8 + $0x13a8] sm:$0xff]
  %v2780 = vld [vmem:[%s8 + $0x13b0] sm:$0xff]
  %v2781 = vld [vmem:[%s8 + $0x13b8] sm:$0xff]
  %v2782 = vld [vmem:[%s8 + $0x13c0] sm:$0xff]
  %v2783 = vld [vmem:[%s8 + $0x13c8] sm:$0xff]
  %v2784 = vld [vmem:[%s8 + $0x13d0] sm:$0xff]
  %v2785 = vld [vmem:[%s8 + $0x13d8] sm:$0xff]
  %v2786 = vld [vmem:[%s8 + $0x13e0] sm:$0xff]
  %v2787 = vld [vmem:[%s8 + $0x13e8] sm:$0xff]
  %v2788 = vld [vmem:[%s8 + $0x13f0] sm:$0xff]
  %v2789 = vld [vmem:[%s8 + $0x13f8] sm:$0xff]
  %v2790 = vld [vmem:[%s8 + $0x1400] sm:$0xff]
  %v2791 = vld [vmem:[%s8 + $0x1408] sm:$0xff]
  %v2792 = vld [vmem:[%s8 + $0x1410] sm:$0xff]
  %v2793 = vld [vmem:[%s8 + $0x1418] sm:$0xff]
  %v2794 = vld [vmem:[%s8 + $0x1420] sm:$0xff]
  %v2795 = vld [vmem:[%s8 + $0x1428] sm:$0xff]
  %v2796 = vld [vmem:[%s8 + $0x1430] sm:$0xff]
  %v2797 = vld [vmem:[%s8 + $0x1438] sm:$0xff]
  %v2798 = vld [vmem:[%s8 + $0x1440] sm:$0xff]
  %v2799 = vld [vmem:[%s8 + $0x1448] sm:$0xff]
  %v2800 = vld [vmem:[%s8 + $0x1450] sm:$0xff]
  %v2801 = vld [vmem:[%s8 + $0x1458] sm:$0xff]
  %v2802 = vld [vmem:[%s8 + $0x1460] sm:$0xff]
  %v2803 = vld [vmem:[%s8 + $0x1468] sm:$0xff]
  %v2804 = vld [vmem:[%s8 + $0x1470] sm:$0xff]
  %v2805 = vld [vmem:[%s8 + $0x1478] sm:$0xff]
  %v2806 = vld [vmem:[%s8 + $0x1480] sm:$0xff]
  %v2807 = vld [vmem:[%s8 + $0x1488] sm:$0xff]
  %v2808 = vld [vmem:[%s8 + $0x1490] sm:$0xff]
  %v2809 = vld [vmem:[%s8 + $0x1498] sm:$0xff]
  %v2810 = vld [vmem:[%s8 + $0x14a0] sm:$0xff]
  %v2811 = vld [vmem:[%s8 + $0x14a8] sm:$0xff]
  %v2812 = vld [vmem:[%s8 + $0x14b0] sm:$0xff]
  %v2813 = vld [vmem:[%s8 + $0x14b8] sm:$0xff]
  %v2814 = vld [vmem:[%s8 + $0x14c0] sm:$0xff]
  %v2815 = vld [vmem:[%s8 + $0x14c8] sm:$0xff]
  %v2816 = vld [vmem:[%s8 + $0x14d0] sm:$0xff]
  %v2817 = vld [vmem:[%s8 + $0x14d8] sm:$0xff]
  %v2818 = vld [vmem:[%s8 + $0x14e0] sm:$0xff]
  %v2819 = vld [vmem:[%s8 + $0x14e8] sm:$0xff]
  %v2820 = vld [vmem:[%s8 + $0x14f0] sm:$0xff]
  %v2821 = vld [vmem:[%s8 + $0x14f8] sm:$0xff]
  %v2822 = vld [vmem:[%s8 + $0x1500] sm:$0xff]
  %v2823 = vld [vmem:[%s8 + $0x1508] sm:$0xff]
  %v2824 = vld [vmem:[%s8 + $0x1510] sm:$0xff]
  %v2825 = vld [vmem:[%s8 + $0x1518] sm:$0xff]
  %v2826 = vld [vmem:[%s8 + $0x1520] sm:$0xff]
  %v2827 = vld [vmem:[%s8 + $0x1528] sm:$0xff]
  %v2828 = vld [vmem:[%s8 + $0x1530] sm:$0xff]
  %v2829 = vld [vmem:[%s8 + $0x1538] sm:$0xff]
  %v2830 = vld [vmem:[%s8 + $0x1540] sm:$0xff]
  %v2831 = vld [vmem:[%s8 + $0x1548] sm:$0xff]
  %v2832 = vld [vmem:[%s8 + $0x1550] sm:$0xff]
  %v2833 = vld [vmem:[%s8 + $0x1558] sm:$0xff]
  %v2834 = vld [vmem:[%s8 + $0x1560] sm:$0xff]
  %v2835 = vld [vmem:[%s8 + $0x1568] sm:$0xff]
  %v2836 = vld [vmem:[%s8 + $0x1570] sm:$0xff]
  %v2837 = vld [vmem:[%s8 + $0x1578] sm:$0xff]
  %v2838 = vld [vmem:[%s8 + $0x1580] sm:$0xff]
  %v2839 = vld [vmem:[%s8 + $0x1588] sm:$0xff]
  %v2840 = vld [vmem:[%s8 + $0x1590] sm:$0xff]
  %v2841 = vld [vmem:[%s8 + $0x1598] sm:$0xff]
  %v2842 = vld [vmem:[%s8 + $0x15a0] sm:$0xff]
  %v2843 = vld [vmem:[%s8 + $0x15a8] sm:$0xff]
  %v2844 = vld [vmem:[%s8 + $0x15b0] sm:$0xff]
  %v2845 = vld [vmem:[%s8 + $0x15b8] sm:$0xff]
  %v2846 = vld [vmem:[%s8 + $0x15c0] sm:$0xff]
  %v2847 = vld [vmem:[%s8 + $0x15c8] sm:$0xff]
  %v2848 = vld [vmem:[%s8 + $0x15d0] sm:$0xff]
  %v2849 = vld [vmem:[%s8 + $0x15d8] sm:$0xff]
  %v2850 = vld [vmem:[%s8 + $0x15e0] sm:$0xff]
  %v2851 = vld [vmem:[%s8 + $0x15e8] sm:$0xff]
  %v2852 = vld [vmem:[%s8 + $0x15f0] sm:$0xff]
  %v2853 = vld [vmem:[%s8 + $0x15f8] sm:$0xff]
  %v2854 = vld [vmem:[%s8 + $0x1600] sm:$0xff]
  %v2855 = vld [vmem:[%s8 + $0x1608] sm:$0xff]
  %v2856 = vld [vmem:[%s8 + $0x1610] sm:$0xff]
  %v2857 = vld [vmem:[%s8 + $0x1618] sm:$0xff]
  %v2858 = vld [vmem:[%s8 + $0x1620] sm:$0xff]
  %v2859 = vld [vmem:[%s8 + $0x1628] sm:$0xff]
  %v2860 = vld [vmem:[%s8 + $0x1630] sm:$0xff]
  %v2861 = vld [vmem:[%s8 + $0x1638] sm:$0xff]
  %v2862 = vld [vmem:[%s8 + $0x1640] sm:$0xff]
  %v2863 = vld [vmem:[%s8 + $0x1648] sm:$0xff]
  %v2864 = vld [vmem:[%s8 + $0x1650] sm:$0xff]
  %v2865 = vld [vmem:[%s8 + $0x1658] sm:$0xff]
  %v2866 = vld [vmem:[%s8 + $0x1660] sm:$0xff]
  %v2867 = vld [vmem:[%s8 + $0x1668] sm:$0xff]
  %v2868 = vld [vmem:[%s8 + $0x1670] sm:$0xff]
  %v2869 = vld [vmem:[%s8 + $0x1678] sm:$0xff]
  %v2870 = vld [vmem:[%s8 + $0x1680] sm:$0xff]
  %v2871 = vld [vmem:[%s8 + $0x1688] sm:$0xff]
  %v2872 = vld [vmem:[%s8 + $0x1690] sm:$0xff]
  %v2873 = vld [vmem:[%s8 + $0x1698] sm:$0xff]
  %v2874 = vld [vmem:[%s8 + $0x16a0] sm:$0xff]
  %v2875 = vld [vmem:[%s8 + $0x16a8] sm:$0xff]
  %v2876 = vld [vmem:[%s8 + $0x16b0] sm:$0xff]
  %v2877 = vld [vmem:[%s8 + $0x16b8] sm:$0xff]
  %v2878 = vld [vmem:[%s8 + $0x16c0] sm:$0xff]
  %v2879 = vld [vmem:[%s8 + $0x16c8] sm:$0xff]
  %v2880 = vld [vmem:[%s8 + $0x16d0] sm:$0xff]
  %v2881 = vld [vmem:[%s8 + $0x16d8] sm:$0xff]
  %v2882 = vld [vmem:[%s8 + $0x16e0] sm:$0xff]
  %v2883 = vld [vmem:[%s8 + $0x16e8] sm:$0xff]
  %v2884 = vld [vmem:[%s8 + $0x16f0] sm:$0xff]
  %v2885 = vld [vmem:[%s8 + $0x16f8] sm:$0xff]
  %v2886 = vld [vmem:[%s8 + $0x1700] sm:$0xff]
  %v2887 = vld [vmem:[%s8 + $0x1708] sm:$0xff]
  %v2888 = vld [vmem:[%s8 + $0x1710] sm:$0xff]
  %v2889 = vld [vmem:[%s8 + $0x1718] sm:$0xff]
  %v2890 = vld [vmem:[%s8 + $0x1720] sm:$0xff]
  %v2891 = vld [vmem:[%s8 + $0x1728] sm:$0xff]
  %v2892 = vld [vmem:[%s8 + $0x1730] sm:$0xff]
  %v2893 = vld [vmem:[%s8 + $0x1738] sm:$0xff]
  %v2894 = vld [vmem:[%s8 + $0x1740] sm:$0xff]
  %v2895 = vld [vmem:[%s8 + $0x1748] sm:$0xff]
  %v2896 = vld [vmem:[%s8 + $0x1750] sm:$0xff]
  %v2897 = vld [vmem:[%s8 + $0x1758] sm:$0xff]
  %v2898 = vld [vmem:[%s8 + $0x1760] sm:$0xff]
  %v2899 = vld [vmem:[%s8 + $0x1768] sm:$0xff]
  %v2900 = vld [vmem:[%s8 + $0x1770] sm:$0xff]
  %v2901 = vld [vmem:[%s8 + $0x1778] sm:$0xff]
  %v2902 = vld [vmem:[%s8 + $0x1780] sm:$0xff]
  %v2903 = vld [vmem:[%s8 + $0x1788] sm:$0xff]
  %v2904 = vld [vmem:[%s8 + $0x1790] sm:$0xff]
  %v2905 = vld [vmem:[%s8 + $0x1798] sm:$0xff]
  %v2906 = vld [vmem:[%s8 + $0x17a0] sm:$0xff]
  %v2907 = vld [vmem:[%s8 + $0x17a8] sm:$0xff]
  %v2908 = vld [vmem:[%s8 + $0x17b0] sm:$0xff]
  %v2909 = vld [vmem:[%s8 + $0x17b8] sm:$0xff]
  %v2910 = vld [vmem:[%s8 + $0x17c0] sm:$0xff]
  %v2911 = vld [vmem:[%s8 + $0x17c8] sm:$0xff]
  %v2912 = vld [vmem:[%s8 + $0x17d0] sm:$0xff]
  %v2913 = vld [vmem:[%s8 + $0x17d8] sm:$0xff]
  %v2914 = vld [vmem:[%s8 + $0x17e0] sm:$0xff]
  %v2915 = vld [vmem:[%s8 + $0x17e8] sm:$0xff]
  %v2916 = vld [vmem:[%s8 + $0x17f0] sm:$0xff]
  %v2917 = vld [vmem:[%s8 + $0x17f8] sm:$0xff]
  %v2918 = vld [vmem:[%s8 + $0x1800] sm:$0xff]
  %v2919 = vld [vmem:[%s8 + $0x1808] sm:$0xff]
  %v2920 = vld [vmem:[%s8 + $0x1810] sm:$0xff]
  %v2921 = vld [vmem:[%s8 + $0x1818] sm:$0xff]
  %v2922 = vld [vmem:[%s8 + $0x1820] sm:$0xff]
  %v2923 = vld [vmem:[%s8 + $0x1828] sm:$0xff]
  %v2924 = vld [vmem:[%s8 + $0x1830] sm:$0xff]
  %v2925 = vld [vmem:[%s8 + $0x1838] sm:$0xff]
  %v2926 = vld [vmem:[%s8 + $0x1840] sm:$0xff]
  %v2927 = vld [vmem:[%s8 + $0x1848] sm:$0xff]
  %v2928 = vld [vmem:[%s8 + $0x1850] sm:$0xff]
  %v2929 = vld [vmem:[%s8 + $0x1858] sm:$0xff]
  %v2930 = vld [vmem:[%s8 + $0x1860] sm:$0xff]
  %v2931 = vld [vmem:[%s8 + $0x1868] sm:$0xff]
  %v2932 = vld [vmem:[%s8 + $0x1870] sm:$0xff]
  %v2933 = vld [vmem:[%s8 + $0x1878] sm:$0xff]
  %v2934 = vld [vmem:[%s8 + $0x1880] sm:$0xff]
  %v2935 = vld [vmem:[%s8 + $0x1888] sm:$0xff]
  %v2936 = vld [vmem:[%s8 + $0x1890] sm:$0xff]
  %v2937 = vld [vmem:[%s8 + $0x1898] sm:$0xff]
  %v2938 = vld [vmem:[%s8 + $0x18a0] sm:$0xff]
  %v2939 = vld [vmem:[%s8 + $0x18a8] sm:$0xff]
  %v2940 = vld [vmem:[%s8 + $0x18b0] sm:$0xff]
  %v2941 = vld [vmem:[%s8 + $0x18b8] sm:$0xff]
  %v2942 = vld [vmem:[%s8 + $0x18c0] sm:$0xff]
  %v2943 = vld [vmem:[%s8 + $0x18c8] sm:$0xff]
  %v2944 = vld [vmem:[%s8 + $0x18d0] sm:$0xff]
  %v2945 = vld [vmem:[%s8 + $0x18d8] sm:$0xff]
  %v2946 = vld [vmem:[%s8 + $0x18e0] sm:$0xff]
  %v2947 = vld [vmem:[%s8 + $0x18e8] sm:$0xff]
  %v2948 = vld [vmem:[%s8 + $0x18f0] sm:$0xff]
  %v2949 = vld [vmem:[%s8 + $0x18f8] sm:$0xff]
  %v2950 = vld [vmem:[%s8 + $0x1900] sm:$0xff]
  %v2951 = vld [vmem:[%s8 + $0x1908] sm:$0xff]
  %v2952 = vld [vmem:[%s8 + $0x1910] sm:$0xff]
  %v2953 = vld [vmem:[%s8 + $0x1918] sm:$0xff]
  %v2954 = vld [vmem:[%s8 + $0x1920] sm:$0xff]
  %v2955 = vld [vmem:[%s8 + $0x1928] sm:$0xff]
  %v2956 = vld [vmem:[%s8 + $0x1930] sm:$0xff]
  %v2957 = vld [vmem:[%s8 + $0x1938] sm:$0xff]
  %v2958 = vld [vmem:[%s8 + $0x1940] sm:$0xff]
  %v2959 = vld [vmem:[%s8 + $0x1948] sm:$0xff]
  %v2960 = vld [vmem:[%s8 + $0x1950] sm:$0xff]
  %v2961 = vld [vmem:[%s8 + $0x1958] sm:$0xff]
  %v2962 = vld [vmem:[%s8 + $0x1960] sm:$0xff]
  %v2963 = vld [vmem:[%s8 + $0x1968] sm:$0xff]
  %v2964 = vld [vmem:[%s8 + $0x1970] sm:$0xff]
  %v2965 = vld [vmem:[%s8 + $0x1978] sm:$0xff]
  %v2966 = vld [vmem:[%s8 + $0x1980] sm:$0xff]
  %v2967 = vld [vmem:[%s8 + $0x1988] sm:$0xff]
  %v2968 = vld [vmem:[%s8 + $0x1990] sm:$0xff]
  %v2969 = vld [vmem:[%s8 + $0x1998] sm:$0xff]
  %v2970 = vld [vmem:[%s8 + $0x19a0] sm:$0xff]
  %v2971 = vld [vmem:[%s8 + $0x19a8] sm:$0xff]
  %v2972 = vld [vmem:[%s8 + $0x19b0] sm:$0xff]
  %v2973 = vld [vmem:[%s8 + $0x19b8] sm:$0xff]
  %v2974 = vld [vmem:[%s8 + $0x19c0] sm:$0xff]
  %v2975 = vld [vmem:[%s8 + $0x19c8] sm:$0xff]
  %v2976 = vld [vmem:[%s8 + $0x19d0] sm:$0xff]
  %v2977 = vld [vmem:[%s8 + $0x19d8] sm:$0xff]
  %v2978 = vld [vmem:[%s8 + $0x19e0] sm:$0xff]
  %v2979 = vld [vmem:[%s8 + $0x19e8] sm:$0xff]
  %v2980 = vld [vmem:[%s8 + $0x19f0] sm:$0xff]
  %v2981 = vld [vmem:[%s8 + $0x19f8] sm:$0xff]
  %v2982 = vld [vmem:[%s8 + $0x1a00] sm:$0xff]
  %v2983 = vld [vmem:[%s8 + $0x1a08] sm:$0xff]
  %v2984 = vld [vmem:[%s8 + $0x1a10] sm:$0xff]
  %v2985 = vld [vmem:[%s8 + $0x1a18] sm:$0xff]
  %v2986 = vld [vmem:[%s8 + $0x1a20] sm:$0xff]
  %v2987 = vld [vmem:[%s8 + $0x1a28] sm:$0xff]
  %v2988 = vld [vmem:[%s8 + $0x1a30] sm:$0xff]
  %v2989 = vld [vmem:[%s8 + $0x1a38] sm:$0xff]
  %v2990 = vld [vmem:[%s8 + $0x1a40] sm:$0xff]
  %v2991 = vld [vmem:[%s8 + $0x1a48] sm:$0xff]
  %v2992 = vld [vmem:[%s8 + $0x1a50] sm:$0xff]
  %v2993 = vld [vmem:[%s8 + $0x1a58] sm:$0xff]
  %v2994 = vld [vmem:[%s8 + $0x1a60] sm:$0xff]
  %v2995 = vld [vmem:[%s8 + $0x1a68] sm:$0xff]
  %v2996 = vld [vmem:[%s8 + $0x1a70] sm:$0xff]
  %v2997 = vld [vmem:[%s8 + $0x1a78] sm:$0xff]
  %v2998 = vld [vmem:[%s8 + $0x1a80] sm:$0xff]
  %v2999 = vld [vmem:[%s8 + $0x1a88] sm:$0xff]
  %v3000 = vld [vmem:[%s8 + $0x1a90] sm:$0xff]
  %v3001 = vld [vmem:[%s8 + $0x1a98] sm:$0xff]
  %v3002 = vld [vmem:[%s8 + $0x1aa0] sm:$0xff]
  %v3003 = vld [vmem:[%s8 + $0x1aa8] sm:$0xff]
  %v3004 = vld [vmem:[%s8 + $0x1ab0] sm:$0xff]
  %v3005 = vld [vmem:[%s8 + $0x1ab8] sm:$0xff]
  %v3006 = vld [vmem:[%s8 + $0x1ac0] sm:$0xff]
  %v3007 = vld [vmem:[%s8 + $0x1ac8] sm:$0xff]
  %v3008 = vld [vmem:[%s8 + $0x1ad0] sm:$0xff]
  %v3009 = vld [vmem:[%s8 + $0x1ad8] sm:$0xff]
  %v3010 = vld [vmem:[%s8 + $0x1ae0] sm:$0xff]
  %v3011 = vld [vmem:[%s8 + $0x1ae8] sm:$0xff]
  %v3012 = vld [vmem:[%s8 + $0x1af0] sm:$0xff]
  %v3013 = vld [vmem:[%s8 + $0x1af8] sm:$0xff]
  %v3014 = vld [vmem:[%s8 + $0x1b00] sm:$0xff]
  %v3015 = vld [vmem:[%s8 + $0x1b08] sm:$0xff]
  %v3016 = vld [vmem:[%s8 + $0x1b10] sm:$0xff]
  %v3017 = vld [vmem:[%s8 + $0x1b18] sm:$0xff]
  %v3018 = vld [vmem:[%s8 + $0x1b20] sm:$0xff]
  %v3019 = vld [vmem:[%s8 + $0x1b28] sm:$0xff]
  %v3020 = vld [vmem:[%s8 + $0x1b30] sm:$0xff]
  %v3021 = vld [vmem:[%s8 + $0x1b38] sm:$0xff]
  %v3022 = vld [vmem:[%s8 + $0x1b40] sm:$0xff]
  %v3023 = vld [vmem:[%s8 + $0x1b48] sm:$0xff]
  %v3024 = vld [vmem:[%s8 + $0x1b50] sm:$0xff]
  %v3025 = vld [vmem:[%s8 + $0x1b58] sm:$0xff]
  %v3026 = vld [vmem:[%s8 + $0x1b60] sm:$0xff]
  %v3027 = vld [vmem:[%s8 + $0x1b68] sm:$0xff]
  %v3028 = vld [vmem:[%s8 + $0x1b70] sm:$0xff]
  %v3029 = vld [vmem:[%s8 + $0x1b78] sm:$0xff]
  %v3030 = vld [vmem:[%s8 + $0x1b80] sm:$0xff]
  %v3031 = vld [vmem:[%s8 + $0x1b88] sm:$0xff]
  %v3032 = vld [vmem:[%s8 + $0x1b90] sm:$0xff]
  %v3033 = vld [vmem:[%s8 + $0x1b98] sm:$0xff]
  %v3034 = vld [vmem:[%s8 + $0x1ba0] sm:$0xff]
  %v3035 = vld [vmem:[%s8 + $0x1ba8] sm:$0xff]
  %v3036 = vld [vmem:[%s8 + $0x1bb0] sm:$0xff]
  %v3037 = vld [vmem:[%s8 + $0x1bb8] sm:$0xff]
  %v3038 = vld [vmem:[%s8 + $0x1bc0] sm:$0xff]
  %v3039 = vld [vmem:[%s8 + $0x1bc8] sm:$0xff]
  %v3040 = vld [vmem:[%s8 + $0x1bd0] sm:$0xff]
  %v3041 = vld [vmem:[%s8 + $0x1bd8] sm:$0xff]
  %v3042 = vld [vmem:[%s8 + $0x1be0] sm:$0xff]
  %v3043 = vld [vmem:[%s8 + $0x1be8] sm:$0xff]
  %v3044 = vld [vmem:[%s8 + $0x1bf0] sm:$0xff]
  %v3045 = vld [vmem:[%s8 + $0x1bf8] sm:$0xff]
  %v3046 = vld [vmem:[%s8 + $0x1c00] sm:$0xff]
  %v3047 = vld [vmem:[%s8 + $0x1c08] sm:$0xff]
  %v3048 = vld [vmem:[%s8 + $0x1c10] sm:$0xff]
  %v3049 = vld [vmem:[%s8 + $0x1c18] sm:$0xff]
  %v3050 = vld [vmem:[%s8 + $0x1c20] sm:$0xff]
  %v3051 = vld [vmem:[%s8 + $0x1c28] sm:$0xff]
  %v3052 = vld [vmem:[%s8 + $0x1c30] sm:$0xff]
  %v3053 = vld [vmem:[%s8 + $0x1c38] sm:$0xff]
  %v3054 = vld [vmem:[%s8 + $0x1c40] sm:$0xff]
  %v3055 = vld [vmem:[%s8 + $0x1c48] sm:$0xff]
  %v3056 = vld [vmem:[%s8 + $0x1c50] sm:$0xff]
  %v3057 = vld [vmem:[%s8 + $0x1c58] sm:$0xff]
  %v3058 = vld [vmem:[%s8 + $0x1c60] sm:$0xff]
  %v3059 = vld [vmem:[%s8 + $0x1c68] sm:$0xff]
  %v3060 = vld [vmem:[%s8 + $0x1c70] sm:$0xff]
  %v3061 = vld [vmem:[%s8 + $0x1c78] sm:$0xff]
  %v3062 = vld [vmem:[%s8 + $0x1c80] sm:$0xff]
  %v3063 = vld [vmem:[%s8 + $0x1c88] sm:$0xff]
  %v3064 = vld [vmem:[%s8 + $0x1c90] sm:$0xff]
  %v3065 = vld [vmem:[%s8 + $0x1c98] sm:$0xff]
  %v3066 = vld [vmem:[%s8 + $0x1ca0] sm:$0xff]
  %v3067 = vld [vmem:[%s8 + $0x1ca8] sm:$0xff]
  %v3068 = vld [vmem:[%s8 + $0x1cb0] sm:$0xff]
  %v3069 = vld [vmem:[%s8 + $0x1cb8] sm:$0xff]
  %v3070 = vld [vmem:[%s8 + $0x1cc0] sm:$0xff]
  %v3071 = vld [vmem:[%s8 + $0x1cc8] sm:$0xff]
  %v3072 = vld [vmem:[%s8 + $0x1cd0] sm:$0xff]
  %v3073 = vld [vmem:[%s8 + $0x1cd8] sm:$0xff]
  %v3074 = vld [vmem:[%s8 + $0x1ce0] sm:$0xff]
  %v3075 = vld [vmem:[%s8 + $0x1ce8] sm:$0xff]
  %v3076 = vld [vmem:[%s8 + $0x1cf0] sm:$0xff]
  %v3077 = vld [vmem:[%s8 + $0x1cf8] sm:$0xff]
  %v3078 = vld [vmem:[%s8 + $0x1d00] sm:$0xff]
  %v3079 = vld [vmem:[%s8 + $0x1d08] sm:$0xff]
  %v3080 = vld [vmem:[%s8 + $0x1d10] sm:$0xff]
  %v3081 = vld [vmem:[%s8 + $0x1d18] sm:$0xff]
  %v3082 = vld [vmem:[%s8 + $0x1d20] sm:$0xff]
  %v3083 = vld [vmem:[%s8 + $0x1d28] sm:$0xff]
  %v3084 = vld [vmem:[%s8 + $0x1d30] sm:$0xff]
  %v3085 = vld [vmem:[%s8 + $0x1d38] sm:$0xff]
  %v3086 = vld [vmem:[%s8 + $0x1d40] sm:$0xff]
  %v3087 = vld [vmem:[%s8 + $0x1d48] sm:$0xff]
  %v3088 = vld [vmem:[%s8 + $0x1d50] sm:$0xff]
  %v3089 = vld [vmem:[%s8 + $0x1d58] sm:$0xff]
  %v3090 = vld [vmem:[%s8 + $0x1d60] sm:$0xff]
  %v3091 = vld [vmem:[%s8 + $0x1d68] sm:$0xff]
  %v3092 = vld [vmem:[%s8 + $0x1d70] sm:$0xff]
  %v3093 = vld [vmem:[%s8 + $0x1d78] sm:$0xff]
  %v3094 = vld [vmem:[%s8 + $0x1d80] sm:$0xff]
  %v3095 = vld [vmem:[%s8 + $0x1d88] sm:$0xff]
  %v3096 = vld [vmem:[%s8 + $0x1d90] sm:$0xff]
  %v3097 = vld [vmem:[%s8 + $0x1d98] sm:$0xff]
  %v3098 = vld [vmem:[%s8 + $0x1da0] sm:$0xff]
  %v3099 = vld [vmem:[%s8 + $0x1da8] sm:$0xff]
  %v3100 = vld [vmem:[%s8 + $0x1db0] sm:$0xff]
  %v3101 = vld [vmem:[%s8 + $0x1db8] sm:$0xff]
  %v3102 = vld [vmem:[%s8 + $0x1dc0] sm:$0xff]
  %v3103 = vld [vmem:[%s8 + $0x1dc8] sm:$0xff]
  %v3104 = vld [vmem:[%s8 + $0x1dd0] sm:$0xff]
  %v3105 = vld [vmem:[%s8 + $0x1dd8] sm:$0xff]
  %v3106 = vld [vmem:[%s8 + $0x1de0] sm:$0xff]
  %v3107 = vld [vmem:[%s8 + $0x1de8] sm:$0xff]
  %v3108 = vld [vmem:[%s8 + $0x1df0] sm:$0xff]
  %v3109 = vld [vmem:[%s8 + $0x1df8] sm:$0xff]
  %v3110 = vld [vmem:[%s8 + $0x1e00] sm:$0xff]
  %v3111 = vld [vmem:[%s8 + $0x1e08] sm:$0xff]
  %v3112 = vld [vmem:[%s8 + $0x1e10] sm:$0xff]
  %v3113 = vld [vmem:[%s8 + $0x1e18] sm:$0xff]
  %v3114 = vld [vmem:[%s8 + $0x1e20] sm:$0xff]
  %v3115 = vld [vmem:[%s8 + $0x1e28] sm:$0xff]
  %v3116 = vld [vmem:[%s8 + $0x1e30] sm:$0xff]
  %v3117 = vld [vmem:[%s8 + $0x1e38] sm:$0xff]
  %v3118 = vld [vmem:[%s8 + $0x1e40] sm:$0xff]
  %v3119 = vld [vmem:[%s8 + $0x1e48] sm:$0xff]
  %v3120 = vld [vmem:[%s8 + $0x1e50] sm:$0xff]
  %v3121 = vld [vmem:[%s8 + $0x1e58] sm:$0xff]
  %v3122 = vld [vmem:[%s8 + $0x1e60] sm:$0xff]
  %v3123 = vld [vmem:[%s8 + $0x1e68] sm:$0xff]
  %v3124 = vld [vmem:[%s8 + $0x1e70] sm:$0xff]
  %v3125 = vld [vmem:[%s8 + $0x1e78] sm:$0xff]
  %v3126 = vld [vmem:[%s8 + $0x1e80] sm:$0xff]
  %v3127 = vld [vmem:[%s8 + $0x1e88] sm:$0xff]
  %v3128 = vld [vmem:[%s8 + $0x1e90] sm:$0xff]
  %v3129 = vld [vmem:[%s8 + $0x1e98] sm:$0xff]
  %v3130 = vld [vmem:[%s8 + $0x1ea0] sm:$0xff]
  %v3131 = vld [vmem:[%s8 + $0x1ea8] sm:$0xff]
  %v3132 = vld [vmem:[%s8 + $0x1eb0] sm:$0xff]
  %v3133 = vld [vmem:[%s8 + $0x1eb8] sm:$0xff]
  %v3134 = vld [vmem:[%s8 + $0x1ec0] sm:$0xff]
  %v3135 = vld [vmem:[%s8 + $0x1ec8] sm:$0xff]
  %v3136 = vld [vmem:[%s8 + $0x1ed0] sm:$0xff]
  %v3137 = vld [vmem:[%s8 + $0x1ed8] sm:$0xff]
  %v3138 = vld [vmem:[%s8 + $0x1ee0] sm:$0xff]
  %v3139 = vld [vmem:[%s8 + $0x1ee8] sm:$0xff]
  %v3140 = vld [vmem:[%s8 + $0x1ef0] sm:$0xff]
  %v3141 = vld [vmem:[%s8 + $0x1ef8] sm:$0xff]
  %v3142 = vld [vmem:[%s8 + $0x1f00] sm:$0xff]
  %v3143 = vld [vmem:[%s8 + $0x1f08] sm:$0xff]
  %v3144 = vld [vmem:[%s8 + $0x1f10] sm:$0xff]
  %v3145 = vld [vmem:[%s8 + $0x1f18] sm:$0xff]
  %v3146 = vld [vmem:[%s8 + $0x1f20] sm:$0xff]
  %v3147 = vld [vmem:[%s8 + $0x1f28] sm:$0xff]
  %v3148 = vld [vmem:[%s8 + $0x1f30] sm:$0xff]
  %v3149 = vld [vmem:[%s8 + $0x1f38] sm:$0xff]
  %v3150 = vld [vmem:[%s8 + $0x1f40] sm:$0xff]
  %v3151 = vld [vmem:[%s8 + $0x1f48] sm:$0xff]
  %v3152 = vld [vmem:[%s8 + $0x1f50] sm:$0xff]
  %v3153 = vld [vmem:[%s8 + $0x1f58] sm:$0xff]
  %v3154 = vld [vmem:[%s8 + $0x1f60] sm:$0xff]
  %v3155 = vld [vmem:[%s8 + $0x1f68] sm:$0xff]
  %v3156 = vld [vmem:[%s8 + $0x1f70] sm:$0xff]
  %v3157 = vld [vmem:[%s8 + $0x1f78] sm:$0xff]
  %v3158 = vld [vmem:[%s8 + $0x1f80] sm:$0xff]
  %v3159 = vld [vmem:[%s8 + $0x1f88] sm:$0xff]
  %v3160 = vld [vmem:[%s8 + $0x1f90] sm:$0xff]
  %v3161 = vld [vmem:[%s8 + $0x1f98] sm:$0xff]
  %v3162 = vld [vmem:[%s8 + $0x1fa0] sm:$0xff]
  %v3163 = vld [vmem:[%s8 + $0x1fa8] sm:$0xff]
  %v3164 = vld [vmem:[%s8 + $0x1fb0] sm:$0xff]
  %v3165 = vld [vmem:[%s8 + $0x1fb8] sm:$0xff]
  %v3166 = vld [vmem:[%s8 + $0x1fc0] sm:$0xff]
  %v3167 = vld [vmem:[%s8 + $0x1fc8] sm:$0xff]
  %v3168 = vld [vmem:[%s8 + $0x1fd0] sm:$0xff]
  %v3169 = vld [vmem:[%s8 + $0x1fd8] sm:$0xff]
  %v3170 = vld [vmem:[%s8 + $0x1fe0] sm:$0xff]
  %v3171 = vld [vmem:[%s8 + $0x1fe8] sm:$0xff]
  %v3172 = vld [vmem:[%s8 + $0x1ff0] sm:$0xff]
  %v3173 = vld [vmem:[%s8 + $0x1ff8] sm:$0xff]
  %v3174 = vld [vmem:[%s9] sm:$0xff]
  %v3176 = vlaneseq
  %v3177 = vshrl.u32 %v3176, 7
  %v3178 = vsub.s32 0, %v3177
  %v3179 = vrot.slane %v3174, %v3178
  %v3180 = vlaneseq
  %v3181 = vshrl.u32 %v3180, 7
  %v3182 = vsub.s32 1, %v3181
  %v3183 = vrot.slane %v3174, %v3182
  %v3184 = vlaneseq
  %v3185 = vshrl.u32 %v3184, 7
  %v3186 = vsub.s32 2, %v3185
  %v3187 = vrot.slane %v3174, %v3186
  %v3188 = vlaneseq
  %v3189 = vshrl.u32 %v3188, 7
  %v3190 = vsub.s32 3, %v3189
  %v3191 = vrot.slane %v3174, %v3190
  %v3192 = vlaneseq
  %v3193 = vshrl.u32 %v3192, 7
  %v3194 = vsub.s32 4, %v3193
  %v3195 = vrot.slane %v3174, %v3194
  %v3196 = vlaneseq
  %v3197 = vshrl.u32 %v3196, 7
  %v3198 = vsub.s32 5, %v3197
  %v3199 = vrot.slane %v3174, %v3198
  %v3200 = vlaneseq
  %v3201 = vshrl.u32 %v3200, 7
  %v3202 = vsub.s32 6, %v3201
  %v3203 = vrot.slane %v3174, %v3202
  %v3204 = vlaneseq
  %v3205 = vshrl.u32 %v3204, 7
  %v3206 = vsub.s32 7, %v3205
  %v3207 = vrot.slane %v3174, %v3206
  %3216 = vmatprep.subr.mxu0 %v2151
  %3217 = vmatpush1.msra.mxu0 %v2150
  %3218 = vmatprep.subr.mxu0 %v2159
  %3219 = vmatpush1.msra.mxu0 %v2158
  %3220 = vmatprep.subr.mxu0 %v2167
  %3221 = vmatpush1.msra.mxu0 %v2166
  %3222 = vmatprep.subr.mxu0 %v2175
  %3223 = vmatpush1.msra.mxu0 %v2174
  %3224 = vmatprep.subr.mxu0 %v2183
  %3225 = vmatpush1.msra.mxu0 %v2182
  %3226 = vmatprep.subr.mxu0 %v2191
  %3227 = vmatpush1.msra.mxu0 %v2190
  %3228 = vmatprep.subr.mxu0 %v2199
  %3229 = vmatpush1.msra.mxu0 %v2198
  %3230 = vmatprep.subr.mxu0 %v2207
  %3231 = vmatpush1.msra.mxu0 %v2206
  %3232 = vmatprep.subr.mxu0 %v2215
  %3233 = vmatpush1.msra.mxu0 %v2214
  %3234 = vmatprep.subr.mxu0 %v2223
  %3235 = vmatpush1.msra.mxu0 %v2222
  %3236 = vmatprep.subr.mxu0 %v2231
  %3237 = vmatpush1.msra.mxu0 %v2230
  %3238 = vmatprep.subr.mxu0 %v2239
  %3239 = vmatpush1.msra.mxu0 %v2238
  %3240 = vmatprep.subr.mxu0 %v2247
  %3241 = vmatpush1.msra.mxu0 %v2246
  %3242 = vmatprep.subr.mxu0 %v2255
  %3243 = vmatpush1.msra.mxu0 %v2254
  %3244 = vmatprep.subr.mxu0 %v2263
  %3245 = vmatpush1.msra.mxu0 %v2262
  %3246 = vmatprep.subr.mxu0 %v2271
  %3247 = vmatpush1.msra.mxu0 %v2270
  %3248 = vmatprep.subr.mxu0 %v2279
  %3249 = vmatpush1.msra.mxu0 %v2278
  %3250 = vmatprep.subr.mxu0 %v2287
  %3251 = vmatpush1.msra.mxu0 %v2286
  %3252 = vmatprep.subr.mxu0 %v2295
  %3253 = vmatpush1.msra.mxu0 %v2294
  %3254 = vmatprep.subr.mxu0 %v2303
  %3255 = vmatpush1.msra.mxu0 %v2302
  %3256 = vmatprep.subr.mxu0 %v2311
  %3257 = vmatpush1.msra.mxu0 %v2310
  %3258 = vmatprep.subr.mxu0 %v2319
  %3259 = vmatpush1.msra.mxu0 %v2318
  %3260 = vmatprep.subr.mxu0 %v2327
  %3261 = vmatpush1.msra.mxu0 %v2326
  %3262 = vmatprep.subr.mxu0 %v2335
  %3263 = vmatpush1.msra.mxu0 %v2334
  %3264 = vmatprep.subr.mxu0 %v2343
  %3265 = vmatpush1.msra.mxu0 %v2342
  %3266 = vmatprep.subr.mxu0 %v2351
  %3267 = vmatpush1.msra.mxu0 %v2350
  %3268 = vmatprep.subr.mxu0 %v2359
  %3269 = vmatpush1.msra.mxu0 %v2358
  %3270 = vmatprep.subr.mxu0 %v2367
  %3271 = vmatpush1.msra.mxu0 %v2366
  %3272 = vmatprep.subr.mxu0 %v2375
  %3273 = vmatpush1.msra.mxu0 %v2374
  %3274 = vmatprep.subr.mxu0 %v2383
  %3275 = vmatpush1.msra.mxu0 %v2382
  %3276 = vmatprep.subr.mxu0 %v2391
  %3277 = vmatpush1.msra.mxu0 %v2390
  %3278 = vmatprep.subr.mxu0 %v2399
  %3279 = vmatpush1.msra.mxu0 %v2398
  %3280 = vmatprep.mubr.f32.mxu0 %v2143
  %3281 = vmatmul.mubr.f32.gmra.mrb[0].mxu0 %v2142
  %v3282 = vpop.f32.mrb[0].mxu0
  %v3283 = vadd.f32 %v3179, %v3282
  %v3284 = vpop.f32.mrb[0].mxu0
  %v3285 = vadd.f32 %v3183, %v3284
  %3286 = vdwg.mxu0
  %3287 = vmatprep.subr.mxu0 %v2407
  %3288 = vmatpush1.msra.mxu0 %v2406
  %3289 = vmatprep.subr.mxu0 %v2415
  %3290 = vmatpush1.msra.mxu0 %v2414
  %3291 = vmatprep.subr.mxu0 %v2423
  %3292 = vmatpush1.msra.mxu0 %v2422
  %3293 = vmatprep.subr.mxu0 %v2431
  %3294 = vmatpush1.msra.mxu0 %v2430
  %3295 = vmatprep.subr.mxu0 %v2439
  %3296 = vmatpush1.msra.mxu0 %v2438
  %3297 = vmatprep.subr.mxu0 %v2447
  %3298 = vmatpush1.msra.mxu0 %v2446
  %3299 = vmatprep.subr.mxu0 %v2455
  %3300 = vmatpush1.msra.mxu0 %v2454
  %3301 = vmatprep.subr.mxu0 %v2463
  %3302 = vmatpush1.msra.mxu0 %v2462
  %3303 = vmatprep.subr.mxu0 %v2471
  %3304 = vmatpush1.msra.mxu0 %v2470
  %3305 = vmatprep.subr.mxu0 %v2479
  %3306 = vmatpush1.msra.mxu0 %v2478
  %3307 = vmatprep.subr.mxu0 %v2487
  %3308 = vmatpush1.msra.mxu0 %v2486
  %3309 = vmatprep.subr.mxu0 %v2495
  %3310 = vmatpush1.msra.mxu0 %v2494
  %3311 = vmatprep.subr.mxu0 %v2503
  %3312 = vmatpush1.msra.mxu0 %v2502
  %3313 = vmatprep.subr.mxu0 %v2511
  %3314 = vmatpush1.msra.mxu0 %v2510
  %3315 = vmatprep.subr.mxu0 %v2519
  %3316 = vmatpush1.msra.mxu0 %v2518
  %3317 = vmatprep.subr.mxu0 %v2527
  %3318 = vmatpush1.msra.mxu0 %v2526
  %3319 = vmatprep.subr.mxu0 %v2535
  %3320 = vmatpush1.msra.mxu0 %v2534
  %3321 = vmatprep.subr.mxu0 %v2543
  %3322 = vmatpush1.msra.mxu0 %v2542
  %3323 = vmatprep.subr.mxu0 %v2551
  %3324 = vmatpush1.msra.mxu0 %v2550
  %3325 = vmatprep.subr.mxu0 %v2559
  %3326 = vmatpush1.msra.mxu0 %v2558
  %3327 = vmatprep.subr.mxu0 %v2567
  %3328 = vmatpush1.msra.mxu0 %v2566
  %3329 = vmatprep.subr.mxu0 %v2575
  %3330 = vmatpush1.msra.mxu0 %v2574
  %3331 = vmatprep.subr.mxu0 %v2583
  %3332 = vmatpush1.msra.mxu0 %v2582
  %3333 = vmatprep.subr.mxu0 %v2591
  %3334 = vmatpush1.msra.mxu0 %v2590
  %3335 = vmatprep.subr.mxu0 %v2599
  %3336 = vmatpush1.msra.mxu0 %v2598
  %3337 = vmatprep.subr.mxu0 %v2607
  %3338 = vmatpush1.msra.mxu0 %v2606
  %3339 = vmatprep.subr.mxu0 %v2615
  %3340 = vmatpush1.msra.mxu0 %v2614
  %3341 = vmatprep.subr.mxu0 %v2623
  %3342 = vmatpush1.msra.mxu0 %v2622
  %3343 = vmatprep.subr.mxu0 %v2631
  %3344 = vmatpush1.msra.mxu0 %v2630
  %3345 = vmatprep.subr.mxu0 %v2639
  %3346 = vmatpush1.msra.mxu0 %v2638
  %3347 = vmatprep.subr.mxu0 %v2647
  %3348 = vmatpush1.msra.mxu0 %v2646
  %3349 = vmatprep.subr.mxu0 %v2655
  %3350 = vmatpush1.msra.mxu0 %v2654
  %3351 = vmatprep.mubr.f32.mxu0 %v2145
  %3352 = vmatmul.mubr.f32.gmra.mrb[0].mxu0 %v2144
  %v3353 = vpop.f32.mrb[0].mxu0
  %v3354 = vadd.f32 %v3283, %v3353
  %v3355 = vpop.f32.mrb[0].mxu0
  %v3356 = vadd.f32 %v3285, %v3355
  %3357 = vdwg.mxu0
  %3358 = vmatprep.subr.mxu0 %v2663
  %3359 = vmatpush1.msra.mxu0 %v2662
  %3360 = vmatprep.subr.mxu0 %v2671
  %3361 = vmatpush1.msra.mxu0 %v2670
  %3362 = vmatprep.subr.mxu0 %v2679
  %3363 = vmatpush1.msra.mxu0 %v2678
  %3364 = vmatprep.subr.mxu0 %v2687
  %3365 = vmatpush1.msra.mxu0 %v2686
  %3366 = vmatprep.subr.mxu0 %v2695
  %3367 = vmatpush1.msra.mxu0 %v2694
  %3368 = vmatprep.subr.mxu0 %v2703
  %3369 = vmatpush1.msra.mxu0 %v2702
  %3370 = vmatprep.subr.mxu0 %v2711
  %3371 = vmatpush1.msra.mxu0 %v2710
  %3372 = vmatprep.subr.mxu0 %v2719
  %3373 = vmatpush1.msra.mxu0 %v2718
  %3374 = vmatprep.subr.mxu0 %v2727
  %3375 = vmatpush1.msra.mxu0 %v2726
  %3376 = vmatprep.subr.mxu0 %v2735
  %3377 = vmatpush1.msra.mxu0 %v2734
  %3378 = vmatprep.subr.mxu0 %v2743
  %3379 = vmatpush1.msra.mxu0 %v2742
  %3380 = vmatprep.subr.mxu0 %v2751
  %3381 = vmatpush1.msra.mxu0 %v2750
  %3382 = vmatprep.subr.mxu0 %v2759
  %3383 = vmatpush1.msra.mxu0 %v2758
  %3384 = vmatprep.subr.mxu0 %v2767
  %3385 = vmatpush1.msra.mxu0 %v2766
  %3386 = vmatprep.subr.mxu0 %v2775
  %3387 = vmatpush1.msra.mxu0 %v2774
  %3388 = vmatprep.subr.mxu0 %v2783
  %3389 = vmatpush1.msra.mxu0 %v2782
  %3390 = vmatprep.subr.mxu0 %v2791
  %3391 = vmatpush1.msra.mxu0 %v2790
  %3392 = vmatprep.subr.mxu0 %v2799
  %3393 = vmatpush1.msra.mxu0 %v2798
  %3394 = vmatprep.subr.mxu0 %v2807
  %3395 = vmatpush1.msra.mxu0 %v2806
  %3396 = vmatprep.subr.mxu0 %v2815
  %3397 = vmatpush1.msra.mxu0 %v2814
  %3398 = vmatprep.subr.mxu0 %v2823
  %3399 = vmatpush1.msra.mxu0 %v2822
  %3400 = vmatprep.subr.mxu0 %v2831
  %3401 = vmatpush1.msra.mxu0 %v2830
  %3402 = vmatprep.subr.mxu0 %v2839
  %3403 = vmatpush1.msra.mxu0 %v2838
  %3404 = vmatprep.subr.mxu0 %v2847
  %3405 = vmatpush1.msra.mxu0 %v2846
  %3406 = vmatprep.subr.mxu0 %v2855
  %3407 = vmatpush1.msra.mxu0 %v2854
  %3408 = vmatprep.subr.mxu0 %v2863
  %3409 = vmatpush1.msra.mxu0 %v2862
  %3410 = vmatprep.subr.mxu0 %v2871
  %3411 = vmatpush1.msra.mxu0 %v2870
  %3412 = vmatprep.subr.mxu0 %v2879
  %3413 = vmatpush1.msra.mxu0 %v2878
  %3414 = vmatprep.subr.mxu0 %v2887
  %3415 = vmatpush1.msra.mxu0 %v2886
  %3416 = vmatprep.subr.mxu0 %v2895
  %3417 = vmatpush1.msra.mxu0 %v2894
  %3418 = vmatprep.subr.mxu0 %v2903
  %3419 = vmatpush1.msra.mxu0 %v2902
  %3420 = vmatprep.subr.mxu0 %v2911
  %3421 = vmatpush1.msra.mxu0 %v2910
  %3422 = vmatprep.mubr.f32.mxu0 %v2147
  %3423 = vmatmul.mubr.f32.gmra.mrb[0].mxu0 %v2146
  %v3424 = vpop.f32.mrb[0].mxu0
  %v3425 = vadd.f32 %v3354, %v3424
  %v3426 = vpop.f32.mrb[0].mxu0
  %v3427 = vadd.f32 %v3356, %v3426
  %3428 = vdwg.mxu0
  %3429 = vmatprep.subr.mxu0 %v2919
  %3430 = vmatpush1.msra.mxu0 %v2918
  %3431 = vmatprep.subr.mxu0 %v2927
  %3432 = vmatpush1.msra.mxu0 %v2926
  %3433 = vmatprep.subr.mxu0 %v2935
  %3434 = vmatpush1.msra.mxu0 %v2934
  %3435 = vmatprep.subr.mxu0 %v2943
  %3436 = vmatpush1.msra.mxu0 %v2942
  %3437 = vmatprep.subr.mxu0 %v2951
  %3438 = vmatpush1.msra.mxu0 %v2950
  %3439 = vmatprep.subr.mxu0 %v2959
  %3440 = vmatpush1.msra.mxu0 %v2958
  %3441 = vmatprep.subr.mxu0 %v2967
  %3442 = vmatpush1.msra.mxu0 %v2966
  %3443 = vmatprep.subr.mxu0 %v2975
  %3444 = vmatpush1.msra.mxu0 %v2974
  %3445 = vmatprep.subr.mxu0 %v2983
  %3446 = vmatpush1.msra.mxu0 %v2982
  %3447 = vmatprep.subr.mxu0 %v2991
  %3448 = vmatpush1.msra.mxu0 %v2990
  %3449 = vmatprep.subr.mxu0 %v2999
  %3450 = vmatpush1.msra.mxu0 %v2998
  %3451 = vmatprep.subr.mxu0 %v3007
  %3452 = vmatpush1.msra.mxu0 %v3006
  %3453 = vmatprep.subr.mxu0 %v3015
  %3454 = vmatpush1.msra.mxu0 %v3014
  %3455 = vmatprep.subr.mxu0 %v3023
  %3456 = vmatpush1.msra.mxu0 %v3022
  %3457 = vmatprep.subr.mxu0 %v3031
  %3458 = vmatpush1.msra.mxu0 %v3030
  %3459 = vmatprep.subr.mxu0 %v3039
  %3460 = vmatpush1.msra.mxu0 %v3038
  %3461 = vmatprep.subr.mxu0 %v3047
  %3462 = vmatpush1.msra.mxu0 %v3046
  %3463 = vmatprep.subr.mxu0 %v3055
  %3464 = vmatpush1.msra.mxu0 %v3054
  %3465 = vmatprep.subr.mxu0 %v3063
  %3466 = vmatpush1.msra.mxu0 %v3062
  %3467 = vmatprep.subr.mxu0 %v3071
  %3468 = vmatpush1.msra.mxu0 %v3070
  %3469 = vmatprep.subr.mxu0 %v3079
  %3470 = vmatpush1.msra.mxu0 %v3078
  %3471 = vmatprep.subr.mxu0 %v3087
  %3472 = vmatpush1.msra.mxu0 %v3086
  %3473 = vmatprep.subr.mxu0 %v3095
  %3474 = vmatpush1.msra.mxu0 %v3094
  %3475 = vmatprep.subr.mxu0 %v3103
  %3476 = vmatpush1.msra.mxu0 %v3102
  %3477 = vmatprep.subr.mxu0 %v3111
  %3478 = vmatpush1.msra.mxu0 %v3110
  %3479 = vmatprep.subr.mxu0 %v3119
  %3480 = vmatpush1.msra.mxu0 %v3118
  %3481 = vmatprep.subr.mxu0 %v3127
  %3482 = vmatpush1.msra.mxu0 %v3126
  %3483 = vmatprep.subr.mxu0 %v3135
  %3484 = vmatpush1.msra.mxu0 %v3134
  %3485 = vmatprep.subr.mxu0 %v3143
  %3486 = vmatpush1.msra.mxu0 %v3142
  %3487 = vmatprep.subr.mxu0 %v3151
  %3488 = vmatpush1.msra.mxu0 %v3150
  %3489 = vmatprep.subr.mxu0 %v3159
  %3490 = vmatpush1.msra.mxu0 %v3158
  %3491 = vmatprep.subr.mxu0 %v3167
  %3492 = vmatpush1.msra.mxu0 %v3166
  %3493 = vmatprep.mubr.f32.mxu0 %v2149
  %3494 = vmatmul.mubr.f32.gmra.mrb[0].mxu0 %v2148
  %v3495 = vpop.f32.mrb[0].mxu0
  %v3496 = vadd.f32 %v3425, %v3495
  %v3497 = vpop.f32.mrb[0].mxu0
  %v3498 = vadd.f32 %v3427, %v3497
  %3499 = vdwg.mxu0
  %3500 = vmatprep.subr.mxu0 %v2153
  %3501 = vmatpush1.msra.mxu0 %v2152
  %3502 = vmatprep.subr.mxu0 %v2161
  %3503 = vmatpush1.msra.mxu0 %v2160
  %3504 = vmatprep.subr.mxu0 %v2169
  %3505 = vmatpush1.msra.mxu0 %v2168
  %3506 = vmatprep.subr.mxu0 %v2177
  %3507 = vmatpush1.msra.mxu0 %v2176
  %3508 = vmatprep.subr.mxu0 %v2185
  %3509 = vmatpush1.msra.mxu0 %v2184
  %3510 = vmatprep.subr.mxu0 %v2193
  %3511 = vmatpush1.msra.mxu0 %v2192
  %3512 = vmatprep.subr.mxu0 %v2201
  %3513 = vmatpush1.msra.mxu0 %v2200
  %3514 = vmatprep.subr.mxu0 %v2209
  %3515 = vmatpush1.msra.mxu0 %v2208
  %3516 = vmatprep.subr.mxu0 %v2217
  %3517 = vmatpush1.msra.mxu0 %v2216
  %3518 = vmatprep.subr.mxu0 %v2225
  %3519 = vmatpush1.msra.mxu0 %v2224
  %3520 = vmatprep.subr.mxu0 %v2233
  %3521 = vmatpush1.msra.mxu0 %v2232
  %3522 = vmatprep.subr.mxu0 %v2241
  %3523 = vmatpush1.msra.mxu0 %v2240
  %3524 = vmatprep.subr.mxu0 %v2249
  %3525 = vmatpush1.msra.mxu0 %v2248
  %3526 = vmatprep.subr.mxu0 %v2257
  %3527 = vmatpush1.msra.mxu0 %v2256
  %3528 = vmatprep.subr.mxu0 %v2265
  %3529 = vmatpush1.msra.mxu0 %v2264
  %3530 = vmatprep.subr.mxu0 %v2273
  %3531 = vmatpush1.msra.mxu0 %v2272
  %3532 = vmatprep.subr.mxu0 %v2281
  %3533 = vmatpush1.msra.mxu0 %v2280
  %3534 = vmatprep.subr.mxu0 %v2289
  %3535 = vmatpush1.msra.mxu0 %v2288
  %3536 = vmatprep.subr.mxu0 %v2297
  %3537 = vmatpush1.msra.mxu0 %v2296
  %3538 = vmatprep.subr.mxu0 %v2305
  %3539 = vmatpush1.msra.mxu0 %v2304
  %3540 = vmatprep.subr.mxu0 %v2313
  %3541 = vmatpush1.msra.mxu0 %v2312
  %3542 = vmatprep.subr.mxu0 %v2321
  %3543 = vmatpush1.msra.mxu0 %v2320
  %3544 = vmatprep.subr.mxu0 %v2329
  %3545 = vmatpush1.msra.mxu0 %v2328
  %3546 = vmatprep.subr.mxu0 %v2337
  %3547 = vmatpush1.msra.mxu0 %v2336
  %3548 = vmatprep.subr.mxu0 %v2345
  %3549 = vmatpush1.msra.mxu0 %v2344
  %3550 = vmatprep.subr.mxu0 %v2353
  %3551 = vmatpush1.msra.mxu0 %v2352
  %3552 = vmatprep.subr.mxu0 %v2361
  %3553 = vmatpush1.msra.mxu0 %v2360
  %3554 = vmatprep.subr.mxu0 %v2369
  %3555 = vmatpush1.msra.mxu0 %v2368
  %3556 = vmatprep.subr.mxu0 %v2377
  %3557 = vmatpush1.msra.mxu0 %v2376
  %3558 = vmatprep.subr.mxu0 %v2385
  %3559 = vmatpush1.msra.mxu0 %v2384
  %3560 = vmatprep.subr.mxu0 %v2393
  %3561 = vmatpush1.msra.mxu0 %v2392
  %3562 = vmatprep.subr.mxu0 %v2401
  %3563 = vmatpush1.msra.mxu0 %v2400
  %3564 = vmatprep.mubr.f32.mxu0 %v2143
  %3565 = vmatmul.mubr.f32.gmra.mrb[0].mxu0 %v2142
  %v3566 = vpop.f32.mrb[0].mxu0
  %v3567 = vadd.f32 %v3187, %v3566
  %v3568 = vpop.f32.mrb[0].mxu0
  %v3569 = vadd.f32 %v3191, %v3568
  %3570 = vdwg.mxu0
  %3571 = vmatprep.subr.mxu0 %v2409
  %3572 = vmatpush1.msra.mxu0 %v2408
  %3573 = vmatprep.subr.mxu0 %v2417
  %3574 = vmatpush1.msra.mxu0 %v2416
  %3575 = vmatprep.subr.mxu0 %v2425
  %3576 = vmatpush1.msra.mxu0 %v2424
  %3577 = vmatprep.subr.mxu0 %v2433
  %3578 = vmatpush1.msra.mxu0 %v2432
  %3579 = vmatprep.subr.mxu0 %v2441
  %3580 = vmatpush1.msra.mxu0 %v2440
  %3581 = vmatprep.subr.mxu0 %v2449
  %3582 = vmatpush1.msra.mxu0 %v2448
  %3583 = vmatprep.subr.mxu0 %v2457
  %3584 = vmatpush1.msra.mxu0 %v2456
  %3585 = vmatprep.subr.mxu0 %v2465
  %3586 = vmatpush1.msra.mxu0 %v2464
  %3587 = vmatprep.subr.mxu0 %v2473
  %3588 = vmatpush1.msra.mxu0 %v2472
  %3589 = vmatprep.subr.mxu0 %v2481
  %3590 = vmatpush1.msra.mxu0 %v2480
  %3591 = vmatprep.subr.mxu0 %v2489
  %3592 = vmatpush1.msra.mxu0 %v2488
  %3593 = vmatprep.subr.mxu0 %v2497
  %3594 = vmatpush1.msra.mxu0 %v2496
  %3595 = vmatprep.subr.mxu0 %v2505
  %3596 = vmatpush1.msra.mxu0 %v2504
  %3597 = vmatprep.subr.mxu0 %v2513
  %3598 = vmatpush1.msra.mxu0 %v2512
  %3599 = vmatprep.subr.mxu0 %v2521
  %3600 = vmatpush1.msra.mxu0 %v2520
  %3601 = vmatprep.subr.mxu0 %v2529
  %3602 = vmatpush1.msra.mxu0 %v2528
  %3603 = vmatprep.subr.mxu0 %v2537
  %3604 = vmatpush1.msra.mxu0 %v2536
  %3605 = vmatprep.subr.mxu0 %v2545
  %3606 = vmatpush1.msra.mxu0 %v2544
  %3607 = vmatprep.subr.mxu0 %v2553
  %3608 = vmatpush1.msra.mxu0 %v2552
  %3609 = vmatprep.subr.mxu0 %v2561
  %3610 = vmatpush1.msra.mxu0 %v2560
  %3611 = vmatprep.subr.mxu0 %v2569
  %3612 = vmatpush1.msra.mxu0 %v2568
  %3613 = vmatprep.subr.mxu0 %v2577
  %3614 = vmatpush1.msra.mxu0 %v2576
  %3615 = vmatprep.subr.mxu0 %v2585
  %3616 = vmatpush1.msra.mxu0 %v2584
  %3617 = vmatprep.subr.mxu0 %v2593
  %3618 = vmatpush1.msra.mxu0 %v2592
  %3619 = vmatprep.subr.mxu0 %v2601
  %3620 = vmatpush1.msra.mxu0 %v2600
  %3621 = vmatprep.subr.mxu0 %v2609
  %3622 = vmatpush1.msra.mxu0 %v2608
  %3623 = vmatprep.subr.mxu0 %v2617
  %3624 = vmatpush1.msra.mxu0 %v2616
  %3625 = vmatprep.subr.mxu0 %v2625
  %3626 = vmatpush1.msra.mxu0 %v2624
  %3627 = vmatprep.subr.mxu0 %v2633
  %3628 = vmatpush1.msra.mxu0 %v2632
  %3629 = vmatprep.subr.mxu0 %v2641
  %3630 = vmatpush1.msra.mxu0 %v2640
  %3631 = vmatprep.subr.mxu0 %v2649
  %3632 = vmatpush1.msra.mxu0 %v2648
  %3633 = vmatprep.subr.mxu0 %v2657
  %3634 = vmatpush1.msra.mxu0 %v2656
  %3635 = vmatprep.mubr.f32.mxu0 %v2145
  %3636 = vmatmul.mubr.f32.gmra.mrb[0].mxu0 %v2144
  %v3637 = vpop.f32.mrb[0].mxu0
  %v3638 = vadd.f32 %v3567, %v3637
  %v3639 = vpop.f32.mrb[0].mxu0
  %v3640 = vadd.f32 %v3569, %v3639
  %3641 = vdwg.mxu0
  %3642 = vmatprep.subr.mxu0 %v2665
  %3643 = vmatpush1.msra.mxu0 %v2664
  %3644 = vmatprep.subr.mxu0 %v2673
  %3645 = vmatpush1.msra.mxu0 %v2672
  %3646 = vmatprep.subr.mxu0 %v2681
  %3647 = vmatpush1.msra.mxu0 %v2680
  %3648 = vmatprep.subr.mxu0 %v2689
  %3649 = vmatpush1.msra.mxu0 %v2688
  %3650 = vmatprep.subr.mxu0 %v2697
  %3651 = vmatpush1.msra.mxu0 %v2696
  %3652 = vmatprep.subr.mxu0 %v2705
  %3653 = vmatpush1.msra.mxu0 %v2704
  %3654 = vmatprep.subr.mxu0 %v2713
  %3655 = vmatpush1.msra.mxu0 %v2712
  %3656 = vmatprep.subr.mxu0 %v2721
  %3657 = vmatpush1.msra.mxu0 %v2720
  %3658 = vmatprep.subr.mxu0 %v2729
  %3659 = vmatpush1.msra.mxu0 %v2728
  %3660 = vmatprep.subr.mxu0 %v2737
  %3661 = vmatpush1.msra.mxu0 %v2736
  %3662 = vmatprep.subr.mxu0 %v2745
  %3663 = vmatpush1.msra.mxu0 %v2744
  %3664 = vmatprep.subr.mxu0 %v2753
  %3665 = vmatpush1.msra.mxu0 %v2752
  %3666 = vmatprep.subr.mxu0 %v2761
  %3667 = vmatpush1.msra.mxu0 %v2760
  %3668 = vmatprep.subr.mxu0 %v2769
  %3669 = vmatpush1.msra.mxu0 %v2768
  %3670 = vmatprep.subr.mxu0 %v2777
  %3671 = vmatpush1.msra.mxu0 %v2776
  %3672 = vmatprep.subr.mxu0 %v2785
  %3673 = vmatpush1.msra.mxu0 %v2784
  %3674 = vmatprep.subr.mxu0 %v2793
  %3675 = vmatpush1.msra.mxu0 %v2792
  %3676 = vmatprep.subr.mxu0 %v2801
  %3677 = vmatpush1.msra.mxu0 %v2800
  %3678 = vmatprep.subr.mxu0 %v2809
  %3679 = vmatpush1.msra.mxu0 %v2808
  %3680 = vmatprep.subr.mxu0 %v2817
  %3681 = vmatpush1.msra.mxu0 %v2816
  %3682 = vmatprep.subr.mxu0 %v2825
  %3683 = vmatpush1.msra.mxu0 %v2824
  %3684 = vmatprep.subr.mxu0 %v2833
  %3685 = vmatpush1.msra.mxu0 %v2832
  %3686 = vmatprep.subr.mxu0 %v2841
  %3687 = vmatpush1.msra.mxu0 %v2840
  %3688 = vmatprep.subr.mxu0 %v2849
  %3689 = vmatpush1.msra.mxu0 %v2848
  %3690 = vmatprep.subr.mxu0 %v2857
  %3691 = vmatpush1.msra.mxu0 %v2856
  %3692 = vmatprep.subr.mxu0 %v2865
  %3693 = vmatpush1.msra.mxu0 %v2864
  %3694 = vmatprep.subr.mxu0 %v2873
  %3695 = vmatpush1.msra.mxu0 %v2872
  %3696 = vmatprep.subr.mxu0 %v2881
  %3697 = vmatpush1.msra.mxu0 %v2880
  %3698 = vmatprep.subr.mxu0 %v2889
  %3699 = vmatpush1.msra.mxu0 %v2888
  %3700 = vmatprep.subr.mxu0 %v2897
  %3701 = vmatpush1.msra.mxu0 %v2896
  %3702 = vmatprep.subr.mxu0 %v2905
  %3703 = vmatpush1.msra.mxu0 %v2904
  %3704 = vmatprep.subr.mxu0 %v2913
  %3705 = vmatpush1.msra.mxu0 %v2912
  %3706 = vmatprep.mubr.f32.mxu0 %v2147
  %3707 = vmatmul.mubr.f32.gmra.mrb[0].mxu0 %v2146
  %v3708 = vpop.f32.mrb[0].mxu0
  %v3709 = vadd.f32 %v3638, %v3708
  %v3710 = vpop.f32.mrb[0].mxu0
  %v3711 = vadd.f32 %v3640, %v3710
  %3712 = vdwg.mxu0
  %3713 = vmatprep.subr.mxu0 %v2921
  %3714 = vmatpush1.msra.mxu0 %v2920
  %3715 = vmatprep.subr.mxu0 %v2929
  %3716 = vmatpush1.msra.mxu0 %v2928
  %3717 = vmatprep.subr.mxu0 %v2937
  %3718 = vmatpush1.msra.mxu0 %v2936
  %3719 = vmatprep.subr.mxu0 %v2945
  %3720 = vmatpush1.msra.mxu0 %v2944
  %3721 = vmatprep.subr.mxu0 %v2953
  %3722 = vmatpush1.msra.mxu0 %v2952
  %3723 = vmatprep.subr.mxu0 %v2961
  %3724 = vmatpush1.msra.mxu0 %v2960
  %3725 = vmatprep.subr.mxu0 %v2969
  %3726 = vmatpush1.msra.mxu0 %v2968
  %3727 = vmatprep.subr.mxu0 %v2977
  %3728 = vmatpush1.msra.mxu0 %v2976
  %3729 = vmatprep.subr.mxu0 %v2985
  %3730 = vmatpush1.msra.mxu0 %v2984
  %3731 = vmatprep.subr.mxu0 %v2993
  %3732 = vmatpush1.msra.mxu0 %v2992
  %3733 = vmatprep.subr.mxu0 %v3001
  %3734 = vmatpush1.msra.mxu0 %v3000
  %3735 = vmatprep.subr.mxu0 %v3009
  %3736 = vmatpush1.msra.mxu0 %v3008
  %3737 = vmatprep.subr.mxu0 %v3017
  %3738 = vmatpush1.msra.mxu0 %v3016
  %3739 = vmatprep.subr.mxu0 %v3025
  %3740 = vmatpush1.msra.mxu0 %v3024
  %3741 = vmatprep.subr.mxu0 %v3033
  %3742 = vmatpush1.msra.mxu0 %v3032
  %3743 = vmatprep.subr.mxu0 %v3041
  %3744 = vmatpush1.msra.mxu0 %v3040
  %3745 = vmatprep.subr.mxu0 %v3049
  %3746 = vmatpush1.msra.mxu0 %v3048
  %3747 = vmatprep.subr.mxu0 %v3057
  %3748 = vmatpush1.msra.mxu0 %v3056
  %3749 = vmatprep.subr.mxu0 %v3065
  %3750 = vmatpush1.msra.mxu0 %v3064
  %3751 = vmatprep.subr.mxu0 %v3073
  %3752 = vmatpush1.msra.mxu0 %v3072
  %3753 = vmatprep.subr.mxu0 %v3081
  %3754 = vmatpush1.msra.mxu0 %v3080
  %3755 = vmatprep.subr.mxu0 %v3089
  %3756 = vmatpush1.msra.mxu0 %v3088
  %3757 = vmatprep.subr.mxu0 %v3097
  %3758 = vmatpush1.msra.mxu0 %v3096
  %3759 = vmatprep.subr.mxu0 %v3105
  %3760 = vmatpush1.msra.mxu0 %v3104
  %3761 = vmatprep.subr.mxu0 %v3113
  %3762 = vmatpush1.msra.mxu0 %v3112
  %3763 = vmatprep.subr.mxu0 %v3121
  %3764 = vmatpush1.msra.mxu0 %v3120
  %3765 = vmatprep.subr.mxu0 %v3129
  %3766 = vmatpush1.msra.mxu0 %v3128
  %3767 = vmatprep.subr.mxu0 %v3137
  %3768 = vmatpush1.msra.mxu0 %v3136
  %3769 = vmatprep.subr.mxu0 %v3145
  %3770 = vmatpush1.msra.mxu0 %v3144
  %3771 = vmatprep.subr.mxu0 %v3153
  %3772 = vmatpush1.msra.mxu0 %v3152
  %3773 = vmatprep.subr.mxu0 %v3161
  %3774 = vmatpush1.msra.mxu0 %v3160
  %3775 = vmatprep.subr.mxu0 %v3169
  %3776 = vmatpush1.msra.mxu0 %v3168
  %3777 = vmatprep.mubr.f32.mxu0 %v2149
  %3778 = vmatmul.mubr.f32.gmra.mrb[0].mxu0 %v2148
  %v3779 = vpop.f32.mrb[0].mxu0
  %v3780 = vadd.f32 %v3709, %v3779
  %v3781 = vpop.f32.mrb[0].mxu0
  %v3782 = vadd.f32 %v3711, %v3781
  %3783 = vdwg.mxu0
  %3784 = vmatprep.subr.mxu0 %v2155
  %3785 = vmatpush1.msra.mxu0 %v2154
  %3786 = vmatprep.subr.mxu0 %v2163
  %3787 = vmatpush1.msra.mxu0 %v2162
  %3788 = vmatprep.subr.mxu0 %v2171
  %3789 = vmatpush1.msra.mxu0 %v2170
  %3790 = vmatprep.subr.mxu0 %v2179
  %3791 = vmatpush1.msra.mxu0 %v2178
  %3792 = vmatprep.subr.mxu0 %v2187
  %3793 = vmatpush1.msra.mxu0 %v2186
  %3794 = vmatprep.subr.mxu0 %v2195
  %3795 = vmatpush1.msra.mxu0 %v2194
  %3796 = vmatprep.subr.mxu0 %v2203
  %3797 = vmatpush1.msra.mxu0 %v2202
  %3798 = vmatprep.subr.mxu0 %v2211
  %3799 = vmatpush1.msra.mxu0 %v2210
  %3800 = vmatprep.subr.mxu0 %v2219
  %3801 = vmatpush1.msra.mxu0 %v2218
  %3802 = vmatprep.subr.mxu0 %v2227
  %3803 = vmatpush1.msra.mxu0 %v2226
  %3804 = vmatprep.subr.mxu0 %v2235
  %3805 = vmatpush1.msra.mxu0 %v2234
  %3806 = vmatprep.subr.mxu0 %v2243
  %3807 = vmatpush1.msra.mxu0 %v2242
  %3808 = vmatprep.subr.mxu0 %v2251
  %3809 = vmatpush1.msra.mxu0 %v2250
  %3810 = vmatprep.subr.mxu0 %v2259
  %3811 = vmatpush1.msra.mxu0 %v2258
  %3812 = vmatprep.subr.mxu0 %v2267
  %3813 = vmatpush1.msra.mxu0 %v2266
  %3814 = vmatprep.subr.mxu0 %v2275
  %3815 = vmatpush1.msra.mxu0 %v2274
  %3816 = vmatprep.subr.mxu0 %v2283
  %3817 = vmatpush1.msra.mxu0 %v2282
  %3818 = vmatprep.subr.mxu0 %v2291
  %3819 = vmatpush1.msra.mxu0 %v2290
  %3820 = vmatprep.subr.mxu0 %v2299
  %3821 = vmatpush1.msra.mxu0 %v2298
  %3822 = vmatprep.subr.mxu0 %v2307
  %3823 = vmatpush1.msra.mxu0 %v2306
  %3824 = vmatprep.subr.mxu0 %v2315
  %3825 = vmatpush1.msra.mxu0 %v2314
  %3826 = vmatprep.subr.mxu0 %v2323
  %3827 = vmatpush1.msra.mxu0 %v2322
  %3828 = vmatprep.subr.mxu0 %v2331
  %3829 = vmatpush1.msra.mxu0 %v2330
  %3830 = vmatprep.subr.mxu0 %v2339
  %3831 = vmatpush1.msra.mxu0 %v2338
  %3832 = vmatprep.subr.mxu0 %v2347
  %3833 = vmatpush1.msra.mxu0 %v2346
  %3834 = vmatprep.subr.mxu0 %v2355
  %3835 = vmatpush1.msra.mxu0 %v2354
  %3836 = vmatprep.subr.mxu0 %v2363
  %3837 = vmatpush1.msra.mxu0 %v2362
  %3838 = vmatprep.subr.mxu0 %v2371
  %3839 = vmatpush1.msra.mxu0 %v2370
  %3840 = vmatprep.subr.mxu0 %v2379
  %3841 = vmatpush1.msra.mxu0 %v2378
  %3842 = vmatprep.subr.mxu0 %v2387
  %3843 = vmatpush1.msra.mxu0 %v2386
  %3844 = vmatprep.subr.mxu0 %v2395
  %3845 = vmatpush1.msra.mxu0 %v2394
  %3846 = vmatprep.subr.mxu0 %v2403
  %3847 = vmatpush1.msra.mxu0 %v2402
  %3848 = vmatprep.mubr.f32.mxu0 %v2143
  %3849 = vmatmul.mubr.f32.gmra.mrb[0].mxu0 %v2142
  %v3850 = vpop.f32.mrb[0].mxu0
  %v3851 = vadd.f32 %v3195, %v3850
  %v3852 = vpop.f32.mrb[0].mxu0
  %v3853 = vadd.f32 %v3199, %v3852
  %3854 = vdwg.mxu0
  %3855 = vmatprep.subr.mxu0 %v2411
  %3856 = vmatpush1.msra.mxu0 %v2410
  %3857 = vmatprep.subr.mxu0 %v2419
  %3858 = vmatpush1.msra.mxu0 %v2418
  %3859 = vmatprep.subr.mxu0 %v2427
  %3860 = vmatpush1.msra.mxu0 %v2426
  %3861 = vmatprep.subr.mxu0 %v2435
  %3862 = vmatpush1.msra.mxu0 %v2434
  %3863 = vmatprep.subr.mxu0 %v2443
  %3864 = vmatpush1.msra.mxu0 %v2442
  %3865 = vmatprep.subr.mxu0 %v2451
  %3866 = vmatpush1.msra.mxu0 %v2450
  %3867 = vmatprep.subr.mxu0 %v2459
  %3868 = vmatpush1.msra.mxu0 %v2458
  %3869 = vmatprep.subr.mxu0 %v2467
  %3870 = vmatpush1.msra.mxu0 %v2466
  %3871 = vmatprep.subr.mxu0 %v2475
  %3872 = vmatpush1.msra.mxu0 %v2474
  %3873 = vmatprep.subr.mxu0 %v2483
  %3874 = vmatpush1.msra.mxu0 %v2482
  %3875 = vmatprep.subr.mxu0 %v2491
  %3876 = vmatpush1.msra.mxu0 %v2490
  %3877 = vmatprep.subr.mxu0 %v2499
  %3878 = vmatpush1.msra.mxu0 %v2498
  %3879 = vmatprep.subr.mxu0 %v2507
  %3880 = vmatpush1.msra.mxu0 %v2506
  %3881 = vmatprep.subr.mxu0 %v2515
  %3882 = vmatpush1.msra.mxu0 %v2514
  %3883 = vmatprep.subr.mxu0 %v2523
  %3884 = vmatpush1.msra.mxu0 %v2522
  %3885 = vmatprep.subr.mxu0 %v2531
  %3886 = vmatpush1.msra.mxu0 %v2530
  %3887 = vmatprep.subr.mxu0 %v2539
  %3888 = vmatpush1.msra.mxu0 %v2538
  %3889 = vmatprep.subr.mxu0 %v2547
  %3890 = vmatpush1.msra.mxu0 %v2546
  %3891 = vmatprep.subr.mxu0 %v2555
  %3892 = vmatpush1.msra.mxu0 %v2554
  %3893 = vmatprep.subr.mxu0 %v2563
  %3894 = vmatpush1.msra.mxu0 %v2562
  %3895 = vmatprep.subr.mxu0 %v2571
  %3896 = vmatpush1.msra.mxu0 %v2570
  %3897 = vmatprep.subr.mxu0 %v2579
  %3898 = vmatpush1.msra.mxu0 %v2578
  %3899 = vmatprep.subr.mxu0 %v2587
  %3900 = vmatpush1.msra.mxu0 %v2586
  %3901 = vmatprep.subr.mxu0 %v2595
  %3902 = vmatpush1.msra.mxu0 %v2594
  %3903 = vmatprep.subr.mxu0 %v2603
  %3904 = vmatpush1.msra.mxu0 %v2602
  %3905 = vmatprep.subr.mxu0 %v2611
  %3906 = vmatpush1.msra.mxu0 %v2610
  %3907 = vmatprep.subr.mxu0 %v2619
  %3908 = vmatpush1.msra.mxu0 %v2618
  %3909 = vmatprep.subr.mxu0 %v2627
  %3910 = vmatpush1.msra.mxu0 %v2626
  %3911 = vmatprep.subr.mxu0 %v2635
  %3912 = vmatpush1.msra.mxu0 %v2634
  %3913 = vmatprep.subr.mxu0 %v2643
  %3914 = vmatpush1.msra.mxu0 %v2642
  %3915 = vmatprep.subr.mxu0 %v2651
  %3916 = vmatpush1.msra.mxu0 %v2650
  %3917 = vmatprep.subr.mxu0 %v2659
  %3918 = vmatpush1.msra.mxu0 %v2658
  %3919 = vmatprep.mubr.f32.mxu0 %v2145
  %3920 = vmatmul.mubr.f32.gmra.mrb[0].mxu0 %v2144
  %v3921 = vpop.f32.mrb[0].mxu0
  %v3922 = vadd.f32 %v3851, %v3921
  %v3923 = vpop.f32.mrb[0].mxu0
  %v3924 = vadd.f32 %v3853, %v3923
  %3925 = vdwg.mxu0
  %3926 = vmatprep.subr.mxu0 %v2667
  %3927 = vmatpush1.msra.mxu0 %v2666
  %3928 = vmatprep.subr.mxu0 %v2675
  %3929 = vmatpush1.msra.mxu0 %v2674
  %3930 = vmatprep.subr.mxu0 %v2683
  %3931 = vmatpush1.msra.mxu0 %v2682
  %3932 = vmatprep.subr.mxu0 %v2691
  %3933 = vmatpush1.msra.mxu0 %v2690
  %3934 = vmatprep.subr.mxu0 %v2699
  %3935 = vmatpush1.msra.mxu0 %v2698
  %3936 = vmatprep.subr.mxu0 %v2707
  %3937 = vmatpush1.msra.mxu0 %v2706
  %3938 = vmatprep.subr.mxu0 %v2715
  %3939 = vmatpush1.msra.mxu0 %v2714
  %3940 = vmatprep.subr.mxu0 %v2723
  %3941 = vmatpush1.msra.mxu0 %v2722
  %3942 = vmatprep.subr.mxu0 %v2731
  %3943 = vmatpush1.msra.mxu0 %v2730
  %3944 = vmatprep.subr.mxu0 %v2739
  %3945 = vmatpush1.msra.mxu0 %v2738
  %3946 = vmatprep.subr.mxu0 %v2747
  %3947 = vmatpush1.msra.mxu0 %v2746
  %3948 = vmatprep.subr.mxu0 %v2755
  %3949 = vmatpush1.msra.mxu0 %v2754
  %3950 = vmatprep.subr.mxu0 %v2763
  %3951 = vmatpush1.msra.mxu0 %v2762
  %3952 = vmatprep.subr.mxu0 %v2771
  %3953 = vmatpush1.msra.mxu0 %v2770
  %3954 = vmatprep.subr.mxu0 %v2779
  %3955 = vmatpush1.msra.mxu0 %v2778
  %3956 = vmatprep.subr.mxu0 %v2787
  %3957 = vmatpush1.msra.mxu0 %v2786
  %3958 = vmatprep.subr.mxu0 %v2795
  %3959 = vmatpush1.msra.mxu0 %v2794
  %3960 = vmatprep.subr.mxu0 %v2803
  %3961 = vmatpush1.msra.mxu0 %v2802
  %3962 = vmatprep.subr.mxu0 %v2811
  %3963 = vmatpush1.msra.mxu0 %v2810
  %3964 = vmatprep.subr.mxu0 %v2819
  %3965 = vmatpush1.msra.mxu0 %v2818
  %3966 = vmatprep.subr.mxu0 %v2827
  %3967 = vmatpush1.msra.mxu0 %v2826
  %3968 = vmatprep.subr.mxu0 %v2835
  %3969 = vmatpush1.msra.mxu0 %v2834
  %3970 = vmatprep.subr.mxu0 %v2843
  %3971 = vmatpush1.msra.mxu0 %v2842
  %3972 = vmatprep.subr.mxu0 %v2851
  %3973 = vmatpush1.msra.mxu0 %v2850
  %3974 = vmatprep.subr.mxu0 %v2859
  %3975 = vmatpush1.msra.mxu0 %v2858
  %3976 = vmatprep.subr.mxu0 %v2867
  %3977 = vmatpush1.msra.mxu0 %v2866
  %3978 = vmatprep.subr.mxu0 %v2875
  %3979 = vmatpush1.msra.mxu0 %v2874
  %3980 = vmatprep.subr.mxu0 %v2883
  %3981 = vmatpush1.msra.mxu0 %v2882
  %3982 = vmatprep.subr.mxu0 %v2891
  %3983 = vmatpush1.msra.mxu0 %v2890
  %3984 = vmatprep.subr.mxu0 %v2899
  %3985 = vmatpush1.msra.mxu0 %v2898
  %3986 = vmatprep.subr.mxu0 %v2907
  %3987 = vmatpush1.msra.mxu0 %v2906
  %3988 = vmatprep.subr.mxu0 %v2915
  %3989 = vmatpush1.msra.mxu0 %v2914
  %3990 = vmatprep.mubr.f32.mxu0 %v2147
  %3991 = vmatmul.mubr.f32.gmra.mrb[0].mxu0 %v2146
  %v3992 = vpop.f32.mrb[0].mxu0
  %v3993 = vadd.f32 %v3922, %v3992
  %v3994 = vpop.f32.mrb[0].mxu0
  %v3995 = vadd.f32 %v3924, %v3994
  %3996 = vdwg.mxu0
  %3997 = vmatprep.subr.mxu0 %v2923
  %3998 = vmatpush1.msra.mxu0 %v2922
  %3999 = vmatprep.subr.mxu0 %v2931
  %4000 = vmatpush1.msra.mxu0 %v2930
  %4001 = vmatprep.subr.mxu0 %v2939
  %4002 = vmatpush1.msra.mxu0 %v2938
  %4003 = vmatprep.subr.mxu0 %v2947
  %4004 = vmatpush1.msra.mxu0 %v2946
  %4005 = vmatprep.subr.mxu0 %v2955
  %4006 = vmatpush1.msra.mxu0 %v2954
  %4007 = vmatprep.subr.mxu0 %v2963
  %4008 = vmatpush1.msra.mxu0 %v2962
  %4009 = vmatprep.subr.mxu0 %v2971
  %4010 = vmatpush1.msra.mxu0 %v2970
  %4011 = vmatprep.subr.mxu0 %v2979
  %4012 = vmatpush1.msra.mxu0 %v2978
  %4013 = vmatprep.subr.mxu0 %v2987
  %4014 = vmatpush1.msra.mxu0 %v2986
  %4015 = vmatprep.subr.mxu0 %v2995
  %4016 = vmatpush1.msra.mxu0 %v2994
  %4017 = vmatprep.subr.mxu0 %v3003
  %4018 = vmatpush1.msra.mxu0 %v3002
  %4019 = vmatprep.subr.mxu0 %v3011
  %4020 = vmatpush1.msra.mxu0 %v3010
  %4021 = vmatprep.subr.mxu0 %v3019
  %4022 = vmatpush1.msra.mxu0 %v3018
  %4023 = vmatprep.subr.mxu0 %v3027
  %4024 = vmatpush1.msra.mxu0 %v3026
  %4025 = vmatprep.subr.mxu0 %v3035
  %4026 = vmatpush1.msra.mxu0 %v3034
  %4027 = vmatprep.subr.mxu0 %v3043
  %4028 = vmatpush1.msra.mxu0 %v3042
  %4029 = vmatprep.subr.mxu0 %v3051
  %4030 = vmatpush1.msra.mxu0 %v3050
  %4031 = vmatprep.subr.mxu0 %v3059
  %4032 = vmatpush1.msra.mxu0 %v3058
  %4033 = vmatprep.subr.mxu0 %v3067
  %4034 = vmatpush1.msra.mxu0 %v3066
  %4035 = vmatprep.subr.mxu0 %v3075
  %4036 = vmatpush1.msra.mxu0 %v3074
  %4037 = vmatprep.subr.mxu0 %v3083
  %4038 = vmatpush1.msra.mxu0 %v3082
  %4039 = vmatprep.subr.mxu0 %v3091
  %4040 = vmatpush1.msra.mxu0 %v3090
  %4041 = vmatprep.subr.mxu0 %v3099
  %4042 = vmatpush1.msra.mxu0 %v3098
  %4043 = vmatprep.subr.mxu0 %v3107
  %4044 = vmatpush1.msra.mxu0 %v3106
  %4045 = vmatprep.subr.mxu0 %v3115
  %4046 = vmatpush1.msra.mxu0 %v3114
  %4047 = vmatprep.subr.mxu0 %v3123
  %4048 = vmatpush1.msra.mxu0 %v3122
  %4049 = vmatprep.subr.mxu0 %v3131
  %4050 = vmatpush1.msra.mxu0 %v3130
  %4051 = vmatprep.subr.mxu0 %v3139
  %4052 = vmatpush1.msra.mxu0 %v3138
  %4053 = vmatprep.subr.mxu0 %v3147
  %4054 = vmatpush1.msra.mxu0 %v3146
  %4055 = vmatprep.subr.mxu0 %v3155
  %4056 = vmatpush1.msra.mxu0 %v3154
  %4057 = vmatprep.subr.mxu0 %v3163
  %4058 = vmatpush1.msra.mxu0 %v3162
  %4059 = vmatprep.subr.mxu0 %v3171
  %4060 = vmatpush1.msra.mxu0 %v3170
  %4061 = vmatprep.mubr.f32.mxu0 %v2149
  %4062 = vmatmul.mubr.f32.gmra.mrb[0].mxu0 %v2148
  %v4063 = vpop.f32.mrb[0].mxu0
  %v4064 = vadd.f32 %v3993, %v4063
  %v4065 = vpop.f32.mrb[0].mxu0
  %v4066 = vadd.f32 %v3995, %v4065
  %4067 = vdwg.mxu0
  %4068 = vmatprep.subr.mxu0 %v2157
  %4069 = vmatpush1.msra.mxu0 %v2156
  %4070 = vmatprep.subr.mxu0 %v2165
  %4071 = vmatpush1.msra.mxu0 %v2164
  %4072 = vmatprep.subr.mxu0 %v2173
  %4073 = vmatpush1.msra.mxu0 %v2172
  %4074 = vmatprep.subr.mxu0 %v2181
  %4075 = vmatpush1.msra.mxu0 %v2180
  %4076 = vmatprep.subr.mxu0 %v2189
  %4077 = vmatpush1.msra.mxu0 %v2188
  %4078 = vmatprep.subr.mxu0 %v2197
  %4079 = vmatpush1.msra.mxu0 %v2196
  %4080 = vmatprep.subr.mxu0 %v2205
  %4081 = vmatpush1.msra.mxu0 %v2204
  %4082 = vmatprep.subr.mxu0 %v2213
  %4083 = vmatpush1.msra.mxu0 %v2212
  %4084 = vmatprep.subr.mxu0 %v2221
  %4085 = vmatpush1.msra.mxu0 %v2220
  %4086 = vmatprep.subr.mxu0 %v2229
  %4087 = vmatpush1.msra.mxu0 %v2228
  %4088 = vmatprep.subr.mxu0 %v2237
  %4089 = vmatpush1.msra.mxu0 %v2236
  %4090 = vmatprep.subr.mxu0 %v2245
  %4091 = vmatpush1.msra.mxu0 %v2244
  %4092 = vmatprep.subr.mxu0 %v2253
  %4093 = vmatpush1.msra.mxu0 %v2252
  %4094 = vmatprep.subr.mxu0 %v2261
  %4095 = vmatpush1.msra.mxu0 %v2260
  %4096 = vmatprep.subr.mxu0 %v2269
  %4097 = vmatpush1.msra.mxu0 %v2268
  %4098 = vmatprep.subr.mxu0 %v2277
  %4099 = vmatpush1.msra.mxu0 %v2276
  %4100 = vmatprep.subr.mxu0 %v2285
  %4101 = vmatpush1.msra.mxu0 %v2284
  %4102 = vmatprep.subr.mxu0 %v2293
  %4103 = vmatpush1.msra.mxu0 %v2292
  %4104 = vmatprep.subr.mxu0 %v2301
  %4105 = vmatpush1.msra.mxu0 %v2300
  %4106 = vmatprep.subr.mxu0 %v2309
  %4107 = vmatpush1.msra.mxu0 %v2308
  %4108 = vmatprep.subr.mxu0 %v2317
  %4109 = vmatpush1.msra.mxu0 %v2316
  %4110 = vmatprep.subr.mxu0 %v2325
  %4111 = vmatpush1.msra.mxu0 %v2324
  %4112 = vmatprep.subr.mxu0 %v2333
  %4113 = vmatpush1.msra.mxu0 %v2332
  %4114 = vmatprep.subr.mxu0 %v2341
  %4115 = vmatpush1.msra.mxu0 %v2340
  %4116 = vmatprep.subr.mxu0 %v2349
  %4117 = vmatpush1.msra.mxu0 %v2348
  %4118 = vmatprep.subr.mxu0 %v2357
  %4119 = vmatpush1.msra.mxu0 %v2356
  %4120 = vmatprep.subr.mxu0 %v2365
  %4121 = vmatpush1.msra.mxu0 %v2364
  %4122 = vmatprep.subr.mxu0 %v2373
  %4123 = vmatpush1.msra.mxu0 %v2372
  %4124 = vmatprep.subr.mxu0 %v2381
  %4125 = vmatpush1.msra.mxu0 %v2380
  %4126 = vmatprep.subr.mxu0 %v2389
  %4127 = vmatpush1.msra.mxu0 %v2388
  %4128 = vmatprep.subr.mxu0 %v2397
  %4129 = vmatpush1.msra.mxu0 %v2396
  %4130 = vmatprep.subr.mxu0 %v2405
  %4131 = vmatpush1.msra.mxu0 %v2404
  %4132 = vmatprep.mubr.f32.mxu0 %v2143
  %4133 = vmatmul.mubr.f32.gmra.mrb[0].mxu0 %v2142
  %v4134 = vpop.f32.mrb[0].mxu0
  %v4135 = vadd.f32 %v3203, %v4134
  %v4136 = vpop.f32.mrb[0].mxu0
  %v4137 = vadd.f32 %v3207, %v4136
  %4138 = vdwg.mxu0
  %4139 = vmatprep.subr.mxu0 %v2413
  %4140 = vmatpush1.msra.mxu0 %v2412
  %4141 = vmatprep.subr.mxu0 %v2421
  %4142 = vmatpush1.msra.mxu0 %v2420
  %4143 = vmatprep.subr.mxu0 %v2429
  %4144 = vmatpush1.msra.mxu0 %v2428
  %4145 = vmatprep.subr.mxu0 %v2437
  %4146 = vmatpush1.msra.mxu0 %v2436
  %4147 = vmatprep.subr.mxu0 %v2445
  %4148 = vmatpush1.msra.mxu0 %v2444
  %4149 = vmatprep.subr.mxu0 %v2453
  %4150 = vmatpush1.msra.mxu0 %v2452
  %4151 = vmatprep.subr.mxu0 %v2461
  %4152 = vmatpush1.msra.mxu0 %v2460
  %4153 = vmatprep.subr.mxu0 %v2469
  %4154 = vmatpush1.msra.mxu0 %v2468
  %4155 = vmatprep.subr.mxu0 %v2477
  %4156 = vmatpush1.msra.mxu0 %v2476
  %4157 = vmatprep.subr.mxu0 %v2485
  %4158 = vmatpush1.msra.mxu0 %v2484
  %4159 = vmatprep.subr.mxu0 %v2493
  %4160 = vmatpush1.msra.mxu0 %v2492
  %4161 = vmatprep.subr.mxu0 %v2501
  %4162 = vmatpush1.msra.mxu0 %v2500
  %4163 = vmatprep.subr.mxu0 %v2509
  %4164 = vmatpush1.msra.mxu0 %v2508
  %4165 = vmatprep.subr.mxu0 %v2517
  %4166 = vmatpush1.msra.mxu0 %v2516
  %4167 = vmatprep.subr.mxu0 %v2525
  %4168 = vmatpush1.msra.mxu0 %v2524
  %4169 = vmatprep.subr.mxu0 %v2533
  %4170 = vmatpush1.msra.mxu0 %v2532
  %4171 = vmatprep.subr.mxu0 %v2541
  %4172 = vmatpush1.msra.mxu0 %v2540
  %4173 = vmatprep.subr.mxu0 %v2549
  %4174 = vmatpush1.msra.mxu0 %v2548
  %4175 = vmatprep.subr.mxu0 %v2557
  %4176 = vmatpush1.msra.mxu0 %v2556
  %4177 = vmatprep.subr.mxu0 %v2565
  %4178 = vmatpush1.msra.mxu0 %v2564
  %4179 = vmatprep.subr.mxu0 %v2573
  %4180 = vmatpush1.msra.mxu0 %v2572
  %4181 = vmatprep.subr.mxu0 %v2581
  %4182 = vmatpush1.msra.mxu0 %v2580
  %4183 = vmatprep.subr.mxu0 %v2589
  %4184 = vmatpush1.msra.mxu0 %v2588
  %4185 = vmatprep.subr.mxu0 %v2597
  %4186 = vmatpush1.msra.mxu0 %v2596
  %4187 = vmatprep.subr.mxu0 %v2605
  %4188 = vmatpush1.msra.mxu0 %v2604
  %4189 = vmatprep.subr.mxu0 %v2613
  %4190 = vmatpush1.msra.mxu0 %v2612
  %4191 = vmatprep.subr.mxu0 %v2621
  %4192 = vmatpush1.msra.mxu0 %v2620
  %4193 = vmatprep.subr.mxu0 %v2629
  %4194 = vmatpush1.msra.mxu0 %v2628
  %4195 = vmatprep.subr.mxu0 %v2637
  %4196 = vmatpush1.msra.mxu0 %v2636
  %4197 = vmatprep.subr.mxu0 %v2645
  %4198 = vmatpush1.msra.mxu0 %v2644
  %4199 = vmatprep.subr.mxu0 %v2653
  %4200 = vmatpush1.msra.mxu0 %v2652
  %4201 = vmatprep.subr.mxu0 %v2661
  %4202 = vmatpush1.msra.mxu0 %v2660
  %4203 = vmatprep.mubr.f32.mxu0 %v2145
  %4204 = vmatmul.mubr.f32.gmra.mrb[0].mxu0 %v2144
  %v4205 = vpop.f32.mrb[0].mxu0
  %v4206 = vadd.f32 %v4135, %v4205
  %v4207 = vpop.f32.mrb[0].mxu0
  %v4208 = vadd.f32 %v4137, %v4207
  %4209 = vdwg.mxu0
  %4210 = vmatprep.subr.mxu0 %v2669
  %4211 = vmatpush1.msra.mxu0 %v2668
  %4212 = vmatprep.subr.mxu0 %v2677
  %4213 = vmatpush1.msra.mxu0 %v2676
  %4214 = vmatprep.subr.mxu0 %v2685
  %4215 = vmatpush1.msra.mxu0 %v2684
  %4216 = vmatprep.subr.mxu0 %v2693
  %4217 = vmatpush1.msra.mxu0 %v2692
  %4218 = vmatprep.subr.mxu0 %v2701
  %4219 = vmatpush1.msra.mxu0 %v2700
  %4220 = vmatprep.subr.mxu0 %v2709
  %4221 = vmatpush1.msra.mxu0 %v2708
  %4222 = vmatprep.subr.mxu0 %v2717
  %4223 = vmatpush1.msra.mxu0 %v2716
  %4224 = vmatprep.subr.mxu0 %v2725
  %4225 = vmatpush1.msra.mxu0 %v2724
  %4226 = vmatprep.subr.mxu0 %v2733
  %4227 = vmatpush1.msra.mxu0 %v2732
  %4228 = vmatprep.subr.mxu0 %v2741
  %4229 = vmatpush1.msra.mxu0 %v2740
  %4230 = vmatprep.subr.mxu0 %v2749
  %4231 = vmatpush1.msra.mxu0 %v2748
  %4232 = vmatprep.subr.mxu0 %v2757
  %4233 = vmatpush1.msra.mxu0 %v2756
  %4234 = vmatprep.subr.mxu0 %v2765
  %4235 = vmatpush1.msra.mxu0 %v2764
  %4236 = vmatprep.subr.mxu0 %v2773
  %4237 = vmatpush1.msra.mxu0 %v2772
  %4238 = vmatprep.subr.mxu0 %v2781
  %4239 = vmatpush1.msra.mxu0 %v2780
  %4240 = vmatprep.subr.mxu0 %v2789
  %4241 = vmatpush1.msra.mxu0 %v2788
  %4242 = vmatprep.subr.mxu0 %v2797
  %4243 = vmatpush1.msra.mxu0 %v2796
  %4244 = vmatprep.subr.mxu0 %v2805
  %4245 = vmatpush1.msra.mxu0 %v2804
  %4246 = vmatprep.subr.mxu0 %v2813
  %4247 = vmatpush1.msra.mxu0 %v2812
  %4248 = vmatprep.subr.mxu0 %v2821
  %4249 = vmatpush1.msra.mxu0 %v2820
  %4250 = vmatprep.subr.mxu0 %v2829
  %4251 = vmatpush1.msra.mxu0 %v2828
  %4252 = vmatprep.subr.mxu0 %v2837
  %4253 = vmatpush1.msra.mxu0 %v2836
  %4254 = vmatprep.subr.mxu0 %v2845
  %4255 = vmatpush1.msra.mxu0 %v2844
  %4256 = vmatprep.subr.mxu0 %v2853
  %4257 = vmatpush1.msra.mxu0 %v2852
  %4258 = vmatprep.subr.mxu0 %v2861
  %4259 = vmatpush1.msra.mxu0 %v2860
  %4260 = vmatprep.subr.mxu0 %v2869
  %4261 = vmatpush1.msra.mxu0 %v2868
  %4262 = vmatprep.subr.mxu0 %v2877
  %4263 = vmatpush1.msra.mxu0 %v2876
  %4264 = vmatprep.subr.mxu0 %v2885
  %4265 = vmatpush1.msra.mxu0 %v2884
  %4266 = vmatprep.subr.mxu0 %v2893
  %4267 = vmatpush1.msra.mxu0 %v2892
  %4268 = vmatprep.subr.mxu0 %v2901
  %4269 = vmatpush1.msra.mxu0 %v2900
  %4270 = vmatprep.subr.mxu0 %v2909
  %4271 = vmatpush1.msra.mxu0 %v2908
  %4272 = vmatprep.subr.mxu0 %v2917
  %4273 = vmatpush1.msra.mxu0 %v2916
  %4274 = vmatprep.mubr.f32.mxu0 %v2147
  %4275 = vmatmul.mubr.f32.gmra.mrb[0].mxu0 %v2146
  %v4276 = vpop.f32.mrb[0].mxu0
  %v4277 = vadd.f32 %v4206, %v4276
  %v4278 = vpop.f32.mrb[0].mxu0
  %v4279 = vadd.f32 %v4208, %v4278
  %4280 = vdwg.mxu0
  %4281 = vmatprep.subr.mxu0 %v2925
  %4282 = vmatpush1.msra.mxu0 %v2924
  %4283 = vmatprep.subr.mxu0 %v2933
  %4284 = vmatpush1.msra.mxu0 %v2932
  %4285 = vmatprep.subr.mxu0 %v2941
  %4286 = vmatpush1.msra.mxu0 %v2940
  %4287 = vmatprep.subr.mxu0 %v2949
  %4288 = vmatpush1.msra.mxu0 %v2948
  %4289 = vmatprep.subr.mxu0 %v2957
  %4290 = vmatpush1.msra.mxu0 %v2956
  %4291 = vmatprep.subr.mxu0 %v2965
  %4292 = vmatpush1.msra.mxu0 %v2964
  %4293 = vmatprep.subr.mxu0 %v2973
  %4294 = vmatpush1.msra.mxu0 %v2972
  %4295 = vmatprep.subr.mxu0 %v2981
  %4296 = vmatpush1.msra.mxu0 %v2980
  %4297 = vmatprep.subr.mxu0 %v2989
  %4298 = vmatpush1.msra.mxu0 %v2988
  %4299 = vmatprep.subr.mxu0 %v2997
  %4300 = vmatpush1.msra.mxu0 %v2996
  %4301 = vmatprep.subr.mxu0 %v3005
  %4302 = vmatpush1.msra.mxu0 %v3004
  %4303 = vmatprep.subr.mxu0 %v3013
  %4304 = vmatpush1.msra.mxu0 %v3012
  %4305 = vmatprep.subr.mxu0 %v3021
  %4306 = vmatpush1.msra.mxu0 %v3020
  %4307 = vmatprep.subr.mxu0 %v3029
  %4308 = vmatpush1.msra.mxu0 %v3028
  %4309 = vmatprep.subr.mxu0 %v3037
  %4310 = vmatpush1.msra.mxu0 %v3036
  %4311 = vmatprep.subr.mxu0 %v3045
  %4312 = vmatpush1.msra.mxu0 %v3044
  %4313 = vmatprep.subr.mxu0 %v3053
  %4314 = vmatpush1.msra.mxu0 %v3052
  %4315 = vmatprep.subr.mxu0 %v3061
  %4316 = vmatpush1.msra.mxu0 %v3060
  %4317 = vmatprep.subr.mxu0 %v3069
  %4318 = vmatpush1.msra.mxu0 %v3068
  %4319 = vmatprep.subr.mxu0 %v3077
  %4320 = vmatpush1.msra.mxu0 %v3076
  %4321 = vmatprep.subr.mxu0 %v3085
  %4322 = vmatpush1.msra.mxu0 %v3084
  %4323 = vmatprep.subr.mxu0 %v3093
  %4324 = vmatpush1.msra.mxu0 %v3092
  %4325 = vmatprep.subr.mxu0 %v3101
  %4326 = vmatpush1.msra.mxu0 %v3100
  %4327 = vmatprep.subr.mxu0 %v3109
  %4328 = vmatpush1.msra.mxu0 %v3108
  %4329 = vmatprep.subr.mxu0 %v3117
  %4330 = vmatpush1.msra.mxu0 %v3116
  %4331 = vmatprep.subr.mxu0 %v3125
  %4332 = vmatpush1.msra.mxu0 %v3124
  %4333 = vmatprep.subr.mxu0 %v3133
  %4334 = vmatpush1.msra.mxu0 %v3132
  %4335 = vmatprep.subr.mxu0 %v3141
  %4336 = vmatpush1.msra.mxu0 %v3140
  %4337 = vmatprep.subr.mxu0 %v3149
  %4338 = vmatpush1.msra.mxu0 %v3148
  %4339 = vmatprep.subr.mxu0 %v3157
  %4340 = vmatpush1.msra.mxu0 %v3156
  %4341 = vmatprep.subr.mxu0 %v3165
  %4342 = vmatpush1.msra.mxu0 %v3164
  %4343 = vmatprep.subr.mxu0 %v3173
  %4344 = vmatpush1.msra.mxu0 %v3172
  %4345 = vmatprep.mubr.f32.mxu0 %v2149
  %4346 = vmatmul.mubr.f32.gmra.mrb[0].mxu0 %v2148
  %v4347 = vpop.f32.mrb[0].mxu0
  %v4348 = vadd.f32 %v4277, %v4347
  %v4349 = vpop.f32.mrb[0].mxu0
  %v4350 = vadd.f32 %v4279, %v4349
  %4351 = vdwg.mxu0
  %v4352 = vmul.f32 %v3496, %v3496
  %v4353 = vmul.f32 %v3498, %v3498
  %v4354 = vmul.f32 %v3780, %v3780
  %v4355 = vmul.f32 %v3782, %v3782
  %v4356 = vmul.f32 %v4064, %v4064
  %v4357 = vmul.f32 %v4066, %v4066
  %v4358 = vmul.f32 %v4348, %v4348
  %v4359 = vmul.f32 %v4350, %v4350
  %v4360 = vld [vmem:[%s10] sm:$0xff]
  %v4361 = vld [vmem:[%s10 + $0x8] sm:$0xff]
  %v4362 = vld [vmem:[%s10 + $0x10] sm:$0xff]
  %v4363 = vld [vmem:[%s10 + $0x18] sm:$0xff]
  %v4364 = vld [vmem:[%s10 + $0x20] sm:$0xff]
  %v4365 = vld [vmem:[%s10 + $0x28] sm:$0xff]
  %v4366 = vld [vmem:[%s10 + $0x30] sm:$0xff]
  %v4367 = vld [vmem:[%s10 + $0x38] sm:$0xff]
  %v4368 = vld [vmem:[%s10 + $0x40] sm:$0xff]
  %v4369 = vld [vmem:[%s10 + $0x48] sm:$0xff]
  %v4370 = vld [vmem:[%s10 + $0x50] sm:$0xff]
  %v4371 = vld [vmem:[%s10 + $0x58] sm:$0xff]
  %v4372 = vld [vmem:[%s10 + $0x60] sm:$0xff]
  %v4373 = vld [vmem:[%s10 + $0x68] sm:$0xff]
  %v4374 = vld [vmem:[%s10 + $0x70] sm:$0xff]
  %v4375 = vld [vmem:[%s10 + $0x78] sm:$0xff]
  %v4376 = vld [vmem:[%s10 + $0x80] sm:$0xff]
  %v4377 = vld [vmem:[%s10 + $0x88] sm:$0xff]
  %v4378 = vld [vmem:[%s10 + $0x90] sm:$0xff]
  %v4379 = vld [vmem:[%s10 + $0x98] sm:$0xff]
  %v4380 = vld [vmem:[%s10 + $0xa0] sm:$0xff]
  %v4381 = vld [vmem:[%s10 + $0xa8] sm:$0xff]
  %v4382 = vld [vmem:[%s10 + $0xb0] sm:$0xff]
  %v4383 = vld [vmem:[%s10 + $0xb8] sm:$0xff]
  %v4384 = vld [vmem:[%s10 + $0xc0] sm:$0xff]
  %v4385 = vld [vmem:[%s10 + $0xc8] sm:$0xff]
  %v4386 = vld [vmem:[%s10 + $0xd0] sm:$0xff]
  %v4387 = vld [vmem:[%s10 + $0xd8] sm:$0xff]
  %v4388 = vld [vmem:[%s10 + $0xe0] sm:$0xff]
  %v4389 = vld [vmem:[%s10 + $0xe8] sm:$0xff]
  %v4390 = vld [vmem:[%s10 + $0xf0] sm:$0xff]
  %v4391 = vld [vmem:[%s10 + $0xf8] sm:$0xff]
  %v4392 = vld [vmem:[%s10 + $0x100] sm:$0xff]
  %v4393 = vld [vmem:[%s10 + $0x108] sm:$0xff]
  %v4394 = vld [vmem:[%s10 + $0x110] sm:$0xff]
  %v4395 = vld [vmem:[%s10 + $0x118] sm:$0xff]
  %v4396 = vld [vmem:[%s10 + $0x120] sm:$0xff]
  %v4397 = vld [vmem:[%s10 + $0x128] sm:$0xff]
  %v4398 = vld [vmem:[%s10 + $0x130] sm:$0xff]
  %v4399 = vld [vmem:[%s10 + $0x138] sm:$0xff]
  %v4400 = vld [vmem:[%s10 + $0x140] sm:$0xff]
  %v4401 = vld [vmem:[%s10 + $0x148] sm:$0xff]
  %v4402 = vld [vmem:[%s10 + $0x150] sm:$0xff]
  %v4403 = vld [vmem:[%s10 + $0x158] sm:$0xff]
  %v4404 = vld [vmem:[%s10 + $0x160] sm:$0xff]
  %v4405 = vld [vmem:[%s10 + $0x168] sm:$0xff]
  %v4406 = vld [vmem:[%s10 + $0x170] sm:$0xff]
  %v4407 = vld [vmem:[%s10 + $0x178] sm:$0xff]
  %v4408 = vld [vmem:[%s10 + $0x180] sm:$0xff]
  %v4409 = vld [vmem:[%s10 + $0x188] sm:$0xff]
  %v4410 = vld [vmem:[%s10 + $0x190] sm:$0xff]
  %v4411 = vld [vmem:[%s10 + $0x198] sm:$0xff]
  %v4412 = vld [vmem:[%s10 + $0x1a0] sm:$0xff]
  %v4413 = vld [vmem:[%s10 + $0x1a8] sm:$0xff]
  %v4414 = vld [vmem:[%s10 + $0x1b0] sm:$0xff]
  %v4415 = vld [vmem:[%s10 + $0x1b8] sm:$0xff]
  %v4416 = vld [vmem:[%s10 + $0x1c0] sm:$0xff]
  %v4417 = vld [vmem:[%s10 + $0x1c8] sm:$0xff]
  %v4418 = vld [vmem:[%s10 + $0x1d0] sm:$0xff]
  %v4419 = vld [vmem:[%s10 + $0x1d8] sm:$0xff]
  %v4420 = vld [vmem:[%s10 + $0x1e0] sm:$0xff]
  %v4421 = vld [vmem:[%s10 + $0x1e8] sm:$0xff]
  %v4422 = vld [vmem:[%s10 + $0x1f0] sm:$0xff]
  %v4423 = vld [vmem:[%s10 + $0x1f8] sm:$0xff]
  %v4424 = vld [vmem:[%s10 + $0x200] sm:$0xff]
  %v4425 = vld [vmem:[%s10 + $0x208] sm:$0xff]
  %v4426 = vld [vmem:[%s10 + $0x210] sm:$0xff]
  %v4427 = vld [vmem:[%s10 + $0x218] sm:$0xff]
  %v4428 = vld [vmem:[%s10 + $0x220] sm:$0xff]
  %v4429 = vld [vmem:[%s10 + $0x228] sm:$0xff]
  %v4430 = vld [vmem:[%s10 + $0x230] sm:$0xff]
  %v4431 = vld [vmem:[%s10 + $0x238] sm:$0xff]
  %v4432 = vld [vmem:[%s10 + $0x240] sm:$0xff]
  %v4433 = vld [vmem:[%s10 + $0x248] sm:$0xff]
  %v4434 = vld [vmem:[%s10 + $0x250] sm:$0xff]
  %v4435 = vld [vmem:[%s10 + $0x258] sm:$0xff]
  %v4436 = vld [vmem:[%s10 + $0x260] sm:$0xff]
  %v4437 = vld [vmem:[%s10 + $0x268] sm:$0xff]
  %v4438 = vld [vmem:[%s10 + $0x270] sm:$0xff]
  %v4439 = vld [vmem:[%s10 + $0x278] sm:$0xff]
  %v4440 = vld [vmem:[%s10 + $0x280] sm:$0xff]
  %v4441 = vld [vmem:[%s10 + $0x288] sm:$0xff]
  %v4442 = vld [vmem:[%s10 + $0x290] sm:$0xff]
  %v4443 = vld [vmem:[%s10 + $0x298] sm:$0xff]
  %v4444 = vld [vmem:[%s10 + $0x2a0] sm:$0xff]
  %v4445 = vld [vmem:[%s10 + $0x2a8] sm:$0xff]
  %v4446 = vld [vmem:[%s10 + $0x2b0] sm:$0xff]
  %v4447 = vld [vmem:[%s10 + $0x2b8] sm:$0xff]
  %v4448 = vld [vmem:[%s10 + $0x2c0] sm:$0xff]
  %v4449 = vld [vmem:[%s10 + $0x2c8] sm:$0xff]
  %v4450 = vld [vmem:[%s10 + $0x2d0] sm:$0xff]
  %v4451 = vld [vmem:[%s10 + $0x2d8] sm:$0xff]
  %v4452 = vld [vmem:[%s10 + $0x2e0] sm:$0xff]
  %v4453 = vld [vmem:[%s10 + $0x2e8] sm:$0xff]
  %v4454 = vld [vmem:[%s10 + $0x2f0] sm:$0xff]
  %v4455 = vld [vmem:[%s10 + $0x2f8] sm:$0xff]
  %v4456 = vld [vmem:[%s10 + $0x300] sm:$0xff]
  %v4457 = vld [vmem:[%s10 + $0x308] sm:$0xff]
  %v4458 = vld [vmem:[%s10 + $0x310] sm:$0xff]
  %v4459 = vld [vmem:[%s10 + $0x318] sm:$0xff]
  %v4460 = vld [vmem:[%s10 + $0x320] sm:$0xff]
  %v4461 = vld [vmem:[%s10 + $0x328] sm:$0xff]
  %v4462 = vld [vmem:[%s10 + $0x330] sm:$0xff]
  %v4463 = vld [vmem:[%s10 + $0x338] sm:$0xff]
  %v4464 = vld [vmem:[%s10 + $0x340] sm:$0xff]
  %v4465 = vld [vmem:[%s10 + $0x348] sm:$0xff]
  %v4466 = vld [vmem:[%s10 + $0x350] sm:$0xff]
  %v4467 = vld [vmem:[%s10 + $0x358] sm:$0xff]
  %v4468 = vld [vmem:[%s10 + $0x360] sm:$0xff]
  %v4469 = vld [vmem:[%s10 + $0x368] sm:$0xff]
  %v4470 = vld [vmem:[%s10 + $0x370] sm:$0xff]
  %v4471 = vld [vmem:[%s10 + $0x378] sm:$0xff]
  %v4472 = vld [vmem:[%s10 + $0x380] sm:$0xff]
  %v4473 = vld [vmem:[%s10 + $0x388] sm:$0xff]
  %v4474 = vld [vmem:[%s10 + $0x390] sm:$0xff]
  %v4475 = vld [vmem:[%s10 + $0x398] sm:$0xff]
  %v4476 = vld [vmem:[%s10 + $0x3a0] sm:$0xff]
  %v4477 = vld [vmem:[%s10 + $0x3a8] sm:$0xff]
  %v4478 = vld [vmem:[%s10 + $0x3b0] sm:$0xff]
  %v4479 = vld [vmem:[%s10 + $0x3b8] sm:$0xff]
  %v4480 = vld [vmem:[%s10 + $0x3c0] sm:$0xff]
  %v4481 = vld [vmem:[%s10 + $0x3c8] sm:$0xff]
  %v4482 = vld [vmem:[%s10 + $0x3d0] sm:$0xff]
  %v4483 = vld [vmem:[%s10 + $0x3d8] sm:$0xff]
  %v4484 = vld [vmem:[%s10 + $0x3e0] sm:$0xff]
  %v4485 = vld [vmem:[%s10 + $0x3e8] sm:$0xff]
  %v4486 = vld [vmem:[%s10 + $0x3f0] sm:$0xff]
  %v4487 = vld [vmem:[%s10 + $0x3f8] sm:$0xff]
  %4488 = vmatprep.subr.mxu0 0.0
  %4489 = vmatpush1.msra.mxu0 %v4360
  %4490 = vmatprep.subr.mxu0 0.0
  %4491 = vmatpush1.msra.mxu0 %v4361
  %4492 = vmatprep.subr.mxu0 0.0
  %4493 = vmatpush1.msra.mxu0 %v4362
  %4494 = vmatprep.subr.mxu0 0.0
  %4495 = vmatpush1.msra.mxu0 %v4363
  %4496 = vmatprep.subr.mxu0 0.0
  %4497 = vmatpush1.msra.mxu0 %v4364
  %4498 = vmatprep.subr.mxu0 0.0
  %4499 = vmatpush1.msra.mxu0 %v4365
  %4500 = vmatprep.subr.mxu0 0.0
  %4501 = vmatpush1.msra.mxu0 %v4366
  %4502 = vmatprep.subr.mxu0 0.0
  %4503 = vmatpush1.msra.mxu0 %v4367
  %4504 = vmatprep.subr.mxu0 0.0
  %4505 = vmatpush1.msra.mxu0 %v4368
  %4506 = vmatprep.subr.mxu0 0.0
  %4507 = vmatpush1.msra.mxu0 %v4369
  %4508 = vmatprep.subr.mxu0 0.0
  %4509 = vmatpush1.msra.mxu0 %v4370
  %4510 = vmatprep.subr.mxu0 0.0
  %4511 = vmatpush1.msra.mxu0 %v4371
  %4512 = vmatprep.subr.mxu0 0.0
  %4513 = vmatpush1.msra.mxu0 %v4372
  %4514 = vmatprep.subr.mxu0 0.0
  %4515 = vmatpush1.msra.mxu0 %v4373
  %4516 = vmatprep.subr.mxu0 0.0
  %4517 = vmatpush1.msra.mxu0 %v4374
  %4518 = vmatprep.subr.mxu0 0.0
  %4519 = vmatpush1.msra.mxu0 %v4375
  %4520 = vmatprep.subr.mxu0 0.0
  %4521 = vmatpush1.msra.mxu0 %v4376
  %4522 = vmatprep.subr.mxu0 0.0
  %4523 = vmatpush1.msra.mxu0 %v4377
  %4524 = vmatprep.subr.mxu0 0.0
  %4525 = vmatpush1.msra.mxu0 %v4378
  %4526 = vmatprep.subr.mxu0 0.0
  %4527 = vmatpush1.msra.mxu0 %v4379
  %4528 = vmatprep.subr.mxu0 0.0
  %4529 = vmatpush1.msra.mxu0 %v4380
  %4530 = vmatprep.subr.mxu0 0.0
  %4531 = vmatpush1.msra.mxu0 %v4381
  %4532 = vmatprep.subr.mxu0 0.0
  %4533 = vmatpush1.msra.mxu0 %v4382
  %4534 = vmatprep.subr.mxu0 0.0
  %4535 = vmatpush1.msra.mxu0 %v4383
  %4536 = vmatprep.subr.mxu0 0.0
  %4537 = vmatpush1.msra.mxu0 %v4384
  %4538 = vmatprep.subr.mxu0 0.0
  %4539 = vmatpush1.msra.mxu0 %v4385
  %4540 = vmatprep.subr.mxu0 0.0
  %4541 = vmatpush1.msra.mxu0 %v4386
  %4542 = vmatprep.subr.mxu0 0.0
  %4543 = vmatpush1.msra.mxu0 %v4387
  %4544 = vmatprep.subr.mxu0 0.0
  %4545 = vmatpush1.msra.mxu0 %v4388
  %4546 = vmatprep.subr.mxu0 0.0
  %4547 = vmatpush1.msra.mxu0 %v4389
  %4548 = vmatprep.subr.mxu0 0.0
  %4549 = vmatpush1.msra.mxu0 %v4390
  %4550 = vmatprep.subr.mxu0 0.0
  %4551 = vmatpush1.msra.mxu0 %v4391
  %4552 = vmatprep.mubr.f32.mxu0 %v3498
  %4553 = vmatmul.mubr.f32.gmra.mrb[0].mxu0 %v3496
  %v4554 = vpop.f32.mrb[0].mxu0
  %v4555 = vadd.f32 0.0, %v4554
  %v4556 = vpop.f32.mrb[0].mxu0
  %4557 = vdwg.mxu0
  %4558 = vmatprep.subr.mxu0 0.0
  %4559 = vmatpush1.msra.mxu0 %v4392
  %4560 = vmatprep.subr.mxu0 0.0
  %4561 = vmatpush1.msra.mxu0 %v4393
  %4562 = vmatprep.subr.mxu0 0.0
  %4563 = vmatpush1.msra.mxu0 %v4394
  %4564 = vmatprep.subr.mxu0 0.0
  %4565 = vmatpush1.msra.mxu0 %v4395
  %4566 = vmatprep.subr.mxu0 0.0
  %4567 = vmatpush1.msra.mxu0 %v4396
  %4568 = vmatprep.subr.mxu0 0.0
  %4569 = vmatpush1.msra.mxu0 %v4397
  %4570 = vmatprep.subr.mxu0 0.0
  %4571 = vmatpush1.msra.mxu0 %v4398
  %4572 = vmatprep.subr.mxu0 0.0
  %4573 = vmatpush1.msra.mxu0 %v4399
  %4574 = vmatprep.subr.mxu0 0.0
  %4575 = vmatpush1.msra.mxu0 %v4400
  %4576 = vmatprep.subr.mxu0 0.0
  %4577 = vmatpush1.msra.mxu0 %v4401
  %4578 = vmatprep.subr.mxu0 0.0
  %4579 = vmatpush1.msra.mxu0 %v4402
  %4580 = vmatprep.subr.mxu0 0.0
  %4581 = vmatpush1.msra.mxu0 %v4403
  %4582 = vmatprep.subr.mxu0 0.0
  %4583 = vmatpush1.msra.mxu0 %v4404
  %4584 = vmatprep.subr.mxu0 0.0
  %4585 = vmatpush1.msra.mxu0 %v4405
  %4586 = vmatprep.subr.mxu0 0.0
  %4587 = vmatpush1.msra.mxu0 %v4406
  %4588 = vmatprep.subr.mxu0 0.0
  %4589 = vmatpush1.msra.mxu0 %v4407
  %4590 = vmatprep.subr.mxu0 0.0
  %4591 = vmatpush1.msra.mxu0 %v4408
  %4592 = vmatprep.subr.mxu0 0.0
  %4593 = vmatpush1.msra.mxu0 %v4409
  %4594 = vmatprep.subr.mxu0 0.0
  %4595 = vmatpush1.msra.mxu0 %v4410
  %4596 = vmatprep.subr.mxu0 0.0
  %4597 = vmatpush1.msra.mxu0 %v4411
  %4598 = vmatprep.subr.mxu0 0.0
  %4599 = vmatpush1.msra.mxu0 %v4412
  %4600 = vmatprep.subr.mxu0 0.0
  %4601 = vmatpush1.msra.mxu0 %v4413
  %4602 = vmatprep.subr.mxu0 0.0
  %4603 = vmatpush1.msra.mxu0 %v4414
  %4604 = vmatprep.subr.mxu0 0.0
  %4605 = vmatpush1.msra.mxu0 %v4415
  %4606 = vmatprep.subr.mxu0 0.0
  %4607 = vmatpush1.msra.mxu0 %v4416
  %4608 = vmatprep.subr.mxu0 0.0
  %4609 = vmatpush1.msra.mxu0 %v4417
  %4610 = vmatprep.subr.mxu0 0.0
  %4611 = vmatpush1.msra.mxu0 %v4418
  %4612 = vmatprep.subr.mxu0 0.0
  %4613 = vmatpush1.msra.mxu0 %v4419
  %4614 = vmatprep.subr.mxu0 0.0
  %4615 = vmatpush1.msra.mxu0 %v4420
  %4616 = vmatprep.subr.mxu0 0.0
  %4617 = vmatpush1.msra.mxu0 %v4421
  %4618 = vmatprep.subr.mxu0 0.0
  %4619 = vmatpush1.msra.mxu0 %v4422
  %4620 = vmatprep.subr.mxu0 0.0
  %4621 = vmatpush1.msra.mxu0 %v4423
  %4622 = vmatprep.mubr.f32.mxu0 %v3782
  %4623 = vmatmul.mubr.f32.gmra.mrb[0].mxu0 %v3780
  %v4624 = vpop.f32.mrb[0].mxu0
  %v4625 = vadd.f32 %v4555, %v4624
  %v4626 = vpop.f32.mrb[0].mxu0
  %4627 = vdwg.mxu0
  %4628 = vmatprep.subr.mxu0 0.0
  %4629 = vmatpush1.msra.mxu0 %v4424
  %4630 = vmatprep.subr.mxu0 0.0
  %4631 = vmatpush1.msra.mxu0 %v4425
  %4632 = vmatprep.subr.mxu0 0.0
  %4633 = vmatpush1.msra.mxu0 %v4426
  %4634 = vmatprep.subr.mxu0 0.0
  %4635 = vmatpush1.msra.mxu0 %v4427
  %4636 = vmatprep.subr.mxu0 0.0
  %4637 = vmatpush1.msra.mxu0 %v4428
  %4638 = vmatprep.subr.mxu0 0.0
  %4639 = vmatpush1.msra.mxu0 %v4429
  %4640 = vmatprep.subr.mxu0 0.0
  %4641 = vmatpush1.msra.mxu0 %v4430
  %4642 = vmatprep.subr.mxu0 0.0
  %4643 = vmatpush1.msra.mxu0 %v4431
  %4644 = vmatprep.subr.mxu0 0.0
  %4645 = vmatpush1.msra.mxu0 %v4432
  %4646 = vmatprep.subr.mxu0 0.0
  %4647 = vmatpush1.msra.mxu0 %v4433
  %4648 = vmatprep.subr.mxu0 0.0
  %4649 = vmatpush1.msra.mxu0 %v4434
  %4650 = vmatprep.subr.mxu0 0.0
  %4651 = vmatpush1.msra.mxu0 %v4435
  %4652 = vmatprep.subr.mxu0 0.0
  %4653 = vmatpush1.msra.mxu0 %v4436
  %4654 = vmatprep.subr.mxu0 0.0
  %4655 = vmatpush1.msra.mxu0 %v4437
  %4656 = vmatprep.subr.mxu0 0.0
  %4657 = vmatpush1.msra.mxu0 %v4438
  %4658 = vmatprep.subr.mxu0 0.0
  %4659 = vmatpush1.msra.mxu0 %v4439
  %4660 = vmatprep.subr.mxu0 0.0
  %4661 = vmatpush1.msra.mxu0 %v4440
  %4662 = vmatprep.subr.mxu0 0.0
  %4663 = vmatpush1.msra.mxu0 %v4441
  %4664 = vmatprep.subr.mxu0 0.0
  %4665 = vmatpush1.msra.mxu0 %v4442
  %4666 = vmatprep.subr.mxu0 0.0
  %4667 = vmatpush1.msra.mxu0 %v4443
  %4668 = vmatprep.subr.mxu0 0.0
  %4669 = vmatpush1.msra.mxu0 %v4444
  %4670 = vmatprep.subr.mxu0 0.0
  %4671 = vmatpush1.msra.mxu0 %v4445
  %4672 = vmatprep.subr.mxu0 0.0
  %4673 = vmatpush1.msra.mxu0 %v4446
  %4674 = vmatprep.subr.mxu0 0.0
  %4675 = vmatpush1.msra.mxu0 %v4447
  %4676 = vmatprep.subr.mxu0 0.0
  %4677 = vmatpush1.msra.mxu0 %v4448
  %4678 = vmatprep.subr.mxu0 0.0
  %4679 = vmatpush1.msra.mxu0 %v4449
  %4680 = vmatprep.subr.mxu0 0.0
  %4681 = vmatpush1.msra.mxu0 %v4450
  %4682 = vmatprep.subr.mxu0 0.0
  %4683 = vmatpush1.msra.mxu0 %v4451
  %4684 = vmatprep.subr.mxu0 0.0
  %4685 = vmatpush1.msra.mxu0 %v4452
  %4686 = vmatprep.subr.mxu0 0.0
  %4687 = vmatpush1.msra.mxu0 %v4453
  %4688 = vmatprep.subr.mxu0 0.0
  %4689 = vmatpush1.msra.mxu0 %v4454
  %4690 = vmatprep.subr.mxu0 0.0
  %4691 = vmatpush1.msra.mxu0 %v4455
  %4692 = vmatprep.mubr.f32.mxu0 %v4066
  %4693 = vmatmul.mubr.f32.gmra.mrb[0].mxu0 %v4064
  %v4694 = vpop.f32.mrb[0].mxu0
  %v4695 = vadd.f32 %v4625, %v4694
  %v4696 = vpop.f32.mrb[0].mxu0
  %4697 = vdwg.mxu0
  %4698 = vmatprep.subr.mxu0 0.0
  %4699 = vmatpush1.msra.mxu0 %v4456
  %4700 = vmatprep.subr.mxu0 0.0
  %4701 = vmatpush1.msra.mxu0 %v4457
  %4702 = vmatprep.subr.mxu0 0.0
  %4703 = vmatpush1.msra.mxu0 %v4458
  %4704 = vmatprep.subr.mxu0 0.0
  %4705 = vmatpush1.msra.mxu0 %v4459
  %4706 = vmatprep.subr.mxu0 0.0
  %4707 = vmatpush1.msra.mxu0 %v4460
  %4708 = vmatprep.subr.mxu0 0.0
  %4709 = vmatpush1.msra.mxu0 %v4461
  %4710 = vmatprep.subr.mxu0 0.0
  %4711 = vmatpush1.msra.mxu0 %v4462
  %4712 = vmatprep.subr.mxu0 0.0
  %4713 = vmatpush1.msra.mxu0 %v4463
  %4714 = vmatprep.subr.mxu0 0.0
  %4715 = vmatpush1.msra.mxu0 %v4464
  %4716 = vmatprep.subr.mxu0 0.0
  %4717 = vmatpush1.msra.mxu0 %v4465
  %4718 = vmatprep.subr.mxu0 0.0
  %4719 = vmatpush1.msra.mxu0 %v4466
  %4720 = vmatprep.subr.mxu0 0.0
  %4721 = vmatpush1.msra.mxu0 %v4467
  %4722 = vmatprep.subr.mxu0 0.0
  %4723 = vmatpush1.msra.mxu0 %v4468
  %4724 = vmatprep.subr.mxu0 0.0
  %4725 = vmatpush1.msra.mxu0 %v4469
  %4726 = vmatprep.subr.mxu0 0.0
  %4727 = vmatpush1.msra.mxu0 %v4470
  %4728 = vmatprep.subr.mxu0 0.0
  %4729 = vmatpush1.msra.mxu0 %v4471
  %4730 = vmatprep.subr.mxu0 0.0
  %4731 = vmatpush1.msra.mxu0 %v4472
  %4732 = vmatprep.subr.mxu0 0.0
  %4733 = vmatpush1.msra.mxu0 %v4473
  %4734 = vmatprep.subr.mxu0 0.0
  %4735 = vmatpush1.msra.mxu0 %v4474
  %4736 = vmatprep.subr.mxu0 0.0
  %4737 = vmatpush1.msra.mxu0 %v4475
  %4738 = vmatprep.subr.mxu0 0.0
  %4739 = vmatpush1.msra.mxu0 %v4476
  %4740 = vmatprep.subr.mxu0 0.0
  %4741 = vmatpush1.msra.mxu0 %v4477
  %4742 = vmatprep.subr.mxu0 0.0
  %4743 = vmatpush1.msra.mxu0 %v4478
  %4744 = vmatprep.subr.mxu0 0.0
  %4745 = vmatpush1.msra.mxu0 %v4479
  %4746 = vmatprep.subr.mxu0 0.0
  %4747 = vmatpush1.msra.mxu0 %v4480
  %4748 = vmatprep.subr.mxu0 0.0
  %4749 = vmatpush1.msra.mxu0 %v4481
  %4750 = vmatprep.subr.mxu0 0.0
  %4751 = vmatpush1.msra.mxu0 %v4482
  %4752 = vmatprep.subr.mxu0 0.0
  %4753 = vmatpush1.msra.mxu0 %v4483
  %4754 = vmatprep.subr.mxu0 0.0
  %4755 = vmatpush1.msra.mxu0 %v4484
  %4756 = vmatprep.subr.mxu0 0.0
  %4757 = vmatpush1.msra.mxu0 %v4485
  %4758 = vmatprep.subr.mxu0 0.0
  %4759 = vmatpush1.msra.mxu0 %v4486
  %4760 = vmatprep.subr.mxu0 0.0
  %4761 = vmatpush1.msra.mxu0 %v4487
  %4762 = vmatprep.mubr.f32.mxu0 %v4350
  %4763 = vmatmul.mubr.f32.gmra.mrb[0].mxu0 %v4348
  %v4764 = vpop.f32.mrb[0].mxu0
  %v4765 = vadd.f32 %v4695, %v4764
  %v4766 = vpop.f32.mrb[0].mxu0
  %4767 = vdwg.mxu0
  %4768 = vmatprep.subr.mxu0 0.0
  %4769 = vmatpush1.msra.mxu0 %v4360
  %4770 = vmatprep.subr.mxu0 0.0
  %4771 = vmatpush1.msra.mxu0 %v4361
  %4772 = vmatprep.subr.mxu0 0.0
  %4773 = vmatpush1.msra.mxu0 %v4362
  %4774 = vmatprep.subr.mxu0 0.0
  %4775 = vmatpush1.msra.mxu0 %v4363
  %4776 = vmatprep.subr.mxu0 0.0
  %4777 = vmatpush1.msra.mxu0 %v4364
  %4778 = vmatprep.subr.mxu0 0.0
  %4779 = vmatpush1.msra.mxu0 %v4365
  %4780 = vmatprep.subr.mxu0 0.0
  %4781 = vmatpush1.msra.mxu0 %v4366
  %4782 = vmatprep.subr.mxu0 0.0
  %4783 = vmatpush1.msra.mxu0 %v4367
  %4784 = vmatprep.subr.mxu0 0.0
  %4785 = vmatpush1.msra.mxu0 %v4368
  %4786 = vmatprep.subr.mxu0 0.0
  %4787 = vmatpush1.msra.mxu0 %v4369
  %4788 = vmatprep.subr.mxu0 0.0
  %4789 = vmatpush1.msra.mxu0 %v4370
  %4790 = vmatprep.subr.mxu0 0.0
  %4791 = vmatpush1.msra.mxu0 %v4371
  %4792 = vmatprep.subr.mxu0 0.0
  %4793 = vmatpush1.msra.mxu0 %v4372
  %4794 = vmatprep.subr.mxu0 0.0
  %4795 = vmatpush1.msra.mxu0 %v4373
  %4796 = vmatprep.subr.mxu0 0.0
  %4797 = vmatpush1.msra.mxu0 %v4374
  %4798 = vmatprep.subr.mxu0 0.0
  %4799 = vmatpush1.msra.mxu0 %v4375
  %4800 = vmatprep.subr.mxu0 0.0
  %4801 = vmatpush1.msra.mxu0 %v4376
  %4802 = vmatprep.subr.mxu0 0.0
  %4803 = vmatpush1.msra.mxu0 %v4377
  %4804 = vmatprep.subr.mxu0 0.0
  %4805 = vmatpush1.msra.mxu0 %v4378
  %4806 = vmatprep.subr.mxu0 0.0
  %4807 = vmatpush1.msra.mxu0 %v4379
  %4808 = vmatprep.subr.mxu0 0.0
  %4809 = vmatpush1.msra.mxu0 %v4380
  %4810 = vmatprep.subr.mxu0 0.0
  %4811 = vmatpush1.msra.mxu0 %v4381
  %4812 = vmatprep.subr.mxu0 0.0
  %4813 = vmatpush1.msra.mxu0 %v4382
  %4814 = vmatprep.subr.mxu0 0.0
  %4815 = vmatpush1.msra.mxu0 %v4383
  %4816 = vmatprep.subr.mxu0 0.0
  %4817 = vmatpush1.msra.mxu0 %v4384
  %4818 = vmatprep.subr.mxu0 0.0
  %4819 = vmatpush1.msra.mxu0 %v4385
  %4820 = vmatprep.subr.mxu0 0.0
  %4821 = vmatpush1.msra.mxu0 %v4386
  %4822 = vmatprep.subr.mxu0 0.0
  %4823 = vmatpush1.msra.mxu0 %v4387
  %4824 = vmatprep.subr.mxu0 0.0
  %4825 = vmatpush1.msra.mxu0 %v4388
  %4826 = vmatprep.subr.mxu0 0.0
  %4827 = vmatpush1.msra.mxu0 %v4389
  %4828 = vmatprep.subr.mxu0 0.0
  %4829 = vmatpush1.msra.mxu0 %v4390
  %4830 = vmatprep.subr.mxu0 0.0
  %4831 = vmatpush1.msra.mxu0 %v4391
  %4832 = vmatprep.mubr.f32.mxu0 %v4353
  %4833 = vmatmul.mubr.f32.gmra.mrb[0].mxu0 %v4352
  %v4834 = vpop.f32.mrb[0].mxu0
  %v4835 = vadd.f32 0.0, %v4834
  %v4836 = vpop.f32.mrb[0].mxu0
  %4837 = vdwg.mxu0
  %4838 = vmatprep.subr.mxu0 0.0
  %4839 = vmatpush1.msra.mxu0 %v4392
  %4840 = vmatprep.subr.mxu0 0.0
  %4841 = vmatpush1.msra.mxu0 %v4393
  %4842 = vmatprep.subr.mxu0 0.0
  %4843 = vmatpush1.msra.mxu0 %v4394
  %4844 = vmatprep.subr.mxu0 0.0
  %4845 = vmatpush1.msra.mxu0 %v4395
  %4846 = vmatprep.subr.mxu0 0.0
  %4847 = vmatpush1.msra.mxu0 %v4396
  %4848 = vmatprep.subr.mxu0 0.0
  %4849 = vmatpush1.msra.mxu0 %v4397
  %4850 = vmatprep.subr.mxu0 0.0
  %4851 = vmatpush1.msra.mxu0 %v4398
  %4852 = vmatprep.subr.mxu0 0.0
  %4853 = vmatpush1.msra.mxu0 %v4399
  %4854 = vmatprep.subr.mxu0 0.0
  %4855 = vmatpush1.msra.mxu0 %v4400
  %4856 = vmatprep.subr.mxu0 0.0
  %4857 = vmatpush1.msra.mxu0 %v4401
  %4858 = vmatprep.subr.mxu0 0.0
  %4859 = vmatpush1.msra.mxu0 %v4402
  %4860 = vmatprep.subr.mxu0 0.0
  %4861 = vmatpush1.msra.mxu0 %v4403
  %4862 = vmatprep.subr.mxu0 0.0
  %4863 = vmatpush1.msra.mxu0 %v4404
  %4864 = vmatprep.subr.mxu0 0.0
  %4865 = vmatpush1.msra.mxu0 %v4405
  %4866 = vmatprep.subr.mxu0 0.0
  %4867 = vmatpush1.msra.mxu0 %v4406
  %4868 = vmatprep.subr.mxu0 0.0
  %4869 = vmatpush1.msra.mxu0 %v4407
  %4870 = vmatprep.subr.mxu0 0.0
  %4871 = vmatpush1.msra.mxu0 %v4408
  %4872 = vmatprep.subr.mxu0 0.0
  %4873 = vmatpush1.msra.mxu0 %v4409
  %4874 = vmatprep.subr.mxu0 0.0
  %4875 = vmatpush1.msra.mxu0 %v4410
  %4876 = vmatprep.subr.mxu0 0.0
  %4877 = vmatpush1.msra.mxu0 %v4411
  %4878 = vmatprep.subr.mxu0 0.0
  %4879 = vmatpush1.msra.mxu0 %v4412
  %4880 = vmatprep.subr.mxu0 0.0
  %4881 = vmatpush1.msra.mxu0 %v4413
  %4882 = vmatprep.subr.mxu0 0.0
  %4883 = vmatpush1.msra.mxu0 %v4414
  %4884 = vmatprep.subr.mxu0 0.0
  %4885 = vmatpush1.msra.mxu0 %v4415
  %4886 = vmatprep.subr.mxu0 0.0
  %4887 = vmatpush1.msra.mxu0 %v4416
  %4888 = vmatprep.subr.mxu0 0.0
  %4889 = vmatpush1.msra.mxu0 %v4417
  %4890 = vmatprep.subr.mxu0 0.0
  %4891 = vmatpush1.msra.mxu0 %v4418
  %4892 = vmatprep.subr.mxu0 0.0
  %4893 = vmatpush1.msra.mxu0 %v4419
  %4894 = vmatprep.subr.mxu0 0.0
  %4895 = vmatpush1.msra.mxu0 %v4420
  %4896 = vmatprep.subr.mxu0 0.0
  %4897 = vmatpush1.msra.mxu0 %v4421
  %4898 = vmatprep.subr.mxu0 0.0
  %4899 = vmatpush1.msra.mxu0 %v4422
  %4900 = vmatprep.subr.mxu0 0.0
  %4901 = vmatpush1.msra.mxu0 %v4423
  %4902 = vmatprep.mubr.f32.mxu0 %v4355
  %4903 = vmatmul.mubr.f32.gmra.mrb[0].mxu0 %v4354
  %v4904 = vpop.f32.mrb[0].mxu0
  %v4905 = vadd.f32 %v4835, %v4904
  %v4906 = vpop.f32.mrb[0].mxu0
  %4907 = vdwg.mxu0
  %4908 = vmatprep.subr.mxu0 0.0
  %4909 = vmatpush1.msra.mxu0 %v4424
  %4910 = vmatprep.subr.mxu0 0.0
  %4911 = vmatpush1.msra.mxu0 %v4425
  %4912 = vmatprep.subr.mxu0 0.0
  %4913 = vmatpush1.msra.mxu0 %v4426
  %4914 = vmatprep.subr.mxu0 0.0
  %4915 = vmatpush1.msra.mxu0 %v4427
  %4916 = vmatprep.subr.mxu0 0.0
  %4917 = vmatpush1.msra.mxu0 %v4428
  %4918 = vmatprep.subr.mxu0 0.0
  %4919 = vmatpush1.msra.mxu0 %v4429
  %4920 = vmatprep.subr.mxu0 0.0
  %4921 = vmatpush1.msra.mxu0 %v4430
  %4922 = vmatprep.subr.mxu0 0.0
  %4923 = vmatpush1.msra.mxu0 %v4431
  %4924 = vmatprep.subr.mxu0 0.0
  %4925 = vmatpush1.msra.mxu0 %v4432
  %4926 = vmatprep.subr.mxu0 0.0
  %4927 = vmatpush1.msra.mxu0 %v4433
  %4928 = vmatprep.subr.mxu0 0.0
  %4929 = vmatpush1.msra.mxu0 %v4434
  %4930 = vmatprep.subr.mxu0 0.0
  %4931 = vmatpush1.msra.mxu0 %v4435
  %4932 = vmatprep.subr.mxu0 0.0
  %4933 = vmatpush1.msra.mxu0 %v4436
  %4934 = vmatprep.subr.mxu0 0.0
  %4935 = vmatpush1.msra.mxu0 %v4437
  %4936 = vmatprep.subr.mxu0 0.0
  %4937 = vmatpush1.msra.mxu0 %v4438
  %4938 = vmatprep.subr.mxu0 0.0
  %4939 = vmatpush1.msra.mxu0 %v4439
  %4940 = vmatprep.subr.mxu0 0.0
  %4941 = vmatpush1.msra.mxu0 %v4440
  %4942 = vmatprep.subr.mxu0 0.0
  %4943 = vmatpush1.msra.mxu0 %v4441
  %4944 = vmatprep.subr.mxu0 0.0
  %4945 = vmatpush1.msra.mxu0 %v4442
  %4946 = vmatprep.subr.mxu0 0.0
  %4947 = vmatpush1.msra.mxu0 %v4443
  %4948 = vmatprep.subr.mxu0 0.0
  %4949 = vmatpush1.msra.mxu0 %v4444
  %4950 = vmatprep.subr.mxu0 0.0
  %4951 = vmatpush1.msra.mxu0 %v4445
  %4952 = vmatprep.subr.mxu0 0.0
  %4953 = vmatpush1.msra.mxu0 %v4446
  %4954 = vmatprep.subr.mxu0 0.0
  %4955 = vmatpush1.msra.mxu0 %v4447
  %4956 = vmatprep.subr.mxu0 0.0
  %4957 = vmatpush1.msra.mxu0 %v4448
  %4958 = vmatprep.subr.mxu0 0.0
  %4959 = vmatpush1.msra.mxu0 %v4449
  %4960 = vmatprep.subr.mxu0 0.0
  %4961 = vmatpush1.msra.mxu0 %v4450
  %4962 = vmatprep.subr.mxu0 0.0
  %4963 = vmatpush1.msra.mxu0 %v4451
  %4964 = vmatprep.subr.mxu0 0.0
  %4965 = vmatpush1.msra.mxu0 %v4452
  %4966 = vmatprep.subr.mxu0 0.0
  %4967 = vmatpush1.msra.mxu0 %v4453
  %4968 = vmatprep.subr.mxu0 0.0
  %4969 = vmatpush1.msra.mxu0 %v4454
  %4970 = vmatprep.subr.mxu0 0.0
  %4971 = vmatpush1.msra.mxu0 %v4455
  %4972 = vmatprep.mubr.f32.mxu0 %v4357
  %4973 = vmatmul.mubr.f32.gmra.mrb[0].mxu0 %v4356
  %v4974 = vpop.f32.mrb[0].mxu0
  %v4975 = vadd.f32 %v4905, %v4974
  %v4976 = vpop.f32.mrb[0].mxu0
  %4977 = vdwg.mxu0
  %4978 = vmatprep.subr.mxu0 0.0
  %4979 = vmatpush1.msra.mxu0 %v4456
  %4980 = vmatprep.subr.mxu0 0.0
  %4981 = vmatpush1.msra.mxu0 %v4457
  %4982 = vmatprep.subr.mxu0 0.0
  %4983 = vmatpush1.msra.mxu0 %v4458
  %4984 = vmatprep.subr.mxu0 0.0
  %4985 = vmatpush1.msra.mxu0 %v4459
  %4986 = vmatprep.subr.mxu0 0.0
  %4987 = vmatpush1.msra.mxu0 %v4460
  %4988 = vmatprep.subr.mxu0 0.0
  %4989 = vmatpush1.msra.mxu0 %v4461
  %4990 = vmatprep.subr.mxu0 0.0
  %4991 = vmatpush1.msra.mxu0 %v4462
  %4992 = vmatprep.subr.mxu0 0.0
  %4993 = vmatpush1.msra.mxu0 %v4463
  %4994 = vmatprep.subr.mxu0 0.0
  %4995 = vmatpush1.msra.mxu0 %v4464
  %4996 = vmatprep.subr.mxu0 0.0
  %4997 = vmatpush1.msra.mxu0 %v4465
  %4998 = vmatprep.subr.mxu0 0.0
  %4999 = vmatpush1.msra.mxu0 %v4466
  %5000 = vmatprep.subr.mxu0 0.0
  %5001 = vmatpush1.msra.mxu0 %v4467
  %5002 = vmatprep.subr.mxu0 0.0
  %5003 = vmatpush1.msra.mxu0 %v4468
  %5004 = vmatprep.subr.mxu0 0.0
  %5005 = vmatpush1.msra.mxu0 %v4469
  %5006 = vmatprep.subr.mxu0 0.0
  %5007 = vmatpush1.msra.mxu0 %v4470
  %5008 = vmatprep.subr.mxu0 0.0
  %5009 = vmatpush1.msra.mxu0 %v4471
  %5010 = vmatprep.subr.mxu0 0.0
  %5011 = vmatpush1.msra.mxu0 %v4472
  %5012 = vmatprep.subr.mxu0 0.0
  %5013 = vmatpush1.msra.mxu0 %v4473
  %5014 = vmatprep.subr.mxu0 0.0
  %5015 = vmatpush1.msra.mxu0 %v4474
  %5016 = vmatprep.subr.mxu0 0.0
  %5017 = vmatpush1.msra.mxu0 %v4475
  %5018 = vmatprep.subr.mxu0 0.0
  %5019 = vmatpush1.msra.mxu0 %v4476
  %5020 = vmatprep.subr.mxu0 0.0
  %5021 = vmatpush1.msra.mxu0 %v4477
  %5022 = vmatprep.subr.mxu0 0.0
  %5023 = vmatpush1.msra.mxu0 %v4478
  %5024 = vmatprep.subr.mxu0 0.0
  %5025 = vmatpush1.msra.mxu0 %v4479
  %5026 = vmatprep.subr.mxu0 0.0
  %5027 = vmatpush1.msra.mxu0 %v4480
  %5028 = vmatprep.subr.mxu0 0.0
  %5029 = vmatpush1.msra.mxu0 %v4481
  %5030 = vmatprep.subr.mxu0 0.0
  %5031 = vmatpush1.msra.mxu0 %v4482
  %5032 = vmatprep.subr.mxu0 0.0
  %5033 = vmatpush1.msra.mxu0 %v4483
  %5034 = vmatprep.subr.mxu0 0.0
  %5035 = vmatpush1.msra.mxu0 %v4484
  %5036 = vmatprep.subr.mxu0 0.0
  %5037 = vmatpush1.msra.mxu0 %v4485
  %5038 = vmatprep.subr.mxu0 0.0
  %5039 = vmatpush1.msra.mxu0 %v4486
  %5040 = vmatprep.subr.mxu0 0.0
  %5041 = vmatpush1.msra.mxu0 %v4487
  %5042 = vmatprep.mubr.f32.mxu0 %v4359
  %5043 = vmatmul.mubr.f32.gmra.mrb[0].mxu0 %v4358
  %v5044 = vpop.f32.mrb[0].mxu0
  %v5045 = vadd.f32 %v4975, %v5044
  %v5046 = vpop.f32.mrb[0].mxu0
  %5047 = vdwg.mxu0
  %5048 = vmatprep.subr.mxu0 0.0
  %5049 = vmatpush1.msra.mxu0 %v4765
  %5050 = vmatprep.subr.mxu0 0.0
  %5051 = vmatpush1.msra.mxu0 0.0
  %5052 = vmatprep.subr.mxu0 0.0
  %5053 = vmatpush1.msra.mxu0 0.0
  %5054 = vmatprep.subr.mxu0 0.0
  %5055 = vmatpush1.msra.mxu0 0.0
  %5056 = vmatprep.subr.mxu0 0.0
  %5057 = vmatpush1.msra.mxu0 0.0
  %5058 = vmatprep.subr.mxu0 0.0
  %5059 = vmatpush1.msra.mxu0 0.0
  %5060 = vmatprep.subr.mxu0 0.0
  %5061 = vmatpush1.msra.mxu0 0.0
  %5062 = vmatprep.subr.mxu0 0.0
  %5063 = vmatpush1.msra.mxu0 0.0
  %5064 = vmatprep.subr.mxu0 0.0
  %5065 = vmatpush1.msra.mxu0 0.0
  %5066 = vmatprep.subr.mxu0 0.0
  %5067 = vmatpush1.msra.mxu0 0.0
  %5068 = vmatprep.subr.mxu0 0.0
  %5069 = vmatpush1.msra.mxu0 0.0
  %5070 = vmatprep.subr.mxu0 0.0
  %5071 = vmatpush1.msra.mxu0 0.0
  %5072 = vmatprep.subr.mxu0 0.0
  %5073 = vmatpush1.msra.mxu0 0.0
  %5074 = vmatprep.subr.mxu0 0.0
  %5075 = vmatpush1.msra.mxu0 0.0
  %5076 = vmatprep.subr.mxu0 0.0
  %5077 = vmatpush1.msra.mxu0 0.0
  %5078 = vmatprep.subr.mxu0 0.0
  %5079 = vmatpush1.msra.mxu0 0.0
  %5080 = vmatprep.subr.mxu0 0.0
  %5081 = vmatpush1.msra.mxu0 0.0
  %5082 = vmatprep.subr.mxu0 0.0
  %5083 = vmatpush1.msra.mxu0 0.0
  %5084 = vmatprep.subr.mxu0 0.0
  %5085 = vmatpush1.msra.mxu0 0.0
  %5086 = vmatprep.subr.mxu0 0.0
  %5087 = vmatpush1.msra.mxu0 0.0
  %5088 = vmatprep.subr.mxu0 0.0
  %5089 = vmatpush1.msra.mxu0 0.0
  %5090 = vmatprep.subr.mxu0 0.0
  %5091 = vmatpush1.msra.mxu0 0.0
  %5092 = vmatprep.subr.mxu0 0.0
  %5093 = vmatpush1.msra.mxu0 0.0
  %5094 = vmatprep.subr.mxu0 0.0
  %5095 = vmatpush1.msra.mxu0 0.0
  %5096 = vmatprep.subr.mxu0 0.0
  %5097 = vmatpush1.msra.mxu0 0.0
  %5098 = vmatprep.subr.mxu0 0.0
  %5099 = vmatpush1.msra.mxu0 0.0
  %5100 = vmatprep.subr.mxu0 0.0
  %5101 = vmatpush1.msra.mxu0 0.0
  %5102 = vmatprep.subr.mxu0 0.0
  %5103 = vmatpush1.msra.mxu0 0.0
  %5104 = vmatprep.subr.mxu0 0.0
  %5105 = vmatpush1.msra.mxu0 0.0
  %5106 = vmatprep.subr.mxu0 0.0
  %5107 = vmatpush1.msra.mxu0 0.0
  %5108 = vmatprep.subr.mxu0 0.0
  %5109 = vmatpush1.msra.mxu0 0.0
  %5110 = vmatprep.subr.mxu0 0.0
  %5111 = vmatpush1.msra.mxu0 0.0
  %5112 = vmatprep.mubr.f32.mxu0 0.0
  %5113 = vmatmul.mubr.f32.gmra.mrb[0].mxu0 %v1354
  %v5114 = vpop.f32.mrb[0].mxu0
  %v5115 = vadd.f32 0.0, %v5114
  %v5116 = vpop.f32.mrb[0].mxu0
  %5117 = vdwg.mxu0
  %v5118 = vmul.f32 %v5115, 0.015625
  %5119 = vmatprep.subr.mxu0 0.0
  %5120 = vmatpush1.msra.mxu0 %v5045
  %5121 = vmatprep.subr.mxu0 0.0
  %5122 = vmatpush1.msra.mxu0 0.0
  %5123 = vmatprep.subr.mxu0 0.0
  %5124 = vmatpush1.msra.mxu0 0.0
  %5125 = vmatprep.subr.mxu0 0.0
  %5126 = vmatpush1.msra.mxu0 0.0
  %5127 = vmatprep.subr.mxu0 0.0
  %5128 = vmatpush1.msra.mxu0 0.0
  %5129 = vmatprep.subr.mxu0 0.0
  %5130 = vmatpush1.msra.mxu0 0.0
  %5131 = vmatprep.subr.mxu0 0.0
  %5132 = vmatpush1.msra.mxu0 0.0
  %5133 = vmatprep.subr.mxu0 0.0
  %5134 = vmatpush1.msra.mxu0 0.0
  %5135 = vmatprep.subr.mxu0 0.0
  %5136 = vmatpush1.msra.mxu0 0.0
  %5137 = vmatprep.subr.mxu0 0.0
  %5138 = vmatpush1.msra.mxu0 0.0
  %5139 = vmatprep.subr.mxu0 0.0
  %5140 = vmatpush1.msra.mxu0 0.0
  %5141 = vmatprep.subr.mxu0 0.0
  %5142 = vmatpush1.msra.mxu0 0.0
  %5143 = vmatprep.subr.mxu0 0.0
  %5144 = vmatpush1.msra.mxu0 0.0
  %5145 = vmatprep.subr.mxu0 0.0
  %5146 = vmatpush1.msra.mxu0 0.0
  %5147 = vmatprep.subr.mxu0 0.0
  %5148 = vmatpush1.msra.mxu0 0.0
  %5149 = vmatprep.subr.mxu0 0.0
  %5150 = vmatpush1.msra.mxu0 0.0
  %5151 = vmatprep.subr.mxu0 0.0
  %5152 = vmatpush1.msra.mxu0 0.0
  %5153 = vmatprep.subr.mxu0 0.0
  %5154 = vmatpush1.msra.mxu0 0.0
  %5155 = vmatprep.subr.mxu0 0.0
  %5156 = vmatpush1.msra.mxu0 0.0
  %5157 = vmatprep.subr.mxu0 0.0
  %5158 = vmatpush1.msra.mxu0 0.0
  %5159 = vmatprep.subr.mxu0 0.0
  %5160 = vmatpush1.msra.mxu0 0.0
  %5161 = vmatprep.subr.mxu0 0.0
  %5162 = vmatpush1.msra.mxu0 0.0
  %5163 = vmatprep.subr.mxu0 0.0
  %5164 = vmatpush1.msra.mxu0 0.0
  %5165 = vmatprep.subr.mxu0 0.0
  %5166 = vmatpush1.msra.mxu0 0.0
  %5167 = vmatprep.subr.mxu0 0.0
  %5168 = vmatpush1.msra.mxu0 0.0
  %5169 = vmatprep.subr.mxu0 0.0
  %5170 = vmatpush1.msra.mxu0 0.0
  %5171 = vmatprep.subr.mxu0 0.0
  %5172 = vmatpush1.msra.mxu0 0.0
  %5173 = vmatprep.subr.mxu0 0.0
  %5174 = vmatpush1.msra.mxu0 0.0
  %5175 = vmatprep.subr.mxu0 0.0
  %5176 = vmatpush1.msra.mxu0 0.0
  %5177 = vmatprep.subr.mxu0 0.0
  %5178 = vmatpush1.msra.mxu0 0.0
  %5179 = vmatprep.subr.mxu0 0.0
  %5180 = vmatpush1.msra.mxu0 0.0
  %5181 = vmatprep.subr.mxu0 0.0
  %5182 = vmatpush1.msra.mxu0 0.0
  %5183 = vmatprep.mubr.f32.mxu0 0.0
  %5184 = vmatmul.mubr.f32.gmra.mrb[0].mxu0 %v1354
  %v5185 = vpop.f32.mrb[0].mxu0
  %v5186 = vadd.f32 0.0, %v5185
  %v5187 = vpop.f32.mrb[0].mxu0
  %5188 = vdwg.mxu0
  %v5189 = vmul.f32 %v5186, 0.015625
  %v5190 = vadd.f32 %v5189, 1e-05
  %v5191 = vmul.f32 %v5118, %v5118
  %v5192 = vsub.f32 %v5190, %v5191
  %v5193 = vrsqrt.pop %v5192
  %v5194 = vld [vmem:[%s12] sm:$0x1]
  %v5196 = vlaneseq
  %v5197 = vshrl.u32 %v5196, 7
  %v5198 = vsub.s32 0, %v5197
  %v5199 = vrot.slane %v5194, %v5198
  %v5201 = vmul.f32 %v5199, %v5193
  %v5202 = vld [vmem:[%s13] sm:$0x1]
  %v5203 = vmul.f32 %v5118, %v5201
  %v5205 = vlaneseq
  %v5206 = vshrl.u32 %v5205, 7
  %v5207 = vsub.s32 0, %v5206
  %v5208 = vrot.slane %v5202, %v5207
  %v5210 = vsub.f32 %v5208, %v5203
  %v5211 = vld [vmem:[%s11] sm:$0xff]
  %v5212 = vld [vmem:[%s11 + $0x8] sm:$0xff]
  %v5213 = vld [vmem:[%s11 + $0x10] sm:$0xff]
  %v5214 = vld [vmem:[%s11 + $0x18] sm:$0xff]
  %v5215 = vld [vmem:[%s11 + $0x20] sm:$0xff]
  %v5216 = vld [vmem:[%s11 + $0x28] sm:$0xff]
  %v5217 = vld [vmem:[%s11 + $0x30] sm:$0xff]
  %v5218 = vld [vmem:[%s11 + $0x38] sm:$0xff]
  %v5219 = vld [vmem:[%s11 + $0x40] sm:$0xff]
  %v5220 = vld [vmem:[%s11 + $0x48] sm:$0xff]
  %v5221 = vld [vmem:[%s11 + $0x50] sm:$0xff]
  %v5222 = vld [vmem:[%s11 + $0x58] sm:$0xff]
  %v5223 = vld [vmem:[%s11 + $0x60] sm:$0xff]
  %v5224 = vld [vmem:[%s11 + $0x68] sm:$0xff]
  %v5225 = vld [vmem:[%s11 + $0x70] sm:$0xff]
  %v5226 = vld [vmem:[%s11 + $0x78] sm:$0xff]
  %v5227 = vld [vmem:[%s11 + $0x80] sm:$0xff]
  %v5228 = vld [vmem:[%s11 + $0x88] sm:$0xff]
  %v5229 = vld [vmem:[%s11 + $0x90] sm:$0xff]
  %v5230 = vld [vmem:[%s11 + $0x98] sm:$0xff]
  %v5231 = vld [vmem:[%s11 + $0xa0] sm:$0xff]
  %v5232 = vld [vmem:[%s11 + $0xa8] sm:$0xff]
  %v5233 = vld [vmem:[%s11 + $0xb0] sm:$0xff]
  %v5234 = vld [vmem:[%s11 + $0xb8] sm:$0xff]
  %v5235 = vld [vmem:[%s11 + $0xc0] sm:$0xff]
  %v5236 = vld [vmem:[%s11 + $0xc8] sm:$0xff]
  %v5237 = vld [vmem:[%s11 + $0xd0] sm:$0xff]
  %v5238 = vld [vmem:[%s11 + $0xd8] sm:$0xff]
  %v5239 = vld [vmem:[%s11 + $0xe0] sm:$0xff]
  %v5240 = vld [vmem:[%s11 + $0xe8] sm:$0xff]
  %v5241 = vld [vmem:[%s11 + $0xf0] sm:$0xff]
  %v5242 = vld [vmem:[%s11 + $0xf8] sm:$0xff]
  %vm5243 = vcmask 261120
  %v5245 = vsel %vm5243, %v5201, 0
  %5247 = vmatprep.subr.mxu0 %v5212
  %5248 = vmatpush1.msra.mxu0 %v5211
  %5249 = vmatprep.subr.mxu0 %v5220
  %5250 = vmatpush1.msra.mxu0 %v5219
  %5251 = vmatprep.subr.mxu0 %v5228
  %5252 = vmatpush1.msra.mxu0 %v5227
  %5253 = vmatprep.subr.mxu0 %v5236
  %5254 = vmatpush1.msra.mxu0 %v5235
  %5255 = vmatprep.subr.mxu0 0.0
  %5256 = vmatpush1.msra.mxu0 0.0
  %5257 = vmatprep.subr.mxu0 0.0
  %5258 = vmatpush1.msra.mxu0 0.0
  %5259 = vmatprep.subr.mxu0 0.0
  %5260 = vmatpush1.msra.mxu0 0.0
  %5261 = vmatprep.subr.mxu0 0.0
  %5262 = vmatpush1.msra.mxu0 0.0
  %5263 = vmatprep.subr.mxu0 0.0
  %5264 = vmatpush1.msra.mxu0 0.0
  %5265 = vmatprep.subr.mxu0 0.0
  %5266 = vmatpush1.msra.mxu0 0.0
  %5267 = vmatprep.subr.mxu0 0.0
  %5268 = vmatpush1.msra.mxu0 0.0
  %5269 = vmatprep.subr.mxu0 0.0
  %5270 = vmatpush1.msra.mxu0 0.0
  %5271 = vmatprep.subr.mxu0 0.0
  %5272 = vmatpush1.msra.mxu0 0.0
  %5273 = vmatprep.subr.mxu0 0.0
  %5274 = vmatpush1.msra.mxu0 0.0
  %5275 = vmatprep.subr.mxu0 0.0
  %5276 = vmatpush1.msra.mxu0 0.0
  %5277 = vmatprep.subr.mxu0 0.0
  %5278 = vmatpush1.msra.mxu0 0.0
  %5279 = vmatprep.subr.mxu0 0.0
  %5280 = vmatpush1.msra.mxu0 0.0
  %5281 = vmatprep.subr.mxu0 0.0
  %5282 = vmatpush1.msra.mxu0 0.0
  %5283 = vmatprep.subr.mxu0 0.0
  %5284 = vmatpush1.msra.mxu0 0.0
  %5285 = vmatprep.subr.mxu0 0.0
  %5286 = vmatpush1.msra.mxu0 0.0
  %5287 = vmatprep.subr.mxu0 0.0
  %5288 = vmatpush1.msra.mxu0 0.0
  %5289 = vmatprep.subr.mxu0 0.0
  %5290 = vmatpush1.msra.mxu0 0.0
  %5291 = vmatprep.subr.mxu0 0.0
  %5292 = vmatpush1.msra.mxu0 0.0
  %5293 = vmatprep.subr.mxu0 0.0
  %5294 = vmatpush1.msra.mxu0 0.0
  %5295 = vmatprep.subr.mxu0 0.0
  %5296 = vmatpush1.msra.mxu0 0.0
  %5297 = vmatprep.subr.mxu0 0.0
  %5298 = vmatpush1.msra.mxu0 0.0
  %5299 = vmatprep.subr.mxu0 0.0
  %5300 = vmatpush1.msra.mxu0 0.0
  %5301 = vmatprep.subr.mxu0 0.0
  %5302 = vmatpush1.msra.mxu0 0.0
  %5303 = vmatprep.subr.mxu0 0.0
  %5304 = vmatpush1.msra.mxu0 0.0
  %5305 = vmatprep.subr.mxu0 0.0
  %5306 = vmatpush1.msra.mxu0 0.0
  %5307 = vmatprep.subr.mxu0 0.0
  %5308 = vmatpush1.msra.mxu0 0.0
  %5309 = vmatprep.subr.mxu0 0.0
  %5310 = vmatpush1.msra.mxu0 0.0
  %5311 = vmatprep.mubr.f32.mxu0 0.0
  %5312 = vmatmul.mubr.f32.gmra.mrb[0].mxu0 %v5245
  %v5313 = vpop.f32.mrb[0].mxu0
  %v5314 = vadd.f32 0.0, %v5313
  %v5315 = vpop.f32.mrb[0].mxu0
  %v5316 = vadd.f32 0.0, %v5315
  %5317 = vdwg.mxu0
  %5318 = vmatprep.subr.mxu0 %v5214
  %5319 = vmatpush1.msra.mxu0 %v5213
  %5320 = vmatprep.subr.mxu0 %v5222
  %5321 = vmatpush1.msra.mxu0 %v5221
  %5322 = vmatprep.subr.mxu0 %v5230
  %5323 = vmatpush1.msra.mxu0 %v5229
  %5324 = vmatprep.subr.mxu0 %v5238
  %5325 = vmatpush1.msra.mxu0 %v5237
  %5326 = vmatprep.subr.mxu0 0.0
  %5327 = vmatpush1.msra.mxu0 0.0
  %5328 = vmatprep.subr.mxu0 0.0
  %5329 = vmatpush1.msra.mxu0 0.0
  %5330 = vmatprep.subr.mxu0 0.0
  %5331 = vmatpush1.msra.mxu0 0.0
  %5332 = vmatprep.subr.mxu0 0.0
  %5333 = vmatpush1.msra.mxu0 0.0
  %5334 = vmatprep.subr.mxu0 0.0
  %5335 = vmatpush1.msra.mxu0 0.0
  %5336 = vmatprep.subr.mxu0 0.0
  %5337 = vmatpush1.msra.mxu0 0.0
  %5338 = vmatprep.subr.mxu0 0.0
  %5339 = vmatpush1.msra.mxu0 0.0
  %5340 = vmatprep.subr.mxu0 0.0
  %5341 = vmatpush1.msra.mxu0 0.0
  %5342 = vmatprep.subr.mxu0 0.0
  %5343 = vmatpush1.msra.mxu0 0.0
  %5344 = vmatprep.subr.mxu0 0.0
  %5345 = vmatpush1.msra.mxu0 0.0
  %5346 = vmatprep.subr.mxu0 0.0
  %5347 = vmatpush1.msra.mxu0 0.0
  %5348 = vmatprep.subr.mxu0 0.0
  %5349 = vmatpush1.msra.mxu0 0.0
  %5350 = vmatprep.subr.mxu0 0.0
  %5351 = vmatpush1.msra.mxu0 0.0
  %5352 = vmatprep.subr.mxu0 0.0
  %5353 = vmatpush1.msra.mxu0 0.0
  %5354 = vmatprep.subr.mxu0 0.0
  %5355 = vmatpush1.msra.mxu0 0.0
  %5356 = vmatprep.subr.mxu0 0.0
  %5357 = vmatpush1.msra.mxu0 0.0
  %5358 = vmatprep.subr.mxu0 0.0
  %5359 = vmatpush1.msra.mxu0 0.0
  %5360 = vmatprep.subr.mxu0 0.0
  %5361 = vmatpush1.msra.mxu0 0.0
  %5362 = vmatprep.subr.mxu0 0.0
  %5363 = vmatpush1.msra.mxu0 0.0
  %5364 = vmatprep.subr.mxu0 0.0
  %5365 = vmatpush1.msra.mxu0 0.0
  %5366 = vmatprep.subr.mxu0 0.0
  %5367 = vmatpush1.msra.mxu0 0.0
  %5368 = vmatprep.subr.mxu0 0.0
  %5369 = vmatpush1.msra.mxu0 0.0
  %5370 = vmatprep.subr.mxu0 0.0
  %5371 = vmatpush1.msra.mxu0 0.0
  %5372 = vmatprep.subr.mxu0 0.0
  %5373 = vmatpush1.msra.mxu0 0.0
  %5374 = vmatprep.subr.mxu0 0.0
  %5375 = vmatpush1.msra.mxu0 0.0
  %5376 = vmatprep.subr.mxu0 0.0
  %5377 = vmatpush1.msra.mxu0 0.0
  %5378 = vmatprep.subr.mxu0 0.0
  %5379 = vmatpush1.msra.mxu0 0.0
  %5380 = vmatprep.subr.mxu0 0.0
  %5381 = vmatpush1.msra.mxu0 0.0
  %5382 = vmatprep.mubr.f32.mxu0 0.0
  %5383 = vmatmul.mubr.f32.gmra.mrb[0].mxu0 %v5245
  %v5384 = vpop.f32.mrb[0].mxu0
  %v5385 = vadd.f32 0.0, %v5384
  %v5386 = vpop.f32.mrb[0].mxu0
  %v5387 = vadd.f32 0.0, %v5386
  %5388 = vdwg.mxu0
  %5389 = vmatprep.subr.mxu0 %v5216
  %5390 = vmatpush1.msra.mxu0 %v5215
  %5391 = vmatprep.subr.mxu0 %v5224
  %5392 = vmatpush1.msra.mxu0 %v5223
  %5393 = vmatprep.subr.mxu0 %v5232
  %5394 = vmatpush1.msra.mxu0 %v5231
  %5395 = vmatprep.subr.mxu0 %v5240
  %5396 = vmatpush1.msra.mxu0 %v5239
  %5397 = vmatprep.subr.mxu0 0.0
  %5398 = vmatpush1.msra.mxu0 0.0
  %5399 = vmatprep.subr.mxu0 0.0
  %5400 = vmatpush1.msra.mxu0 0.0
  %5401 = vmatprep.subr.mxu0 0.0
  %5402 = vmatpush1.msra.mxu0 0.0
  %5403 = vmatprep.subr.mxu0 0.0
  %5404 = vmatpush1.msra.mxu0 0.0
  %5405 = vmatprep.subr.mxu0 0.0
  %5406 = vmatpush1.msra.mxu0 0.0
  %5407 = vmatprep.subr.mxu0 0.0
  %5408 = vmatpush1.msra.mxu0 0.0
  %5409 = vmatprep.subr.mxu0 0.0
  %5410 = vmatpush1.msra.mxu0 0.0
  %5411 = vmatprep.subr.mxu0 0.0
  %5412 = vmatpush1.msra.mxu0 0.0
  %5413 = vmatprep.subr.mxu0 0.0
  %5414 = vmatpush1.msra.mxu0 0.0
  %5415 = vmatprep.subr.mxu0 0.0
  %5416 = vmatpush1.msra.mxu0 0.0
  %5417 = vmatprep.subr.mxu0 0.0
  %5418 = vmatpush1.msra.mxu0 0.0
  %5419 = vmatprep.subr.mxu0 0.0
  %5420 = vmatpush1.msra.mxu0 0.0
  %5421 = vmatprep.subr.mxu0 0.0
  %5422 = vmatpush1.msra.mxu0 0.0
  %5423 = vmatprep.subr.mxu0 0.0
  %5424 = vmatpush1.msra.mxu0 0.0
  %5425 = vmatprep.subr.mxu0 0.0
  %5426 = vmatpush1.msra.mxu0 0.0
  %5427 = vmatprep.subr.mxu0 0.0
  %5428 = vmatpush1.msra.mxu0 0.0
  %5429 = vmatprep.subr.mxu0 0.0
  %5430 = vmatpush1.msra.mxu0 0.0
  %5431 = vmatprep.subr.mxu0 0.0
  %5432 = vmatpush1.msra.mxu0 0.0
  %5433 = vmatprep.subr.mxu0 0.0
  %5434 = vmatpush1.msra.mxu0 0.0
  %5435 = vmatprep.subr.mxu0 0.0
  %5436 = vmatpush1.msra.mxu0 0.0
  %5437 = vmatprep.subr.mxu0 0.0
  %5438 = vmatpush1.msra.mxu0 0.0
  %5439 = vmatprep.subr.mxu0 0.0
  %5440 = vmatpush1.msra.mxu0 0.0
  %5441 = vmatprep.subr.mxu0 0.0
  %5442 = vmatpush1.msra.mxu0 0.0
  %5443 = vmatprep.subr.mxu0 0.0
  %5444 = vmatpush1.msra.mxu0 0.0
  %5445 = vmatprep.subr.mxu0 0.0
  %5446 = vmatpush1.msra.mxu0 0.0
  %5447 = vmatprep.subr.mxu0 0.0
  %5448 = vmatpush1.msra.mxu0 0.0
  %5449 = vmatprep.subr.mxu0 0.0
  %5450 = vmatpush1.msra.mxu0 0.0
  %5451 = vmatprep.subr.mxu0 0.0
  %5452 = vmatpush1.msra.mxu0 0.0
  %5453 = vmatprep.mubr.f32.mxu0 0.0
  %5454 = vmatmul.mubr.f32.gmra.mrb[0].mxu0 %v5245
  %v5455 = vpop.f32.mrb[0].mxu0
  %v5456 = vadd.f32 0.0, %v5455
  %v5457 = vpop.f32.mrb[0].mxu0
  %v5458 = vadd.f32 0.0, %v5457
  %5459 = vdwg.mxu0
  %5460 = vmatprep.subr.mxu0 %v5218
  %5461 = vmatpush1.msra.mxu0 %v5217
  %5462 = vmatprep.subr.mxu0 %v5226
  %5463 = vmatpush1.msra.mxu0 %v5225
  %5464 = vmatprep.subr.mxu0 %v5234
  %5465 = vmatpush1.msra.mxu0 %v5233
  %5466 = vmatprep.subr.mxu0 %v5242
  %5467 = vmatpush1.msra.mxu0 %v5241
  %5468 = vmatprep.subr.mxu0 0.0
  %5469 = vmatpush1.msra.mxu0 0.0
  %5470 = vmatprep.subr.mxu0 0.0
  %5471 = vmatpush1.msra.mxu0 0.0
  %5472 = vmatprep.subr.mxu0 0.0
  %5473 = vmatpush1.msra.mxu0 0.0
  %5474 = vmatprep.subr.mxu0 0.0
  %5475 = vmatpush1.msra.mxu0 0.0
  %5476 = vmatprep.subr.mxu0 0.0
  %5477 = vmatpush1.msra.mxu0 0.0
  %5478 = vmatprep.subr.mxu0 0.0
  %5479 = vmatpush1.msra.mxu0 0.0
  %5480 = vmatprep.subr.mxu0 0.0
  %5481 = vmatpush1.msra.mxu0 0.0
  %5482 = vmatprep.subr.mxu0 0.0
  %5483 = vmatpush1.msra.mxu0 0.0
  %5484 = vmatprep.subr.mxu0 0.0
  %5485 = vmatpush1.msra.mxu0 0.0
  %5486 = vmatprep.subr.mxu0 0.0
  %5487 = vmatpush1.msra.mxu0 0.0
  %5488 = vmatprep.subr.mxu0 0.0
  %5489 = vmatpush1.msra.mxu0 0.0
  %5490 = vmatprep.subr.mxu0 0.0
  %5491 = vmatpush1.msra.mxu0 0.0
  %5492 = vmatprep.subr.mxu0 0.0
  %5493 = vmatpush1.msra.mxu0 0.0
  %5494 = vmatprep.subr.mxu0 0.0
  %5495 = vmatpush1.msra.mxu0 0.0
  %5496 = vmatprep.subr.mxu0 0.0
  %5497 = vmatpush1.msra.mxu0 0.0
  %5498 = vmatprep.subr.mxu0 0.0
  %5499 = vmatpush1.msra.mxu0 0.0
  %5500 = vmatprep.subr.mxu0 0.0
  %5501 = vmatpush1.msra.mxu0 0.0
  %5502 = vmatprep.subr.mxu0 0.0
  %5503 = vmatpush1.msra.mxu0 0.0
  %5504 = vmatprep.subr.mxu0 0.0
  %5505 = vmatpush1.msra.mxu0 0.0
  %5506 = vmatprep.subr.mxu0 0.0
  %5507 = vmatpush1.msra.mxu0 0.0
  %5508 = vmatprep.subr.mxu0 0.0
  %5509 = vmatpush1.msra.mxu0 0.0
  %5510 = vmatprep.subr.mxu0 0.0
  %5511 = vmatpush1.msra.mxu0 0.0
  %5512 = vmatprep.subr.mxu0 0.0
  %5513 = vmatpush1.msra.mxu0 0.0
  %5514 = vmatprep.subr.mxu0 0.0
  %5515 = vmatpush1.msra.mxu0 0.0
  %5516 = vmatprep.subr.mxu0 0.0
  %5517 = vmatpush1.msra.mxu0 0.0
  %5518 = vmatprep.subr.mxu0 0.0
  %5519 = vmatpush1.msra.mxu0 0.0
  %5520 = vmatprep.subr.mxu0 0.0
  %5521 = vmatpush1.msra.mxu0 0.0
  %5522 = vmatprep.subr.mxu0 0.0
  %5523 = vmatpush1.msra.mxu0 0.0
  %5524 = vmatprep.mubr.f32.mxu0 0.0
  %5525 = vmatmul.mubr.f32.gmra.mrb[0].mxu0 %v5245
  %v5526 = vpop.f32.mrb[0].mxu0
  %v5527 = vadd.f32 0.0, %v5526
  %v5528 = vpop.f32.mrb[0].mxu0
  %v5529 = vadd.f32 0.0, %v5528
  %5530 = vdwg.mxu0
  %v5532 = vsel %vm5243, %v5210, 0
  %5534 = vmatprep.subr.mxu0 %v5212
  %5535 = vmatpush1.msra.mxu0 %v5211
  %5536 = vmatprep.subr.mxu0 %v5220
  %5537 = vmatpush1.msra.mxu0 %v5219
  %5538 = vmatprep.subr.mxu0 %v5228
  %5539 = vmatpush1.msra.mxu0 %v5227
  %5540 = vmatprep.subr.mxu0 %v5236
  %5541 = vmatpush1.msra.mxu0 %v5235
  %5542 = vmatprep.subr.mxu0 0.0
  %5543 = vmatpush1.msra.mxu0 0.0
  %5544 = vmatprep.subr.mxu0 0.0
  %5545 = vmatpush1.msra.mxu0 0.0
  %5546 = vmatprep.subr.mxu0 0.0
  %5547 = vmatpush1.msra.mxu0 0.0
  %5548 = vmatprep.subr.mxu0 0.0
  %5549 = vmatpush1.msra.mxu0 0.0
  %5550 = vmatprep.subr.mxu0 0.0
  %5551 = vmatpush1.msra.mxu0 0.0
  %5552 = vmatprep.subr.mxu0 0.0
  %5553 = vmatpush1.msra.mxu0 0.0
  %5554 = vmatprep.subr.mxu0 0.0
  %5555 = vmatpush1.msra.mxu0 0.0
  %5556 = vmatprep.subr.mxu0 0.0
  %5557 = vmatpush1.msra.mxu0 0.0
  %5558 = vmatprep.subr.mxu0 0.0
  %5559 = vmatpush1.msra.mxu0 0.0
  %5560 = vmatprep.subr.mxu0 0.0
  %5561 = vmatpush1.msra.mxu0 0.0
  %5562 = vmatprep.subr.mxu0 0.0
  %5563 = vmatpush1.msra.mxu0 0.0
  %5564 = vmatprep.subr.mxu0 0.0
  %5565 = vmatpush1.msra.mxu0 0.0
  %5566 = vmatprep.subr.mxu0 0.0
  %5567 = vmatpush1.msra.mxu0 0.0
  %5568 = vmatprep.subr.mxu0 0.0
  %5569 = vmatpush1.msra.mxu0 0.0
  %5570 = vmatprep.subr.mxu0 0.0
  %5571 = vmatpush1.msra.mxu0 0.0
  %5572 = vmatprep.subr.mxu0 0.0
  %5573 = vmatpush1.msra.mxu0 0.0
  %5574 = vmatprep.subr.mxu0 0.0
  %5575 = vmatpush1.msra.mxu0 0.0
  %5576 = vmatprep.subr.mxu0 0.0
  %5577 = vmatpush1.msra.mxu0 0.0
  %5578 = vmatprep.subr.mxu0 0.0
  %5579 = vmatpush1.msra.mxu0 0.0
  %5580 = vmatprep.subr.mxu0 0.0
  %5581 = vmatpush1.msra.mxu0 0.0
  %5582 = vmatprep.subr.mxu0 0.0
  %5583 = vmatpush1.msra.mxu0 0.0
  %5584 = vmatprep.subr.mxu0 0.0
  %5585 = vmatpush1.msra.mxu0 0.0
  %5586 = vmatprep.subr.mxu0 0.0
  %5587 = vmatpush1.msra.mxu0 0.0
  %5588 = vmatprep.subr.mxu0 0.0
  %5589 = vmatpush1.msra.mxu0 0.0
  %5590 = vmatprep.subr.mxu0 0.0
  %5591 = vmatpush1.msra.mxu0 0.0
  %5592 = vmatprep.subr.mxu0 0.0
  %5593 = vmatpush1.msra.mxu0 0.0
  %5594 = vmatprep.subr.mxu0 0.0
  %5595 = vmatpush1.msra.mxu0 0.0
  %5596 = vmatprep.subr.mxu0 0.0
  %5597 = vmatpush1.msra.mxu0 0.0
  %5598 = vmatprep.mubr.f32.mxu0 0.0
  %5599 = vmatmul.mubr.f32.gmra.mrb[0].mxu0 %v5532
  %v5600 = vpop.f32.mrb[0].mxu0
  %v5601 = vadd.f32 0.0, %v5600
  %v5602 = vpop.f32.mrb[0].mxu0
  %v5603 = vadd.f32 0.0, %v5602
  %5604 = vdwg.mxu0
  %5605 = vmatprep.subr.mxu0 %v5214
  %5606 = vmatpush1.msra.mxu0 %v5213
  %5607 = vmatprep.subr.mxu0 %v5222
  %5608 = vmatpush1.msra.mxu0 %v5221
  %5609 = vmatprep.subr.mxu0 %v5230
  %5610 = vmatpush1.msra.mxu0 %v5229
  %5611 = vmatprep.subr.mxu0 %v5238
  %5612 = vmatpush1.msra.mxu0 %v5237
  %5613 = vmatprep.subr.mxu0 0.0
  %5614 = vmatpush1.msra.mxu0 0.0
  %5615 = vmatprep.subr.mxu0 0.0
  %5616 = vmatpush1.msra.mxu0 0.0
  %5617 = vmatprep.subr.mxu0 0.0
  %5618 = vmatpush1.msra.mxu0 0.0
  %5619 = vmatprep.subr.mxu0 0.0
  %5620 = vmatpush1.msra.mxu0 0.0
  %5621 = vmatprep.subr.mxu0 0.0
  %5622 = vmatpush1.msra.mxu0 0.0
  %5623 = vmatprep.subr.mxu0 0.0
  %5624 = vmatpush1.msra.mxu0 0.0
  %5625 = vmatprep.subr.mxu0 0.0
  %5626 = vmatpush1.msra.mxu0 0.0
  %5627 = vmatprep.subr.mxu0 0.0
  %5628 = vmatpush1.msra.mxu0 0.0
  %5629 = vmatprep.subr.mxu0 0.0
  %5630 = vmatpush1.msra.mxu0 0.0
  %5631 = vmatprep.subr.mxu0 0.0
  %5632 = vmatpush1.msra.mxu0 0.0
  %5633 = vmatprep.subr.mxu0 0.0
  %5634 = vmatpush1.msra.mxu0 0.0
  %5635 = vmatprep.subr.mxu0 0.0
  %5636 = vmatpush1.msra.mxu0 0.0
  %5637 = vmatprep.subr.mxu0 0.0
  %5638 = vmatpush1.msra.mxu0 0.0
  %5639 = vmatprep.subr.mxu0 0.0
  %5640 = vmatpush1.msra.mxu0 0.0
  %5641 = vmatprep.subr.mxu0 0.0
  %5642 = vmatpush1.msra.mxu0 0.0
  %5643 = vmatprep.subr.mxu0 0.0
  %5644 = vmatpush1.msra.mxu0 0.0
  %5645 = vmatprep.subr.mxu0 0.0
  %5646 = vmatpush1.msra.mxu0 0.0
  %5647 = vmatprep.subr.mxu0 0.0
  %5648 = vmatpush1.msra.mxu0 0.0
  %5649 = vmatprep.subr.mxu0 0.0
  %5650 = vmatpush1.msra.mxu0 0.0
  %5651 = vmatprep.subr.mxu0 0.0
  %5652 = vmatpush1.msra.mxu0 0.0
  %5653 = vmatprep.subr.mxu0 0.0
  %5654 = vmatpush1.msra.mxu0 0.0
  %5655 = vmatprep.subr.mxu0 0.0
  %5656 = vmatpush1.msra.mxu0 0.0
  %5657 = vmatprep.subr.mxu0 0.0
  %5658 = vmatpush1.msra.mxu0 0.0
  %5659 = vmatprep.subr.mxu0 0.0
  %5660 = vmatpush1.msra.mxu0 0.0
  %5661 = vmatprep.subr.mxu0 0.0
  %5662 = vmatpush1.msra.mxu0 0.0
  %5663 = vmatprep.subr.mxu0 0.0
  %5664 = vmatpush1.msra.mxu0 0.0
  %5665 = vmatprep.subr.mxu0 0.0
  %5666 = vmatpush1.msra.mxu0 0.0
  %5667 = vmatprep.subr.mxu0 0.0
  %5668 = vmatpush1.msra.mxu0 0.0
  %5669 = vmatprep.mubr.f32.mxu0 0.0
  %5670 = vmatmul.mubr.f32.gmra.mrb[0].mxu0 %v5532
  %v5671 = vpop.f32.mrb[0].mxu0
  %v5672 = vadd.f32 0.0, %v5671
  %v5673 = vpop.f32.mrb[0].mxu0
  %v5674 = vadd.f32 0.0, %v5673
  %5675 = vdwg.mxu0
  %5676 = vmatprep.subr.mxu0 %v5216
  %5677 = vmatpush1.msra.mxu0 %v5215
  %5678 = vmatprep.subr.mxu0 %v5224
  %5679 = vmatpush1.msra.mxu0 %v5223
  %5680 = vmatprep.subr.mxu0 %v5232
  %5681 = vmatpush1.msra.mxu0 %v5231
  %5682 = vmatprep.subr.mxu0 %v5240
  %5683 = vmatpush1.msra.mxu0 %v5239
  %5684 = vmatprep.subr.mxu0 0.0
  %5685 = vmatpush1.msra.mxu0 0.0
  %5686 = vmatprep.subr.mxu0 0.0
  %5687 = vmatpush1.msra.mxu0 0.0
  %5688 = vmatprep.subr.mxu0 0.0
  %5689 = vmatpush1.msra.mxu0 0.0
  %5690 = vmatprep.subr.mxu0 0.0
  %5691 = vmatpush1.msra.mxu0 0.0
  %5692 = vmatprep.subr.mxu0 0.0
  %5693 = vmatpush1.msra.mxu0 0.0
  %5694 = vmatprep.subr.mxu0 0.0
  %5695 = vmatpush1.msra.mxu0 0.0
  %5696 = vmatprep.subr.mxu0 0.0
  %5697 = vmatpush1.msra.mxu0 0.0
  %5698 = vmatprep.subr.mxu0 0.0
  %5699 = vmatpush1.msra.mxu0 0.0
  %5700 = vmatprep.subr.mxu0 0.0
  %5701 = vmatpush1.msra.mxu0 0.0
  %5702 = vmatprep.subr.mxu0 0.0
  %5703 = vmatpush1.msra.mxu0 0.0
  %5704 = vmatprep.subr.mxu0 0.0
  %5705 = vmatpush1.msra.mxu0 0.0
  %5706 = vmatprep.subr.mxu0 0.0
  %5707 = vmatpush1.msra.mxu0 0.0
  %5708 = vmatprep.subr.mxu0 0.0
  %5709 = vmatpush1.msra.mxu0 0.0
  %5710 = vmatprep.subr.mxu0 0.0
  %5711 = vmatpush1.msra.mxu0 0.0
  %5712 = vmatprep.subr.mxu0 0.0
  %5713 = vmatpush1.msra.mxu0 0.0
  %5714 = vmatprep.subr.mxu0 0.0
  %5715 = vmatpush1.msra.mxu0 0.0
  %5716 = vmatprep.subr.mxu0 0.0
  %5717 = vmatpush1.msra.mxu0 0.0
  %5718 = vmatprep.subr.mxu0 0.0
  %5719 = vmatpush1.msra.mxu0 0.0
  %5720 = vmatprep.subr.mxu0 0.0
  %5721 = vmatpush1.msra.mxu0 0.0
  %5722 = vmatprep.subr.mxu0 0.0
  %5723 = vmatpush1.msra.mxu0 0.0
  %5724 = vmatprep.subr.mxu0 0.0
  %5725 = vmatpush1.msra.mxu0 0.0
  %5726 = vmatprep.subr.mxu0 0.0
  %5727 = vmatpush1.msra.mxu0 0.0
  %5728 = vmatprep.subr.mxu0 0.0
  %5729 = vmatpush1.msra.mxu0 0.0
  %5730 = vmatprep.subr.mxu0 0.0
  %5731 = vmatpush1.msra.mxu0 0.0
  %5732 = vmatprep.subr.mxu0 0.0
  %5733 = vmatpush1.msra.mxu0 0.0
  %5734 = vmatprep.subr.mxu0 0.0
  %5735 = vmatpush1.msra.mxu0 0.0
  %5736 = vmatprep.subr.mxu0 0.0
  %5737 = vmatpush1.msra.mxu0 0.0
  %5738 = vmatprep.subr.mxu0 0.0
  %5739 = vmatpush1.msra.mxu0 0.0
  %5740 = vmatprep.mubr.f32.mxu0 0.0
  %5741 = vmatmul.mubr.f32.gmra.mrb[0].mxu0 %v5532
  %v5742 = vpop.f32.mrb[0].mxu0
  %v5743 = vadd.f32 0.0, %v5742
  %v5744 = vpop.f32.mrb[0].mxu0
  %v5745 = vadd.f32 0.0, %v5744
  %5746 = vdwg.mxu0
  %5747 = vmatprep.subr.mxu0 %v5218
  %5748 = vmatpush1.msra.mxu0 %v5217
  %5749 = vmatprep.subr.mxu0 %v5226
  %5750 = vmatpush1.msra.mxu0 %v5225
  %5751 = vmatprep.subr.mxu0 %v5234
  %5752 = vmatpush1.msra.mxu0 %v5233
  %5753 = vmatprep.subr.mxu0 %v5242
  %5754 = vmatpush1.msra.mxu0 %v5241
  %5755 = vmatprep.subr.mxu0 0.0
  %5756 = vmatpush1.msra.mxu0 0.0
  %5757 = vmatprep.subr.mxu0 0.0
  %5758 = vmatpush1.msra.mxu0 0.0
  %5759 = vmatprep.subr.mxu0 0.0
  %5760 = vmatpush1.msra.mxu0 0.0
  %5761 = vmatprep.subr.mxu0 0.0
  %5762 = vmatpush1.msra.mxu0 0.0
  %5763 = vmatprep.subr.mxu0 0.0
  %5764 = vmatpush1.msra.mxu0 0.0
  %5765 = vmatprep.subr.mxu0 0.0
  %5766 = vmatpush1.msra.mxu0 0.0
  %5767 = vmatprep.subr.mxu0 0.0
  %5768 = vmatpush1.msra.mxu0 0.0
  %5769 = vmatprep.subr.mxu0 0.0
  %5770 = vmatpush1.msra.mxu0 0.0
  %5771 = vmatprep.subr.mxu0 0.0
  %5772 = vmatpush1.msra.mxu0 0.0
  %5773 = vmatprep.subr.mxu0 0.0
  %5774 = vmatpush1.msra.mxu0 0.0
  %5775 = vmatprep.subr.mxu0 0.0
  %5776 = vmatpush1.msra.mxu0 0.0
  %5777 = vmatprep.subr.mxu0 0.0
  %5778 = vmatpush1.msra.mxu0 0.0
  %5779 = vmatprep.subr.mxu0 0.0
  %5780 = vmatpush1.msra.mxu0 0.0
  %5781 = vmatprep.subr.mxu0 0.0
  %5782 = vmatpush1.msra.mxu0 0.0
  %5783 = vmatprep.subr.mxu0 0.0
  %5784 = vmatpush1.msra.mxu0 0.0
  %5785 = vmatprep.subr.mxu0 0.0
  %5786 = vmatpush1.msra.mxu0 0.0
  %5787 = vmatprep.subr.mxu0 0.0
  %5788 = vmatpush1.msra.mxu0 0.0
  %5789 = vmatprep.subr.mxu0 0.0
  %5790 = vmatpush1.msra.mxu0 0.0
  %5791 = vmatprep.subr.mxu0 0.0
  %5792 = vmatpush1.msra.mxu0 0.0
  %5793 = vmatprep.subr.mxu0 0.0
  %5794 = vmatpush1.msra.mxu0 0.0
  %5795 = vmatprep.subr.mxu0 0.0
  %5796 = vmatpush1.msra.mxu0 0.0
  %5797 = vmatprep.subr.mxu0 0.0
  %5798 = vmatpush1.msra.mxu0 0.0
  %5799 = vmatprep.subr.mxu0 0.0
  %5800 = vmatpush1.msra.mxu0 0.0
  %5801 = vmatprep.subr.mxu0 0.0
  %5802 = vmatpush1.msra.mxu0 0.0
  %5803 = vmatprep.subr.mxu0 0.0
  %5804 = vmatpush1.msra.mxu0 0.0
  %5805 = vmatprep.subr.mxu0 0.0
  %5806 = vmatpush1.msra.mxu0 0.0
  %5807 = vmatprep.subr.mxu0 0.0
  %5808 = vmatpush1.msra.mxu0 0.0
  %5809 = vmatprep.subr.mxu0 0.0
  %5810 = vmatpush1.msra.mxu0 0.0
  %5811 = vmatprep.mubr.f32.mxu0 0.0
  %5812 = vmatmul.mubr.f32.gmra.mrb[0].mxu0 %v5532
  %v5813 = vpop.f32.mrb[0].mxu0
  %v5814 = vadd.f32 0.0, %v5813
  %v5815 = vpop.f32.mrb[0].mxu0
  %v5816 = vadd.f32 0.0, %v5815
  %5817 = vdwg.mxu0
  %v5818 = vmul.f32 %v3496, %v5314
  %v5819 = vmul.f32 %v3498, %v5316
  %v5820 = vmul.f32 %v3780, %v5385
  %v5821 = vmul.f32 %v3782, %v5387
  %v5822 = vmul.f32 %v4064, %v5456
  %v5823 = vmul.f32 %v4066, %v5458
  %v5824 = vmul.f32 %v4348, %v5527
  %v5825 = vmul.f32 %v4350, %v5529
  %v5826 = vadd.f32 %v5818, %v5601
  %v5827 = vadd.f32 %v5819, %v5603
  %v5828 = vadd.f32 %v5820, %v5672
  %v5829 = vadd.f32 %v5821, %v5674
  %v5830 = vadd.f32 %v5822, %v5743
  %v5831 = vadd.f32 %v5823, %v5745
  %v5832 = vadd.f32 %v5824, %v5814
  %v5833 = vadd.f32 %v5825, %v5816
  %vm5834 = vcmp.ge.f32.partialorder %v5826, 0.0
  %vm5835 = vcmp.ge.f32.partialorder %v5827, 0.0
  %vm5836 = vcmp.ge.f32.partialorder %v5828, 0.0
  %vm5837 = vcmp.ge.f32.partialorder %v5829, 0.0
  %vm5838 = vcmp.ge.f32.partialorder %v5830, 0.0
  %vm5839 = vcmp.ge.f32.partialorder %v5831, 0.0
  %vm5840 = vcmp.ge.f32.partialorder %v5832, 0.0
  %vm5841 = vcmp.ge.f32.partialorder %v5833, 0.0
  %v5842 = vmul.f32 %v5826, 0.3
  %v5843 = vmul.f32 %v5827, 0.3
  %v5844 = vmul.f32 %v5828, 0.3
  %v5845 = vmul.f32 %v5829, 0.3
  %v5846 = vmul.f32 %v5830, 0.3
  %v5847 = vmul.f32 %v5831, 0.3
  %v5848 = vmul.f32 %v5832, 0.3
  %v5849 = vmul.f32 %v5833, 0.3
  %v5850 = vsel %vm5834, %v5826, %v5842
  %v5851 = vsel %vm5835, %v5827, %v5843
  %v5852 = vsel %vm5836, %v5828, %v5844
  %v5853 = vsel %vm5837, %v5829, %v5845
  %v5854 = vsel %vm5838, %v5830, %v5846
  %v5855 = vsel %vm5839, %v5831, %v5847
  %v5856 = vsel %vm5840, %v5832, %v5848
  %v5857 = vsel %vm5841, %v5833, %v5849
  %v5858 = vld [vmem:[%s14] sm:$0xff]
  %v5859 = vld [vmem:[%s14 + $0x8] sm:$0xff]
  %v5860 = vld [vmem:[%s14 + $0x10] sm:$0xff]
  %v5861 = vld [vmem:[%s14 + $0x18] sm:$0xff]
  %v5862 = vld [vmem:[%s14 + $0x20] sm:$0xff]
  %v5863 = vld [vmem:[%s14 + $0x28] sm:$0xff]
  %v5864 = vld [vmem:[%s14 + $0x30] sm:$0xff]
  %v5865 = vld [vmem:[%s14 + $0x38] sm:$0xff]
  %v5866 = vld [vmem:[%s14 + $0x40] sm:$0xff]
  %v5867 = vld [vmem:[%s14 + $0x48] sm:$0xff]
  %v5868 = vld [vmem:[%s14 + $0x50] sm:$0xff]
  %v5869 = vld [vmem:[%s14 + $0x58] sm:$0xff]
  %v5870 = vld [vmem:[%s14 + $0x60] sm:$0xff]
  %v5871 = vld [vmem:[%s14 + $0x68] sm:$0xff]
  %v5872 = vld [vmem:[%s14 + $0x70] sm:$0xff]
  %v5873 = vld [vmem:[%s14 + $0x78] sm:$0xff]
  %v5874 = vld [vmem:[%s14 + $0x80] sm:$0xff]
  %v5875 = vld [vmem:[%s14 + $0x88] sm:$0xff]
  %v5876 = vld [vmem:[%s14 + $0x90] sm:$0xff]
  %v5877 = vld [vmem:[%s14 + $0x98] sm:$0xff]
  %v5878 = vld [vmem:[%s14 + $0xa0] sm:$0xff]
  %v5879 = vld [vmem:[%s14 + $0xa8] sm:$0xff]
  %v5880 = vld [vmem:[%s14 + $0xb0] sm:$0xff]
  %v5881 = vld [vmem:[%s14 + $0xb8] sm:$0xff]
  %v5882 = vld [vmem:[%s14 + $0xc0] sm:$0xff]
  %v5883 = vld [vmem:[%s14 + $0xc8] sm:$0xff]
  %v5884 = vld [vmem:[%s14 + $0xd0] sm:$0xff]
  %v5885 = vld [vmem:[%s14 + $0xd8] sm:$0xff]
  %v5886 = vld [vmem:[%s14 + $0xe0] sm:$0xff]
  %v5887 = vld [vmem:[%s14 + $0xe8] sm:$0xff]
  %v5888 = vld [vmem:[%s14 + $0xf0] sm:$0xff]
  %v5889 = vld [vmem:[%s14 + $0xf8] sm:$0xff]
  %v5890 = vld [vmem:[%s14 + $0x100] sm:$0xff]
  %v5891 = vld [vmem:[%s14 + $0x108] sm:$0xff]
  %v5892 = vld [vmem:[%s14 + $0x110] sm:$0xff]
  %v5893 = vld [vmem:[%s14 + $0x118] sm:$0xff]
  %v5894 = vld [vmem:[%s14 + $0x120] sm:$0xff]
  %v5895 = vld [vmem:[%s14 + $0x128] sm:$0xff]
  %v5896 = vld [vmem:[%s14 + $0x130] sm:$0xff]
  %v5897 = vld [vmem:[%s14 + $0x138] sm:$0xff]
  %v5898 = vld [vmem:[%s14 + $0x140] sm:$0xff]
  %v5899 = vld [vmem:[%s14 + $0x148] sm:$0xff]
  %v5900 = vld [vmem:[%s14 + $0x150] sm:$0xff]
  %v5901 = vld [vmem:[%s14 + $0x158] sm:$0xff]
  %v5902 = vld [vmem:[%s14 + $0x160] sm:$0xff]
  %v5903 = vld [vmem:[%s14 + $0x168] sm:$0xff]
  %v5904 = vld [vmem:[%s14 + $0x170] sm:$0xff]
  %v5905 = vld [vmem:[%s14 + $0x178] sm:$0xff]
  %v5906 = vld [vmem:[%s14 + $0x180] sm:$0xff]
  %v5907 = vld [vmem:[%s14 + $0x188] sm:$0xff]
  %v5908 = vld [vmem:[%s14 + $0x190] sm:$0xff]
  %v5909 = vld [vmem:[%s14 + $0x198] sm:$0xff]
  %v5910 = vld [vmem:[%s14 + $0x1a0] sm:$0xff]
  %v5911 = vld [vmem:[%s14 + $0x1a8] sm:$0xff]
  %v5912 = vld [vmem:[%s14 + $0x1b0] sm:$0xff]
  %v5913 = vld [vmem:[%s14 + $0x1b8] sm:$0xff]
  %v5914 = vld [vmem:[%s14 + $0x1c0] sm:$0xff]
  %v5915 = vld [vmem:[%s14 + $0x1c8] sm:$0xff]
  %v5916 = vld [vmem:[%s14 + $0x1d0] sm:$0xff]
  %v5917 = vld [vmem:[%s14 + $0x1d8] sm:$0xff]
  %v5918 = vld [vmem:[%s14 + $0x1e0] sm:$0xff]
  %v5919 = vld [vmem:[%s14 + $0x1e8] sm:$0xff]
  %v5920 = vld [vmem:[%s14 + $0x1f0] sm:$0xff]
  %v5921 = vld [vmem:[%s14 + $0x1f8] sm:$0xff]
  %v5922 = vld [vmem:[%s14 + $0x200] sm:$0xff]
  %v5923 = vld [vmem:[%s14 + $0x208] sm:$0xff]
  %v5924 = vld [vmem:[%s14 + $0x210] sm:$0xff]
  %v5925 = vld [vmem:[%s14 + $0x218] sm:$0xff]
  %v5926 = vld [vmem:[%s14 + $0x220] sm:$0xff]
  %v5927 = vld [vmem:[%s14 + $0x228] sm:$0xff]
  %v5928 = vld [vmem:[%s14 + $0x230] sm:$0xff]
  %v5929 = vld [vmem:[%s14 + $0x238] sm:$0xff]
  %v5930 = vld [vmem:[%s14 + $0x240] sm:$0xff]
  %v5931 = vld [vmem:[%s14 + $0x248] sm:$0xff]
  %v5932 = vld [vmem:[%s14 + $0x250] sm:$0xff]
  %v5933 = vld [vmem:[%s14 + $0x258] sm:$0xff]
  %v5934 = vld [vmem:[%s14 + $0x260] sm:$0xff]
  %v5935 = vld [vmem:[%s14 + $0x268] sm:$0xff]
  %v5936 = vld [vmem:[%s14 + $0x270] sm:$0xff]
  %v5937 = vld [vmem:[%s14 + $0x278] sm:$0xff]
  %v5938 = vld [vmem:[%s14 + $0x280] sm:$0xff]
  %v5939 = vld [vmem:[%s14 + $0x288] sm:$0xff]
  %v5940 = vld [vmem:[%s14 + $0x290] sm:$0xff]
  %v5941 = vld [vmem:[%s14 + $0x298] sm:$0xff]
  %v5942 = vld [vmem:[%s14 + $0x2a0] sm:$0xff]
  %v5943 = vld [vmem:[%s14 + $0x2a8] sm:$0xff]
  %v5944 = vld [vmem:[%s14 + $0x2b0] sm:$0xff]
  %v5945 = vld [vmem:[%s14 + $0x2b8] sm:$0xff]
  %v5946 = vld [vmem:[%s14 + $0x2c0] sm:$0xff]
  %v5947 = vld [vmem:[%s14 + $0x2c8] sm:$0xff]
  %v5948 = vld [vmem:[%s14 + $0x2d0] sm:$0xff]
  %v5949 = vld [vmem:[%s14 + $0x2d8] sm:$0xff]
  %v5950 = vld [vmem:[%s14 + $0x2e0] sm:$0xff]
  %v5951 = vld [vmem:[%s14 + $0x2e8] sm:$0xff]
  %v5952 = vld [vmem:[%s14 + $0x2f0] sm:$0xff]
  %v5953 = vld [vmem:[%s14 + $0x2f8] sm:$0xff]
  %v5954 = vld [vmem:[%s14 + $0x300] sm:$0xff]
  %v5955 = vld [vmem:[%s14 + $0x308] sm:$0xff]
  %v5956 = vld [vmem:[%s14 + $0x310] sm:$0xff]
  %v5957 = vld [vmem:[%s14 + $0x318] sm:$0xff]
  %v5958 = vld [vmem:[%s14 + $0x320] sm:$0xff]
  %v5959 = vld [vmem:[%s14 + $0x328] sm:$0xff]
  %v5960 = vld [vmem:[%s14 + $0x330] sm:$0xff]
  %v5961 = vld [vmem:[%s14 + $0x338] sm:$0xff]
  %v5962 = vld [vmem:[%s14 + $0x340] sm:$0xff]
  %v5963 = vld [vmem:[%s14 + $0x348] sm:$0xff]
  %v5964 = vld [vmem:[%s14 + $0x350] sm:$0xff]
  %v5965 = vld [vmem:[%s14 + $0x358] sm:$0xff]
  %v5966 = vld [vmem:[%s14 + $0x360] sm:$0xff]
  %v5967 = vld [vmem:[%s14 + $0x368] sm:$0xff]
  %v5968 = vld [vmem:[%s14 + $0x370] sm:$0xff]
  %v5969 = vld [vmem:[%s14 + $0x378] sm:$0xff]
  %v5970 = vld [vmem:[%s14 + $0x380] sm:$0xff]
  %v5971 = vld [vmem:[%s14 + $0x388] sm:$0xff]
  %v5972 = vld [vmem:[%s14 + $0x390] sm:$0xff]
  %v5973 = vld [vmem:[%s14 + $0x398] sm:$0xff]
  %v5974 = vld [vmem:[%s14 + $0x3a0] sm:$0xff]
  %v5975 = vld [vmem:[%s14 + $0x3a8] sm:$0xff]
  %v5976 = vld [vmem:[%s14 + $0x3b0] sm:$0xff]
  %v5977 = vld [vmem:[%s14 + $0x3b8] sm:$0xff]
  %v5978 = vld [vmem:[%s14 + $0x3c0] sm:$0xff]
  %v5979 = vld [vmem:[%s14 + $0x3c8] sm:$0xff]
  %v5980 = vld [vmem:[%s14 + $0x3d0] sm:$0xff]
  %v5981 = vld [vmem:[%s14 + $0x3d8] sm:$0xff]
  %v5982 = vld [vmem:[%s14 + $0x3e0] sm:$0xff]
  %v5983 = vld [vmem:[%s14 + $0x3e8] sm:$0xff]
  %v5984 = vld [vmem:[%s14 + $0x3f0] sm:$0xff]
  %v5985 = vld [vmem:[%s14 + $0x3f8] sm:$0xff]
  %v5986 = vld [vmem:[%s14 + $0x400] sm:$0xff]
  %v5987 = vld [vmem:[%s14 + $0x408] sm:$0xff]
  %v5988 = vld [vmem:[%s14 + $0x410] sm:$0xff]
  %v5989 = vld [vmem:[%s14 + $0x418] sm:$0xff]
  %v5990 = vld [vmem:[%s14 + $0x420] sm:$0xff]
  %v5991 = vld [vmem:[%s14 + $0x428] sm:$0xff]
  %v5992 = vld [vmem:[%s14 + $0x430] sm:$0xff]
  %v5993 = vld [vmem:[%s14 + $0x438] sm:$0xff]
  %v5994 = vld [vmem:[%s14 + $0x440] sm:$0xff]
  %v5995 = vld [vmem:[%s14 + $0x448] sm:$0xff]
  %v5996 = vld [vmem:[%s14 + $0x450] sm:$0xff]
  %v5997 = vld [vmem:[%s14 + $0x458] sm:$0xff]
  %v5998 = vld [vmem:[%s14 + $0x460] sm:$0xff]
  %v5999 = vld [vmem:[%s14 + $0x468] sm:$0xff]
  %v6000 = vld [vmem:[%s14 + $0x470] sm:$0xff]
  %v6001 = vld [vmem:[%s14 + $0x478] sm:$0xff]
  %v6002 = vld [vmem:[%s14 + $0x480] sm:$0xff]
  %v6003 = vld [vmem:[%s14 + $0x488] sm:$0xff]
  %v6004 = vld [vmem:[%s14 + $0x490] sm:$0xff]
  %v6005 = vld [vmem:[%s14 + $0x498] sm:$0xff]
  %v6006 = vld [vmem:[%s14 + $0x4a0] sm:$0xff]
  %v6007 = vld [vmem:[%s14 + $0x4a8] sm:$0xff]
  %v6008 = vld [vmem:[%s14 + $0x4b0] sm:$0xff]
  %v6009 = vld [vmem:[%s14 + $0x4b8] sm:$0xff]
  %v6010 = vld [vmem:[%s14 + $0x4c0] sm:$0xff]
  %v6011 = vld [vmem:[%s14 + $0x4c8] sm:$0xff]
  %v6012 = vld [vmem:[%s14 + $0x4d0] sm:$0xff]
  %v6013 = vld [vmem:[%s14 + $0x4d8] sm:$0xff]
  %v6014 = vld [vmem:[%s14 + $0x4e0] sm:$0xff]
  %v6015 = vld [vmem:[%s14 + $0x4e8] sm:$0xff]
  %v6016 = vld [vmem:[%s14 + $0x4f0] sm:$0xff]
  %v6017 = vld [vmem:[%s14 + $0x4f8] sm:$0xff]
  %v6018 = vld [vmem:[%s14 + $0x500] sm:$0xff]
  %v6019 = vld [vmem:[%s14 + $0x508] sm:$0xff]
  %v6020 = vld [vmem:[%s14 + $0x510] sm:$0xff]
  %v6021 = vld [vmem:[%s14 + $0x518] sm:$0xff]
  %v6022 = vld [vmem:[%s14 + $0x520] sm:$0xff]
  %v6023 = vld [vmem:[%s14 + $0x528] sm:$0xff]
  %v6024 = vld [vmem:[%s14 + $0x530] sm:$0xff]
  %v6025 = vld [vmem:[%s14 + $0x538] sm:$0xff]
  %v6026 = vld [vmem:[%s14 + $0x540] sm:$0xff]
  %v6027 = vld [vmem:[%s14 + $0x548] sm:$0xff]
  %v6028 = vld [vmem:[%s14 + $0x550] sm:$0xff]
  %v6029 = vld [vmem:[%s14 + $0x558] sm:$0xff]
  %v6030 = vld [vmem:[%s14 + $0x560] sm:$0xff]
  %v6031 = vld [vmem:[%s14 + $0x568] sm:$0xff]
  %v6032 = vld [vmem:[%s14 + $0x570] sm:$0xff]
  %v6033 = vld [vmem:[%s14 + $0x578] sm:$0xff]
  %v6034 = vld [vmem:[%s14 + $0x580] sm:$0xff]
  %v6035 = vld [vmem:[%s14 + $0x588] sm:$0xff]
  %v6036 = vld [vmem:[%s14 + $0x590] sm:$0xff]
  %v6037 = vld [vmem:[%s14 + $0x598] sm:$0xff]
  %v6038 = vld [vmem:[%s14 + $0x5a0] sm:$0xff]
  %v6039 = vld [vmem:[%s14 + $0x5a8] sm:$0xff]
  %v6040 = vld [vmem:[%s14 + $0x5b0] sm:$0xff]
  %v6041 = vld [vmem:[%s14 + $0x5b8] sm:$0xff]
  %v6042 = vld [vmem:[%s14 + $0x5c0] sm:$0xff]
  %v6043 = vld [vmem:[%s14 + $0x5c8] sm:$0xff]
  %v6044 = vld [vmem:[%s14 + $0x5d0] sm:$0xff]
  %v6045 = vld [vmem:[%s14 + $0x5d8] sm:$0xff]
  %v6046 = vld [vmem:[%s14 + $0x5e0] sm:$0xff]
  %v6047 = vld [vmem:[%s14 + $0x5e8] sm:$0xff]
  %v6048 = vld [vmem:[%s14 + $0x5f0] sm:$0xff]
  %v6049 = vld [vmem:[%s14 + $0x5f8] sm:$0xff]
  %v6050 = vld [vmem:[%s14 + $0x600] sm:$0xff]
  %v6051 = vld [vmem:[%s14 + $0x608] sm:$0xff]
  %v6052 = vld [vmem:[%s14 + $0x610] sm:$0xff]
  %v6053 = vld [vmem:[%s14 + $0x618] sm:$0xff]
  %v6054 = vld [vmem:[%s14 + $0x620] sm:$0xff]
  %v6055 = vld [vmem:[%s14 + $0x628] sm:$0xff]
  %v6056 = vld [vmem:[%s14 + $0x630] sm:$0xff]
  %v6057 = vld [vmem:[%s14 + $0x638] sm:$0xff]
  %v6058 = vld [vmem:[%s14 + $0x640] sm:$0xff]
  %v6059 = vld [vmem:[%s14 + $0x648] sm:$0xff]
  %v6060 = vld [vmem:[%s14 + $0x650] sm:$0xff]
  %v6061 = vld [vmem:[%s14 + $0x658] sm:$0xff]
  %v6062 = vld [vmem:[%s14 + $0x660] sm:$0xff]
  %v6063 = vld [vmem:[%s14 + $0x668] sm:$0xff]
  %v6064 = vld [vmem:[%s14 + $0x670] sm:$0xff]
  %v6065 = vld [vmem:[%s14 + $0x678] sm:$0xff]
  %v6066 = vld [vmem:[%s14 + $0x680] sm:$0xff]
  %v6067 = vld [vmem:[%s14 + $0x688] sm:$0xff]
  %v6068 = vld [vmem:[%s14 + $0x690] sm:$0xff]
  %v6069 = vld [vmem:[%s14 + $0x698] sm:$0xff]
  %v6070 = vld [vmem:[%s14 + $0x6a0] sm:$0xff]
  %v6071 = vld [vmem:[%s14 + $0x6a8] sm:$0xff]
  %v6072 = vld [vmem:[%s14 + $0x6b0] sm:$0xff]
  %v6073 = vld [vmem:[%s14 + $0x6b8] sm:$0xff]
  %v6074 = vld [vmem:[%s14 + $0x6c0] sm:$0xff]
  %v6075 = vld [vmem:[%s14 + $0x6c8] sm:$0xff]
  %v6076 = vld [vmem:[%s14 + $0x6d0] sm:$0xff]
  %v6077 = vld [vmem:[%s14 + $0x6d8] sm:$0xff]
  %v6078 = vld [vmem:[%s14 + $0x6e0] sm:$0xff]
  %v6079 = vld [vmem:[%s14 + $0x6e8] sm:$0xff]
  %v6080 = vld [vmem:[%s14 + $0x6f0] sm:$0xff]
  %v6081 = vld [vmem:[%s14 + $0x6f8] sm:$0xff]
  %v6082 = vld [vmem:[%s14 + $0x700] sm:$0xff]
  %v6083 = vld [vmem:[%s14 + $0x708] sm:$0xff]
  %v6084 = vld [vmem:[%s14 + $0x710] sm:$0xff]
  %v6085 = vld [vmem:[%s14 + $0x718] sm:$0xff]
  %v6086 = vld [vmem:[%s14 + $0x720] sm:$0xff]
  %v6087 = vld [vmem:[%s14 + $0x728] sm:$0xff]
  %v6088 = vld [vmem:[%s14 + $0x730] sm:$0xff]
  %v6089 = vld [vmem:[%s14 + $0x738] sm:$0xff]
  %v6090 = vld [vmem:[%s14 + $0x740] sm:$0xff]
  %v6091 = vld [vmem:[%s14 + $0x748] sm:$0xff]
  %v6092 = vld [vmem:[%s14 + $0x750] sm:$0xff]
  %v6093 = vld [vmem:[%s14 + $0x758] sm:$0xff]
  %v6094 = vld [vmem:[%s14 + $0x760] sm:$0xff]
  %v6095 = vld [vmem:[%s14 + $0x768] sm:$0xff]
  %v6096 = vld [vmem:[%s14 + $0x770] sm:$0xff]
  %v6097 = vld [vmem:[%s14 + $0x778] sm:$0xff]
  %v6098 = vld [vmem:[%s14 + $0x780] sm:$0xff]
  %v6099 = vld [vmem:[%s14 + $0x788] sm:$0xff]
  %v6100 = vld [vmem:[%s14 + $0x790] sm:$0xff]
  %v6101 = vld [vmem:[%s14 + $0x798] sm:$0xff]
  %v6102 = vld [vmem:[%s14 + $0x7a0] sm:$0xff]
  %v6103 = vld [vmem:[%s14 + $0x7a8] sm:$0xff]
  %v6104 = vld [vmem:[%s14 + $0x7b0] sm:$0xff]
  %v6105 = vld [vmem:[%s14 + $0x7b8] sm:$0xff]
  %v6106 = vld [vmem:[%s14 + $0x7c0] sm:$0xff]
  %v6107 = vld [vmem:[%s14 + $0x7c8] sm:$0xff]
  %v6108 = vld [vmem:[%s14 + $0x7d0] sm:$0xff]
  %v6109 = vld [vmem:[%s14 + $0x7d8] sm:$0xff]
  %v6110 = vld [vmem:[%s14 + $0x7e0] sm:$0xff]
  %v6111 = vld [vmem:[%s14 + $0x7e8] sm:$0xff]
  %v6112 = vld [vmem:[%s14 + $0x7f0] sm:$0xff]
  %v6113 = vld [vmem:[%s14 + $0x7f8] sm:$0xff]
  %v6114 = vld [vmem:[%s14 + $0x800] sm:$0xff]
  %v6115 = vld [vmem:[%s14 + $0x808] sm:$0xff]
  %v6116 = vld [vmem:[%s14 + $0x810] sm:$0xff]
  %v6117 = vld [vmem:[%s14 + $0x818] sm:$0xff]
  %v6118 = vld [vmem:[%s14 + $0x820] sm:$0xff]
  %v6119 = vld [vmem:[%s14 + $0x828] sm:$0xff]
  %v6120 = vld [vmem:[%s14 + $0x830] sm:$0xff]
  %v6121 = vld [vmem:[%s14 + $0x838] sm:$0xff]
  %v6122 = vld [vmem:[%s14 + $0x840] sm:$0xff]
  %v6123 = vld [vmem:[%s14 + $0x848] sm:$0xff]
  %v6124 = vld [vmem:[%s14 + $0x850] sm:$0xff]
  %v6125 = vld [vmem:[%s14 + $0x858] sm:$0xff]
  %v6126 = vld [vmem:[%s14 + $0x860] sm:$0xff]
  %v6127 = vld [vmem:[%s14 + $0x868] sm:$0xff]
  %v6128 = vld [vmem:[%s14 + $0x870] sm:$0xff]
  %v6129 = vld [vmem:[%s14 + $0x878] sm:$0xff]
  %v6130 = vld [vmem:[%s14 + $0x880] sm:$0xff]
  %v6131 = vld [vmem:[%s14 + $0x888] sm:$0xff]
  %v6132 = vld [vmem:[%s14 + $0x890] sm:$0xff]
  %v6133 = vld [vmem:[%s14 + $0x898] sm:$0xff]
  %v6134 = vld [vmem:[%s14 + $0x8a0] sm:$0xff]
  %v6135 = vld [vmem:[%s14 + $0x8a8] sm:$0xff]
  %v6136 = vld [vmem:[%s14 + $0x8b0] sm:$0xff]
  %v6137 = vld [vmem:[%s14 + $0x8b8] sm:$0xff]
  %v6138 = vld [vmem:[%s14 + $0x8c0] sm:$0xff]
  %v6139 = vld [vmem:[%s14 + $0x8c8] sm:$0xff]
  %v6140 = vld [vmem:[%s14 + $0x8d0] sm:$0xff]
  %v6141 = vld [vmem:[%s14 + $0x8d8] sm:$0xff]
  %v6142 = vld [vmem:[%s14 + $0x8e0] sm:$0xff]
  %v6143 = vld [vmem:[%s14 + $0x8e8] sm:$0xff]
  %v6144 = vld [vmem:[%s14 + $0x8f0] sm:$0xff]
  %v6145 = vld [vmem:[%s14 + $0x8f8] sm:$0xff]
  %v6146 = vld [vmem:[%s14 + $0x900] sm:$0xff]
  %v6147 = vld [vmem:[%s14 + $0x908] sm:$0xff]
  %v6148 = vld [vmem:[%s14 + $0x910] sm:$0xff]
  %v6149 = vld [vmem:[%s14 + $0x918] sm:$0xff]
  %v6150 = vld [vmem:[%s14 + $0x920] sm:$0xff]
  %v6151 = vld [vmem:[%s14 + $0x928] sm:$0xff]
  %v6152 = vld [vmem:[%s14 + $0x930] sm:$0xff]
  %v6153 = vld [vmem:[%s14 + $0x938] sm:$0xff]
  %v6154 = vld [vmem:[%s14 + $0x940] sm:$0xff]
  %v6155 = vld [vmem:[%s14 + $0x948] sm:$0xff]
  %v6156 = vld [vmem:[%s14 + $0x950] sm:$0xff]
  %v6157 = vld [vmem:[%s14 + $0x958] sm:$0xff]
  %v6158 = vld [vmem:[%s14 + $0x960] sm:$0xff]
  %v6159 = vld [vmem:[%s14 + $0x968] sm:$0xff]
  %v6160 = vld [vmem:[%s14 + $0x970] sm:$0xff]
  %v6161 = vld [vmem:[%s14 + $0x978] sm:$0xff]
  %v6162 = vld [vmem:[%s14 + $0x980] sm:$0xff]
  %v6163 = vld [vmem:[%s14 + $0x988] sm:$0xff]
  %v6164 = vld [vmem:[%s14 + $0x990] sm:$0xff]
  %v6165 = vld [vmem:[%s14 + $0x998] sm:$0xff]
  %v6166 = vld [vmem:[%s14 + $0x9a0] sm:$0xff]
  %v6167 = vld [vmem:[%s14 + $0x9a8] sm:$0xff]
  %v6168 = vld [vmem:[%s14 + $0x9b0] sm:$0xff]
  %v6169 = vld [vmem:[%s14 + $0x9b8] sm:$0xff]
  %v6170 = vld [vmem:[%s14 + $0x9c0] sm:$0xff]
  %v6171 = vld [vmem:[%s14 + $0x9c8] sm:$0xff]
  %v6172 = vld [vmem:[%s14 + $0x9d0] sm:$0xff]
  %v6173 = vld [vmem:[%s14 + $0x9d8] sm:$0xff]
  %v6174 = vld [vmem:[%s14 + $0x9e0] sm:$0xff]
  %v6175 = vld [vmem:[%s14 + $0x9e8] sm:$0xff]
  %v6176 = vld [vmem:[%s14 + $0x9f0] sm:$0xff]
  %v6177 = vld [vmem:[%s14 + $0x9f8] sm:$0xff]
  %v6178 = vld [vmem:[%s14 + $0xa00] sm:$0xff]
  %v6179 = vld [vmem:[%s14 + $0xa08] sm:$0xff]
  %v6180 = vld [vmem:[%s14 + $0xa10] sm:$0xff]
  %v6181 = vld [vmem:[%s14 + $0xa18] sm:$0xff]
  %v6182 = vld [vmem:[%s14 + $0xa20] sm:$0xff]
  %v6183 = vld [vmem:[%s14 + $0xa28] sm:$0xff]
  %v6184 = vld [vmem:[%s14 + $0xa30] sm:$0xff]
  %v6185 = vld [vmem:[%s14 + $0xa38] sm:$0xff]
  %v6186 = vld [vmem:[%s14 + $0xa40] sm:$0xff]
  %v6187 = vld [vmem:[%s14 + $0xa48] sm:$0xff]
  %v6188 = vld [vmem:[%s14 + $0xa50] sm:$0xff]
  %v6189 = vld [vmem:[%s14 + $0xa58] sm:$0xff]
  %v6190 = vld [vmem:[%s14 + $0xa60] sm:$0xff]
  %v6191 = vld [vmem:[%s14 + $0xa68] sm:$0xff]
  %v6192 = vld [vmem:[%s14 + $0xa70] sm:$0xff]
  %v6193 = vld [vmem:[%s14 + $0xa78] sm:$0xff]
  %v6194 = vld [vmem:[%s14 + $0xa80] sm:$0xff]
  %v6195 = vld [vmem:[%s14 + $0xa88] sm:$0xff]
  %v6196 = vld [vmem:[%s14 + $0xa90] sm:$0xff]
  %v6197 = vld [vmem:[%s14 + $0xa98] sm:$0xff]
  %v6198 = vld [vmem:[%s14 + $0xaa0] sm:$0xff]
  %v6199 = vld [vmem:[%s14 + $0xaa8] sm:$0xff]
  %v6200 = vld [vmem:[%s14 + $0xab0] sm:$0xff]
  %v6201 = vld [vmem:[%s14 + $0xab8] sm:$0xff]
  %v6202 = vld [vmem:[%s14 + $0xac0] sm:$0xff]
  %v6203 = vld [vmem:[%s14 + $0xac8] sm:$0xff]
  %v6204 = vld [vmem:[%s14 + $0xad0] sm:$0xff]
  %v6205 = vld [vmem:[%s14 + $0xad8] sm:$0xff]
  %v6206 = vld [vmem:[%s14 + $0xae0] sm:$0xff]
  %v6207 = vld [vmem:[%s14 + $0xae8] sm:$0xff]
  %v6208 = vld [vmem:[%s14 + $0xaf0] sm:$0xff]
  %v6209 = vld [vmem:[%s14 + $0xaf8] sm:$0xff]
  %v6210 = vld [vmem:[%s14 + $0xb00] sm:$0xff]
  %v6211 = vld [vmem:[%s14 + $0xb08] sm:$0xff]
  %v6212 = vld [vmem:[%s14 + $0xb10] sm:$0xff]
  %v6213 = vld [vmem:[%s14 + $0xb18] sm:$0xff]
  %v6214 = vld [vmem:[%s14 + $0xb20] sm:$0xff]
  %v6215 = vld [vmem:[%s14 + $0xb28] sm:$0xff]
  %v6216 = vld [vmem:[%s14 + $0xb30] sm:$0xff]
  %v6217 = vld [vmem:[%s14 + $0xb38] sm:$0xff]
  %v6218 = vld [vmem:[%s14 + $0xb40] sm:$0xff]
  %v6219 = vld [vmem:[%s14 + $0xb48] sm:$0xff]
  %v6220 = vld [vmem:[%s14 + $0xb50] sm:$0xff]
  %v6221 = vld [vmem:[%s14 + $0xb58] sm:$0xff]
  %v6222 = vld [vmem:[%s14 + $0xb60] sm:$0xff]
  %v6223 = vld [vmem:[%s14 + $0xb68] sm:$0xff]
  %v6224 = vld [vmem:[%s14 + $0xb70] sm:$0xff]
  %v6225 = vld [vmem:[%s14 + $0xb78] sm:$0xff]
  %v6226 = vld [vmem:[%s14 + $0xb80] sm:$0xff]
  %v6227 = vld [vmem:[%s14 + $0xb88] sm:$0xff]
  %v6228 = vld [vmem:[%s14 + $0xb90] sm:$0xff]
  %v6229 = vld [vmem:[%s14 + $0xb98] sm:$0xff]
  %v6230 = vld [vmem:[%s14 + $0xba0] sm:$0xff]
  %v6231 = vld [vmem:[%s14 + $0xba8] sm:$0xff]
  %v6232 = vld [vmem:[%s14 + $0xbb0] sm:$0xff]
  %v6233 = vld [vmem:[%s14 + $0xbb8] sm:$0xff]
  %v6234 = vld [vmem:[%s14 + $0xbc0] sm:$0xff]
  %v6235 = vld [vmem:[%s14 + $0xbc8] sm:$0xff]
  %v6236 = vld [vmem:[%s14 + $0xbd0] sm:$0xff]
  %v6237 = vld [vmem:[%s14 + $0xbd8] sm:$0xff]
  %v6238 = vld [vmem:[%s14 + $0xbe0] sm:$0xff]
  %v6239 = vld [vmem:[%s14 + $0xbe8] sm:$0xff]
  %v6240 = vld [vmem:[%s14 + $0xbf0] sm:$0xff]
  %v6241 = vld [vmem:[%s14 + $0xbf8] sm:$0xff]
  %v6242 = vld [vmem:[%s14 + $0xc00] sm:$0xff]
  %v6243 = vld [vmem:[%s14 + $0xc08] sm:$0xff]
  %v6244 = vld [vmem:[%s14 + $0xc10] sm:$0xff]
  %v6245 = vld [vmem:[%s14 + $0xc18] sm:$0xff]
  %v6246 = vld [vmem:[%s14 + $0xc20] sm:$0xff]
  %v6247 = vld [vmem:[%s14 + $0xc28] sm:$0xff]
  %v6248 = vld [vmem:[%s14 + $0xc30] sm:$0xff]
  %v6249 = vld [vmem:[%s14 + $0xc38] sm:$0xff]
  %v6250 = vld [vmem:[%s14 + $0xc40] sm:$0xff]
  %v6251 = vld [vmem:[%s14 + $0xc48] sm:$0xff]
  %v6252 = vld [vmem:[%s14 + $0xc50] sm:$0xff]
  %v6253 = vld [vmem:[%s14 + $0xc58] sm:$0xff]
  %v6254 = vld [vmem:[%s14 + $0xc60] sm:$0xff]
  %v6255 = vld [vmem:[%s14 + $0xc68] sm:$0xff]
  %v6256 = vld [vmem:[%s14 + $0xc70] sm:$0xff]
  %v6257 = vld [vmem:[%s14 + $0xc78] sm:$0xff]
  %v6258 = vld [vmem:[%s14 + $0xc80] sm:$0xff]
  %v6259 = vld [vmem:[%s14 + $0xc88] sm:$0xff]
  %v6260 = vld [vmem:[%s14 + $0xc90] sm:$0xff]
  %v6261 = vld [vmem:[%s14 + $0xc98] sm:$0xff]
  %v6262 = vld [vmem:[%s14 + $0xca0] sm:$0xff]
  %v6263 = vld [vmem:[%s14 + $0xca8] sm:$0xff]
  %v6264 = vld [vmem:[%s14 + $0xcb0] sm:$0xff]
  %v6265 = vld [vmem:[%s14 + $0xcb8] sm:$0xff]
  %v6266 = vld [vmem:[%s14 + $0xcc0] sm:$0xff]
  %v6267 = vld [vmem:[%s14 + $0xcc8] sm:$0xff]
  %v6268 = vld [vmem:[%s14 + $0xcd0] sm:$0xff]
  %v6269 = vld [vmem:[%s14 + $0xcd8] sm:$0xff]
  %v6270 = vld [vmem:[%s14 + $0xce0] sm:$0xff]
  %v6271 = vld [vmem:[%s14 + $0xce8] sm:$0xff]
  %v6272 = vld [vmem:[%s14 + $0xcf0] sm:$0xff]
  %v6273 = vld [vmem:[%s14 + $0xcf8] sm:$0xff]
  %v6274 = vld [vmem:[%s14 + $0xd00] sm:$0xff]
  %v6275 = vld [vmem:[%s14 + $0xd08] sm:$0xff]
  %v6276 = vld [vmem:[%s14 + $0xd10] sm:$0xff]
  %v6277 = vld [vmem:[%s14 + $0xd18] sm:$0xff]
  %v6278 = vld [vmem:[%s14 + $0xd20] sm:$0xff]
  %v6279 = vld [vmem:[%s14 + $0xd28] sm:$0xff]
  %v6280 = vld [vmem:[%s14 + $0xd30] sm:$0xff]
  %v6281 = vld [vmem:[%s14 + $0xd38] sm:$0xff]
  %v6282 = vld [vmem:[%s14 + $0xd40] sm:$0xff]
  %v6283 = vld [vmem:[%s14 + $0xd48] sm:$0xff]
  %v6284 = vld [vmem:[%s14 + $0xd50] sm:$0xff]
  %v6285 = vld [vmem:[%s14 + $0xd58] sm:$0xff]
  %v6286 = vld [vmem:[%s14 + $0xd60] sm:$0xff]
  %v6287 = vld [vmem:[%s14 + $0xd68] sm:$0xff]
  %v6288 = vld [vmem:[%s14 + $0xd70] sm:$0xff]
  %v6289 = vld [vmem:[%s14 + $0xd78] sm:$0xff]
  %v6290 = vld [vmem:[%s14 + $0xd80] sm:$0xff]
  %v6291 = vld [vmem:[%s14 + $0xd88] sm:$0xff]
  %v6292 = vld [vmem:[%s14 + $0xd90] sm:$0xff]
  %v6293 = vld [vmem:[%s14 + $0xd98] sm:$0xff]
  %v6294 = vld [vmem:[%s14 + $0xda0] sm:$0xff]
  %v6295 = vld [vmem:[%s14 + $0xda8] sm:$0xff]
  %v6296 = vld [vmem:[%s14 + $0xdb0] sm:$0xff]
  %v6297 = vld [vmem:[%s14 + $0xdb8] sm:$0xff]
  %v6298 = vld [vmem:[%s14 + $0xdc0] sm:$0xff]
  %v6299 = vld [vmem:[%s14 + $0xdc8] sm:$0xff]
  %v6300 = vld [vmem:[%s14 + $0xdd0] sm:$0xff]
  %v6301 = vld [vmem:[%s14 + $0xdd8] sm:$0xff]
  %v6302 = vld [vmem:[%s14 + $0xde0] sm:$0xff]
  %v6303 = vld [vmem:[%s14 + $0xde8] sm:$0xff]
  %v6304 = vld [vmem:[%s14 + $0xdf0] sm:$0xff]
  %v6305 = vld [vmem:[%s14 + $0xdf8] sm:$0xff]
  %v6306 = vld [vmem:[%s14 + $0xe00] sm:$0xff]
  %v6307 = vld [vmem:[%s14 + $0xe08] sm:$0xff]
  %v6308 = vld [vmem:[%s14 + $0xe10] sm:$0xff]
  %v6309 = vld [vmem:[%s14 + $0xe18] sm:$0xff]
  %v6310 = vld [vmem:[%s14 + $0xe20] sm:$0xff]
  %v6311 = vld [vmem:[%s14 + $0xe28] sm:$0xff]
  %v6312 = vld [vmem:[%s14 + $0xe30] sm:$0xff]
  %v6313 = vld [vmem:[%s14 + $0xe38] sm:$0xff]
  %v6314 = vld [vmem:[%s14 + $0xe40] sm:$0xff]
  %v6315 = vld [vmem:[%s14 + $0xe48] sm:$0xff]
  %v6316 = vld [vmem:[%s14 + $0xe50] sm:$0xff]
  %v6317 = vld [vmem:[%s14 + $0xe58] sm:$0xff]
  %v6318 = vld [vmem:[%s14 + $0xe60] sm:$0xff]
  %v6319 = vld [vmem:[%s14 + $0xe68] sm:$0xff]
  %v6320 = vld [vmem:[%s14 + $0xe70] sm:$0xff]
  %v6321 = vld [vmem:[%s14 + $0xe78] sm:$0xff]
  %v6322 = vld [vmem:[%s14 + $0xe80] sm:$0xff]
  %v6323 = vld [vmem:[%s14 + $0xe88] sm:$0xff]
  %v6324 = vld [vmem:[%s14 + $0xe90] sm:$0xff]
  %v6325 = vld [vmem:[%s14 + $0xe98] sm:$0xff]
  %v6326 = vld [vmem:[%s14 + $0xea0] sm:$0xff]
  %v6327 = vld [vmem:[%s14 + $0xea8] sm:$0xff]
  %v6328 = vld [vmem:[%s14 + $0xeb0] sm:$0xff]
  %v6329 = vld [vmem:[%s14 + $0xeb8] sm:$0xff]
  %v6330 = vld [vmem:[%s14 + $0xec0] sm:$0xff]
  %v6331 = vld [vmem:[%s14 + $0xec8] sm:$0xff]
  %v6332 = vld [vmem:[%s14 + $0xed0] sm:$0xff]
  %v6333 = vld [vmem:[%s14 + $0xed8] sm:$0xff]
  %v6334 = vld [vmem:[%s14 + $0xee0] sm:$0xff]
  %v6335 = vld [vmem:[%s14 + $0xee8] sm:$0xff]
  %v6336 = vld [vmem:[%s14 + $0xef0] sm:$0xff]
  %v6337 = vld [vmem:[%s14 + $0xef8] sm:$0xff]
  %v6338 = vld [vmem:[%s14 + $0xf00] sm:$0xff]
  %v6339 = vld [vmem:[%s14 + $0xf08] sm:$0xff]
  %v6340 = vld [vmem:[%s14 + $0xf10] sm:$0xff]
  %v6341 = vld [vmem:[%s14 + $0xf18] sm:$0xff]
  %v6342 = vld [vmem:[%s14 + $0xf20] sm:$0xff]
  %v6343 = vld [vmem:[%s14 + $0xf28] sm:$0xff]
  %v6344 = vld [vmem:[%s14 + $0xf30] sm:$0xff]
  %v6345 = vld [vmem:[%s14 + $0xf38] sm:$0xff]
  %v6346 = vld [vmem:[%s14 + $0xf40] sm:$0xff]
  %v6347 = vld [vmem:[%s14 + $0xf48] sm:$0xff]
  %v6348 = vld [vmem:[%s14 + $0xf50] sm:$0xff]
  %v6349 = vld [vmem:[%s14 + $0xf58] sm:$0xff]
  %v6350 = vld [vmem:[%s14 + $0xf60] sm:$0xff]
  %v6351 = vld [vmem:[%s14 + $0xf68] sm:$0xff]
  %v6352 = vld [vmem:[%s14 + $0xf70] sm:$0xff]
  %v6353 = vld [vmem:[%s14 + $0xf78] sm:$0xff]
  %v6354 = vld [vmem:[%s14 + $0xf80] sm:$0xff]
  %v6355 = vld [vmem:[%s14 + $0xf88] sm:$0xff]
  %v6356 = vld [vmem:[%s14 + $0xf90] sm:$0xff]
  %v6357 = vld [vmem:[%s14 + $0xf98] sm:$0xff]
  %v6358 = vld [vmem:[%s14 + $0xfa0] sm:$0xff]
  %v6359 = vld [vmem:[%s14 + $0xfa8] sm:$0xff]
  %v6360 = vld [vmem:[%s14 + $0xfb0] sm:$0xff]
  %v6361 = vld [vmem:[%s14 + $0xfb8] sm:$0xff]
  %v6362 = vld [vmem:[%s14 + $0xfc0] sm:$0xff]
  %v6363 = vld [vmem:[%s14 + $0xfc8] sm:$0xff]
  %v6364 = vld [vmem:[%s14 + $0xfd0] sm:$0xff]
  %v6365 = vld [vmem:[%s14 + $0xfd8] sm:$0xff]
  %v6366 = vld [vmem:[%s14 + $0xfe0] sm:$0xff]
  %v6367 = vld [vmem:[%s14 + $0xfe8] sm:$0xff]
  %v6368 = vld [vmem:[%s14 + $0xff0] sm:$0xff]
  %v6369 = vld [vmem:[%s14 + $0xff8] sm:$0xff]
  %v6370 = vld [vmem:[%s14 + $0x1000] sm:$0xff]
  %v6371 = vld [vmem:[%s14 + $0x1008] sm:$0xff]
  %v6372 = vld [vmem:[%s14 + $0x1010] sm:$0xff]
  %v6373 = vld [vmem:[%s14 + $0x1018] sm:$0xff]
  %v6374 = vld [vmem:[%s14 + $0x1020] sm:$0xff]
  %v6375 = vld [vmem:[%s14 + $0x1028] sm:$0xff]
  %v6376 = vld [vmem:[%s14 + $0x1030] sm:$0xff]
  %v6377 = vld [vmem:[%s14 + $0x1038] sm:$0xff]
  %v6378 = vld [vmem:[%s14 + $0x1040] sm:$0xff]
  %v6379 = vld [vmem:[%s14 + $0x1048] sm:$0xff]
  %v6380 = vld [vmem:[%s14 + $0x1050] sm:$0xff]
  %v6381 = vld [vmem:[%s14 + $0x1058] sm:$0xff]
  %v6382 = vld [vmem:[%s14 + $0x1060] sm:$0xff]
  %v6383 = vld [vmem:[%s14 + $0x1068] sm:$0xff]
  %v6384 = vld [vmem:[%s14 + $0x1070] sm:$0xff]
  %v6385 = vld [vmem:[%s14 + $0x1078] sm:$0xff]
  %v6386 = vld [vmem:[%s14 + $0x1080] sm:$0xff]
  %v6387 = vld [vmem:[%s14 + $0x1088] sm:$0xff]
  %v6388 = vld [vmem:[%s14 + $0x1090] sm:$0xff]
  %v6389 = vld [vmem:[%s14 + $0x1098] sm:$0xff]
  %v6390 = vld [vmem:[%s14 + $0x10a0] sm:$0xff]
  %v6391 = vld [vmem:[%s14 + $0x10a8] sm:$0xff]
  %v6392 = vld [vmem:[%s14 + $0x10b0] sm:$0xff]
  %v6393 = vld [vmem:[%s14 + $0x10b8] sm:$0xff]
  %v6394 = vld [vmem:[%s14 + $0x10c0] sm:$0xff]
  %v6395 = vld [vmem:[%s14 + $0x10c8] sm:$0xff]
  %v6396 = vld [vmem:[%s14 + $0x10d0] sm:$0xff]
  %v6397 = vld [vmem:[%s14 + $0x10d8] sm:$0xff]
  %v6398 = vld [vmem:[%s14 + $0x10e0] sm:$0xff]
  %v6399 = vld [vmem:[%s14 + $0x10e8] sm:$0xff]
  %v6400 = vld [vmem:[%s14 + $0x10f0] sm:$0xff]
  %v6401 = vld [vmem:[%s14 + $0x10f8] sm:$0xff]
  %v6402 = vld [vmem:[%s14 + $0x1100] sm:$0xff]
  %v6403 = vld [vmem:[%s14 + $0x1108] sm:$0xff]
  %v6404 = vld [vmem:[%s14 + $0x1110] sm:$0xff]
  %v6405 = vld [vmem:[%s14 + $0x1118] sm:$0xff]
  %v6406 = vld [vmem:[%s14 + $0x1120] sm:$0xff]
  %v6407 = vld [vmem:[%s14 + $0x1128] sm:$0xff]
  %v6408 = vld [vmem:[%s14 + $0x1130] sm:$0xff]
  %v6409 = vld [vmem:[%s14 + $0x1138] sm:$0xff]
  %v6410 = vld [vmem:[%s14 + $0x1140] sm:$0xff]
  %v6411 = vld [vmem:[%s14 + $0x1148] sm:$0xff]
  %v6412 = vld [vmem:[%s14 + $0x1150] sm:$0xff]
  %v6413 = vld [vmem:[%s14 + $0x1158] sm:$0xff]
  %v6414 = vld [vmem:[%s14 + $0x1160] sm:$0xff]
  %v6415 = vld [vmem:[%s14 + $0x1168] sm:$0xff]
  %v6416 = vld [vmem:[%s14 + $0x1170] sm:$0xff]
  %v6417 = vld [vmem:[%s14 + $0x1178] sm:$0xff]
  %v6418 = vld [vmem:[%s14 + $0x1180] sm:$0xff]
  %v6419 = vld [vmem:[%s14 + $0x1188] sm:$0xff]
  %v6420 = vld [vmem:[%s14 + $0x1190] sm:$0xff]
  %v6421 = vld [vmem:[%s14 + $0x1198] sm:$0xff]
  %v6422 = vld [vmem:[%s14 + $0x11a0] sm:$0xff]
  %v6423 = vld [vmem:[%s14 + $0x11a8] sm:$0xff]
  %v6424 = vld [vmem:[%s14 + $0x11b0] sm:$0xff]
  %v6425 = vld [vmem:[%s14 + $0x11b8] sm:$0xff]
  %v6426 = vld [vmem:[%s14 + $0x11c0] sm:$0xff]
  %v6427 = vld [vmem:[%s14 + $0x11c8] sm:$0xff]
  %v6428 = vld [vmem:[%s14 + $0x11d0] sm:$0xff]
  %v6429 = vld [vmem:[%s14 + $0x11d8] sm:$0xff]
  %v6430 = vld [vmem:[%s14 + $0x11e0] sm:$0xff]
  %v6431 = vld [vmem:[%s14 + $0x11e8] sm:$0xff]
  %v6432 = vld [vmem:[%s14 + $0x11f0] sm:$0xff]
  %v6433 = vld [vmem:[%s14 + $0x11f8] sm:$0xff]
  %v6434 = vld [vmem:[%s14 + $0x1200] sm:$0xff]
  %v6435 = vld [vmem:[%s14 + $0x1208] sm:$0xff]
  %v6436 = vld [vmem:[%s14 + $0x1210] sm:$0xff]
  %v6437 = vld [vmem:[%s14 + $0x1218] sm:$0xff]
  %v6438 = vld [vmem:[%s14 + $0x1220] sm:$0xff]
  %v6439 = vld [vmem:[%s14 + $0x1228] sm:$0xff]
  %v6440 = vld [vmem:[%s14 + $0x1230] sm:$0xff]
  %v6441 = vld [vmem:[%s14 + $0x1238] sm:$0xff]
  %v6442 = vld [vmem:[%s14 + $0x1240] sm:$0xff]
  %v6443 = vld [vmem:[%s14 + $0x1248] sm:$0xff]
  %v6444 = vld [vmem:[%s14 + $0x1250] sm:$0xff]
  %v6445 = vld [vmem:[%s14 + $0x1258] sm:$0xff]
  %v6446 = vld [vmem:[%s14 + $0x1260] sm:$0xff]
  %v6447 = vld [vmem:[%s14 + $0x1268] sm:$0xff]
  %v6448 = vld [vmem:[%s14 + $0x1270] sm:$0xff]
  %v6449 = vld [vmem:[%s14 + $0x1278] sm:$0xff]
  %v6450 = vld [vmem:[%s14 + $0x1280] sm:$0xff]
  %v6451 = vld [vmem:[%s14 + $0x1288] sm:$0xff]
  %v6452 = vld [vmem:[%s14 + $0x1290] sm:$0xff]
  %v6453 = vld [vmem:[%s14 + $0x1298] sm:$0xff]
  %v6454 = vld [vmem:[%s14 + $0x12a0] sm:$0xff]
  %v6455 = vld [vmem:[%s14 + $0x12a8] sm:$0xff]
  %v6456 = vld [vmem:[%s14 + $0x12b0] sm:$0xff]
  %v6457 = vld [vmem:[%s14 + $0x12b8] sm:$0xff]
  %v6458 = vld [vmem:[%s14 + $0x12c0] sm:$0xff]
  %v6459 = vld [vmem:[%s14 + $0x12c8] sm:$0xff]
  %v6460 = vld [vmem:[%s14 + $0x12d0] sm:$0xff]
  %v6461 = vld [vmem:[%s14 + $0x12d8] sm:$0xff]
  %v6462 = vld [vmem:[%s14 + $0x12e0] sm:$0xff]
  %v6463 = vld [vmem:[%s14 + $0x12e8] sm:$0xff]
  %v6464 = vld [vmem:[%s14 + $0x12f0] sm:$0xff]
  %v6465 = vld [vmem:[%s14 + $0x12f8] sm:$0xff]
  %v6466 = vld [vmem:[%s14 + $0x1300] sm:$0xff]
  %v6467 = vld [vmem:[%s14 + $0x1308] sm:$0xff]
  %v6468 = vld [vmem:[%s14 + $0x1310] sm:$0xff]
  %v6469 = vld [vmem:[%s14 + $0x1318] sm:$0xff]
  %v6470 = vld [vmem:[%s14 + $0x1320] sm:$0xff]
  %v6471 = vld [vmem:[%s14 + $0x1328] sm:$0xff]
  %v6472 = vld [vmem:[%s14 + $0x1330] sm:$0xff]
  %v6473 = vld [vmem:[%s14 + $0x1338] sm:$0xff]
  %v6474 = vld [vmem:[%s14 + $0x1340] sm:$0xff]
  %v6475 = vld [vmem:[%s14 + $0x1348] sm:$0xff]
  %v6476 = vld [vmem:[%s14 + $0x1350] sm:$0xff]
  %v6477 = vld [vmem:[%s14 + $0x1358] sm:$0xff]
  %v6478 = vld [vmem:[%s14 + $0x1360] sm:$0xff]
  %v6479 = vld [vmem:[%s14 + $0x1368] sm:$0xff]
  %v6480 = vld [vmem:[%s14 + $0x1370] sm:$0xff]
  %v6481 = vld [vmem:[%s14 + $0x1378] sm:$0xff]
  %v6482 = vld [vmem:[%s14 + $0x1380] sm:$0xff]
  %v6483 = vld [vmem:[%s14 + $0x1388] sm:$0xff]
  %v6484 = vld [vmem:[%s14 + $0x1390] sm:$0xff]
  %v6485 = vld [vmem:[%s14 + $0x1398] sm:$0xff]
  %v6486 = vld [vmem:[%s14 + $0x13a0] sm:$0xff]
  %v6487 = vld [vmem:[%s14 + $0x13a8] sm:$0xff]
  %v6488 = vld [vmem:[%s14 + $0x13b0] sm:$0xff]
  %v6489 = vld [vmem:[%s14 + $0x13b8] sm:$0xff]
  %v6490 = vld [vmem:[%s14 + $0x13c0] sm:$0xff]
  %v6491 = vld [vmem:[%s14 + $0x13c8] sm:$0xff]
  %v6492 = vld [vmem:[%s14 + $0x13d0] sm:$0xff]
  %v6493 = vld [vmem:[%s14 + $0x13d8] sm:$0xff]
  %v6494 = vld [vmem:[%s14 + $0x13e0] sm:$0xff]
  %v6495 = vld [vmem:[%s14 + $0x13e8] sm:$0xff]
  %v6496 = vld [vmem:[%s14 + $0x13f0] sm:$0xff]
  %v6497 = vld [vmem:[%s14 + $0x13f8] sm:$0xff]
  %v6498 = vld [vmem:[%s14 + $0x1400] sm:$0xff]
  %v6499 = vld [vmem:[%s14 + $0x1408] sm:$0xff]
  %v6500 = vld [vmem:[%s14 + $0x1410] sm:$0xff]
  %v6501 = vld [vmem:[%s14 + $0x1418] sm:$0xff]
  %v6502 = vld [vmem:[%s14 + $0x1420] sm:$0xff]
  %v6503 = vld [vmem:[%s14 + $0x1428] sm:$0xff]
  %v6504 = vld [vmem:[%s14 + $0x1430] sm:$0xff]
  %v6505 = vld [vmem:[%s14 + $0x1438] sm:$0xff]
  %v6506 = vld [vmem:[%s14 + $0x1440] sm:$0xff]
  %v6507 = vld [vmem:[%s14 + $0x1448] sm:$0xff]
  %v6508 = vld [vmem:[%s14 + $0x1450] sm:$0xff]
  %v6509 = vld [vmem:[%s14 + $0x1458] sm:$0xff]
  %v6510 = vld [vmem:[%s14 + $0x1460] sm:$0xff]
  %v6511 = vld [vmem:[%s14 + $0x1468] sm:$0xff]
  %v6512 = vld [vmem:[%s14 + $0x1470] sm:$0xff]
  %v6513 = vld [vmem:[%s14 + $0x1478] sm:$0xff]
  %v6514 = vld [vmem:[%s14 + $0x1480] sm:$0xff]
  %v6515 = vld [vmem:[%s14 + $0x1488] sm:$0xff]
  %v6516 = vld [vmem:[%s14 + $0x1490] sm:$0xff]
  %v6517 = vld [vmem:[%s14 + $0x1498] sm:$0xff]
  %v6518 = vld [vmem:[%s14 + $0x14a0] sm:$0xff]
  %v6519 = vld [vmem:[%s14 + $0x14a8] sm:$0xff]
  %v6520 = vld [vmem:[%s14 + $0x14b0] sm:$0xff]
  %v6521 = vld [vmem:[%s14 + $0x14b8] sm:$0xff]
  %v6522 = vld [vmem:[%s14 + $0x14c0] sm:$0xff]
  %v6523 = vld [vmem:[%s14 + $0x14c8] sm:$0xff]
  %v6524 = vld [vmem:[%s14 + $0x14d0] sm:$0xff]
  %v6525 = vld [vmem:[%s14 + $0x14d8] sm:$0xff]
  %v6526 = vld [vmem:[%s14 + $0x14e0] sm:$0xff]
  %v6527 = vld [vmem:[%s14 + $0x14e8] sm:$0xff]
  %v6528 = vld [vmem:[%s14 + $0x14f0] sm:$0xff]
  %v6529 = vld [vmem:[%s14 + $0x14f8] sm:$0xff]
  %v6530 = vld [vmem:[%s14 + $0x1500] sm:$0xff]
  %v6531 = vld [vmem:[%s14 + $0x1508] sm:$0xff]
  %v6532 = vld [vmem:[%s14 + $0x1510] sm:$0xff]
  %v6533 = vld [vmem:[%s14 + $0x1518] sm:$0xff]
  %v6534 = vld [vmem:[%s14 + $0x1520] sm:$0xff]
  %v6535 = vld [vmem:[%s14 + $0x1528] sm:$0xff]
  %v6536 = vld [vmem:[%s14 + $0x1530] sm:$0xff]
  %v6537 = vld [vmem:[%s14 + $0x1538] sm:$0xff]
  %v6538 = vld [vmem:[%s14 + $0x1540] sm:$0xff]
  %v6539 = vld [vmem:[%s14 + $0x1548] sm:$0xff]
  %v6540 = vld [vmem:[%s14 + $0x1550] sm:$0xff]
  %v6541 = vld [vmem:[%s14 + $0x1558] sm:$0xff]
  %v6542 = vld [vmem:[%s14 + $0x1560] sm:$0xff]
  %v6543 = vld [vmem:[%s14 + $0x1568] sm:$0xff]
  %v6544 = vld [vmem:[%s14 + $0x1570] sm:$0xff]
  %v6545 = vld [vmem:[%s14 + $0x1578] sm:$0xff]
  %v6546 = vld [vmem:[%s14 + $0x1580] sm:$0xff]
  %v6547 = vld [vmem:[%s14 + $0x1588] sm:$0xff]
  %v6548 = vld [vmem:[%s14 + $0x1590] sm:$0xff]
  %v6549 = vld [vmem:[%s14 + $0x1598] sm:$0xff]
  %v6550 = vld [vmem:[%s14 + $0x15a0] sm:$0xff]
  %v6551 = vld [vmem:[%s14 + $0x15a8] sm:$0xff]
  %v6552 = vld [vmem:[%s14 + $0x15b0] sm:$0xff]
  %v6553 = vld [vmem:[%s14 + $0x15b8] sm:$0xff]
  %v6554 = vld [vmem:[%s14 + $0x15c0] sm:$0xff]
  %v6555 = vld [vmem:[%s14 + $0x15c8] sm:$0xff]
  %v6556 = vld [vmem:[%s14 + $0x15d0] sm:$0xff]
  %v6557 = vld [vmem:[%s14 + $0x15d8] sm:$0xff]
  %v6558 = vld [vmem:[%s14 + $0x15e0] sm:$0xff]
  %v6559 = vld [vmem:[%s14 + $0x15e8] sm:$0xff]
  %v6560 = vld [vmem:[%s14 + $0x15f0] sm:$0xff]
  %v6561 = vld [vmem:[%s14 + $0x15f8] sm:$0xff]
  %v6562 = vld [vmem:[%s14 + $0x1600] sm:$0xff]
  %v6563 = vld [vmem:[%s14 + $0x1608] sm:$0xff]
  %v6564 = vld [vmem:[%s14 + $0x1610] sm:$0xff]
  %v6565 = vld [vmem:[%s14 + $0x1618] sm:$0xff]
  %v6566 = vld [vmem:[%s14 + $0x1620] sm:$0xff]
  %v6567 = vld [vmem:[%s14 + $0x1628] sm:$0xff]
  %v6568 = vld [vmem:[%s14 + $0x1630] sm:$0xff]
  %v6569 = vld [vmem:[%s14 + $0x1638] sm:$0xff]
  %v6570 = vld [vmem:[%s14 + $0x1640] sm:$0xff]
  %v6571 = vld [vmem:[%s14 + $0x1648] sm:$0xff]
  %v6572 = vld [vmem:[%s14 + $0x1650] sm:$0xff]
  %v6573 = vld [vmem:[%s14 + $0x1658] sm:$0xff]
  %v6574 = vld [vmem:[%s14 + $0x1660] sm:$0xff]
  %v6575 = vld [vmem:[%s14 + $0x1668] sm:$0xff]
  %v6576 = vld [vmem:[%s14 + $0x1670] sm:$0xff]
  %v6577 = vld [vmem:[%s14 + $0x1678] sm:$0xff]
  %v6578 = vld [vmem:[%s14 + $0x1680] sm:$0xff]
  %v6579 = vld [vmem:[%s14 + $0x1688] sm:$0xff]
  %v6580 = vld [vmem:[%s14 + $0x1690] sm:$0xff]
  %v6581 = vld [vmem:[%s14 + $0x1698] sm:$0xff]
  %v6582 = vld [vmem:[%s14 + $0x16a0] sm:$0xff]
  %v6583 = vld [vmem:[%s14 + $0x16a8] sm:$0xff]
  %v6584 = vld [vmem:[%s14 + $0x16b0] sm:$0xff]
  %v6585 = vld [vmem:[%s14 + $0x16b8] sm:$0xff]
  %v6586 = vld [vmem:[%s14 + $0x16c0] sm:$0xff]
  %v6587 = vld [vmem:[%s14 + $0x16c8] sm:$0xff]
  %v6588 = vld [vmem:[%s14 + $0x16d0] sm:$0xff]
  %v6589 = vld [vmem:[%s14 + $0x16d8] sm:$0xff]
  %v6590 = vld [vmem:[%s14 + $0x16e0] sm:$0xff]
  %v6591 = vld [vmem:[%s14 + $0x16e8] sm:$0xff]
  %v6592 = vld [vmem:[%s14 + $0x16f0] sm:$0xff]
  %v6593 = vld [vmem:[%s14 + $0x16f8] sm:$0xff]
  %v6594 = vld [vmem:[%s14 + $0x1700] sm:$0xff]
  %v6595 = vld [vmem:[%s14 + $0x1708] sm:$0xff]
  %v6596 = vld [vmem:[%s14 + $0x1710] sm:$0xff]
  %v6597 = vld [vmem:[%s14 + $0x1718] sm:$0xff]
  %v6598 = vld [vmem:[%s14 + $0x1720] sm:$0xff]
  %v6599 = vld [vmem:[%s14 + $0x1728] sm:$0xff]
  %v6600 = vld [vmem:[%s14 + $0x1730] sm:$0xff]
  %v6601 = vld [vmem:[%s14 + $0x1738] sm:$0xff]
  %v6602 = vld [vmem:[%s14 + $0x1740] sm:$0xff]
  %v6603 = vld [vmem:[%s14 + $0x1748] sm:$0xff]
  %v6604 = vld [vmem:[%s14 + $0x1750] sm:$0xff]
  %v6605 = vld [vmem:[%s14 + $0x1758] sm:$0xff]
  %v6606 = vld [vmem:[%s14 + $0x1760] sm:$0xff]
  %v6607 = vld [vmem:[%s14 + $0x1768] sm:$0xff]
  %v6608 = vld [vmem:[%s14 + $0x1770] sm:$0xff]
  %v6609 = vld [vmem:[%s14 + $0x1778] sm:$0xff]
  %v6610 = vld [vmem:[%s14 + $0x1780] sm:$0xff]
  %v6611 = vld [vmem:[%s14 + $0x1788] sm:$0xff]
  %v6612 = vld [vmem:[%s14 + $0x1790] sm:$0xff]
  %v6613 = vld [vmem:[%s14 + $0x1798] sm:$0xff]
  %v6614 = vld [vmem:[%s14 + $0x17a0] sm:$0xff]
  %v6615 = vld [vmem:[%s14 + $0x17a8] sm:$0xff]
  %v6616 = vld [vmem:[%s14 + $0x17b0] sm:$0xff]
  %v6617 = vld [vmem:[%s14 + $0x17b8] sm:$0xff]
  %v6618 = vld [vmem:[%s14 + $0x17c0] sm:$0xff]
  %v6619 = vld [vmem:[%s14 + $0x17c8] sm:$0xff]
  %v6620 = vld [vmem:[%s14 + $0x17d0] sm:$0xff]
  %v6621 = vld [vmem:[%s14 + $0x17d8] sm:$0xff]
  %v6622 = vld [vmem:[%s14 + $0x17e0] sm:$0xff]
  %v6623 = vld [vmem:[%s14 + $0x17e8] sm:$0xff]
  %v6624 = vld [vmem:[%s14 + $0x17f0] sm:$0xff]
  %v6625 = vld [vmem:[%s14 + $0x17f8] sm:$0xff]
  %v6626 = vld [vmem:[%s14 + $0x1800] sm:$0xff]
  %v6627 = vld [vmem:[%s14 + $0x1808] sm:$0xff]
  %v6628 = vld [vmem:[%s14 + $0x1810] sm:$0xff]
  %v6629 = vld [vmem:[%s14 + $0x1818] sm:$0xff]
  %v6630 = vld [vmem:[%s14 + $0x1820] sm:$0xff]
  %v6631 = vld [vmem:[%s14 + $0x1828] sm:$0xff]
  %v6632 = vld [vmem:[%s14 + $0x1830] sm:$0xff]
  %v6633 = vld [vmem:[%s14 + $0x1838] sm:$0xff]
  %v6634 = vld [vmem:[%s14 + $0x1840] sm:$0xff]
  %v6635 = vld [vmem:[%s14 + $0x1848] sm:$0xff]
  %v6636 = vld [vmem:[%s14 + $0x1850] sm:$0xff]
  %v6637 = vld [vmem:[%s14 + $0x1858] sm:$0xff]
  %v6638 = vld [vmem:[%s14 + $0x1860] sm:$0xff]
  %v6639 = vld [vmem:[%s14 + $0x1868] sm:$0xff]
  %v6640 = vld [vmem:[%s14 + $0x1870] sm:$0xff]
  %v6641 = vld [vmem:[%s14 + $0x1878] sm:$0xff]
  %v6642 = vld [vmem:[%s14 + $0x1880] sm:$0xff]
  %v6643 = vld [vmem:[%s14 + $0x1888] sm:$0xff]
  %v6644 = vld [vmem:[%s14 + $0x1890] sm:$0xff]
  %v6645 = vld [vmem:[%s14 + $0x1898] sm:$0xff]
  %v6646 = vld [vmem:[%s14 + $0x18a0] sm:$0xff]
  %v6647 = vld [vmem:[%s14 + $0x18a8] sm:$0xff]
  %v6648 = vld [vmem:[%s14 + $0x18b0] sm:$0xff]
  %v6649 = vld [vmem:[%s14 + $0x18b8] sm:$0xff]
  %v6650 = vld [vmem:[%s14 + $0x18c0] sm:$0xff]
  %v6651 = vld [vmem:[%s14 + $0x18c8] sm:$0xff]
  %v6652 = vld [vmem:[%s14 + $0x18d0] sm:$0xff]
  %v6653 = vld [vmem:[%s14 + $0x18d8] sm:$0xff]
  %v6654 = vld [vmem:[%s14 + $0x18e0] sm:$0xff]
  %v6655 = vld [vmem:[%s14 + $0x18e8] sm:$0xff]
  %v6656 = vld [vmem:[%s14 + $0x18f0] sm:$0xff]
  %v6657 = vld [vmem:[%s14 + $0x18f8] sm:$0xff]
  %v6658 = vld [vmem:[%s14 + $0x1900] sm:$0xff]
  %v6659 = vld [vmem:[%s14 + $0x1908] sm:$0xff]
  %v6660 = vld [vmem:[%s14 + $0x1910] sm:$0xff]
  %v6661 = vld [vmem:[%s14 + $0x1918] sm:$0xff]
  %v6662 = vld [vmem:[%s14 + $0x1920] sm:$0xff]
  %v6663 = vld [vmem:[%s14 + $0x1928] sm:$0xff]
  %v6664 = vld [vmem:[%s14 + $0x1930] sm:$0xff]
  %v6665 = vld [vmem:[%s14 + $0x1938] sm:$0xff]
  %v6666 = vld [vmem:[%s14 + $0x1940] sm:$0xff]
  %v6667 = vld [vmem:[%s14 + $0x1948] sm:$0xff]
  %v6668 = vld [vmem:[%s14 + $0x1950] sm:$0xff]
  %v6669 = vld [vmem:[%s14 + $0x1958] sm:$0xff]
  %v6670 = vld [vmem:[%s14 + $0x1960] sm:$0xff]
  %v6671 = vld [vmem:[%s14 + $0x1968] sm:$0xff]
  %v6672 = vld [vmem:[%s14 + $0x1970] sm:$0xff]
  %v6673 = vld [vmem:[%s14 + $0x1978] sm:$0xff]
  %v6674 = vld [vmem:[%s14 + $0x1980] sm:$0xff]
  %v6675 = vld [vmem:[%s14 + $0x1988] sm:$0xff]
  %v6676 = vld [vmem:[%s14 + $0x1990] sm:$0xff]
  %v6677 = vld [vmem:[%s14 + $0x1998] sm:$0xff]
  %v6678 = vld [vmem:[%s14 + $0x19a0] sm:$0xff]
  %v6679 = vld [vmem:[%s14 + $0x19a8] sm:$0xff]
  %v6680 = vld [vmem:[%s14 + $0x19b0] sm:$0xff]
  %v6681 = vld [vmem:[%s14 + $0x19b8] sm:$0xff]
  %v6682 = vld [vmem:[%s14 + $0x19c0] sm:$0xff]
  %v6683 = vld [vmem:[%s14 + $0x19c8] sm:$0xff]
  %v6684 = vld [vmem:[%s14 + $0x19d0] sm:$0xff]
  %v6685 = vld [vmem:[%s14 + $0x19d8] sm:$0xff]
  %v6686 = vld [vmem:[%s14 + $0x19e0] sm:$0xff]
  %v6687 = vld [vmem:[%s14 + $0x19e8] sm:$0xff]
  %v6688 = vld [vmem:[%s14 + $0x19f0] sm:$0xff]
  %v6689 = vld [vmem:[%s14 + $0x19f8] sm:$0xff]
  %v6690 = vld [vmem:[%s14 + $0x1a00] sm:$0xff]
  %v6691 = vld [vmem:[%s14 + $0x1a08] sm:$0xff]
  %v6692 = vld [vmem:[%s14 + $0x1a10] sm:$0xff]
  %v6693 = vld [vmem:[%s14 + $0x1a18] sm:$0xff]
  %v6694 = vld [vmem:[%s14 + $0x1a20] sm:$0xff]
  %v6695 = vld [vmem:[%s14 + $0x1a28] sm:$0xff]
  %v6696 = vld [vmem:[%s14 + $0x1a30] sm:$0xff]
  %v6697 = vld [vmem:[%s14 + $0x1a38] sm:$0xff]
  %v6698 = vld [vmem:[%s14 + $0x1a40] sm:$0xff]
  %v6699 = vld [vmem:[%s14 + $0x1a48] sm:$0xff]
  %v6700 = vld [vmem:[%s14 + $0x1a50] sm:$0xff]
  %v6701 = vld [vmem:[%s14 + $0x1a58] sm:$0xff]
  %v6702 = vld [vmem:[%s14 + $0x1a60] sm:$0xff]
  %v6703 = vld [vmem:[%s14 + $0x1a68] sm:$0xff]
  %v6704 = vld [vmem:[%s14 + $0x1a70] sm:$0xff]
  %v6705 = vld [vmem:[%s14 + $0x1a78] sm:$0xff]
  %v6706 = vld [vmem:[%s14 + $0x1a80] sm:$0xff]
  %v6707 = vld [vmem:[%s14 + $0x1a88] sm:$0xff]
  %v6708 = vld [vmem:[%s14 + $0x1a90] sm:$0xff]
  %v6709 = vld [vmem:[%s14 + $0x1a98] sm:$0xff]
  %v6710 = vld [vmem:[%s14 + $0x1aa0] sm:$0xff]
  %v6711 = vld [vmem:[%s14 + $0x1aa8] sm:$0xff]
  %v6712 = vld [vmem:[%s14 + $0x1ab0] sm:$0xff]
  %v6713 = vld [vmem:[%s14 + $0x1ab8] sm:$0xff]
  %v6714 = vld [vmem:[%s14 + $0x1ac0] sm:$0xff]
  %v6715 = vld [vmem:[%s14 + $0x1ac8] sm:$0xff]
  %v6716 = vld [vmem:[%s14 + $0x1ad0] sm:$0xff]
  %v6717 = vld [vmem:[%s14 + $0x1ad8] sm:$0xff]
  %v6718 = vld [vmem:[%s14 + $0x1ae0] sm:$0xff]
  %v6719 = vld [vmem:[%s14 + $0x1ae8] sm:$0xff]
  %v6720 = vld [vmem:[%s14 + $0x1af0] sm:$0xff]
  %v6721 = vld [vmem:[%s14 + $0x1af8] sm:$0xff]
  %v6722 = vld [vmem:[%s14 + $0x1b00] sm:$0xff]
  %v6723 = vld [vmem:[%s14 + $0x1b08] sm:$0xff]
  %v6724 = vld [vmem:[%s14 + $0x1b10] sm:$0xff]
  %v6725 = vld [vmem:[%s14 + $0x1b18] sm:$0xff]
  %v6726 = vld [vmem:[%s14 + $0x1b20] sm:$0xff]
  %v6727 = vld [vmem:[%s14 + $0x1b28] sm:$0xff]
  %v6728 = vld [vmem:[%s14 + $0x1b30] sm:$0xff]
  %v6729 = vld [vmem:[%s14 + $0x1b38] sm:$0xff]
  %v6730 = vld [vmem:[%s14 + $0x1b40] sm:$0xff]
  %v6731 = vld [vmem:[%s14 + $0x1b48] sm:$0xff]
  %v6732 = vld [vmem:[%s14 + $0x1b50] sm:$0xff]
  %v6733 = vld [vmem:[%s14 + $0x1b58] sm:$0xff]
  %v6734 = vld [vmem:[%s14 + $0x1b60] sm:$0xff]
  %v6735 = vld [vmem:[%s14 + $0x1b68] sm:$0xff]
  %v6736 = vld [vmem:[%s14 + $0x1b70] sm:$0xff]
  %v6737 = vld [vmem:[%s14 + $0x1b78] sm:$0xff]
  %v6738 = vld [vmem:[%s14 + $0x1b80] sm:$0xff]
  %v6739 = vld [vmem:[%s14 + $0x1b88] sm:$0xff]
  %v6740 = vld [vmem:[%s14 + $0x1b90] sm:$0xff]
  %v6741 = vld [vmem:[%s14 + $0x1b98] sm:$0xff]
  %v6742 = vld [vmem:[%s14 + $0x1ba0] sm:$0xff]
  %v6743 = vld [vmem:[%s14 + $0x1ba8] sm:$0xff]
  %v6744 = vld [vmem:[%s14 + $0x1bb0] sm:$0xff]
  %v6745 = vld [vmem:[%s14 + $0x1bb8] sm:$0xff]
  %v6746 = vld [vmem:[%s14 + $0x1bc0] sm:$0xff]
  %v6747 = vld [vmem:[%s14 + $0x1bc8] sm:$0xff]
  %v6748 = vld [vmem:[%s14 + $0x1bd0] sm:$0xff]
  %v6749 = vld [vmem:[%s14 + $0x1bd8] sm:$0xff]
  %v6750 = vld [vmem:[%s14 + $0x1be0] sm:$0xff]
  %v6751 = vld [vmem:[%s14 + $0x1be8] sm:$0xff]
  %v6752 = vld [vmem:[%s14 + $0x1bf0] sm:$0xff]
  %v6753 = vld [vmem:[%s14 + $0x1bf8] sm:$0xff]
  %v6754 = vld [vmem:[%s14 + $0x1c00] sm:$0xff]
  %v6755 = vld [vmem:[%s14 + $0x1c08] sm:$0xff]
  %v6756 = vld [vmem:[%s14 + $0x1c10] sm:$0xff]
  %v6757 = vld [vmem:[%s14 + $0x1c18] sm:$0xff]
  %v6758 = vld [vmem:[%s14 + $0x1c20] sm:$0xff]
  %v6759 = vld [vmem:[%s14 + $0x1c28] sm:$0xff]
  %v6760 = vld [vmem:[%s14 + $0x1c30] sm:$0xff]
  %v6761 = vld [vmem:[%s14 + $0x1c38] sm:$0xff]
  %v6762 = vld [vmem:[%s14 + $0x1c40] sm:$0xff]
  %v6763 = vld [vmem:[%s14 + $0x1c48] sm:$0xff]
  %v6764 = vld [vmem:[%s14 + $0x1c50] sm:$0xff]
  %v6765 = vld [vmem:[%s14 + $0x1c58] sm:$0xff]
  %v6766 = vld [vmem:[%s14 + $0x1c60] sm:$0xff]
  %v6767 = vld [vmem:[%s14 + $0x1c68] sm:$0xff]
  %v6768 = vld [vmem:[%s14 + $0x1c70] sm:$0xff]
  %v6769 = vld [vmem:[%s14 + $0x1c78] sm:$0xff]
  %v6770 = vld [vmem:[%s14 + $0x1c80] sm:$0xff]
  %v6771 = vld [vmem:[%s14 + $0x1c88] sm:$0xff]
  %v6772 = vld [vmem:[%s14 + $0x1c90] sm:$0xff]
  %v6773 = vld [vmem:[%s14 + $0x1c98] sm:$0xff]
  %v6774 = vld [vmem:[%s14 + $0x1ca0] sm:$0xff]
  %v6775 = vld [vmem:[%s14 + $0x1ca8] sm:$0xff]
  %v6776 = vld [vmem:[%s14 + $0x1cb0] sm:$0xff]
  %v6777 = vld [vmem:[%s14 + $0x1cb8] sm:$0xff]
  %v6778 = vld [vmem:[%s14 + $0x1cc0] sm:$0xff]
  %v6779 = vld [vmem:[%s14 + $0x1cc8] sm:$0xff]
  %v6780 = vld [vmem:[%s14 + $0x1cd0] sm:$0xff]
  %v6781 = vld [vmem:[%s14 + $0x1cd8] sm:$0xff]
  %v6782 = vld [vmem:[%s14 + $0x1ce0] sm:$0xff]
  %v6783 = vld [vmem:[%s14 + $0x1ce8] sm:$0xff]
  %v6784 = vld [vmem:[%s14 + $0x1cf0] sm:$0xff]
  %v6785 = vld [vmem:[%s14 + $0x1cf8] sm:$0xff]
  %v6786 = vld [vmem:[%s14 + $0x1d00] sm:$0xff]
  %v6787 = vld [vmem:[%s14 + $0x1d08] sm:$0xff]
  %v6788 = vld [vmem:[%s14 + $0x1d10] sm:$0xff]
  %v6789 = vld [vmem:[%s14 + $0x1d18] sm:$0xff]
  %v6790 = vld [vmem:[%s14 + $0x1d20] sm:$0xff]
  %v6791 = vld [vmem:[%s14 + $0x1d28] sm:$0xff]
  %v6792 = vld [vmem:[%s14 + $0x1d30] sm:$0xff]
  %v6793 = vld [vmem:[%s14 + $0x1d38] sm:$0xff]
  %v6794 = vld [vmem:[%s14 + $0x1d40] sm:$0xff]
  %v6795 = vld [vmem:[%s14 + $0x1d48] sm:$0xff]
  %v6796 = vld [vmem:[%s14 + $0x1d50] sm:$0xff]
  %v6797 = vld [vmem:[%s14 + $0x1d58] sm:$0xff]
  %v6798 = vld [vmem:[%s14 + $0x1d60] sm:$0xff]
  %v6799 = vld [vmem:[%s14 + $0x1d68] sm:$0xff]
  %v6800 = vld [vmem:[%s14 + $0x1d70] sm:$0xff]
  %v6801 = vld [vmem:[%s14 + $0x1d78] sm:$0xff]
  %v6802 = vld [vmem:[%s14 + $0x1d80] sm:$0xff]
  %v6803 = vld [vmem:[%s14 + $0x1d88] sm:$0xff]
  %v6804 = vld [vmem:[%s14 + $0x1d90] sm:$0xff]
  %v6805 = vld [vmem:[%s14 + $0x1d98] sm:$0xff]
  %v6806 = vld [vmem:[%s14 + $0x1da0] sm:$0xff]
  %v6807 = vld [vmem:[%s14 + $0x1da8] sm:$0xff]
  %v6808 = vld [vmem:[%s14 + $0x1db0] sm:$0xff]
  %v6809 = vld [vmem:[%s14 + $0x1db8] sm:$0xff]
  %v6810 = vld [vmem:[%s14 + $0x1dc0] sm:$0xff]
  %v6811 = vld [vmem:[%s14 + $0x1dc8] sm:$0xff]
  %v6812 = vld [vmem:[%s14 + $0x1dd0] sm:$0xff]
  %v6813 = vld [vmem:[%s14 + $0x1dd8] sm:$0xff]
  %v6814 = vld [vmem:[%s14 + $0x1de0] sm:$0xff]
  %v6815 = vld [vmem:[%s14 + $0x1de8] sm:$0xff]
  %v6816 = vld [vmem:[%s14 + $0x1df0] sm:$0xff]
  %v6817 = vld [vmem:[%s14 + $0x1df8] sm:$0xff]
  %v6818 = vld [vmem:[%s14 + $0x1e00] sm:$0xff]
  %v6819 = vld [vmem:[%s14 + $0x1e08] sm:$0xff]
  %v6820 = vld [vmem:[%s14 + $0x1e10] sm:$0xff]
  %v6821 = vld [vmem:[%s14 + $0x1e18] sm:$0xff]
  %v6822 = vld [vmem:[%s14 + $0x1e20] sm:$0xff]
  %v6823 = vld [vmem:[%s14 + $0x1e28] sm:$0xff]
  %v6824 = vld [vmem:[%s14 + $0x1e30] sm:$0xff]
  %v6825 = vld [vmem:[%s14 + $0x1e38] sm:$0xff]
  %v6826 = vld [vmem:[%s14 + $0x1e40] sm:$0xff]
  %v6827 = vld [vmem:[%s14 + $0x1e48] sm:$0xff]
  %v6828 = vld [vmem:[%s14 + $0x1e50] sm:$0xff]
  %v6829 = vld [vmem:[%s14 + $0x1e58] sm:$0xff]
  %v6830 = vld [vmem:[%s14 + $0x1e60] sm:$0xff]
  %v6831 = vld [vmem:[%s14 + $0x1e68] sm:$0xff]
  %v6832 = vld [vmem:[%s14 + $0x1e70] sm:$0xff]
  %v6833 = vld [vmem:[%s14 + $0x1e78] sm:$0xff]
  %v6834 = vld [vmem:[%s14 + $0x1e80] sm:$0xff]
  %v6835 = vld [vmem:[%s14 + $0x1e88] sm:$0xff]
  %v6836 = vld [vmem:[%s14 + $0x1e90] sm:$0xff]
  %v6837 = vld [vmem:[%s14 + $0x1e98] sm:$0xff]
  %v6838 = vld [vmem:[%s14 + $0x1ea0] sm:$0xff]
  %v6839 = vld [vmem:[%s14 + $0x1ea8] sm:$0xff]
  %v6840 = vld [vmem:[%s14 + $0x1eb0] sm:$0xff]
  %v6841 = vld [vmem:[%s14 + $0x1eb8] sm:$0xff]
  %v6842 = vld [vmem:[%s14 + $0x1ec0] sm:$0xff]
  %v6843 = vld [vmem:[%s14 + $0x1ec8] sm:$0xff]
  %v6844 = vld [vmem:[%s14 + $0x1ed0] sm:$0xff]
  %v6845 = vld [vmem:[%s14 + $0x1ed8] sm:$0xff]
  %v6846 = vld [vmem:[%s14 + $0x1ee0] sm:$0xff]
  %v6847 = vld [vmem:[%s14 + $0x1ee8] sm:$0xff]
  %v6848 = vld [vmem:[%s14 + $0x1ef0] sm:$0xff]
  %v6849 = vld [vmem:[%s14 + $0x1ef8] sm:$0xff]
  %v6850 = vld [vmem:[%s14 + $0x1f00] sm:$0xff]
  %v6851 = vld [vmem:[%s14 + $0x1f08] sm:$0xff]
  %v6852 = vld [vmem:[%s14 + $0x1f10] sm:$0xff]
  %v6853 = vld [vmem:[%s14 + $0x1f18] sm:$0xff]
  %v6854 = vld [vmem:[%s14 + $0x1f20] sm:$0xff]
  %v6855 = vld [vmem:[%s14 + $0x1f28] sm:$0xff]
  %v6856 = vld [vmem:[%s14 + $0x1f30] sm:$0xff]
  %v6857 = vld [vmem:[%s14 + $0x1f38] sm:$0xff]
  %v6858 = vld [vmem:[%s14 + $0x1f40] sm:$0xff]
  %v6859 = vld [vmem:[%s14 + $0x1f48] sm:$0xff]
  %v6860 = vld [vmem:[%s14 + $0x1f50] sm:$0xff]
  %v6861 = vld [vmem:[%s14 + $0x1f58] sm:$0xff]
  %v6862 = vld [vmem:[%s14 + $0x1f60] sm:$0xff]
  %v6863 = vld [vmem:[%s14 + $0x1f68] sm:$0xff]
  %v6864 = vld [vmem:[%s14 + $0x1f70] sm:$0xff]
  %v6865 = vld [vmem:[%s14 + $0x1f78] sm:$0xff]
  %v6866 = vld [vmem:[%s14 + $0x1f80] sm:$0xff]
  %v6867 = vld [vmem:[%s14 + $0x1f88] sm:$0xff]
  %v6868 = vld [vmem:[%s14 + $0x1f90] sm:$0xff]
  %v6869 = vld [vmem:[%s14 + $0x1f98] sm:$0xff]
  %v6870 = vld [vmem:[%s14 + $0x1fa0] sm:$0xff]
  %v6871 = vld [vmem:[%s14 + $0x1fa8] sm:$0xff]
  %v6872 = vld [vmem:[%s14 + $0x1fb0] sm:$0xff]
  %v6873 = vld [vmem:[%s14 + $0x1fb8] sm:$0xff]
  %v6874 = vld [vmem:[%s14 + $0x1fc0] sm:$0xff]
  %v6875 = vld [vmem:[%s14 + $0x1fc8] sm:$0xff]
  %v6876 = vld [vmem:[%s14 + $0x1fd0] sm:$0xff]
  %v6877 = vld [vmem:[%s14 + $0x1fd8] sm:$0xff]
  %v6878 = vld [vmem:[%s14 + $0x1fe0] sm:$0xff]
  %v6879 = vld [vmem:[%s14 + $0x1fe8] sm:$0xff]
  %v6880 = vld [vmem:[%s14 + $0x1ff0] sm:$0xff]
  %v6881 = vld [vmem:[%s14 + $0x1ff8] sm:$0xff]
  %v6882 = vld [vmem:[%s15] sm:$0xff]
  %v6884 = vlaneseq
  %v6885 = vshrl.u32 %v6884, 7
  %v6886 = vsub.s32 0, %v6885
  %v6887 = vrot.slane %v6882, %v6886
  %v6888 = vlaneseq
  %v6889 = vshrl.u32 %v6888, 7
  %v6890 = vsub.s32 1, %v6889
  %v6891 = vrot.slane %v6882, %v6890
  %v6892 = vlaneseq
  %v6893 = vshrl.u32 %v6892, 7
  %v6894 = vsub.s32 2, %v6893
  %v6895 = vrot.slane %v6882, %v6894
  %v6896 = vlaneseq
  %v6897 = vshrl.u32 %v6896, 7
  %v6898 = vsub.s32 3, %v6897
  %v6899 = vrot.slane %v6882, %v6898
  %v6900 = vlaneseq
  %v6901 = vshrl.u32 %v6900, 7
  %v6902 = vsub.s32 4, %v6901
  %v6903 = vrot.slane %v6882, %v6902
  %v6904 = vlaneseq
  %v6905 = vshrl.u32 %v6904, 7
  %v6906 = vsub.s32 5, %v6905
  %v6907 = vrot.slane %v6882, %v6906
  %v6908 = vlaneseq
  %v6909 = vshrl.u32 %v6908, 7
  %v6910 = vsub.s32 6, %v6909
  %v6911 = vrot.slane %v6882, %v6910
  %v6912 = vlaneseq
  %v6913 = vshrl.u32 %v6912, 7
  %v6914 = vsub.s32 7, %v6913
  %v6915 = vrot.slane %v6882, %v6914
  %6924 = vmatprep.subr.mxu0 %v5859
  %6925 = vmatpush1.msra.mxu0 %v5858
  %6926 = vmatprep.subr.mxu0 %v5867
  %6927 = vmatpush1.msra.mxu0 %v5866
  %6928 = vmatprep.subr.mxu0 %v5875
  %6929 = vmatpush1.msra.mxu0 %v5874
  %6930 = vmatprep.subr.mxu0 %v5883
  %6931 = vmatpush1.msra.mxu0 %v5882
  %6932 = vmatprep.subr.mxu0 %v5891
  %6933 = vmatpush1.msra.mxu0 %v5890
  %6934 = vmatprep.subr.mxu0 %v5899
  %6935 = vmatpush1.msra.mxu0 %v5898
  %6936 = vmatprep.subr.mxu0 %v5907
  %6937 = vmatpush1.msra.mxu0 %v5906
  %6938 = vmatprep.subr.mxu0 %v5915
  %6939 = vmatpush1.msra.mxu0 %v5914
  %6940 = vmatprep.subr.mxu0 %v5923
  %6941 = vmatpush1.msra.mxu0 %v5922
  %6942 = vmatprep.subr.mxu0 %v5931
  %6943 = vmatpush1.msra.mxu0 %v5930
  %6944 = vmatprep.subr.mxu0 %v5939
  %6945 = vmatpush1.msra.mxu0 %v5938
  %6946 = vmatprep.subr.mxu0 %v5947
  %6947 = vmatpush1.msra.mxu0 %v5946
  %6948 = vmatprep.subr.mxu0 %v5955
  %6949 = vmatpush1.msra.mxu0 %v5954
  %6950 = vmatprep.subr.mxu0 %v5963
  %6951 = vmatpush1.msra.mxu0 %v5962
  %6952 = vmatprep.subr.mxu0 %v5971
  %6953 = vmatpush1.msra.mxu0 %v5970
  %6954 = vmatprep.subr.mxu0 %v5979
  %6955 = vmatpush1.msra.mxu0 %v5978
  %6956 = vmatprep.subr.mxu0 %v5987
  %6957 = vmatpush1.msra.mxu0 %v5986
  %6958 = vmatprep.subr.mxu0 %v5995
  %6959 = vmatpush1.msra.mxu0 %v5994
  %6960 = vmatprep.subr.mxu0 %v6003
  %6961 = vmatpush1.msra.mxu0 %v6002
  %6962 = vmatprep.subr.mxu0 %v6011
  %6963 = vmatpush1.msra.mxu0 %v6010
  %6964 = vmatprep.subr.mxu0 %v6019
  %6965 = vmatpush1.msra.mxu0 %v6018
  %6966 = vmatprep.subr.mxu0 %v6027
  %6967 = vmatpush1.msra.mxu0 %v6026
  %6968 = vmatprep.subr.mxu0 %v6035
  %6969 = vmatpush1.msra.mxu0 %v6034
  %6970 = vmatprep.subr.mxu0 %v6043
  %6971 = vmatpush1.msra.mxu0 %v6042
  %6972 = vmatprep.subr.mxu0 %v6051
  %6973 = vmatpush1.msra.mxu0 %v6050
  %6974 = vmatprep.subr.mxu0 %v6059
  %6975 = vmatpush1.msra.mxu0 %v6058
  %6976 = vmatprep.subr.mxu0 %v6067
  %6977 = vmatpush1.msra.mxu0 %v6066
  %6978 = vmatprep.subr.mxu0 %v6075
  %6979 = vmatpush1.msra.mxu0 %v6074
  %6980 = vmatprep.subr.mxu0 %v6083
  %6981 = vmatpush1.msra.mxu0 %v6082
  %6982 = vmatprep.subr.mxu0 %v6091
  %6983 = vmatpush1.msra.mxu0 %v6090
  %6984 = vmatprep.subr.mxu0 %v6099
  %6985 = vmatpush1.msra.mxu0 %v6098
  %6986 = vmatprep.subr.mxu0 %v6107
  %6987 = vmatpush1.msra.mxu0 %v6106
  %6988 = vmatprep.mubr.f32.mxu0 %v5851
  %6989 = vmatmul.mubr.f32.gmra.mrb[0].mxu0 %v5850
  %v6990 = vpop.f32.mrb[0].mxu0
  %v6991 = vadd.f32 %v6887, %v6990
  %v6992 = vpop.f32.mrb[0].mxu0
  %v6993 = vadd.f32 %v6891, %v6992
  %6994 = vdwg.mxu0
  %6995 = vmatprep.subr.mxu0 %v6115
  %6996 = vmatpush1.msra.mxu0 %v6114
  %6997 = vmatprep.subr.mxu0 %v6123
  %6998 = vmatpush1.msra.mxu0 %v6122
  %6999 = vmatprep.subr.mxu0 %v6131
  %7000 = vmatpush1.msra.mxu0 %v6130
  %7001 = vmatprep.subr.mxu0 %v6139
  %7002 = vmatpush1.msra.mxu0 %v6138
  %7003 = vmatprep.subr.mxu0 %v6147
  %7004 = vmatpush1.msra.mxu0 %v6146
  %7005 = vmatprep.subr.mxu0 %v6155
  %7006 = vmatpush1.msra.mxu0 %v6154
  %7007 = vmatprep.subr.mxu0 %v6163
  %7008 = vmatpush1.msra.mxu0 %v6162
  %7009 = vmatprep.subr.mxu0 %v6171
  %7010 = vmatpush1.msra.mxu0 %v6170
  %7011 = vmatprep.subr.mxu0 %v6179
  %7012 = vmatpush1.msra.mxu0 %v6178
  %7013 = vmatprep.subr.mxu0 %v6187
  %7014 = vmatpush1.msra.mxu0 %v6186
  %7015 = vmatprep.subr.mxu0 %v6195
  %7016 = vmatpush1.msra.mxu0 %v6194
  %7017 = vmatprep.subr.mxu0 %v6203
  %7018 = vmatpush1.msra.mxu0 %v6202
  %7019 = vmatprep.subr.mxu0 %v6211
  %7020 = vmatpush1.msra.mxu0 %v6210
  %7021 = vmatprep.subr.mxu0 %v6219
  %7022 = vmatpush1.msra.mxu0 %v6218
  %7023 = vmatprep.subr.mxu0 %v6227
  %7024 = vmatpush1.msra.mxu0 %v6226
  %7025 = vmatprep.subr.mxu0 %v6235
  %7026 = vmatpush1.msra.mxu0 %v6234
  %7027 = vmatprep.subr.mxu0 %v6243
  %7028 = vmatpush1.msra.mxu0 %v6242
  %7029 = vmatprep.subr.mxu0 %v6251
  %7030 = vmatpush1.msra.mxu0 %v6250
  %7031 = vmatprep.subr.mxu0 %v6259
  %7032 = vmatpush1.msra.mxu0 %v6258
  %7033 = vmatprep.subr.mxu0 %v6267
  %7034 = vmatpush1.msra.mxu0 %v6266
  %7035 = vmatprep.subr.mxu0 %v6275
  %7036 = vmatpush1.msra.mxu0 %v6274
  %7037 = vmatprep.subr.mxu0 %v6283
  %7038 = vmatpush1.msra.mxu0 %v6282
  %7039 = vmatprep.subr.mxu0 %v6291
  %7040 = vmatpush1.msra.mxu0 %v6290
  %7041 = vmatprep.subr.mxu0 %v6299
  %7042 = vmatpush1.msra.mxu0 %v6298
  %7043 = vmatprep.subr.mxu0 %v6307
  %7044 = vmatpush1.msra.mxu0 %v6306
  %7045 = vmatprep.subr.mxu0 %v6315
  %7046 = vmatpush1.msra.mxu0 %v6314
  %7047 = vmatprep.subr.mxu0 %v6323
  %7048 = vmatpush1.msra.mxu0 %v6322
  %7049 = vmatprep.subr.mxu0 %v6331
  %7050 = vmatpush1.msra.mxu0 %v6330
  %7051 = vmatprep.subr.mxu0 %v6339
  %7052 = vmatpush1.msra.mxu0 %v6338
  %7053 = vmatprep.subr.mxu0 %v6347
  %7054 = vmatpush1.msra.mxu0 %v6346
  %7055 = vmatprep.subr.mxu0 %v6355
  %7056 = vmatpush1.msra.mxu0 %v6354
  %7057 = vmatprep.subr.mxu0 %v6363
  %7058 = vmatpush1.msra.mxu0 %v6362
  %7059 = vmatprep.mubr.f32.mxu0 %v5853
  %7060 = vmatmul.mubr.f32.gmra.mrb[0].mxu0 %v5852
  %v7061 = vpop.f32.mrb[0].mxu0
  %v7062 = vadd.f32 %v6991, %v7061
  %v7063 = vpop.f32.mrb[0].mxu0
  %v7064 = vadd.f32 %v6993, %v7063
  %7065 = vdwg.mxu0
  %7066 = vmatprep.subr.mxu0 %v6371
  %7067 = vmatpush1.msra.mxu0 %v6370
  %7068 = vmatprep.subr.mxu0 %v6379
  %7069 = vmatpush1.msra.mxu0 %v6378
  %7070 = vmatprep.subr.mxu0 %v6387
  %7071 = vmatpush1.msra.mxu0 %v6386
  %7072 = vmatprep.subr.mxu0 %v6395
  %7073 = vmatpush1.msra.mxu0 %v6394
  %7074 = vmatprep.subr.mxu0 %v6403
  %7075 = vmatpush1.msra.mxu0 %v6402
  %7076 = vmatprep.subr.mxu0 %v6411
  %7077 = vmatpush1.msra.mxu0 %v6410
  %7078 = vmatprep.subr.mxu0 %v6419
  %7079 = vmatpush1.msra.mxu0 %v6418
  %7080 = vmatprep.subr.mxu0 %v6427
  %7081 = vmatpush1.msra.mxu0 %v6426
  %7082 = vmatprep.subr.mxu0 %v6435
  %7083 = vmatpush1.msra.mxu0 %v6434
  %7084 = vmatprep.subr.mxu0 %v6443
  %7085 = vmatpush1.msra.mxu0 %v6442
  %7086 = vmatprep.subr.mxu0 %v6451
  %7087 = vmatpush1.msra.mxu0 %v6450
  %7088 = vmatprep.subr.mxu0 %v6459
  %7089 = vmatpush1.msra.mxu0 %v6458
  %7090 = vmatprep.subr.mxu0 %v6467
  %7091 = vmatpush1.msra.mxu0 %v6466
  %7092 = vmatprep.subr.mxu0 %v6475
  %7093 = vmatpush1.msra.mxu0 %v6474
  %7094 = vmatprep.subr.mxu0 %v6483
  %7095 = vmatpush1.msra.mxu0 %v6482
  %7096 = vmatprep.subr.mxu0 %v6491
  %7097 = vmatpush1.msra.mxu0 %v6490
  %7098 = vmatprep.subr.mxu0 %v6499
  %7099 = vmatpush1.msra.mxu0 %v6498
  %7100 = vmatprep.subr.mxu0 %v6507
  %7101 = vmatpush1.msra.mxu0 %v6506
  %7102 = vmatprep.subr.mxu0 %v6515
  %7103 = vmatpush1.msra.mxu0 %v6514
  %7104 = vmatprep.subr.mxu0 %v6523
  %7105 = vmatpush1.msra.mxu0 %v6522
  %7106 = vmatprep.subr.mxu0 %v6531
  %7107 = vmatpush1.msra.mxu0 %v6530
  %7108 = vmatprep.subr.mxu0 %v6539
  %7109 = vmatpush1.msra.mxu0 %v6538
  %7110 = vmatprep.subr.mxu0 %v6547
  %7111 = vmatpush1.msra.mxu0 %v6546
  %7112 = vmatprep.subr.mxu0 %v6555
  %7113 = vmatpush1.msra.mxu0 %v6554
  %7114 = vmatprep.subr.mxu0 %v6563
  %7115 = vmatpush1.msra.mxu0 %v6562
  %7116 = vmatprep.subr.mxu0 %v6571
  %7117 = vmatpush1.msra.mxu0 %v6570
  %7118 = vmatprep.subr.mxu0 %v6579
  %7119 = vmatpush1.msra.mxu0 %v6578
  %7120 = vmatprep.subr.mxu0 %v6587
  %7121 = vmatpush1.msra.mxu0 %v6586
  %7122 = vmatprep.subr.mxu0 %v6595
  %7123 = vmatpush1.msra.mxu0 %v6594
  %7124 = vmatprep.subr.mxu0 %v6603
  %7125 = vmatpush1.msra.mxu0 %v6602
  %7126 = vmatprep.subr.mxu0 %v6611
  %7127 = vmatpush1.msra.mxu0 %v6610
  %7128 = vmatprep.subr.mxu0 %v6619
  %7129 = vmatpush1.msra.mxu0 %v6618
  %7130 = vmatprep.mubr.f32.mxu0 %v5855
  %7131 = vmatmul.mubr.f32.gmra.mrb[0].mxu0 %v5854
  %v7132 = vpop.f32.mrb[0].mxu0
  %v7133 = vadd.f32 %v7062, %v7132
  %v7134 = vpop.f32.mrb[0].mxu0
  %v7135 = vadd.f32 %v7064, %v7134
  %7136 = vdwg.mxu0
  %7137 = vmatprep.subr.mxu0 %v6627
  %7138 = vmatpush1.msra.mxu0 %v6626
  %7139 = vmatprep.subr.mxu0 %v6635
  %7140 = vmatpush1.msra.mxu0 %v6634
  %7141 = vmatprep.subr.mxu0 %v6643
  %7142 = vmatpush1.msra.mxu0 %v6642
  %7143 = vmatprep.subr.mxu0 %v6651
  %7144 = vmatpush1.msra.mxu0 %v6650
  %7145 = vmatprep.subr.mxu0 %v6659
  %7146 = vmatpush1.msra.mxu0 %v6658
  %7147 = vmatprep.subr.mxu0 %v6667
  %7148 = vmatpush1.msra.mxu0 %v6666
  %7149 = vmatprep.subr.mxu0 %v6675
  %7150 = vmatpush1.msra.mxu0 %v6674
  %7151 = vmatprep.subr.mxu0 %v6683
  %7152 = vmatpush1.msra.mxu0 %v6682
  %7153 = vmatprep.subr.mxu0 %v6691
  %7154 = vmatpush1.msra.mxu0 %v6690
  %7155 = vmatprep.subr.mxu0 %v6699
  %7156 = vmatpush1.msra.mxu0 %v6698
  %7157 = vmatprep.subr.mxu0 %v6707
  %7158 = vmatpush1.msra.mxu0 %v6706
  %7159 = vmatprep.subr.mxu0 %v6715
  %7160 = vmatpush1.msra.mxu0 %v6714
  %7161 = vmatprep.subr.mxu0 %v6723
  %7162 = vmatpush1.msra.mxu0 %v6722
  %7163 = vmatprep.subr.mxu0 %v6731
  %7164 = vmatpush1.msra.mxu0 %v6730
  %7165 = vmatprep.subr.mxu0 %v6739
  %7166 = vmatpush1.msra.mxu0 %v6738
  %7167 = vmatprep.subr.mxu0 %v6747
  %7168 = vmatpush1.msra.mxu0 %v6746
  %7169 = vmatprep.subr.mxu0 %v6755
  %7170 = vmatpush1.msra.mxu0 %v6754
  %7171 = vmatprep.subr.mxu0 %v6763
  %7172 = vmatpush1.msra.mxu0 %v6762
  %7173 = vmatprep.subr.mxu0 %v6771
  %7174 = vmatpush1.msra.mxu0 %v6770
  %7175 = vmatprep.subr.mxu0 %v6779
  %7176 = vmatpush1.msra.mxu0 %v6778
  %7177 = vmatprep.subr.mxu0 %v6787
  %7178 = vmatpush1.msra.mxu0 %v6786
  %7179 = vmatprep.subr.mxu0 %v6795
  %7180 = vmatpush1.msra.mxu0 %v6794
  %7181 = vmatprep.subr.mxu0 %v6803
  %7182 = vmatpush1.msra.mxu0 %v6802
  %7183 = vmatprep.subr.mxu0 %v6811
  %7184 = vmatpush1.msra.mxu0 %v6810
  %7185 = vmatprep.subr.mxu0 %v6819
  %7186 = vmatpush1.msra.mxu0 %v6818
  %7187 = vmatprep.subr.mxu0 %v6827
  %7188 = vmatpush1.msra.mxu0 %v6826
  %7189 = vmatprep.subr.mxu0 %v6835
  %7190 = vmatpush1.msra.mxu0 %v6834
  %7191 = vmatprep.subr.mxu0 %v6843
  %7192 = vmatpush1.msra.mxu0 %v6842
  %7193 = vmatprep.subr.mxu0 %v6851
  %7194 = vmatpush1.msra.mxu0 %v6850
  %7195 = vmatprep.subr.mxu0 %v6859
  %7196 = vmatpush1.msra.mxu0 %v6858
  %7197 = vmatprep.subr.mxu0 %v6867
  %7198 = vmatpush1.msra.mxu0 %v6866
  %7199 = vmatprep.subr.mxu0 %v6875
  %7200 = vmatpush1.msra.mxu0 %v6874
  %7201 = vmatprep.mubr.f32.mxu0 %v5857
  %7202 = vmatmul.mubr.f32.gmra.mrb[0].mxu0 %v5856
  %v7203 = vpop.f32.mrb[0].mxu0
  %v7204 = vadd.f32 %v7133, %v7203
  %v7205 = vpop.f32.mrb[0].mxu0
  %v7206 = vadd.f32 %v7135, %v7205
  %7207 = vdwg.mxu0
  %7208 = vmatprep.subr.mxu0 %v5861
  %7209 = vmatpush1.msra.mxu0 %v5860
  %7210 = vmatprep.subr.mxu0 %v5869
  %7211 = vmatpush1.msra.mxu0 %v5868
  %7212 = vmatprep.subr.mxu0 %v5877
  %7213 = vmatpush1.msra.mxu0 %v5876
  %7214 = vmatprep.subr.mxu0 %v5885
  %7215 = vmatpush1.msra.mxu0 %v5884
  %7216 = vmatprep.subr.mxu0 %v5893
  %7217 = vmatpush1.msra.mxu0 %v5892
  %7218 = vmatprep.subr.mxu0 %v5901
  %7219 = vmatpush1.msra.mxu0 %v5900
  %7220 = vmatprep.subr.mxu0 %v5909
  %7221 = vmatpush1.msra.mxu0 %v5908
  %7222 = vmatprep.subr.mxu0 %v5917
  %7223 = vmatpush1.msra.mxu0 %v5916
  %7224 = vmatprep.subr.mxu0 %v5925
  %7225 = vmatpush1.msra.mxu0 %v5924
  %7226 = vmatprep.subr.mxu0 %v5933
  %7227 = vmatpush1.msra.mxu0 %v5932
  %7228 = vmatprep.subr.mxu0 %v5941
  %7229 = vmatpush1.msra.mxu0 %v5940
  %7230 = vmatprep.subr.mxu0 %v5949
  %7231 = vmatpush1.msra.mxu0 %v5948
  %7232 = vmatprep.subr.mxu0 %v5957
  %7233 = vmatpush1.msra.mxu0 %v5956
  %7234 = vmatprep.subr.mxu0 %v5965
  %7235 = vmatpush1.msra.mxu0 %v5964
  %7236 = vmatprep.subr.mxu0 %v5973
  %7237 = vmatpush1.msra.mxu0 %v5972
  %7238 = vmatprep.subr.mxu0 %v5981
  %7239 = vmatpush1.msra.mxu0 %v5980
  %7240 = vmatprep.subr.mxu0 %v5989
  %7241 = vmatpush1.msra.mxu0 %v5988
  %7242 = vmatprep.subr.mxu0 %v5997
  %7243 = vmatpush1.msra.mxu0 %v5996
  %7244 = vmatprep.subr.mxu0 %v6005
  %7245 = vmatpush1.msra.mxu0 %v6004
  %7246 = vmatprep.subr.mxu0 %v6013
  %7247 = vmatpush1.msra.mxu0 %v6012
  %7248 = vmatprep.subr.mxu0 %v6021
  %7249 = vmatpush1.msra.mxu0 %v6020
  %7250 = vmatprep.subr.mxu0 %v6029
  %7251 = vmatpush1.msra.mxu0 %v6028
  %7252 = vmatprep.subr.mxu0 %v6037
  %7253 = vmatpush1.msra.mxu0 %v6036
  %7254 = vmatprep.subr.mxu0 %v6045
  %7255 = vmatpush1.msra.mxu0 %v6044
  %7256 = vmatprep.subr.mxu0 %v6053
  %7257 = vmatpush1.msra.mxu0 %v6052
  %7258 = vmatprep.subr.mxu0 %v6061
  %7259 = vmatpush1.msra.mxu0 %v6060
  %7260 = vmatprep.subr.mxu0 %v6069
  %7261 = vmatpush1.msra.mxu0 %v6068
  %7262 = vmatprep.subr.mxu0 %v6077
  %7263 = vmatpush1.msra.mxu0 %v6076
  %7264 = vmatprep.subr.mxu0 %v6085
  %7265 = vmatpush1.msra.mxu0 %v6084
  %7266 = vmatprep.subr.mxu0 %v6093
  %7267 = vmatpush1.msra.mxu0 %v6092
  %7268 = vmatprep.subr.mxu0 %v6101
  %7269 = vmatpush1.msra.mxu0 %v6100
  %7270 = vmatprep.subr.mxu0 %v6109
  %7271 = vmatpush1.msra.mxu0 %v6108
  %7272 = vmatprep.mubr.f32.mxu0 %v5851
  %7273 = vmatmul.mubr.f32.gmra.mrb[0].mxu0 %v5850
  %v7274 = vpop.f32.mrb[0].mxu0
  %v7275 = vadd.f32 %v6895, %v7274
  %v7276 = vpop.f32.mrb[0].mxu0
  %v7277 = vadd.f32 %v6899, %v7276
  %7278 = vdwg.mxu0
  %7279 = vmatprep.subr.mxu0 %v6117
  %7280 = vmatpush1.msra.mxu0 %v6116
  %7281 = vmatprep.subr.mxu0 %v6125
  %7282 = vmatpush1.msra.mxu0 %v6124
  %7283 = vmatprep.subr.mxu0 %v6133
  %7284 = vmatpush1.msra.mxu0 %v6132
  %7285 = vmatprep.subr.mxu0 %v6141
  %7286 = vmatpush1.msra.mxu0 %v6140
  %7287 = vmatprep.subr.mxu0 %v6149
  %7288 = vmatpush1.msra.mxu0 %v6148
  %7289 = vmatprep.subr.mxu0 %v6157
  %7290 = vmatpush1.msra.mxu0 %v6156
  %7291 = vmatprep.subr.mxu0 %v6165
  %7292 = vmatpush1.msra.mxu0 %v6164
  %7293 = vmatprep.subr.mxu0 %v6173
  %7294 = vmatpush1.msra.mxu0 %v6172
  %7295 = vmatprep.subr.mxu0 %v6181
  %7296 = vmatpush1.msra.mxu0 %v6180
  %7297 = vmatprep.subr.mxu0 %v6189
  %7298 = vmatpush1.msra.mxu0 %v6188
  %7299 = vmatprep.subr.mxu0 %v6197
  %7300 = vmatpush1.msra.mxu0 %v6196
  %7301 = vmatprep.subr.mxu0 %v6205
  %7302 = vmatpush1.msra.mxu0 %v6204
  %7303 = vmatprep.subr.mxu0 %v6213
  %7304 = vmatpush1.msra.mxu0 %v6212
  %7305 = vmatprep.subr.mxu0 %v6221
  %7306 = vmatpush1.msra.mxu0 %v6220
  %7307 = vmatprep.subr.mxu0 %v6229
  %7308 = vmatpush1.msra.mxu0 %v6228
  %7309 = vmatprep.subr.mxu0 %v6237
  %7310 = vmatpush1.msra.mxu0 %v6236
  %7311 = vmatprep.subr.mxu0 %v6245
  %7312 = vmatpush1.msra.mxu0 %v6244
  %7313 = vmatprep.subr.mxu0 %v6253
  %7314 = vmatpush1.msra.mxu0 %v6252
  %7315 = vmatprep.subr.mxu0 %v6261
  %7316 = vmatpush1.msra.mxu0 %v6260
  %7317 = vmatprep.subr.mxu0 %v6269
  %7318 = vmatpush1.msra.mxu0 %v6268
  %7319 = vmatprep.subr.mxu0 %v6277
  %7320 = vmatpush1.msra.mxu0 %v6276
  %7321 = vmatprep.subr.mxu0 %v6285
  %7322 = vmatpush1.msra.mxu0 %v6284
  %7323 = vmatprep.subr.mxu0 %v6293
  %7324 = vmatpush1.msra.mxu0 %v6292
  %7325 = vmatprep.subr.mxu0 %v6301
  %7326 = vmatpush1.msra.mxu0 %v6300
  %7327 = vmatprep.subr.mxu0 %v6309
  %7328 = vmatpush1.msra.mxu0 %v6308
  %7329 = vmatprep.subr.mxu0 %v6317
  %7330 = vmatpush1.msra.mxu0 %v6316
  %7331 = vmatprep.subr.mxu0 %v6325
  %7332 = vmatpush1.msra.mxu0 %v6324
  %7333 = vmatprep.subr.mxu0 %v6333
  %7334 = vmatpush1.msra.mxu0 %v6332
  %7335 = vmatprep.subr.mxu0 %v6341
  %7336 = vmatpush1.msra.mxu0 %v6340
  %7337 = vmatprep.subr.mxu0 %v6349
  %7338 = vmatpush1.msra.mxu0 %v6348
  %7339 = vmatprep.subr.mxu0 %v6357
  %7340 = vmatpush1.msra.mxu0 %v6356
  %7341 = vmatprep.subr.mxu0 %v6365
  %7342 = vmatpush1.msra.mxu0 %v6364
  %7343 = vmatprep.mubr.f32.mxu0 %v5853
  %7344 = vmatmul.mubr.f32.gmra.mrb[0].mxu0 %v5852
  %v7345 = vpop.f32.mrb[0].mxu0
  %v7346 = vadd.f32 %v7275, %v7345
  %v7347 = vpop.f32.mrb[0].mxu0
  %v7348 = vadd.f32 %v7277, %v7347
  %7349 = vdwg.mxu0
  %7350 = vmatprep.subr.mxu0 %v6373
  %7351 = vmatpush1.msra.mxu0 %v6372
  %7352 = vmatprep.subr.mxu0 %v6381
  %7353 = vmatpush1.msra.mxu0 %v6380
  %7354 = vmatprep.subr.mxu0 %v6389
  %7355 = vmatpush1.msra.mxu0 %v6388
  %7356 = vmatprep.subr.mxu0 %v6397
  %7357 = vmatpush1.msra.mxu0 %v6396
  %7358 = vmatprep.subr.mxu0 %v6405
  %7359 = vmatpush1.msra.mxu0 %v6404
  %7360 = vmatprep.subr.mxu0 %v6413
  %7361 = vmatpush1.msra.mxu0 %v6412
  %7362 = vmatprep.subr.mxu0 %v6421
  %7363 = vmatpush1.msra.mxu0 %v6420
  %7364 = vmatprep.subr.mxu0 %v6429
  %7365 = vmatpush1.msra.mxu0 %v6428
  %7366 = vmatprep.subr.mxu0 %v6437
  %7367 = vmatpush1.msra.mxu0 %v6436
  %7368 = vmatprep.subr.mxu0 %v6445
  %7369 = vmatpush1.msra.mxu0 %v6444
  %7370 = vmatprep.subr.mxu0 %v6453
  %7371 = vmatpush1.msra.mxu0 %v6452
  %7372 = vmatprep.subr.mxu0 %v6461
  %7373 = vmatpush1.msra.mxu0 %v6460
  %7374 = vmatprep.subr.mxu0 %v6469
  %7375 = vmatpush1.msra.mxu0 %v6468
  %7376 = vmatprep.subr.mxu0 %v6477
  %7377 = vmatpush1.msra.mxu0 %v6476
  %7378 = vmatprep.subr.mxu0 %v6485
  %7379 = vmatpush1.msra.mxu0 %v6484
  %7380 = vmatprep.subr.mxu0 %v6493
  %7381 = vmatpush1.msra.mxu0 %v6492
  %7382 = vmatprep.subr.mxu0 %v6501
  %7383 = vmatpush1.msra.mxu0 %v6500
  %7384 = vmatprep.subr.mxu0 %v6509
  %7385 = vmatpush1.msra.mxu0 %v6508
  %7386 = vmatprep.subr.mxu0 %v6517
  %7387 = vmatpush1.msra.mxu0 %v6516
  %7388 = vmatprep.subr.mxu0 %v6525
  %7389 = vmatpush1.msra.mxu0 %v6524
  %7390 = vmatprep.subr.mxu0 %v6533
  %7391 = vmatpush1.msra.mxu0 %v6532
  %7392 = vmatprep.subr.mxu0 %v6541
  %7393 = vmatpush1.msra.mxu0 %v6540
  %7394 = vmatprep.subr.mxu0 %v6549
  %7395 = vmatpush1.msra.mxu0 %v6548
  %7396 = vmatprep.subr.mxu0 %v6557
  %7397 = vmatpush1.msra.mxu0 %v6556
  %7398 = vmatprep.subr.mxu0 %v6565
  %7399 = vmatpush1.msra.mxu0 %v6564
  %7400 = vmatprep.subr.mxu0 %v6573
  %7401 = vmatpush1.msra.mxu0 %v6572
  %7402 = vmatprep.subr.mxu0 %v6581
  %7403 = vmatpush1.msra.mxu0 %v6580
  %7404 = vmatprep.subr.mxu0 %v6589
  %7405 = vmatpush1.msra.mxu0 %v6588
  %7406 = vmatprep.subr.mxu0 %v6597
  %7407 = vmatpush1.msra.mxu0 %v6596
  %7408 = vmatprep.subr.mxu0 %v6605
  %7409 = vmatpush1.msra.mxu0 %v6604
  %7410 = vmatprep.subr.mxu0 %v6613
  %7411 = vmatpush1.msra.mxu0 %v6612
  %7412 = vmatprep.subr.mxu0 %v6621
  %7413 = vmatpush1.msra.mxu0 %v6620
  %7414 = vmatprep.mubr.f32.mxu0 %v5855
  %7415 = vmatmul.mubr.f32.gmra.mrb[0].mxu0 %v5854
  %v7416 = vpop.f32.mrb[0].mxu0
  %v7417 = vadd.f32 %v7346, %v7416
  %v7418 = vpop.f32.mrb[0].mxu0
  %v7419 = vadd.f32 %v7348, %v7418
  %7420 = vdwg.mxu0
  %7421 = vmatprep.subr.mxu0 %v6629
  %7422 = vmatpush1.msra.mxu0 %v6628
  %7423 = vmatprep.subr.mxu0 %v6637
  %7424 = vmatpush1.msra.mxu0 %v6636
  %7425 = vmatprep.subr.mxu0 %v6645
  %7426 = vmatpush1.msra.mxu0 %v6644
  %7427 = vmatprep.subr.mxu0 %v6653
  %7428 = vmatpush1.msra.mxu0 %v6652
  %7429 = vmatprep.subr.mxu0 %v6661
  %7430 = vmatpush1.msra.mxu0 %v6660
  %7431 = vmatprep.subr.mxu0 %v6669
  %7432 = vmatpush1.msra.mxu0 %v6668
  %7433 = vmatprep.subr.mxu0 %v6677
  %7434 = vmatpush1.msra.mxu0 %v6676
  %7435 = vmatprep.subr.mxu0 %v6685
  %7436 = vmatpush1.msra.mxu0 %v6684
  %7437 = vmatprep.subr.mxu0 %v6693
  %7438 = vmatpush1.msra.mxu0 %v6692
  %7439 = vmatprep.subr.mxu0 %v6701
  %7440 = vmatpush1.msra.mxu0 %v6700
  %7441 = vmatprep.subr.mxu0 %v6709
  %7442 = vmatpush1.msra.mxu0 %v6708
  %7443 = vmatprep.subr.mxu0 %v6717
  %7444 = vmatpush1.msra.mxu0 %v6716
  %7445 = vmatprep.subr.mxu0 %v6725
  %7446 = vmatpush1.msra.mxu0 %v6724
  %7447 = vmatprep.subr.mxu0 %v6733
  %7448 = vmatpush1.msra.mxu0 %v6732
  %7449 = vmatprep.subr.mxu0 %v6741
  %7450 = vmatpush1.msra.mxu0 %v6740
  %7451 = vmatprep.subr.mxu0 %v6749
  %7452 = vmatpush1.msra.mxu0 %v6748
  %7453 = vmatprep.subr.mxu0 %v6757
  %7454 = vmatpush1.msra.mxu0 %v6756
  %7455 = vmatprep.subr.mxu0 %v6765
  %7456 = vmatpush1.msra.mxu0 %v6764
  %7457 = vmatprep.subr.mxu0 %v6773
  %7458 = vmatpush1.msra.mxu0 %v6772
  %7459 = vmatprep.subr.mxu0 %v6781
  %7460 = vmatpush1.msra.mxu0 %v6780
  %7461 = vmatprep.subr.mxu0 %v6789
  %7462 = vmatpush1.msra.mxu0 %v6788
  %7463 = vmatprep.subr.mxu0 %v6797
  %7464 = vmatpush1.msra.mxu0 %v6796
  %7465 = vmatprep.subr.mxu0 %v6805
  %7466 = vmatpush1.msra.mxu0 %v6804
  %7467 = vmatprep.subr.mxu0 %v6813
  %7468 = vmatpush1.msra.mxu0 %v6812
  %7469 = vmatprep.subr.mxu0 %v6821
  %7470 = vmatpush1.msra.mxu0 %v6820
  %7471 = vmatprep.subr.mxu0 %v6829
  %7472 = vmatpush1.msra.mxu0 %v6828
  %7473 = vmatprep.subr.mxu0 %v6837
  %7474 = vmatpush1.msra.mxu0 %v6836
  %7475 = vmatprep.subr.mxu0 %v6845
  %7476 = vmatpush1.msra.mxu0 %v6844
  %7477 = vmatprep.subr.mxu0 %v6853
  %7478 = vmatpush1.msra.mxu0 %v6852
  %7479 = vmatprep.subr.mxu0 %v6861
  %7480 = vmatpush1.msra.mxu0 %v6860
  %7481 = vmatprep.subr.mxu0 %v6869
  %7482 = vmatpush1.msra.mxu0 %v6868
  %7483 = vmatprep.subr.mxu0 %v6877
  %7484 = vmatpush1.msra.mxu0 %v6876
  %7485 = vmatprep.mubr.f32.mxu0 %v5857
  %7486 = vmatmul.mubr.f32.gmra.mrb[0].mxu0 %v5856
  %v7487 = vpop.f32.mrb[0].mxu0
  %v7488 = vadd.f32 %v7417, %v7487
  %v7489 = vpop.f32.mrb[0].mxu0
  %v7490 = vadd.f32 %v7419, %v7489
  %7491 = vdwg.mxu0
  %7492 = vmatprep.subr.mxu0 %v5863
  %7493 = vmatpush1.msra.mxu0 %v5862
  %7494 = vmatprep.subr.mxu0 %v5871
  %7495 = vmatpush1.msra.mxu0 %v5870
  %7496 = vmatprep.subr.mxu0 %v5879
  %7497 = vmatpush1.msra.mxu0 %v5878
  %7498 = vmatprep.subr.mxu0 %v5887
  %7499 = vmatpush1.msra.mxu0 %v5886
  %7500 = vmatprep.subr.mxu0 %v5895
  %7501 = vmatpush1.msra.mxu0 %v5894
  %7502 = vmatprep.subr.mxu0 %v5903
  %7503 = vmatpush1.msra.mxu0 %v5902
  %7504 = vmatprep.subr.mxu0 %v5911
  %7505 = vmatpush1.msra.mxu0 %v5910
  %7506 = vmatprep.subr.mxu0 %v5919
  %7507 = vmatpush1.msra.mxu0 %v5918
  %7508 = vmatprep.subr.mxu0 %v5927
  %7509 = vmatpush1.msra.mxu0 %v5926
  %7510 = vmatprep.subr.mxu0 %v5935
  %7511 = vmatpush1.msra.mxu0 %v5934
  %7512 = vmatprep.subr.mxu0 %v5943
  %7513 = vmatpush1.msra.mxu0 %v5942
  %7514 = vmatprep.subr.mxu0 %v5951
  %7515 = vmatpush1.msra.mxu0 %v5950
  %7516 = vmatprep.subr.mxu0 %v5959
  %7517 = vmatpush1.msra.mxu0 %v5958
  %7518 = vmatprep.subr.mxu0 %v5967
  %7519 = vmatpush1.msra.mxu0 %v5966
  %7520 = vmatprep.subr.mxu0 %v5975
  %7521 = vmatpush1.msra.mxu0 %v5974
  %7522 = vmatprep.subr.mxu0 %v5983
  %7523 = vmatpush1.msra.mxu0 %v5982
  %7524 = vmatprep.subr.mxu0 %v5991
  %7525 = vmatpush1.msra.mxu0 %v5990
  %7526 = vmatprep.subr.mxu0 %v5999
  %7527 = vmatpush1.msra.mxu0 %v5998
  %7528 = vmatprep.subr.mxu0 %v6007
  %7529 = vmatpush1.msra.mxu0 %v6006
  %7530 = vmatprep.subr.mxu0 %v6015
  %7531 = vmatpush1.msra.mxu0 %v6014
  %7532 = vmatprep.subr.mxu0 %v6023
  %7533 = vmatpush1.msra.mxu0 %v6022
  %7534 = vmatprep.subr.mxu0 %v6031
  %7535 = vmatpush1.msra.mxu0 %v6030
  %7536 = vmatprep.subr.mxu0 %v6039
  %7537 = vmatpush1.msra.mxu0 %v6038
  %7538 = vmatprep.subr.mxu0 %v6047
  %7539 = vmatpush1.msra.mxu0 %v6046
  %7540 = vmatprep.subr.mxu0 %v6055
  %7541 = vmatpush1.msra.mxu0 %v6054
  %7542 = vmatprep.subr.mxu0 %v6063
  %7543 = vmatpush1.msra.mxu0 %v6062
  %7544 = vmatprep.subr.mxu0 %v6071
  %7545 = vmatpush1.msra.mxu0 %v6070
  %7546 = vmatprep.subr.mxu0 %v6079
  %7547 = vmatpush1.msra.mxu0 %v6078
  %7548 = vmatprep.subr.mxu0 %v6087
  %7549 = vmatpush1.msra.mxu0 %v6086
  %7550 = vmatprep.subr.mxu0 %v6095
  %7551 = vmatpush1.msra.mxu0 %v6094
  %7552 = vmatprep.subr.mxu0 %v6103
  %7553 = vmatpush1.msra.mxu0 %v6102
  %7554 = vmatprep.subr.mxu0 %v6111
  %7555 = vmatpush1.msra.mxu0 %v6110
  %7556 = vmatprep.mubr.f32.mxu0 %v5851
  %7557 = vmatmul.mubr.f32.gmra.mrb[0].mxu0 %v5850
  %v7558 = vpop.f32.mrb[0].mxu0
  %v7559 = vadd.f32 %v6903, %v7558
  %v7560 = vpop.f32.mrb[0].mxu0
  %v7561 = vadd.f32 %v6907, %v7560
  %7562 = vdwg.mxu0
  %7563 = vmatprep.subr.mxu0 %v6119
  %7564 = vmatpush1.msra.mxu0 %v6118
  %7565 = vmatprep.subr.mxu0 %v6127
  %7566 = vmatpush1.msra.mxu0 %v6126
  %7567 = vmatprep.subr.mxu0 %v6135
  %7568 = vmatpush1.msra.mxu0 %v6134
  %7569 = vmatprep.subr.mxu0 %v6143
  %7570 = vmatpush1.msra.mxu0 %v6142
  %7571 = vmatprep.subr.mxu0 %v6151
  %7572 = vmatpush1.msra.mxu0 %v6150
  %7573 = vmatprep.subr.mxu0 %v6159
  %7574 = vmatpush1.msra.mxu0 %v6158
  %7575 = vmatprep.subr.mxu0 %v6167
  %7576 = vmatpush1.msra.mxu0 %v6166
  %7577 = vmatprep.subr.mxu0 %v6175
  %7578 = vmatpush1.msra.mxu0 %v6174
  %7579 = vmatprep.subr.mxu0 %v6183
  %7580 = vmatpush1.msra.mxu0 %v6182
  %7581 = vmatprep.subr.mxu0 %v6191
  %7582 = vmatpush1.msra.mxu0 %v6190
  %7583 = vmatprep.subr.mxu0 %v6199
  %7584 = vmatpush1.msra.mxu0 %v6198
  %7585 = vmatprep.subr.mxu0 %v6207
  %7586 = vmatpush1.msra.mxu0 %v6206
  %7587 = vmatprep.subr.mxu0 %v6215
  %7588 = vmatpush1.msra.mxu0 %v6214
  %7589 = vmatprep.subr.mxu0 %v6223
  %7590 = vmatpush1.msra.mxu0 %v6222
  %7591 = vmatprep.subr.mxu0 %v6231
  %7592 = vmatpush1.msra.mxu0 %v6230
  %7593 = vmatprep.subr.mxu0 %v6239
  %7594 = vmatpush1.msra.mxu0 %v6238
  %7595 = vmatprep.subr.mxu0 %v6247
  %7596 = vmatpush1.msra.mxu0 %v6246
  %7597 = vmatprep.subr.mxu0 %v6255
  %7598 = vmatpush1.msra.mxu0 %v6254
  %7599 = vmatprep.subr.mxu0 %v6263
  %7600 = vmatpush1.msra.mxu0 %v6262
  %7601 = vmatprep.subr.mxu0 %v6271
  %7602 = vmatpush1.msra.mxu0 %v6270
  %7603 = vmatprep.subr.mxu0 %v6279
  %7604 = vmatpush1.msra.mxu0 %v6278
  %7605 = vmatprep.subr.mxu0 %v6287
  %7606 = vmatpush1.msra.mxu0 %v6286
  %7607 = vmatprep.subr.mxu0 %v6295
  %7608 = vmatpush1.msra.mxu0 %v6294
  %7609 = vmatprep.subr.mxu0 %v6303
  %7610 = vmatpush1.msra.mxu0 %v6302
  %7611 = vmatprep.subr.mxu0 %v6311
  %7612 = vmatpush1.msra.mxu0 %v6310
  %7613 = vmatprep.subr.mxu0 %v6319
  %7614 = vmatpush1.msra.mxu0 %v6318
  %7615 = vmatprep.subr.mxu0 %v6327
  %7616 = vmatpush1.msra.mxu0 %v6326
  %7617 = vmatprep.subr.mxu0 %v6335
  %7618 = vmatpush1.msra.mxu0 %v6334
  %7619 = vmatprep.subr.mxu0 %v6343
  %7620 = vmatpush1.msra.mxu0 %v6342
  %7621 = vmatprep.subr.mxu0 %v6351
  %7622 = vmatpush1.msra.mxu0 %v6350
  %7623 = vmatprep.subr.mxu0 %v6359
  %7624 = vmatpush1.msra.mxu0 %v6358
  %7625 = vmatprep.subr.mxu0 %v6367
  %7626 = vmatpush1.msra.mxu0 %v6366
  %7627 = vmatprep.mubr.f32.mxu0 %v5853
  %7628 = vmatmul.mubr.f32.gmra.mrb[0].mxu0 %v5852
  %v7629 = vpop.f32.mrb[0].mxu0
  %v7630 = vadd.f32 %v7559, %v7629
  %v7631 = vpop.f32.mrb[0].mxu0
  %v7632 = vadd.f32 %v7561, %v7631
  %7633 = vdwg.mxu0
  %7634 = vmatprep.subr.mxu0 %v6375
  %7635 = vmatpush1.msra.mxu0 %v6374
  %7636 = vmatprep.subr.mxu0 %v6383
  %7637 = vmatpush1.msra.mxu0 %v6382
  %7638 = vmatprep.subr.mxu0 %v6391
  %7639 = vmatpush1.msra.mxu0 %v6390
  %7640 = vmatprep.subr.mxu0 %v6399
  %7641 = vmatpush1.msra.mxu0 %v6398
  %7642 = vmatprep.subr.mxu0 %v6407
  %7643 = vmatpush1.msra.mxu0 %v6406
  %7644 = vmatprep.subr.mxu0 %v6415
  %7645 = vmatpush1.msra.mxu0 %v6414
  %7646 = vmatprep.subr.mxu0 %v6423
  %7647 = vmatpush1.msra.mxu0 %v6422
  %7648 = vmatprep.subr.mxu0 %v6431
  %7649 = vmatpush1.msra.mxu0 %v6430
  %7650 = vmatprep.subr.mxu0 %v6439
  %7651 = vmatpush1.msra.mxu0 %v6438
  %7652 = vmatprep.subr.mxu0 %v6447
  %7653 = vmatpush1.msra.mxu0 %v6446
  %7654 = vmatprep.subr.mxu0 %v6455
  %7655 = vmatpush1.msra.mxu0 %v6454
  %7656 = vmatprep.subr.mxu0 %v6463
  %7657 = vmatpush1.msra.mxu0 %v6462
  %7658 = vmatprep.subr.mxu0 %v6471
  %7659 = vmatpush1.msra.mxu0 %v6470
  %7660 = vmatprep.subr.mxu0 %v6479
  %7661 = vmatpush1.msra.mxu0 %v6478
  %7662 = vmatprep.subr.mxu0 %v6487
  %7663 = vmatpush1.msra.mxu0 %v6486
  %7664 = vmatprep.subr.mxu0 %v6495
  %7665 = vmatpush1.msra.mxu0 %v6494
  %7666 = vmatprep.subr.mxu0 %v6503
  %7667 = vmatpush1.msra.mxu0 %v6502
  %7668 = vmatprep.subr.mxu0 %v6511
  %7669 = vmatpush1.msra.mxu0 %v6510
  %7670 = vmatprep.subr.mxu0 %v6519
  %7671 = vmatpush1.msra.mxu0 %v6518
  %7672 = vmatprep.subr.mxu0 %v6527
  %7673 = vmatpush1.msra.mxu0 %v6526
  %7674 = vmatprep.subr.mxu0 %v6535
  %7675 = vmatpush1.msra.mxu0 %v6534
  %7676 = vmatprep.subr.mxu0 %v6543
  %7677 = vmatpush1.msra.mxu0 %v6542
  %7678 = vmatprep.subr.mxu0 %v6551
  %7679 = vmatpush1.msra.mxu0 %v6550
  %7680 = vmatprep.subr.mxu0 %v6559
  %7681 = vmatpush1.msra.mxu0 %v6558
  %7682 = vmatprep.subr.mxu0 %v6567
  %7683 = vmatpush1.msra.mxu0 %v6566
  %7684 = vmatprep.subr.mxu0 %v6575
  %7685 = vmatpush1.msra.mxu0 %v6574
  %7686 = vmatprep.subr.mxu0 %v6583
  %7687 = vmatpush1.msra.mxu0 %v6582
  %7688 = vmatprep.subr.mxu0 %v6591
  %7689 = vmatpush1.msra.mxu0 %v6590
  %7690 = vmatprep.subr.mxu0 %v6599
  %7691 = vmatpush1.msra.mxu0 %v6598
  %7692 = vmatprep.subr.mxu0 %v6607
  %7693 = vmatpush1.msra.mxu0 %v6606
  %7694 = vmatprep.subr.mxu0 %v6615
  %7695 = vmatpush1.msra.mxu0 %v6614
  %7696 = vmatprep.subr.mxu0 %v6623
  %7697 = vmatpush1.msra.mxu0 %v6622
  %7698 = vmatprep.mubr.f32.mxu0 %v5855
  %7699 = vmatmul.mubr.f32.gmra.mrb[0].mxu0 %v5854
  %v7700 = vpop.f32.mrb[0].mxu0
  %v7701 = vadd.f32 %v7630, %v7700
  %v7702 = vpop.f32.mrb[0].mxu0
  %v7703 = vadd.f32 %v7632, %v7702
  %7704 = vdwg.mxu0
  %7705 = vmatprep.subr.mxu0 %v6631
  %7706 = vmatpush1.msra.mxu0 %v6630
  %7707 = vmatprep.subr.mxu0 %v6639
  %7708 = vmatpush1.msra.mxu0 %v6638
  %7709 = vmatprep.subr.mxu0 %v6647
  %7710 = vmatpush1.msra.mxu0 %v6646
  %7711 = vmatprep.subr.mxu0 %v6655
  %7712 = vmatpush1.msra.mxu0 %v6654
  %7713 = vmatprep.subr.mxu0 %v6663
  %7714 = vmatpush1.msra.mxu0 %v6662
  %7715 = vmatprep.subr.mxu0 %v6671
  %7716 = vmatpush1.msra.mxu0 %v6670
  %7717 = vmatprep.subr.mxu0 %v6679
  %7718 = vmatpush1.msra.mxu0 %v6678
  %7719 = vmatprep.subr.mxu0 %v6687
  %7720 = vmatpush1.msra.mxu0 %v6686
  %7721 = vmatprep.subr.mxu0 %v6695
  %7722 = vmatpush1.msra.mxu0 %v6694
  %7723 = vmatprep.subr.mxu0 %v6703
  %7724 = vmatpush1.msra.mxu0 %v6702
  %7725 = vmatprep.subr.mxu0 %v6711
  %7726 = vmatpush1.msra.mxu0 %v6710
  %7727 = vmatprep.subr.mxu0 %v6719
  %7728 = vmatpush1.msra.mxu0 %v6718
  %7729 = vmatprep.subr.mxu0 %v6727
  %7730 = vmatpush1.msra.mxu0 %v6726
  %7731 = vmatprep.subr.mxu0 %v6735
  %7732 = vmatpush1.msra.mxu0 %v6734
  %7733 = vmatprep.subr.mxu0 %v6743
  %7734 = vmatpush1.msra.mxu0 %v6742
  %7735 = vmatprep.subr.mxu0 %v6751
  %7736 = vmatpush1.msra.mxu0 %v6750
  %7737 = vmatprep.subr.mxu0 %v6759
  %7738 = vmatpush1.msra.mxu0 %v6758
  %7739 = vmatprep.subr.mxu0 %v6767
  %7740 = vmatpush1.msra.mxu0 %v6766
  %7741 = vmatprep.subr.mxu0 %v6775
  %7742 = vmatpush1.msra.mxu0 %v6774
  %7743 = vmatprep.subr.mxu0 %v6783
  %7744 = vmatpush1.msra.mxu0 %v6782
  %7745 = vmatprep.subr.mxu0 %v6791
  %7746 = vmatpush1.msra.mxu0 %v6790
  %7747 = vmatprep.subr.mxu0 %v6799
  %7748 = vmatpush1.msra.mxu0 %v6798
  %7749 = vmatprep.subr.mxu0 %v6807
  %7750 = vmatpush1.msra.mxu0 %v6806
  %7751 = vmatprep.subr.mxu0 %v6815
  %7752 = vmatpush1.msra.mxu0 %v6814
  %7753 = vmatprep.subr.mxu0 %v6823
  %7754 = vmatpush1.msra.mxu0 %v6822
  %7755 = vmatprep.subr.mxu0 %v6831
  %7756 = vmatpush1.msra.mxu0 %v6830
  %7757 = vmatprep.subr.mxu0 %v6839
  %7758 = vmatpush1.msra.mxu0 %v6838
  %7759 = vmatprep.subr.mxu0 %v6847
  %7760 = vmatpush1.msra.mxu0 %v6846
  %7761 = vmatprep.subr.mxu0 %v6855
  %7762 = vmatpush1.msra.mxu0 %v6854
  %7763 = vmatprep.subr.mxu0 %v6863
  %7764 = vmatpush1.msra.mxu0 %v6862
  %7765 = vmatprep.subr.mxu0 %v6871
  %7766 = vmatpush1.msra.mxu0 %v6870
  %7767 = vmatprep.subr.mxu0 %v6879
  %7768 = vmatpush1.msra.mxu0 %v6878
  %7769 = vmatprep.mubr.f32.mxu0 %v5857
  %7770 = vmatmul.mubr.f32.gmra.mrb[0].mxu0 %v5856
  %v7771 = vpop.f32.mrb[0].mxu0
  %v7772 = vadd.f32 %v7701, %v7771
  %v7773 = vpop.f32.mrb[0].mxu0
  %v7774 = vadd.f32 %v7703, %v7773
  %7775 = vdwg.mxu0
  %7776 = vmatprep.subr.mxu0 %v5865
  %7777 = vmatpush1.msra.mxu0 %v5864
  %7778 = vmatprep.subr.mxu0 %v5873
  %7779 = vmatpush1.msra.mxu0 %v5872
  %7780 = vmatprep.subr.mxu0 %v5881
  %7781 = vmatpush1.msra.mxu0 %v5880
  %7782 = vmatprep.subr.mxu0 %v5889
  %7783 = vmatpush1.msra.mxu0 %v5888
  %7784 = vmatprep.subr.mxu0 %v5897
  %7785 = vmatpush1.msra.mxu0 %v5896
  %7786 = vmatprep.subr.mxu0 %v5905
  %7787 = vmatpush1.msra.mxu0 %v5904
  %7788 = vmatprep.subr.mxu0 %v5913
  %7789 = vmatpush1.msra.mxu0 %v5912
  %7790 = vmatprep.subr.mxu0 %v5921
  %7791 = vmatpush1.msra.mxu0 %v5920
  %7792 = vmatprep.subr.mxu0 %v5929
  %7793 = vmatpush1.msra.mxu0 %v5928
  %7794 = vmatprep.subr.mxu0 %v5937
  %7795 = vmatpush1.msra.mxu0 %v5936
  %7796 = vmatprep.subr.mxu0 %v5945
  %7797 = vmatpush1.msra.mxu0 %v5944
  %7798 = vmatprep.subr.mxu0 %v5953
  %7799 = vmatpush1.msra.mxu0 %v5952
  %7800 = vmatprep.subr.mxu0 %v5961
  %7801 = vmatpush1.msra.mxu0 %v5960
  %7802 = vmatprep.subr.mxu0 %v5969
  %7803 = vmatpush1.msra.mxu0 %v5968
  %7804 = vmatprep.subr.mxu0 %v5977
  %7805 = vmatpush1.msra.mxu0 %v5976
  %7806 = vmatprep.subr.mxu0 %v5985
  %7807 = vmatpush1.msra.mxu0 %v5984
  %7808 = vmatprep.subr.mxu0 %v5993
  %7809 = vmatpush1.msra.mxu0 %v5992
  %7810 = vmatprep.subr.mxu0 %v6001
  %7811 = vmatpush1.msra.mxu0 %v6000
  %7812 = vmatprep.subr.mxu0 %v6009
  %7813 = vmatpush1.msra.mxu0 %v6008
  %7814 = vmatprep.subr.mxu0 %v6017
  %7815 = vmatpush1.msra.mxu0 %v6016
  %7816 = vmatprep.subr.mxu0 %v6025
  %7817 = vmatpush1.msra.mxu0 %v6024
  %7818 = vmatprep.subr.mxu0 %v6033
  %7819 = vmatpush1.msra.mxu0 %v6032
  %7820 = vmatprep.subr.mxu0 %v6041
  %7821 = vmatpush1.msra.mxu0 %v6040
  %7822 = vmatprep.subr.mxu0 %v6049
  %7823 = vmatpush1.msra.mxu0 %v6048
  %7824 = vmatprep.subr.mxu0 %v6057
  %7825 = vmatpush1.msra.mxu0 %v6056
  %7826 = vmatprep.subr.mxu0 %v6065
  %7827 = vmatpush1.msra.mxu0 %v6064
  %7828 = vmatprep.subr.mxu0 %v6073
  %7829 = vmatpush1.msra.mxu0 %v6072
  %7830 = vmatprep.subr.mxu0 %v6081
  %7831 = vmatpush1.msra.mxu0 %v6080
  %7832 = vmatprep.subr.mxu0 %v6089
  %7833 = vmatpush1.msra.mxu0 %v6088
  %7834 = vmatprep.subr.mxu0 %v6097
  %7835 = vmatpush1.msra.mxu0 %v6096
  %7836 = vmatprep.subr.mxu0 %v6105
  %7837 = vmatpush1.msra.mxu0 %v6104
  %7838 = vmatprep.subr.mxu0 %v6113
  %7839 = vmatpush1.msra.mxu0 %v6112
  %7840 = vmatprep.mubr.f32.mxu0 %v5851
  %7841 = vmatmul.mubr.f32.gmra.mrb[0].mxu0 %v5850
  %v7842 = vpop.f32.mrb[0].mxu0
  %v7843 = vadd.f32 %v6911, %v7842
  %v7844 = vpop.f32.mrb[0].mxu0
  %v7845 = vadd.f32 %v6915, %v7844
  %7846 = vdwg.mxu0
  %7847 = vmatprep.subr.mxu0 %v6121
  %7848 = vmatpush1.msra.mxu0 %v6120
  %7849 = vmatprep.subr.mxu0 %v6129
  %7850 = vmatpush1.msra.mxu0 %v6128
  %7851 = vmatprep.subr.mxu0 %v6137
  %7852 = vmatpush1.msra.mxu0 %v6136
  %7853 = vmatprep.subr.mxu0 %v6145
  %7854 = vmatpush1.msra.mxu0 %v6144
  %7855 = vmatprep.subr.mxu0 %v6153
  %7856 = vmatpush1.msra.mxu0 %v6152
  %7857 = vmatprep.subr.mxu0 %v6161
  %7858 = vmatpush1.msra.mxu0 %v6160
  %7859 = vmatprep.subr.mxu0 %v6169
  %7860 = vmatpush1.msra.mxu0 %v6168
  %7861 = vmatprep.subr.mxu0 %v6177
  %7862 = vmatpush1.msra.mxu0 %v6176
  %7863 = vmatprep.subr.mxu0 %v6185
  %7864 = vmatpush1.msra.mxu0 %v6184
  %7865 = vmatprep.subr.mxu0 %v6193
  %7866 = vmatpush1.msra.mxu0 %v6192
  %7867 = vmatprep.subr.mxu0 %v6201
  %7868 = vmatpush1.msra.mxu0 %v6200
  %7869 = vmatprep.subr.mxu0 %v6209
  %7870 = vmatpush1.msra.mxu0 %v6208
  %7871 = vmatprep.subr.mxu0 %v6217
  %7872 = vmatpush1.msra.mxu0 %v6216
  %7873 = vmatprep.subr.mxu0 %v6225
  %7874 = vmatpush1.msra.mxu0 %v6224
  %7875 = vmatprep.subr.mxu0 %v6233
  %7876 = vmatpush1.msra.mxu0 %v6232
  %7877 = vmatprep.subr.mxu0 %v6241
  %7878 = vmatpush1.msra.mxu0 %v6240
  %7879 = vmatprep.subr.mxu0 %v6249
  %7880 = vmatpush1.msra.mxu0 %v6248
  %7881 = vmatprep.subr.mxu0 %v6257
  %7882 = vmatpush1.msra.mxu0 %v6256
  %7883 = vmatprep.subr.mxu0 %v6265
  %7884 = vmatpush1.msra.mxu0 %v6264
  %7885 = vmatprep.subr.mxu0 %v6273
  %7886 = vmatpush1.msra.mxu0 %v6272
  %7887 = vmatprep.subr.mxu0 %v6281
  %7888 = vmatpush1.msra.mxu0 %v6280
  %7889 = vmatprep.subr.mxu0 %v6289
  %7890 = vmatpush1.msra.mxu0 %v6288
  %7891 = vmatprep.subr.mxu0 %v6297
  %7892 = vmatpush1.msra.mxu0 %v6296
  %7893 = vmatprep.subr.mxu0 %v6305
  %7894 = vmatpush1.msra.mxu0 %v6304
  %7895 = vmatprep.subr.mxu0 %v6313
  %7896 = vmatpush1.msra.mxu0 %v6312
  %7897 = vmatprep.subr.mxu0 %v6321
  %7898 = vmatpush1.msra.mxu0 %v6320
  %7899 = vmatprep.subr.mxu0 %v6329
  %7900 = vmatpush1.msra.mxu0 %v6328
  %7901 = vmatprep.subr.mxu0 %v6337
  %7902 = vmatpush1.msra.mxu0 %v6336
  %7903 = vmatprep.subr.mxu0 %v6345
  %7904 = vmatpush1.msra.mxu0 %v6344
  %7905 = vmatprep.subr.mxu0 %v6353
  %7906 = vmatpush1.msra.mxu0 %v6352
  %7907 = vmatprep.subr.mxu0 %v6361
  %7908 = vmatpush1.msra.mxu0 %v6360
  %7909 = vmatprep.subr.mxu0 %v6369
  %7910 = vmatpush1.msra.mxu0 %v6368
  %7911 = vmatprep.mubr.f32.mxu0 %v5853
  %7912 = vmatmul.mubr.f32.gmra.mrb[0].mxu0 %v5852
  %v7913 = vpop.f32.mrb[0].mxu0
  %v7914 = vadd.f32 %v7843, %v7913
  %v7915 = vpop.f32.mrb[0].mxu0
  %v7916 = vadd.f32 %v7845, %v7915
  %7917 = vdwg.mxu0
  %7918 = vmatprep.subr.mxu0 %v6377
  %7919 = vmatpush1.msra.mxu0 %v6376
  %7920 = vmatprep.subr.mxu0 %v6385
  %7921 = vmatpush1.msra.mxu0 %v6384
  %7922 = vmatprep.subr.mxu0 %v6393
  %7923 = vmatpush1.msra.mxu0 %v6392
  %7924 = vmatprep.subr.mxu0 %v6401
  %7925 = vmatpush1.msra.mxu0 %v6400
  %7926 = vmatprep.subr.mxu0 %v6409
  %7927 = vmatpush1.msra.mxu0 %v6408
  %7928 = vmatprep.subr.mxu0 %v6417
  %7929 = vmatpush1.msra.mxu0 %v6416
  %7930 = vmatprep.subr.mxu0 %v6425
  %7931 = vmatpush1.msra.mxu0 %v6424
  %7932 = vmatprep.subr.mxu0 %v6433
  %7933 = vmatpush1.msra.mxu0 %v6432
  %7934 = vmatprep.subr.mxu0 %v6441
  %7935 = vmatpush1.msra.mxu0 %v6440
  %7936 = vmatprep.subr.mxu0 %v6449
  %7937 = vmatpush1.msra.mxu0 %v6448
  %7938 = vmatprep.subr.mxu0 %v6457
  %7939 = vmatpush1.msra.mxu0 %v6456
  %7940 = vmatprep.subr.mxu0 %v6465
  %7941 = vmatpush1.msra.mxu0 %v6464
  %7942 = vmatprep.subr.mxu0 %v6473
  %7943 = vmatpush1.msra.mxu0 %v6472
  %7944 = vmatprep.subr.mxu0 %v6481
  %7945 = vmatpush1.msra.mxu0 %v6480
  %7946 = vmatprep.subr.mxu0 %v6489
  %7947 = vmatpush1.msra.mxu0 %v6488
  %7948 = vmatprep.subr.mxu0 %v6497
  %7949 = vmatpush1.msra.mxu0 %v6496
  %7950 = vmatprep.subr.mxu0 %v6505
  %7951 = vmatpush1.msra.mxu0 %v6504
  %7952 = vmatprep.subr.mxu0 %v6513
  %7953 = vmatpush1.msra.mxu0 %v6512
  %7954 = vmatprep.subr.mxu0 %v6521
  %7955 = vmatpush1.msra.mxu0 %v6520
  %7956 = vmatprep.subr.mxu0 %v6529
  %7957 = vmatpush1.msra.mxu0 %v6528
  %7958 = vmatprep.subr.mxu0 %v6537
  %7959 = vmatpush1.msra.mxu0 %v6536
  %7960 = vmatprep.subr.mxu0 %v6545
  %7961 = vmatpush1.msra.mxu0 %v6544
  %7962 = vmatprep.subr.mxu0 %v6553
  %7963 = vmatpush1.msra.mxu0 %v6552
  %7964 = vmatprep.subr.mxu0 %v6561
  %7965 = vmatpush1.msra.mxu0 %v6560
  %7966 = vmatprep.subr.mxu0 %v6569
  %7967 = vmatpush1.msra.mxu0 %v6568
  %7968 = vmatprep.subr.mxu0 %v6577
  %7969 = vmatpush1.msra.mxu0 %v6576
  %7970 = vmatprep.subr.mxu0 %v6585
  %7971 = vmatpush1.msra.mxu0 %v6584
  %7972 = vmatprep.subr.mxu0 %v6593
  %7973 = vmatpush1.msra.mxu0 %v6592
  %7974 = vmatprep.subr.mxu0 %v6601
  %7975 = vmatpush1.msra.mxu0 %v6600
  %7976 = vmatprep.subr.mxu0 %v6609
  %7977 = vmatpush1.msra.mxu0 %v6608
  %7978 = vmatprep.subr.mxu0 %v6617
  %7979 = vmatpush1.msra.mxu0 %v6616
  %7980 = vmatprep.subr.mxu0 %v6625
  %7981 = vmatpush1.msra.mxu0 %v6624
  %7982 = vmatprep.mubr.f32.mxu0 %v5855
  %7983 = vmatmul.mubr.f32.gmra.mrb[0].mxu0 %v5854
  %v7984 = vpop.f32.mrb[0].mxu0
  %v7985 = vadd.f32 %v7914, %v7984
  %v7986 = vpop.f32.mrb[0].mxu0
  %v7987 = vadd.f32 %v7916, %v7986
  %7988 = vdwg.mxu0
  %7989 = vmatprep.subr.mxu0 %v6633
  %7990 = vmatpush1.msra.mxu0 %v6632
  %7991 = vmatprep.subr.mxu0 %v6641
  %7992 = vmatpush1.msra.mxu0 %v6640
  %7993 = vmatprep.subr.mxu0 %v6649
  %7994 = vmatpush1.msra.mxu0 %v6648
  %7995 = vmatprep.subr.mxu0 %v6657
  %7996 = vmatpush1.msra.mxu0 %v6656
  %7997 = vmatprep.subr.mxu0 %v6665
  %7998 = vmatpush1.msra.mxu0 %v6664
  %7999 = vmatprep.subr.mxu0 %v6673
  %8000 = vmatpush1.msra.mxu0 %v6672
  %8001 = vmatprep.subr.mxu0 %v6681
  %8002 = vmatpush1.msra.mxu0 %v6680
  %8003 = vmatprep.subr.mxu0 %v6689
  %8004 = vmatpush1.msra.mxu0 %v6688
  %8005 = vmatprep.subr.mxu0 %v6697
  %8006 = vmatpush1.msra.mxu0 %v6696
  %8007 = vmatprep.subr.mxu0 %v6705
  %8008 = vmatpush1.msra.mxu0 %v6704
  %8009 = vmatprep.subr.mxu0 %v6713
  %8010 = vmatpush1.msra.mxu0 %v6712
  %8011 = vmatprep.subr.mxu0 %v6721
  %8012 = vmatpush1.msra.mxu0 %v6720
  %8013 = vmatprep.subr.mxu0 %v6729
  %8014 = vmatpush1.msra.mxu0 %v6728
  %8015 = vmatprep.subr.mxu0 %v6737
  %8016 = vmatpush1.msra.mxu0 %v6736
  %8017 = vmatprep.subr.mxu0 %v6745
  %8018 = vmatpush1.msra.mxu0 %v6744
  %8019 = vmatprep.subr.mxu0 %v6753
  %8020 = vmatpush1.msra.mxu0 %v6752
  %8021 = vmatprep.subr.mxu0 %v6761
  %8022 = vmatpush1.msra.mxu0 %v6760
  %8023 = vmatprep.subr.mxu0 %v6769
  %8024 = vmatpush1.msra.mxu0 %v6768
  %8025 = vmatprep.subr.mxu0 %v6777
  %8026 = vmatpush1.msra.mxu0 %v6776
  %8027 = vmatprep.subr.mxu0 %v6785
  %8028 = vmatpush1.msra.mxu0 %v6784
  %8029 = vmatprep.subr.mxu0 %v6793
  %8030 = vmatpush1.msra.mxu0 %v6792
  %8031 = vmatprep.subr.mxu0 %v6801
  %8032 = vmatpush1.msra.mxu0 %v6800
  %8033 = vmatprep.subr.mxu0 %v6809
  %8034 = vmatpush1.msra.mxu0 %v6808
  %8035 = vmatprep.subr.mxu0 %v6817
  %8036 = vmatpush1.msra.mxu0 %v6816
  %8037 = vmatprep.subr.mxu0 %v6825
  %8038 = vmatpush1.msra.mxu0 %v6824
  %8039 = vmatprep.subr.mxu0 %v6833
  %8040 = vmatpush1.msra.mxu0 %v6832
  %8041 = vmatprep.subr.mxu0 %v6841
  %8042 = vmatpush1.msra.mxu0 %v6840
  %8043 = vmatprep.subr.mxu0 %v6849
  %8044 = vmatpush1.msra.mxu0 %v6848
  %8045 = vmatprep.subr.mxu0 %v6857
  %8046 = vmatpush1.msra.mxu0 %v6856
  %8047 = vmatprep.subr.mxu0 %v6865
  %8048 = vmatpush1.msra.mxu0 %v6864
  %8049 = vmatprep.subr.mxu0 %v6873
  %8050 = vmatpush1.msra.mxu0 %v6872
  %8051 = vmatprep.subr.mxu0 %v6881
  %8052 = vmatpush1.msra.mxu0 %v6880
  %8053 = vmatprep.mubr.f32.mxu0 %v5857
  %8054 = vmatmul.mubr.f32.gmra.mrb[0].mxu0 %v5856
  %v8055 = vpop.f32.mrb[0].mxu0
  %v8056 = vadd.f32 %v7985, %v8055
  %v8057 = vpop.f32.mrb[0].mxu0
  %v8058 = vadd.f32 %v7987, %v8057
  %8059 = vdwg.mxu0
  %v8060 = vmul.f32 %v7204, %v7204
  %v8061 = vmul.f32 %v7206, %v7206
  %v8062 = vmul.f32 %v7488, %v7488
  %v8063 = vmul.f32 %v7490, %v7490
  %v8064 = vmul.f32 %v7772, %v7772
  %v8065 = vmul.f32 %v7774, %v7774
  %v8066 = vmul.f32 %v8056, %v8056
  %v8067 = vmul.f32 %v8058, %v8058
  %v8068 = vld [vmem:[%s16] sm:$0xff]
  %v8069 = vld [vmem:[%s16 + $0x8] sm:$0xff]
  %v8070 = vld [vmem:[%s16 + $0x10] sm:$0xff]
  %v8071 = vld [vmem:[%s16 + $0x18] sm:$0xff]
  %v8072 = vld [vmem:[%s16 + $0x20] sm:$0xff]
  %v8073 = vld [vmem:[%s16 + $0x28] sm:$0xff]
  %v8074 = vld [vmem:[%s16 + $0x30] sm:$0xff]
  %v8075 = vld [vmem:[%s16 + $0x38] sm:$0xff]
  %v8076 = vld [vmem:[%s16 + $0x40] sm:$0xff]
  %v8077 = vld [vmem:[%s16 + $0x48] sm:$0xff]
  %v8078 = vld [vmem:[%s16 + $0x50] sm:$0xff]
  %v8079 = vld [vmem:[%s16 + $0x58] sm:$0xff]
  %v8080 = vld [vmem:[%s16 + $0x60] sm:$0xff]
  %v8081 = vld [vmem:[%s16 + $0x68] sm:$0xff]
  %v8082 = vld [vmem:[%s16 + $0x70] sm:$0xff]
  %v8083 = vld [vmem:[%s16 + $0x78] sm:$0xff]
  %v8084 = vld [vmem:[%s16 + $0x80] sm:$0xff]
  %v8085 = vld [vmem:[%s16 + $0x88] sm:$0xff]
  %v8086 = vld [vmem:[%s16 + $0x90] sm:$0xff]
  %v8087 = vld [vmem:[%s16 + $0x98] sm:$0xff]
  %v8088 = vld [vmem:[%s16 + $0xa0] sm:$0xff]
  %v8089 = vld [vmem:[%s16 + $0xa8] sm:$0xff]
  %v8090 = vld [vmem:[%s16 + $0xb0] sm:$0xff]
  %v8091 = vld [vmem:[%s16 + $0xb8] sm:$0xff]
  %v8092 = vld [vmem:[%s16 + $0xc0] sm:$0xff]
  %v8093 = vld [vmem:[%s16 + $0xc8] sm:$0xff]
  %v8094 = vld [vmem:[%s16 + $0xd0] sm:$0xff]
  %v8095 = vld [vmem:[%s16 + $0xd8] sm:$0xff]
  %v8096 = vld [vmem:[%s16 + $0xe0] sm:$0xff]
  %v8097 = vld [vmem:[%s16 + $0xe8] sm:$0xff]
  %v8098 = vld [vmem:[%s16 + $0xf0] sm:$0xff]
  %v8099 = vld [vmem:[%s16 + $0xf8] sm:$0xff]
  %v8100 = vld [vmem:[%s16 + $0x100] sm:$0xff]
  %v8101 = vld [vmem:[%s16 + $0x108] sm:$0xff]
  %v8102 = vld [vmem:[%s16 + $0x110] sm:$0xff]
  %v8103 = vld [vmem:[%s16 + $0x118] sm:$0xff]
  %v8104 = vld [vmem:[%s16 + $0x120] sm:$0xff]
  %v8105 = vld [vmem:[%s16 + $0x128] sm:$0xff]
  %v8106 = vld [vmem:[%s16 + $0x130] sm:$0xff]
  %v8107 = vld [vmem:[%s16 + $0x138] sm:$0xff]
  %v8108 = vld [vmem:[%s16 + $0x140] sm:$0xff]
  %v8109 = vld [vmem:[%s16 + $0x148] sm:$0xff]
  %v8110 = vld [vmem:[%s16 + $0x150] sm:$0xff]
  %v8111 = vld [vmem:[%s16 + $0x158] sm:$0xff]
  %v8112 = vld [vmem:[%s16 + $0x160] sm:$0xff]
  %v8113 = vld [vmem:[%s16 + $0x168] sm:$0xff]
  %v8114 = vld [vmem:[%s16 + $0x170] sm:$0xff]
  %v8115 = vld [vmem:[%s16 + $0x178] sm:$0xff]
  %v8116 = vld [vmem:[%s16 + $0x180] sm:$0xff]
  %v8117 = vld [vmem:[%s16 + $0x188] sm:$0xff]
  %v8118 = vld [vmem:[%s16 + $0x190] sm:$0xff]
  %v8119 = vld [vmem:[%s16 + $0x198] sm:$0xff]
  %v8120 = vld [vmem:[%s16 + $0x1a0] sm:$0xff]
  %v8121 = vld [vmem:[%s16 + $0x1a8] sm:$0xff]
  %v8122 = vld [vmem:[%s16 + $0x1b0] sm:$0xff]
  %v8123 = vld [vmem:[%s16 + $0x1b8] sm:$0xff]
  %v8124 = vld [vmem:[%s16 + $0x1c0] sm:$0xff]
  %v8125 = vld [vmem:[%s16 + $0x1c8] sm:$0xff]
  %v8126 = vld [vmem:[%s16 + $0x1d0] sm:$0xff]
  %v8127 = vld [vmem:[%s16 + $0x1d8] sm:$0xff]
  %v8128 = vld [vmem:[%s16 + $0x1e0] sm:$0xff]
  %v8129 = vld [vmem:[%s16 + $0x1e8] sm:$0xff]
  %v8130 = vld [vmem:[%s16 + $0x1f0] sm:$0xff]
  %v8131 = vld [vmem:[%s16 + $0x1f8] sm:$0xff]
  %v8132 = vld [vmem:[%s16 + $0x200] sm:$0xff]
  %v8133 = vld [vmem:[%s16 + $0x208] sm:$0xff]
  %v8134 = vld [vmem:[%s16 + $0x210] sm:$0xff]
  %v8135 = vld [vmem:[%s16 + $0x218] sm:$0xff]
  %v8136 = vld [vmem:[%s16 + $0x220] sm:$0xff]
  %v8137 = vld [vmem:[%s16 + $0x228] sm:$0xff]
  %v8138 = vld [vmem:[%s16 + $0x230] sm:$0xff]
  %v8139 = vld [vmem:[%s16 + $0x238] sm:$0xff]
  %v8140 = vld [vmem:[%s16 + $0x240] sm:$0xff]
  %v8141 = vld [vmem:[%s16 + $0x248] sm:$0xff]
  %v8142 = vld [vmem:[%s16 + $0x250] sm:$0xff]
  %v8143 = vld [vmem:[%s16 + $0x258] sm:$0xff]
  %v8144 = vld [vmem:[%s16 + $0x260] sm:$0xff]
  %v8145 = vld [vmem:[%s16 + $0x268] sm:$0xff]
  %v8146 = vld [vmem:[%s16 + $0x270] sm:$0xff]
  %v8147 = vld [vmem:[%s16 + $0x278] sm:$0xff]
  %v8148 = vld [vmem:[%s16 + $0x280] sm:$0xff]
  %v8149 = vld [vmem:[%s16 + $0x288] sm:$0xff]
  %v8150 = vld [vmem:[%s16 + $0x290] sm:$0xff]
  %v8151 = vld [vmem:[%s16 + $0x298] sm:$0xff]
  %v8152 = vld [vmem:[%s16 + $0x2a0] sm:$0xff]
  %v8153 = vld [vmem:[%s16 + $0x2a8] sm:$0xff]
  %v8154 = vld [vmem:[%s16 + $0x2b0] sm:$0xff]
  %v8155 = vld [vmem:[%s16 + $0x2b8] sm:$0xff]
  %v8156 = vld [vmem:[%s16 + $0x2c0] sm:$0xff]
  %v8157 = vld [vmem:[%s16 + $0x2c8] sm:$0xff]
  %v8158 = vld [vmem:[%s16 + $0x2d0] sm:$0xff]
  %v8159 = vld [vmem:[%s16 + $0x2d8] sm:$0xff]
  %v8160 = vld [vmem:[%s16 + $0x2e0] sm:$0xff]
  %v8161 = vld [vmem:[%s16 + $0x2e8] sm:$0xff]
  %v8162 = vld [vmem:[%s16 + $0x2f0] sm:$0xff]
  %v8163 = vld [vmem:[%s16 + $0x2f8] sm:$0xff]
  %v8164 = vld [vmem:[%s16 + $0x300] sm:$0xff]
  %v8165 = vld [vmem:[%s16 + $0x308] sm:$0xff]
  %v8166 = vld [vmem:[%s16 + $0x310] sm:$0xff]
  %v8167 = vld [vmem:[%s16 + $0x318] sm:$0xff]
  %v8168 = vld [vmem:[%s16 + $0x320] sm:$0xff]
  %v8169 = vld [vmem:[%s16 + $0x328] sm:$0xff]
  %v8170 = vld [vmem:[%s16 + $0x330] sm:$0xff]
  %v8171 = vld [vmem:[%s16 + $0x338] sm:$0xff]
  %v8172 = vld [vmem:[%s16 + $0x340] sm:$0xff]
  %v8173 = vld [vmem:[%s16 + $0x348] sm:$0xff]
  %v8174 = vld [vmem:[%s16 + $0x350] sm:$0xff]
  %v8175 = vld [vmem:[%s16 + $0x358] sm:$0xff]
  %v8176 = vld [vmem:[%s16 + $0x360] sm:$0xff]
  %v8177 = vld [vmem:[%s16 + $0x368] sm:$0xff]
  %v8178 = vld [vmem:[%s16 + $0x370] sm:$0xff]
  %v8179 = vld [vmem:[%s16 + $0x378] sm:$0xff]
  %v8180 = vld [vmem:[%s16 + $0x380] sm:$0xff]
  %v8181 = vld [vmem:[%s16 + $0x388] sm:$0xff]
  %v8182 = vld [vmem:[%s16 + $0x390] sm:$0xff]
  %v8183 = vld [vmem:[%s16 + $0x398] sm:$0xff]
  %v8184 = vld [vmem:[%s16 + $0x3a0] sm:$0xff]
  %v8185 = vld [vmem:[%s16 + $0x3a8] sm:$0xff]
  %v8186 = vld [vmem:[%s16 + $0x3b0] sm:$0xff]
  %v8187 = vld [vmem:[%s16 + $0x3b8] sm:$0xff]
  %v8188 = vld [vmem:[%s16 + $0x3c0] sm:$0xff]
  %v8189 = vld [vmem:[%s16 + $0x3c8] sm:$0xff]
  %v8190 = vld [vmem:[%s16 + $0x3d0] sm:$0xff]
  %v8191 = vld [vmem:[%s16 + $0x3d8] sm:$0xff]
  %v8192 = vld [vmem:[%s16 + $0x3e0] sm:$0xff]
  %v8193 = vld [vmem:[%s16 + $0x3e8] sm:$0xff]
  %v8194 = vld [vmem:[%s16 + $0x3f0] sm:$0xff]
  %v8195 = vld [vmem:[%s16 + $0x3f8] sm:$0xff]
  %8196 = vmatprep.subr.mxu0 0.0
  %8197 = vmatpush1.msra.mxu0 %v8068
  %8198 = vmatprep.subr.mxu0 0.0
  %8199 = vmatpush1.msra.mxu0 %v8069
  %8200 = vmatprep.subr.mxu0 0.0
  %8201 = vmatpush1.msra.mxu0 %v8070
  %8202 = vmatprep.subr.mxu0 0.0
  %8203 = vmatpush1.msra.mxu0 %v8071
  %8204 = vmatprep.subr.mxu0 0.0
  %8205 = vmatpush1.msra.mxu0 %v8072
  %8206 = vmatprep.subr.mxu0 0.0
  %8207 = vmatpush1.msra.mxu0 %v8073
  %8208 = vmatprep.subr.mxu0 0.0
  %8209 = vmatpush1.msra.mxu0 %v8074
  %8210 = vmatprep.subr.mxu0 0.0
  %8211 = vmatpush1.msra.mxu0 %v8075
  %8212 = vmatprep.subr.mxu0 0.0
  %8213 = vmatpush1.msra.mxu0 %v8076
  %8214 = vmatprep.subr.mxu0 0.0
  %8215 = vmatpush1.msra.mxu0 %v8077
  %8216 = vmatprep.subr.mxu0 0.0
  %8217 = vmatpush1.msra.mxu0 %v8078
  %8218 = vmatprep.subr.mxu0 0.0
  %8219 = vmatpush1.msra.mxu0 %v8079
  %8220 = vmatprep.subr.mxu0 0.0
  %8221 = vmatpush1.msra.mxu0 %v8080
  %8222 = vmatprep.subr.mxu0 0.0
  %8223 = vmatpush1.msra.mxu0 %v8081
  %8224 = vmatprep.subr.mxu0 0.0
  %8225 = vmatpush1.msra.mxu0 %v8082
  %8226 = vmatprep.subr.mxu0 0.0
  %8227 = vmatpush1.msra.mxu0 %v8083
  %8228 = vmatprep.subr.mxu0 0.0
  %8229 = vmatpush1.msra.mxu0 %v8084
  %8230 = vmatprep.subr.mxu0 0.0
  %8231 = vmatpush1.msra.mxu0 %v8085
  %8232 = vmatprep.subr.mxu0 0.0
  %8233 = vmatpush1.msra.mxu0 %v8086
  %8234 = vmatprep.subr.mxu0 0.0
  %8235 = vmatpush1.msra.mxu0 %v8087
  %8236 = vmatprep.subr.mxu0 0.0
  %8237 = vmatpush1.msra.mxu0 %v8088
  %8238 = vmatprep.subr.mxu0 0.0
  %8239 = vmatpush1.msra.mxu0 %v8089
  %8240 = vmatprep.subr.mxu0 0.0
  %8241 = vmatpush1.msra.mxu0 %v8090
  %8242 = vmatprep.subr.mxu0 0.0
  %8243 = vmatpush1.msra.mxu0 %v8091
  %8244 = vmatprep.subr.mxu0 0.0
  %8245 = vmatpush1.msra.mxu0 %v8092
  %8246 = vmatprep.subr.mxu0 0.0
  %8247 = vmatpush1.msra.mxu0 %v8093
  %8248 = vmatprep.subr.mxu0 0.0
  %8249 = vmatpush1.msra.mxu0 %v8094
  %8250 = vmatprep.subr.mxu0 0.0
  %8251 = vmatpush1.msra.mxu0 %v8095
  %8252 = vmatprep.subr.mxu0 0.0
  %8253 = vmatpush1.msra.mxu0 %v8096
  %8254 = vmatprep.subr.mxu0 0.0
  %8255 = vmatpush1.msra.mxu0 %v8097
  %8256 = vmatprep.subr.mxu0 0.0
  %8257 = vmatpush1.msra.mxu0 %v8098
  %8258 = vmatprep.subr.mxu0 0.0
  %8259 = vmatpush1.msra.mxu0 %v8099
  %8260 = vmatprep.mubr.f32.mxu0 %v7206
  %8261 = vmatmul.mubr.f32.gmra.mrb[0].mxu0 %v7204
  %v8262 = vpop.f32.mrb[0].mxu0
  %v8263 = vadd.f32 0.0, %v8262
  %v8264 = vpop.f32.mrb[0].mxu0
  %8265 = vdwg.mxu0
  %8266 = vmatprep.subr.mxu0 0.0
  %8267 = vmatpush1.msra.mxu0 %v8100
  %8268 = vmatprep.subr.mxu0 0.0
  %8269 = vmatpush1.msra.mxu0 %v8101
  %8270 = vmatprep.subr.mxu0 0.0
  %8271 = vmatpush1.msra.mxu0 %v8102
  %8272 = vmatprep.subr.mxu0 0.0
  %8273 = vmatpush1.msra.mxu0 %v8103
  %8274 = vmatprep.subr.mxu0 0.0
  %8275 = vmatpush1.msra.mxu0 %v8104
  %8276 = vmatprep.subr.mxu0 0.0
  %8277 = vmatpush1.msra.mxu0 %v8105
  %8278 = vmatprep.subr.mxu0 0.0
  %8279 = vmatpush1.msra.mxu0 %v8106
  %8280 = vmatprep.subr.mxu0 0.0
  %8281 = vmatpush1.msra.mxu0 %v8107
  %8282 = vmatprep.subr.mxu0 0.0
  %8283 = vmatpush1.msra.mxu0 %v8108
  %8284 = vmatprep.subr.mxu0 0.0
  %8285 = vmatpush1.msra.mxu0 %v8109
  %8286 = vmatprep.subr.mxu0 0.0
  %8287 = vmatpush1.msra.mxu0 %v8110
  %8288 = vmatprep.subr.mxu0 0.0
  %8289 = vmatpush1.msra.mxu0 %v8111
  %8290 = vmatprep.subr.mxu0 0.0
  %8291 = vmatpush1.msra.mxu0 %v8112
  %8292 = vmatprep.subr.mxu0 0.0
  %8293 = vmatpush1.msra.mxu0 %v8113
  %8294 = vmatprep.subr.mxu0 0.0
  %8295 = vmatpush1.msra.mxu0 %v8114
  %8296 = vmatprep.subr.mxu0 0.0
  %8297 = vmatpush1.msra.mxu0 %v8115
  %8298 = vmatprep.subr.mxu0 0.0
  %8299 = vmatpush1.msra.mxu0 %v8116
  %8300 = vmatprep.subr.mxu0 0.0
  %8301 = vmatpush1.msra.mxu0 %v8117
  %8302 = vmatprep.subr.mxu0 0.0
  %8303 = vmatpush1.msra.mxu0 %v8118
  %8304 = vmatprep.subr.mxu0 0.0
  %8305 = vmatpush1.msra.mxu0 %v8119
  %8306 = vmatprep.subr.mxu0 0.0
  %8307 = vmatpush1.msra.mxu0 %v8120
  %8308 = vmatprep.subr.mxu0 0.0
  %8309 = vmatpush1.msra.mxu0 %v8121
  %8310 = vmatprep.subr.mxu0 0.0
  %8311 = vmatpush1.msra.mxu0 %v8122
  %8312 = vmatprep.subr.mxu0 0.0
  %8313 = vmatpush1.msra.mxu0 %v8123
  %8314 = vmatprep.subr.mxu0 0.0
  %8315 = vmatpush1.msra.mxu0 %v8124
  %8316 = vmatprep.subr.mxu0 0.0
  %8317 = vmatpush1.msra.mxu0 %v8125
  %8318 = vmatprep.subr.mxu0 0.0
  %8319 = vmatpush1.msra.mxu0 %v8126
  %8320 = vmatprep.subr.mxu0 0.0
  %8321 = vmatpush1.msra.mxu0 %v8127
  %8322 = vmatprep.subr.mxu0 0.0
  %8323 = vmatpush1.msra.mxu0 %v8128
  %8324 = vmatprep.subr.mxu0 0.0
  %8325 = vmatpush1.msra.mxu0 %v8129
  %8326 = vmatprep.subr.mxu0 0.0
  %8327 = vmatpush1.msra.mxu0 %v8130
  %8328 = vmatprep.subr.mxu0 0.0
  %8329 = vmatpush1.msra.mxu0 %v8131
  %8330 = vmatprep.mubr.f32.mxu0 %v7490
  %8331 = vmatmul.mubr.f32.gmra.mrb[0].mxu0 %v7488
  %v8332 = vpop.f32.mrb[0].mxu0
  %v8333 = vadd.f32 %v8263, %v8332
  %v8334 = vpop.f32.mrb[0].mxu0
  %8335 = vdwg.mxu0
  %8336 = vmatprep.subr.mxu0 0.0
  %8337 = vmatpush1.msra.mxu0 %v8132
  %8338 = vmatprep.subr.mxu0 0.0
  %8339 = vmatpush1.msra.mxu0 %v8133
  %8340 = vmatprep.subr.mxu0 0.0
  %8341 = vmatpush1.msra.mxu0 %v8134
  %8342 = vmatprep.subr.mxu0 0.0
  %8343 = vmatpush1.msra.mxu0 %v8135
  %8344 = vmatprep.subr.mxu0 0.0
  %8345 = vmatpush1.msra.mxu0 %v8136
  %8346 = vmatprep.subr.mxu0 0.0
  %8347 = vmatpush1.msra.mxu0 %v8137
  %8348 = vmatprep.subr.mxu0 0.0
  %8349 = vmatpush1.msra.mxu0 %v8138
  %8350 = vmatprep.subr.mxu0 0.0
  %8351 = vmatpush1.msra.mxu0 %v8139
  %8352 = vmatprep.subr.mxu0 0.0
  %8353 = vmatpush1.msra.mxu0 %v8140
  %8354 = vmatprep.subr.mxu0 0.0
  %8355 = vmatpush1.msra.mxu0 %v8141
  %8356 = vmatprep.subr.mxu0 0.0
  %8357 = vmatpush1.msra.mxu0 %v8142
  %8358 = vmatprep.subr.mxu0 0.0
  %8359 = vmatpush1.msra.mxu0 %v8143
  %8360 = vmatprep.subr.mxu0 0.0
  %8361 = vmatpush1.msra.mxu0 %v8144
  %8362 = vmatprep.subr.mxu0 0.0
  %8363 = vmatpush1.msra.mxu0 %v8145
  %8364 = vmatprep.subr.mxu0 0.0
  %8365 = vmatpush1.msra.mxu0 %v8146
  %8366 = vmatprep.subr.mxu0 0.0
  %8367 = vmatpush1.msra.mxu0 %v8147
  %8368 = vmatprep.subr.mxu0 0.0
  %8369 = vmatpush1.msra.mxu0 %v8148
  %8370 = vmatprep.subr.mxu0 0.0
  %8371 = vmatpush1.msra.mxu0 %v8149
  %8372 = vmatprep.subr.mxu0 0.0
  %8373 = vmatpush1.msra.mxu0 %v8150
  %8374 = vmatprep.subr.mxu0 0.0
  %8375 = vmatpush1.msra.mxu0 %v8151
  %8376 = vmatprep.subr.mxu0 0.0
  %8377 = vmatpush1.msra.mxu0 %v8152
  %8378 = vmatprep.subr.mxu0 0.0
  %8379 = vmatpush1.msra.mxu0 %v8153
  %8380 = vmatprep.subr.mxu0 0.0
  %8381 = vmatpush1.msra.mxu0 %v8154
  %8382 = vmatprep.subr.mxu0 0.0
  %8383 = vmatpush1.msra.mxu0 %v8155
  %8384 = vmatprep.subr.mxu0 0.0
  %8385 = vmatpush1.msra.mxu0 %v8156
  %8386 = vmatprep.subr.mxu0 0.0
  %8387 = vmatpush1.msra.mxu0 %v8157
  %8388 = vmatprep.subr.mxu0 0.0
  %8389 = vmatpush1.msra.mxu0 %v8158
  %8390 = vmatprep.subr.mxu0 0.0
  %8391 = vmatpush1.msra.mxu0 %v8159
  %8392 = vmatprep.subr.mxu0 0.0
  %8393 = vmatpush1.msra.mxu0 %v8160
  %8394 = vmatprep.subr.mxu0 0.0
  %8395 = vmatpush1.msra.mxu0 %v8161
  %8396 = vmatprep.subr.mxu0 0.0
  %8397 = vmatpush1.msra.mxu0 %v8162
  %8398 = vmatprep.subr.mxu0 0.0
  %8399 = vmatpush1.msra.mxu0 %v8163
  %8400 = vmatprep.mubr.f32.mxu0 %v7774
  %8401 = vmatmul.mubr.f32.gmra.mrb[0].mxu0 %v7772
  %v8402 = vpop.f32.mrb[0].mxu0
  %v8403 = vadd.f32 %v8333, %v8402
  %v8404 = vpop.f32.mrb[0].mxu0
  %8405 = vdwg.mxu0
  %8406 = vmatprep.subr.mxu0 0.0
  %8407 = vmatpush1.msra.mxu0 %v8164
  %8408 = vmatprep.subr.mxu0 0.0
  %8409 = vmatpush1.msra.mxu0 %v8165
  %8410 = vmatprep.subr.mxu0 0.0
  %8411 = vmatpush1.msra.mxu0 %v8166
  %8412 = vmatprep.subr.mxu0 0.0
  %8413 = vmatpush1.msra.mxu0 %v8167
  %8414 = vmatprep.subr.mxu0 0.0
  %8415 = vmatpush1.msra.mxu0 %v8168
  %8416 = vmatprep.subr.mxu0 0.0
  %8417 = vmatpush1.msra.mxu0 %v8169
  %8418 = vmatprep.subr.mxu0 0.0
  %8419 = vmatpush1.msra.mxu0 %v8170
  %8420 = vmatprep.subr.mxu0 0.0
  %8421 = vmatpush1.msra.mxu0 %v8171
  %8422 = vmatprep.subr.mxu0 0.0
  %8423 = vmatpush1.msra.mxu0 %v8172
  %8424 = vmatprep.subr.mxu0 0.0
  %8425 = vmatpush1.msra.mxu0 %v8173
  %8426 = vmatprep.subr.mxu0 0.0
  %8427 = vmatpush1.msra.mxu0 %v8174
  %8428 = vmatprep.subr.mxu0 0.0
  %8429 = vmatpush1.msra.mxu0 %v8175
  %8430 = vmatprep.subr.mxu0 0.0
  %8431 = vmatpush1.msra.mxu0 %v8176
  %8432 = vmatprep.subr.mxu0 0.0
  %8433 = vmatpush1.msra.mxu0 %v8177
  %8434 = vmatprep.subr.mxu0 0.0
  %8435 = vmatpush1.msra.mxu0 %v8178
  %8436 = vmatprep.subr.mxu0 0.0
  %8437 = vmatpush1.msra.mxu0 %v8179
  %8438 = vmatprep.subr.mxu0 0.0
  %8439 = vmatpush1.msra.mxu0 %v8180
  %8440 = vmatprep.subr.mxu0 0.0
  %8441 = vmatpush1.msra.mxu0 %v8181
  %8442 = vmatprep.subr.mxu0 0.0
  %8443 = vmatpush1.msra.mxu0 %v8182
  %8444 = vmatprep.subr.mxu0 0.0
  %8445 = vmatpush1.msra.mxu0 %v8183
  %8446 = vmatprep.subr.mxu0 0.0
  %8447 = vmatpush1.msra.mxu0 %v8184
  %8448 = vmatprep.subr.mxu0 0.0
  %8449 = vmatpush1.msra.mxu0 %v8185
  %8450 = vmatprep.subr.mxu0 0.0
  %8451 = vmatpush1.msra.mxu0 %v8186
  %8452 = vmatprep.subr.mxu0 0.0
  %8453 = vmatpush1.msra.mxu0 %v8187
  %8454 = vmatprep.subr.mxu0 0.0
  %8455 = vmatpush1.msra.mxu0 %v8188
  %8456 = vmatprep.subr.mxu0 0.0
  %8457 = vmatpush1.msra.mxu0 %v8189
  %8458 = vmatprep.subr.mxu0 0.0
  %8459 = vmatpush1.msra.mxu0 %v8190
  %8460 = vmatprep.subr.mxu0 0.0
  %8461 = vmatpush1.msra.mxu0 %v8191
  %8462 = vmatprep.subr.mxu0 0.0
  %8463 = vmatpush1.msra.mxu0 %v8192
  %8464 = vmatprep.subr.mxu0 0.0
  %8465 = vmatpush1.msra.mxu0 %v8193
  %8466 = vmatprep.subr.mxu0 0.0
  %8467 = vmatpush1.msra.mxu0 %v8194
  %8468 = vmatprep.subr.mxu0 0.0
  %8469 = vmatpush1.msra.mxu0 %v8195
  %8470 = vmatprep.mubr.f32.mxu0 %v8058
  %8471 = vmatmul.mubr.f32.gmra.mrb[0].mxu0 %v8056
  %v8472 = vpop.f32.mrb[0].mxu0
  %v8473 = vadd.f32 %v8403, %v8472
  %v8474 = vpop.f32.mrb[0].mxu0
  %8475 = vdwg.mxu0
  %8476 = vmatprep.subr.mxu0 0.0
  %8477 = vmatpush1.msra.mxu0 %v8068
  %8478 = vmatprep.subr.mxu0 0.0
  %8479 = vmatpush1.msra.mxu0 %v8069
  %8480 = vmatprep.subr.mxu0 0.0
  %8481 = vmatpush1.msra.mxu0 %v8070
  %8482 = vmatprep.subr.mxu0 0.0
  %8483 = vmatpush1.msra.mxu0 %v8071
  %8484 = vmatprep.subr.mxu0 0.0
  %8485 = vmatpush1.msra.mxu0 %v8072
  %8486 = vmatprep.subr.mxu0 0.0
  %8487 = vmatpush1.msra.mxu0 %v8073
  %8488 = vmatprep.subr.mxu0 0.0
  %8489 = vmatpush1.msra.mxu0 %v8074
  %8490 = vmatprep.subr.mxu0 0.0
  %8491 = vmatpush1.msra.mxu0 %v8075
  %8492 = vmatprep.subr.mxu0 0.0
  %8493 = vmatpush1.msra.mxu0 %v8076
  %8494 = vmatprep.subr.mxu0 0.0
  %8495 = vmatpush1.msra.mxu0 %v8077
  %8496 = vmatprep.subr.mxu0 0.0
  %8497 = vmatpush1.msra.mxu0 %v8078
  %8498 = vmatprep.subr.mxu0 0.0
  %8499 = vmatpush1.msra.mxu0 %v8079
  %8500 = vmatprep.subr.mxu0 0.0
  %8501 = vmatpush1.msra.mxu0 %v8080
  %8502 = vmatprep.subr.mxu0 0.0
  %8503 = vmatpush1.msra.mxu0 %v8081
  %8504 = vmatprep.subr.mxu0 0.0
  %8505 = vmatpush1.msra.mxu0 %v8082
  %8506 = vmatprep.subr.mxu0 0.0
  %8507 = vmatpush1.msra.mxu0 %v8083
  %8508 = vmatprep.subr.mxu0 0.0
  %8509 = vmatpush1.msra.mxu0 %v8084
  %8510 = vmatprep.subr.mxu0 0.0
  %8511 = vmatpush1.msra.mxu0 %v8085
  %8512 = vmatprep.subr.mxu0 0.0
  %8513 = vmatpush1.msra.mxu0 %v8086
  %8514 = vmatprep.subr.mxu0 0.0
  %8515 = vmatpush1.msra.mxu0 %v8087
  %8516 = vmatprep.subr.mxu0 0.0
  %8517 = vmatpush1.msra.mxu0 %v8088
  %8518 = vmatprep.subr.mxu0 0.0
  %8519 = vmatpush1.msra.mxu0 %v8089
  %8520 = vmatprep.subr.mxu0 0.0
  %8521 = vmatpush1.msra.mxu0 %v8090
  %8522 = vmatprep.subr.mxu0 0.0
  %8523 = vmatpush1.msra.mxu0 %v8091
  %8524 = vmatprep.subr.mxu0 0.0
  %8525 = vmatpush1.msra.mxu0 %v8092
  %8526 = vmatprep.subr.mxu0 0.0
  %8527 = vmatpush1.msra.mxu0 %v8093
  %8528 = vmatprep.subr.mxu0 0.0
  %8529 = vmatpush1.msra.mxu0 %v8094
  %8530 = vmatprep.subr.mxu0 0.0
  %8531 = vmatpush1.msra.mxu0 %v8095
  %8532 = vmatprep.subr.mxu0 0.0
  %8533 = vmatpush1.msra.mxu0 %v8096
  %8534 = vmatprep.subr.mxu0 0.0
  %8535 = vmatpush1.msra.mxu0 %v8097
  %8536 = vmatprep.subr.mxu0 0.0
  %8537 = vmatpush1.msra.mxu0 %v8098
  %8538 = vmatprep.subr.mxu0 0.0
  %8539 = vmatpush1.msra.mxu0 %v8099
  %8540 = vmatprep.mubr.f32.mxu0 %v8061
  %8541 = vmatmul.mubr.f32.gmra.mrb[0].mxu0 %v8060
  %v8542 = vpop.f32.mrb[0].mxu0
  %v8543 = vadd.f32 0.0, %v8542
  %v8544 = vpop.f32.mrb[0].mxu0
  %8545 = vdwg.mxu0
  %8546 = vmatprep.subr.mxu0 0.0
  %8547 = vmatpush1.msra.mxu0 %v8100
  %8548 = vmatprep.subr.mxu0 0.0
  %8549 = vmatpush1.msra.mxu0 %v8101
  %8550 = vmatprep.subr.mxu0 0.0
  %8551 = vmatpush1.msra.mxu0 %v8102
  %8552 = vmatprep.subr.mxu0 0.0
  %8553 = vmatpush1.msra.mxu0 %v8103
  %8554 = vmatprep.subr.mxu0 0.0
  %8555 = vmatpush1.msra.mxu0 %v8104
  %8556 = vmatprep.subr.mxu0 0.0
  %8557 = vmatpush1.msra.mxu0 %v8105
  %8558 = vmatprep.subr.mxu0 0.0
  %8559 = vmatpush1.msra.mxu0 %v8106
  %8560 = vmatprep.subr.mxu0 0.0
  %8561 = vmatpush1.msra.mxu0 %v8107
  %8562 = vmatprep.subr.mxu0 0.0
  %8563 = vmatpush1.msra.mxu0 %v8108
  %8564 = vmatprep.subr.mxu0 0.0
  %8565 = vmatpush1.msra.mxu0 %v8109
  %8566 = vmatprep.subr.mxu0 0.0
  %8567 = vmatpush1.msra.mxu0 %v8110
  %8568 = vmatprep.subr.mxu0 0.0
  %8569 = vmatpush1.msra.mxu0 %v8111
  %8570 = vmatprep.subr.mxu0 0.0
  %8571 = vmatpush1.msra.mxu0 %v8112
  %8572 = vmatprep.subr.mxu0 0.0
  %8573 = vmatpush1.msra.mxu0 %v8113
  %8574 = vmatprep.subr.mxu0 0.0
  %8575 = vmatpush1.msra.mxu0 %v8114
  %8576 = vmatprep.subr.mxu0 0.0
  %8577 = vmatpush1.msra.mxu0 %v8115
  %8578 = vmatprep.subr.mxu0 0.0
  %8579 = vmatpush1.msra.mxu0 %v8116
  %8580 = vmatprep.subr.mxu0 0.0
  %8581 = vmatpush1.msra.mxu0 %v8117
  %8582 = vmatprep.subr.mxu0 0.0
  %8583 = vmatpush1.msra.mxu0 %v8118
  %8584 = vmatprep.subr.mxu0 0.0
  %8585 = vmatpush1.msra.mxu0 %v8119
  %8586 = vmatprep.subr.mxu0 0.0
  %8587 = vmatpush1.msra.mxu0 %v8120
  %8588 = vmatprep.subr.mxu0 0.0
  %8589 = vmatpush1.msra.mxu0 %v8121
  %8590 = vmatprep.subr.mxu0 0.0
  %8591 = vmatpush1.msra.mxu0 %v8122
  %8592 = vmatprep.subr.mxu0 0.0
  %8593 = vmatpush1.msra.mxu0 %v8123
  %8594 = vmatprep.subr.mxu0 0.0
  %8595 = vmatpush1.msra.mxu0 %v8124
  %8596 = vmatprep.subr.mxu0 0.0
  %8597 = vmatpush1.msra.mxu0 %v8125
  %8598 = vmatprep.subr.mxu0 0.0
  %8599 = vmatpush1.msra.mxu0 %v8126
  %8600 = vmatprep.subr.mxu0 0.0
  %8601 = vmatpush1.msra.mxu0 %v8127
  %8602 = vmatprep.subr.mxu0 0.0
  %8603 = vmatpush1.msra.mxu0 %v8128
  %8604 = vmatprep.subr.mxu0 0.0
  %8605 = vmatpush1.msra.mxu0 %v8129
  %8606 = vmatprep.subr.mxu0 0.0
  %8607 = vmatpush1.msra.mxu0 %v8130
  %8608 = vmatprep.subr.mxu0 0.0
  %8609 = vmatpush1.msra.mxu0 %v8131
  %8610 = vmatprep.mubr.f32.mxu0 %v8063
  %8611 = vmatmul.mubr.f32.gmra.mrb[0].mxu0 %v8062
  %v8612 = vpop.f32.mrb[0].mxu0
  %v8613 = vadd.f32 %v8543, %v8612
  %v8614 = vpop.f32.mrb[0].mxu0
  %8615 = vdwg.mxu0
  %8616 = vmatprep.subr.mxu0 0.0
  %8617 = vmatpush1.msra.mxu0 %v8132
  %8618 = vmatprep.subr.mxu0 0.0
  %8619 = vmatpush1.msra.mxu0 %v8133
  %8620 = vmatprep.subr.mxu0 0.0
  %8621 = vmatpush1.msra.mxu0 %v8134
  %8622 = vmatprep.subr.mxu0 0.0
  %8623 = vmatpush1.msra.mxu0 %v8135
  %8624 = vmatprep.subr.mxu0 0.0
  %8625 = vmatpush1.msra.mxu0 %v8136
  %8626 = vmatprep.subr.mxu0 0.0
  %8627 = vmatpush1.msra.mxu0 %v8137
  %8628 = vmatprep.subr.mxu0 0.0
  %8629 = vmatpush1.msra.mxu0 %v8138
  %8630 = vmatprep.subr.mxu0 0.0
  %8631 = vmatpush1.msra.mxu0 %v8139
  %8632 = vmatprep.subr.mxu0 0.0
  %8633 = vmatpush1.msra.mxu0 %v8140
  %8634 = vmatprep.subr.mxu0 0.0
  %8635 = vmatpush1.msra.mxu0 %v8141
  %8636 = vmatprep.subr.mxu0 0.0
  %8637 = vmatpush1.msra.mxu0 %v8142
  %8638 = vmatprep.subr.mxu0 0.0
  %8639 = vmatpush1.msra.mxu0 %v8143
  %8640 = vmatprep.subr.mxu0 0.0
  %8641 = vmatpush1.msra.mxu0 %v8144
  %8642 = vmatprep.subr.mxu0 0.0
  %8643 = vmatpush1.msra.mxu0 %v8145
  %8644 = vmatprep.subr.mxu0 0.0
  %8645 = vmatpush1.msra.mxu0 %v8146
  %8646 = vmatprep.subr.mxu0 0.0
  %8647 = vmatpush1.msra.mxu0 %v8147
  %8648 = vmatprep.subr.mxu0 0.0
  %8649 = vmatpush1.msra.mxu0 %v8148
  %8650 = vmatprep.subr.mxu0 0.0
  %8651 = vmatpush1.msra.mxu0 %v8149
  %8652 = vmatprep.subr.mxu0 0.0
  %8653 = vmatpush1.msra.mxu0 %v8150
  %8654 = vmatprep.subr.mxu0 0.0
  %8655 = vmatpush1.msra.mxu0 %v8151
  %8656 = vmatprep.subr.mxu0 0.0
  %8657 = vmatpush1.msra.mxu0 %v8152
  %8658 = vmatprep.subr.mxu0 0.0
  %8659 = vmatpush1.msra.mxu0 %v8153
  %8660 = vmatprep.subr.mxu0 0.0
  %8661 = vmatpush1.msra.mxu0 %v8154
  %8662 = vmatprep.subr.mxu0 0.0
  %8663 = vmatpush1.msra.mxu0 %v8155
  %8664 = vmatprep.subr.mxu0 0.0
  %8665 = vmatpush1.msra.mxu0 %v8156
  %8666 = vmatprep.subr.mxu0 0.0
  %8667 = vmatpush1.msra.mxu0 %v8157
  %8668 = vmatprep.subr.mxu0 0.0
  %8669 = vmatpush1.msra.mxu0 %v8158
  %8670 = vmatprep.subr.mxu0 0.0
  %8671 = vmatpush1.msra.mxu0 %v8159
  %8672 = vmatprep.subr.mxu0 0.0
  %8673 = vmatpush1.msra.mxu0 %v8160
  %8674 = vmatprep.subr.mxu0 0.0
  %8675 = vmatpush1.msra.mxu0 %v8161
  %8676 = vmatprep.subr.mxu0 0.0
  %8677 = vmatpush1.msra.mxu0 %v8162
  %8678 = vmatprep.subr.mxu0 0.0
  %8679 = vmatpush1.msra.mxu0 %v8163
  %8680 = vmatprep.mubr.f32.mxu0 %v8065
  %8681 = vmatmul.mubr.f32.gmra.mrb[0].mxu0 %v8064
  %v8682 = vpop.f32.mrb[0].mxu0
  %v8683 = vadd.f32 %v8613, %v8682
  %v8684 = vpop.f32.mrb[0].mxu0
  %8685 = vdwg.mxu0
  %8686 = vmatprep.subr.mxu0 0.0
  %8687 = vmatpush1.msra.mxu0 %v8164
  %8688 = vmatprep.subr.mxu0 0.0
  %8689 = vmatpush1.msra.mxu0 %v8165
  %8690 = vmatprep.subr.mxu0 0.0
  %8691 = vmatpush1.msra.mxu0 %v8166
  %8692 = vmatprep.subr.mxu0 0.0
  %8693 = vmatpush1.msra.mxu0 %v8167
  %8694 = vmatprep.subr.mxu0 0.0
  %8695 = vmatpush1.msra.mxu0 %v8168
  %8696 = vmatprep.subr.mxu0 0.0
  %8697 = vmatpush1.msra.mxu0 %v8169
  %8698 = vmatprep.subr.mxu0 0.0
  %8699 = vmatpush1.msra.mxu0 %v8170
  %8700 = vmatprep.subr.mxu0 0.0
  %8701 = vmatpush1.msra.mxu0 %v8171
  %8702 = vmatprep.subr.mxu0 0.0
  %8703 = vmatpush1.msra.mxu0 %v8172
  %8704 = vmatprep.subr.mxu0 0.0
  %8705 = vmatpush1.msra.mxu0 %v8173
  %8706 = vmatprep.subr.mxu0 0.0
  %8707 = vmatpush1.msra.mxu0 %v8174
  %8708 = vmatprep.subr.mxu0 0.0
  %8709 = vmatpush1.msra.mxu0 %v8175
  %8710 = vmatprep.subr.mxu0 0.0
  %8711 = vmatpush1.msra.mxu0 %v8176
  %8712 = vmatprep.subr.mxu0 0.0
  %8713 = vmatpush1.msra.mxu0 %v8177
  %8714 = vmatprep.subr.mxu0 0.0
  %8715 = vmatpush1.msra.mxu0 %v8178
  %8716 = vmatprep.subr.mxu0 0.0
  %8717 = vmatpush1.msra.mxu0 %v8179
  %8718 = vmatprep.subr.mxu0 0.0
  %8719 = vmatpush1.msra.mxu0 %v8180
  %8720 = vmatprep.subr.mxu0 0.0
  %8721 = vmatpush1.msra.mxu0 %v8181
  %8722 = vmatprep.subr.mxu0 0.0
  %8723 = vmatpush1.msra.mxu0 %v8182
  %8724 = vmatprep.subr.mxu0 0.0
  %8725 = vmatpush1.msra.mxu0 %v8183
  %8726 = vmatprep.subr.mxu0 0.0
  %8727 = vmatpush1.msra.mxu0 %v8184
  %8728 = vmatprep.subr.mxu0 0.0
  %8729 = vmatpush1.msra.mxu0 %v8185
  %8730 = vmatprep.subr.mxu0 0.0
  %8731 = vmatpush1.msra.mxu0 %v8186
  %8732 = vmatprep.subr.mxu0 0.0
  %8733 = vmatpush1.msra.mxu0 %v8187
  %8734 = vmatprep.subr.mxu0 0.0
  %8735 = vmatpush1.msra.mxu0 %v8188
  %8736 = vmatprep.subr.mxu0 0.0
  %8737 = vmatpush1.msra.mxu0 %v8189
  %8738 = vmatprep.subr.mxu0 0.0
  %8739 = vmatpush1.msra.mxu0 %v8190
  %8740 = vmatprep.subr.mxu0 0.0
  %8741 = vmatpush1.msra.mxu0 %v8191
  %8742 = vmatprep.subr.mxu0 0.0
  %8743 = vmatpush1.msra.mxu0 %v8192
  %8744 = vmatprep.subr.mxu0 0.0
  %8745 = vmatpush1.msra.mxu0 %v8193
  %8746 = vmatprep.subr.mxu0 0.0
  %8747 = vmatpush1.msra.mxu0 %v8194
  %8748 = vmatprep.subr.mxu0 0.0
  %8749 = vmatpush1.msra.mxu0 %v8195
  %8750 = vmatprep.mubr.f32.mxu0 %v8067
  %8751 = vmatmul.mubr.f32.gmra.mrb[0].mxu0 %v8066
  %v8752 = vpop.f32.mrb[0].mxu0
  %v8753 = vadd.f32 %v8683, %v8752
  %v8754 = vpop.f32.mrb[0].mxu0
  %8755 = vdwg.mxu0
  %8756 = vmatprep.subr.mxu0 0.0
  %8757 = vmatpush1.msra.mxu0 %v8473
  %8758 = vmatprep.subr.mxu0 0.0
  %8759 = vmatpush1.msra.mxu0 0.0
  %8760 = vmatprep.subr.mxu0 0.0
  %8761 = vmatpush1.msra.mxu0 0.0
  %8762 = vmatprep.subr.mxu0 0.0
  %8763 = vmatpush1.msra.mxu0 0.0
  %8764 = vmatprep.subr.mxu0 0.0
  %8765 = vmatpush1.msra.mxu0 0.0
  %8766 = vmatprep.subr.mxu0 0.0
  %8767 = vmatpush1.msra.mxu0 0.0
  %8768 = vmatprep.subr.mxu0 0.0
  %8769 = vmatpush1.msra.mxu0 0.0
  %8770 = vmatprep.subr.mxu0 0.0
  %8771 = vmatpush1.msra.mxu0 0.0
  %8772 = vmatprep.subr.mxu0 0.0
  %8773 = vmatpush1.msra.mxu0 0.0
  %8774 = vmatprep.subr.mxu0 0.0
  %8775 = vmatpush1.msra.mxu0 0.0
  %8776 = vmatprep.subr.mxu0 0.0
  %8777 = vmatpush1.msra.mxu0 0.0
  %8778 = vmatprep.subr.mxu0 0.0
  %8779 = vmatpush1.msra.mxu0 0.0
  %8780 = vmatprep.subr.mxu0 0.0
  %8781 = vmatpush1.msra.mxu0 0.0
  %8782 = vmatprep.subr.mxu0 0.0
  %8783 = vmatpush1.msra.mxu0 0.0
  %8784 = vmatprep.subr.mxu0 0.0
  %8785 = vmatpush1.msra.mxu0 0.0
  %8786 = vmatprep.subr.mxu0 0.0
  %8787 = vmatpush1.msra.mxu0 0.0
  %8788 = vmatprep.subr.mxu0 0.0
  %8789 = vmatpush1.msra.mxu0 0.0
  %8790 = vmatprep.subr.mxu0 0.0
  %8791 = vmatpush1.msra.mxu0 0.0
  %8792 = vmatprep.subr.mxu0 0.0
  %8793 = vmatpush1.msra.mxu0 0.0
  %8794 = vmatprep.subr.mxu0 0.0
  %8795 = vmatpush1.msra.mxu0 0.0
  %8796 = vmatprep.subr.mxu0 0.0
  %8797 = vmatpush1.msra.mxu0 0.0
  %8798 = vmatprep.subr.mxu0 0.0
  %8799 = vmatpush1.msra.mxu0 0.0
  %8800 = vmatprep.subr.mxu0 0.0
  %8801 = vmatpush1.msra.mxu0 0.0
  %8802 = vmatprep.subr.mxu0 0.0
  %8803 = vmatpush1.msra.mxu0 0.0
  %8804 = vmatprep.subr.mxu0 0.0
  %8805 = vmatpush1.msra.mxu0 0.0
  %8806 = vmatprep.subr.mxu0 0.0
  %8807 = vmatpush1.msra.mxu0 0.0
  %8808 = vmatprep.subr.mxu0 0.0
  %8809 = vmatpush1.msra.mxu0 0.0
  %8810 = vmatprep.subr.mxu0 0.0
  %8811 = vmatpush1.msra.mxu0 0.0
  %8812 = vmatprep.subr.mxu0 0.0
  %8813 = vmatpush1.msra.mxu0 0.0
  %8814 = vmatprep.subr.mxu0 0.0
  %8815 = vmatpush1.msra.mxu0 0.0
  %8816 = vmatprep.subr.mxu0 0.0
  %8817 = vmatpush1.msra.mxu0 0.0
  %8818 = vmatprep.subr.mxu0 0.0
  %8819 = vmatpush1.msra.mxu0 0.0
  %8820 = vmatprep.mubr.f32.mxu0 0.0
  %8821 = vmatmul.mubr.f32.gmra.mrb[0].mxu0 %v1354
  %v8822 = vpop.f32.mrb[0].mxu0
  %v8823 = vadd.f32 0.0, %v8822
  %v8824 = vpop.f32.mrb[0].mxu0
  %8825 = vdwg.mxu0
  %v8826 = vmul.f32 %v8823, 0.03125
  %8827 = vmatprep.subr.mxu0 0.0
  %8828 = vmatpush1.msra.mxu0 %v8753
  %8829 = vmatprep.subr.mxu0 0.0
  %8830 = vmatpush1.msra.mxu0 0.0
  %8831 = vmatprep.subr.mxu0 0.0
  %8832 = vmatpush1.msra.mxu0 0.0
  %8833 = vmatprep.subr.mxu0 0.0
  %8834 = vmatpush1.msra.mxu0 0.0
  %8835 = vmatprep.subr.mxu0 0.0
  %8836 = vmatpush1.msra.mxu0 0.0
  %8837 = vmatprep.subr.mxu0 0.0
  %8838 = vmatpush1.msra.mxu0 0.0
  %8839 = vmatprep.subr.mxu0 0.0
  %8840 = vmatpush1.msra.mxu0 0.0
  %8841 = vmatprep.subr.mxu0 0.0
  %8842 = vmatpush1.msra.mxu0 0.0
  %8843 = vmatprep.subr.mxu0 0.0
  %8844 = vmatpush1.msra.mxu0 0.0
  %8845 = vmatprep.subr.mxu0 0.0
  %8846 = vmatpush1.msra.mxu0 0.0
  %8847 = vmatprep.subr.mxu0 0.0
  %8848 = vmatpush1.msra.mxu0 0.0
  %8849 = vmatprep.subr.mxu0 0.0
  %8850 = vmatpush1.msra.mxu0 0.0
  %8851 = vmatprep.subr.mxu0 0.0
  %8852 = vmatpush1.msra.mxu0 0.0
  %8853 = vmatprep.subr.mxu0 0.0
  %8854 = vmatpush1.msra.mxu0 0.0
  %8855 = vmatprep.subr.mxu0 0.0
  %8856 = vmatpush1.msra.mxu0 0.0
  %8857 = vmatprep.subr.mxu0 0.0
  %8858 = vmatpush1.msra.mxu0 0.0
  %8859 = vmatprep.subr.mxu0 0.0
  %8860 = vmatpush1.msra.mxu0 0.0
  %8861 = vmatprep.subr.mxu0 0.0
  %8862 = vmatpush1.msra.mxu0 0.0
  %8863 = vmatprep.subr.mxu0 0.0
  %8864 = vmatpush1.msra.mxu0 0.0
  %8865 = vmatprep.subr.mxu0 0.0
  %8866 = vmatpush1.msra.mxu0 0.0
  %8867 = vmatprep.subr.mxu0 0.0
  %8868 = vmatpush1.msra.mxu0 0.0
  %8869 = vmatprep.subr.mxu0 0.0
  %8870 = vmatpush1.msra.mxu0 0.0
  %8871 = vmatprep.subr.mxu0 0.0
  %8872 = vmatpush1.msra.mxu0 0.0
  %8873 = vmatprep.subr.mxu0 0.0
  %8874 = vmatpush1.msra.mxu0 0.0
  %8875 = vmatprep.subr.mxu0 0.0
  %8876 = vmatpush1.msra.mxu0 0.0
  %8877 = vmatprep.subr.mxu0 0.0
  %8878 = vmatpush1.msra.mxu0 0.0
  %8879 = vmatprep.subr.mxu0 0.0
  %8880 = vmatpush1.msra.mxu0 0.0
  %8881 = vmatprep.subr.mxu0 0.0
  %8882 = vmatpush1.msra.mxu0 0.0
  %8883 = vmatprep.subr.mxu0 0.0
  %8884 = vmatpush1.msra.mxu0 0.0
  %8885 = vmatprep.subr.mxu0 0.0
  %8886 = vmatpush1.msra.mxu0 0.0
  %8887 = vmatprep.subr.mxu0 0.0
  %8888 = vmatpush1.msra.mxu0 0.0
  %8889 = vmatprep.subr.mxu0 0.0
  %8890 = vmatpush1.msra.mxu0 0.0
  %8891 = vmatprep.mubr.f32.mxu0 0.0
  %8892 = vmatmul.mubr.f32.gmra.mrb[0].mxu0 %v1354
  %v8893 = vpop.f32.mrb[0].mxu0
  %v8894 = vadd.f32 0.0, %v8893
  %v8895 = vpop.f32.mrb[0].mxu0
  %8896 = vdwg.mxu0
  %v8897 = vmul.f32 %v8894, 0.03125
  %v8898 = vadd.f32 %v8897, 1e-05
  %v8899 = vmul.f32 %v8826, %v8826
  %v8900 = vsub.f32 %v8898, %v8899
  %v8901 = vrsqrt.pop %v8900
  %v8902 = vld [vmem:[%s18] sm:$0x1]
  %v8904 = vlaneseq
  %v8905 = vshrl.u32 %v8904, 7
  %v8906 = vsub.s32 0, %v8905
  %v8907 = vrot.slane %v8902, %v8906
  %v8909 = vmul.f32 %v8907, %v8901
  %v8910 = vld [vmem:[%s19] sm:$0x1]
  %v8911 = vmul.f32 %v8826, %v8909
  %v8913 = vlaneseq
  %v8914 = vshrl.u32 %v8913, 7
  %v8915 = vsub.s32 0, %v8914
  %v8916 = vrot.slane %v8910, %v8915
  %v8918 = vsub.f32 %v8916, %v8911
  %v8919 = vld [vmem:[%s17] sm:$0xff]
  %v8920 = vld [vmem:[%s17 + $0x8] sm:$0xff]
  %v8921 = vld [vmem:[%s17 + $0x10] sm:$0xff]
  %v8922 = vld [vmem:[%s17 + $0x18] sm:$0xff]
  %v8923 = vld [vmem:[%s17 + $0x20] sm:$0xff]
  %v8924 = vld [vmem:[%s17 + $0x28] sm:$0xff]
  %v8925 = vld [vmem:[%s17 + $0x30] sm:$0xff]
  %v8926 = vld [vmem:[%s17 + $0x38] sm:$0xff]
  %v8927 = vld [vmem:[%s17 + $0x40] sm:$0xff]
  %v8928 = vld [vmem:[%s17 + $0x48] sm:$0xff]
  %v8929 = vld [vmem:[%s17 + $0x50] sm:$0xff]
  %v8930 = vld [vmem:[%s17 + $0x58] sm:$0xff]
  %v8931 = vld [vmem:[%s17 + $0x60] sm:$0xff]
  %v8932 = vld [vmem:[%s17 + $0x68] sm:$0xff]
  %v8933 = vld [vmem:[%s17 + $0x70] sm:$0xff]
  %v8934 = vld [vmem:[%s17 + $0x78] sm:$0xff]
  %v8935 = vld [vmem:[%s17 + $0x80] sm:$0xff]
  %v8936 = vld [vmem:[%s17 + $0x88] sm:$0xff]
  %v8937 = vld [vmem:[%s17 + $0x90] sm:$0xff]
  %v8938 = vld [vmem:[%s17 + $0x98] sm:$0xff]
  %v8939 = vld [vmem:[%s17 + $0xa0] sm:$0xff]
  %v8940 = vld [vmem:[%s17 + $0xa8] sm:$0xff]
  %v8941 = vld [vmem:[%s17 + $0xb0] sm:$0xff]
  %v8942 = vld [vmem:[%s17 + $0xb8] sm:$0xff]
  %v8943 = vld [vmem:[%s17 + $0xc0] sm:$0xff]
  %v8944 = vld [vmem:[%s17 + $0xc8] sm:$0xff]
  %v8945 = vld [vmem:[%s17 + $0xd0] sm:$0xff]
  %v8946 = vld [vmem:[%s17 + $0xd8] sm:$0xff]
  %v8947 = vld [vmem:[%s17 + $0xe0] sm:$0xff]
  %v8948 = vld [vmem:[%s17 + $0xe8] sm:$0xff]
  %v8949 = vld [vmem:[%s17 + $0xf0] sm:$0xff]
  %v8950 = vld [vmem:[%s17 + $0xf8] sm:$0xff]
  %v8951 = vld [vmem:[%s17 + $0x100] sm:$0xff]
  %v8952 = vld [vmem:[%s17 + $0x108] sm:$0xff]
  %v8953 = vld [vmem:[%s17 + $0x110] sm:$0xff]
  %v8954 = vld [vmem:[%s17 + $0x118] sm:$0xff]
  %v8955 = vld [vmem:[%s17 + $0x120] sm:$0xff]
  %v8956 = vld [vmem:[%s17 + $0x128] sm:$0xff]
  %v8957 = vld [vmem:[%s17 + $0x130] sm:$0xff]
  %v8958 = vld [vmem:[%s17 + $0x138] sm:$0xff]
  %v8959 = vld [vmem:[%s17 + $0x140] sm:$0xff]
  %v8960 = vld [vmem:[%s17 + $0x148] sm:$0xff]
  %v8961 = vld [vmem:[%s17 + $0x150] sm:$0xff]
  %v8962 = vld [vmem:[%s17 + $0x158] sm:$0xff]
  %v8963 = vld [vmem:[%s17 + $0x160] sm:$0xff]
  %v8964 = vld [vmem:[%s17 + $0x168] sm:$0xff]
  %v8965 = vld [vmem:[%s17 + $0x170] sm:$0xff]
  %v8966 = vld [vmem:[%s17 + $0x178] sm:$0xff]
  %v8967 = vld [vmem:[%s17 + $0x180] sm:$0xff]
  %v8968 = vld [vmem:[%s17 + $0x188] sm:$0xff]
  %v8969 = vld [vmem:[%s17 + $0x190] sm:$0xff]
  %v8970 = vld [vmem:[%s17 + $0x198] sm:$0xff]
  %v8971 = vld [vmem:[%s17 + $0x1a0] sm:$0xff]
  %v8972 = vld [vmem:[%s17 + $0x1a8] sm:$0xff]
  %v8973 = vld [vmem:[%s17 + $0x1b0] sm:$0xff]
  %v8974 = vld [vmem:[%s17 + $0x1b8] sm:$0xff]
  %v8975 = vld [vmem:[%s17 + $0x1c0] sm:$0xff]
  %v8976 = vld [vmem:[%s17 + $0x1c8] sm:$0xff]
  %v8977 = vld [vmem:[%s17 + $0x1d0] sm:$0xff]
  %v8978 = vld [vmem:[%s17 + $0x1d8] sm:$0xff]
  %v8979 = vld [vmem:[%s17 + $0x1e0] sm:$0xff]
  %v8980 = vld [vmem:[%s17 + $0x1e8] sm:$0xff]
  %v8981 = vld [vmem:[%s17 + $0x1f0] sm:$0xff]
  %v8982 = vld [vmem:[%s17 + $0x1f8] sm:$0xff]
  %vm8983 = vcmask 523264
  %v8985 = vsel %vm8983, %v8909, 0
  %8987 = vmatprep.subr.mxu0 %v8920
  %8988 = vmatpush1.msra.mxu0 %v8919
  %8989 = vmatprep.subr.mxu0 %v8928
  %8990 = vmatpush1.msra.mxu0 %v8927
  %8991 = vmatprep.subr.mxu0 %v8936
  %8992 = vmatpush1.msra.mxu0 %v8935
  %8993 = vmatprep.subr.mxu0 %v8944
  %8994 = vmatpush1.msra.mxu0 %v8943
  %8995 = vmatprep.subr.mxu0 %v8952
  %8996 = vmatpush1.msra.mxu0 %v8951
  %8997 = vmatprep.subr.mxu0 %v8960
  %8998 = vmatpush1.msra.mxu0 %v8959
  %8999 = vmatprep.subr.mxu0 %v8968
  %9000 = vmatpush1.msra.mxu0 %v8967
  %9001 = vmatprep.subr.mxu0 %v8976
  %9002 = vmatpush1.msra.mxu0 %v8975
  %9003 = vmatprep.subr.mxu0 0.0
  %9004 = vmatpush1.msra.mxu0 0.0
  %9005 = vmatprep.subr.mxu0 0.0
  %9006 = vmatpush1.msra.mxu0 0.0
  %9007 = vmatprep.subr.mxu0 0.0
  %9008 = vmatpush1.msra.mxu0 0.0
  %9009 = vmatprep.subr.mxu0 0.0
  %9010 = vmatpush1.msra.mxu0 0.0
  %9011 = vmatprep.subr.mxu0 0.0
  %9012 = vmatpush1.msra.mxu0 0.0
  %9013 = vmatprep.subr.mxu0 0.0
  %9014 = vmatpush1.msra.mxu0 0.0
  %9015 = vmatprep.subr.mxu0 0.0
  %9016 = vmatpush1.msra.mxu0 0.0
  %9017 = vmatprep.subr.mxu0 0.0
  %9018 = vmatpush1.msra.mxu0 0.0
  %9019 = vmatprep.subr.mxu0 0.0
  %9020 = vmatpush1.msra.mxu0 0.0
  %9021 = vmatprep.subr.mxu0 0.0
  %9022 = vmatpush1.msra.mxu0 0.0
  %9023 = vmatprep.subr.mxu0 0.0
  %9024 = vmatpush1.msra.mxu0 0.0
  %9025 = vmatprep.subr.mxu0 0.0
  %9026 = vmatpush1.msra.mxu0 0.0
  %9027 = vmatprep.subr.mxu0 0.0
  %9028 = vmatpush1.msra.mxu0 0.0
  %9029 = vmatprep.subr.mxu0 0.0
  %9030 = vmatpush1.msra.mxu0 0.0
  %9031 = vmatprep.subr.mxu0 0.0
  %9032 = vmatpush1.msra.mxu0 0.0
  %9033 = vmatprep.subr.mxu0 0.0
  %9034 = vmatpush1.msra.mxu0 0.0
  %9035 = vmatprep.subr.mxu0 0.0
  %9036 = vmatpush1.msra.mxu0 0.0
  %9037 = vmatprep.subr.mxu0 0.0
  %9038 = vmatpush1.msra.mxu0 0.0
  %9039 = vmatprep.subr.mxu0 0.0
  %9040 = vmatpush1.msra.mxu0 0.0
  %9041 = vmatprep.subr.mxu0 0.0
  %9042 = vmatpush1.msra.mxu0 0.0
  %9043 = vmatprep.subr.mxu0 0.0
  %9044 = vmatpush1.msra.mxu0 0.0
  %9045 = vmatprep.subr.mxu0 0.0
  %9046 = vmatpush1.msra.mxu0 0.0
  %9047 = vmatprep.subr.mxu0 0.0
  %9048 = vmatpush1.msra.mxu0 0.0
  %9049 = vmatprep.subr.mxu0 0.0
  %9050 = vmatpush1.msra.mxu0 0.0
  %9051 = vmatprep.mubr.f32.mxu0 0.0
  %9052 = vmatmul.mubr.f32.gmra.mrb[0].mxu0 %v8985
  %v9053 = vpop.f32.mrb[0].mxu0
  %v9054 = vadd.f32 0.0, %v9053
  %v9055 = vpop.f32.mrb[0].mxu0
  %v9056 = vadd.f32 0.0, %v9055
  %9057 = vdwg.mxu0
  %9058 = vmatprep.subr.mxu0 %v8922
  %9059 = vmatpush1.msra.mxu0 %v8921
  %9060 = vmatprep.subr.mxu0 %v8930
  %9061 = vmatpush1.msra.mxu0 %v8929
  %9062 = vmatprep.subr.mxu0 %v8938
  %9063 = vmatpush1.msra.mxu0 %v8937
  %9064 = vmatprep.subr.mxu0 %v8946
  %9065 = vmatpush1.msra.mxu0 %v8945
  %9066 = vmatprep.subr.mxu0 %v8954
  %9067 = vmatpush1.msra.mxu0 %v8953
  %9068 = vmatprep.subr.mxu0 %v8962
  %9069 = vmatpush1.msra.mxu0 %v8961
  %9070 = vmatprep.subr.mxu0 %v8970
  %9071 = vmatpush1.msra.mxu0 %v8969
  %9072 = vmatprep.subr.mxu0 %v8978
  %9073 = vmatpush1.msra.mxu0 %v8977
  %9074 = vmatprep.subr.mxu0 0.0
  %9075 = vmatpush1.msra.mxu0 0.0
  %9076 = vmatprep.subr.mxu0 0.0
  %9077 = vmatpush1.msra.mxu0 0.0
  %9078 = vmatprep.subr.mxu0 0.0
  %9079 = vmatpush1.msra.mxu0 0.0
  %9080 = vmatprep.subr.mxu0 0.0
  %9081 = vmatpush1.msra.mxu0 0.0
  %9082 = vmatprep.subr.mxu0 0.0
  %9083 = vmatpush1.msra.mxu0 0.0
  %9084 = vmatprep.subr.mxu0 0.0
  %9085 = vmatpush1.msra.mxu0 0.0
  %9086 = vmatprep.subr.mxu0 0.0
  %9087 = vmatpush1.msra.mxu0 0.0
  %9088 = vmatprep.subr.mxu0 0.0
  %9089 = vmatpush1.msra.mxu0 0.0
  %9090 = vmatprep.subr.mxu0 0.0
  %9091 = vmatpush1.msra.mxu0 0.0
  %9092 = vmatprep.subr.mxu0 0.0
  %9093 = vmatpush1.msra.mxu0 0.0
  %9094 = vmatprep.subr.mxu0 0.0
  %9095 = vmatpush1.msra.mxu0 0.0
  %9096 = vmatprep.subr.mxu0 0.0
  %9097 = vmatpush1.msra.mxu0 0.0
  %9098 = vmatprep.subr.mxu0 0.0
  %9099 = vmatpush1.msra.mxu0 0.0
  %9100 = vmatprep.subr.mxu0 0.0
  %9101 = vmatpush1.msra.mxu0 0.0
  %9102 = vmatprep.subr.mxu0 0.0
  %9103 = vmatpush1.msra.mxu0 0.0
  %9104 = vmatprep.subr.mxu0 0.0
  %9105 = vmatpush1.msra.mxu0 0.0
  %9106 = vmatprep.subr.mxu0 0.0
  %9107 = vmatpush1.msra.mxu0 0.0
  %9108 = vmatprep.subr.mxu0 0.0
  %9109 = vmatpush1.msra.mxu0 0.0
  %9110 = vmatprep.subr.mxu0 0.0
  %9111 = vmatpush1.msra.mxu0 0.0
  %9112 = vmatprep.subr.mxu0 0.0
  %9113 = vmatpush1.msra.mxu0 0.0
  %9114 = vmatprep.subr.mxu0 0.0
  %9115 = vmatpush1.msra.mxu0 0.0
  %9116 = vmatprep.subr.mxu0 0.0
  %9117 = vmatpush1.msra.mxu0 0.0
  %9118 = vmatprep.subr.mxu0 0.0
  %9119 = vmatpush1.msra.mxu0 0.0
  %9120 = vmatprep.subr.mxu0 0.0
  %9121 = vmatpush1.msra.mxu0 0.0
  %9122 = vmatprep.mubr.f32.mxu0 0.0
  %9123 = vmatmul.mubr.f32.gmra.mrb[0].mxu0 %v8985
  %v9124 = vpop.f32.mrb[0].mxu0
  %v9125 = vadd.f32 0.0, %v9124
  %v9126 = vpop.f32.mrb[0].mxu0
  %v9127 = vadd.f32 0.0, %v9126
  %9128 = vdwg.mxu0
  %9129 = vmatprep.subr.mxu0 %v8924
  %9130 = vmatpush1.msra.mxu0 %v8923
  %9131 = vmatprep.subr.mxu0 %v8932
  %9132 = vmatpush1.msra.mxu0 %v8931
  %9133 = vmatprep.subr.mxu0 %v8940
  %9134 = vmatpush1.msra.mxu0 %v8939
  %9135 = vmatprep.subr.mxu0 %v8948
  %9136 = vmatpush1.msra.mxu0 %v8947
  %9137 = vmatprep.subr.mxu0 %v8956
  %9138 = vmatpush1.msra.mxu0 %v8955
  %9139 = vmatprep.subr.mxu0 %v8964
  %9140 = vmatpush1.msra.mxu0 %v8963
  %9141 = vmatprep.subr.mxu0 %v8972
  %9142 = vmatpush1.msra.mxu0 %v8971
  %9143 = vmatprep.subr.mxu0 %v8980
  %9144 = vmatpush1.msra.mxu0 %v8979
  %9145 = vmatprep.subr.mxu0 0.0
  %9146 = vmatpush1.msra.mxu0 0.0
  %9147 = vmatprep.subr.mxu0 0.0
  %9148 = vmatpush1.msra.mxu0 0.0
  %9149 = vmatprep.subr.mxu0 0.0
  %9150 = vmatpush1.msra.mxu0 0.0
  %9151 = vmatprep.subr.mxu0 0.0
  %9152 = vmatpush1.msra.mxu0 0.0
  %9153 = vmatprep.subr.mxu0 0.0
  %9154 = vmatpush1.msra.mxu0 0.0
  %9155 = vmatprep.subr.mxu0 0.0
  %9156 = vmatpush1.msra.mxu0 0.0
  %9157 = vmatprep.subr.mxu0 0.0
  %9158 = vmatpush1.msra.mxu0 0.0
  %9159 = vmatprep.subr.mxu0 0.0
  %9160 = vmatpush1.msra.mxu0 0.0
  %9161 = vmatprep.subr.mxu0 0.0
  %9162 = vmatpush1.msra.mxu0 0.0
  %9163 = vmatprep.subr.mxu0 0.0
  %9164 = vmatpush1.msra.mxu0 0.0
  %9165 = vmatprep.subr.mxu0 0.0
  %9166 = vmatpush1.msra.mxu0 0.0
  %9167 = vmatprep.subr.mxu0 0.0
  %9168 = vmatpush1.msra.mxu0 0.0
  %9169 = vmatprep.subr.mxu0 0.0
  %9170 = vmatpush1.msra.mxu0 0.0
  %9171 = vmatprep.subr.mxu0 0.0
  %9172 = vmatpush1.msra.mxu0 0.0
  %9173 = vmatprep.subr.mxu0 0.0
  %9174 = vmatpush1.msra.mxu0 0.0
  %9175 = vmatprep.subr.mxu0 0.0
  %9176 = vmatpush1.msra.mxu0 0.0
  %9177 = vmatprep.subr.mxu0 0.0
  %9178 = vmatpush1.msra.mxu0 0.0
  %9179 = vmatprep.subr.mxu0 0.0
  %9180 = vmatpush1.msra.mxu0 0.0
  %9181 = vmatprep.subr.mxu0 0.0
  %9182 = vmatpush1.msra.mxu0 0.0
  %9183 = vmatprep.subr.mxu0 0.0
  %9184 = vmatpush1.msra.mxu0 0.0
  %9185 = vmatprep.subr.mxu0 0.0
  %9186 = vmatpush1.msra.mxu0 0.0
  %9187 = vmatprep.subr.mxu0 0.0
  %9188 = vmatpush1.msra.mxu0 0.0
  %9189 = vmatprep.subr.mxu0 0.0
  %9190 = vmatpush1.msra.mxu0 0.0
  %9191 = vmatprep.subr.mxu0 0.0
  %9192 = vmatpush1.msra.mxu0 0.0
  %9193 = vmatprep.mubr.f32.mxu0 0.0
  %9194 = vmatmul.mubr.f32.gmra.mrb[0].mxu0 %v8985
  %v9195 = vpop.f32.mrb[0].mxu0
  %v9196 = vadd.f32 0.0, %v9195
  %v9197 = vpop.f32.mrb[0].mxu0
  %v9198 = vadd.f32 0.0, %v9197
  %9199 = vdwg.mxu0
  %9200 = vmatprep.subr.mxu0 %v8926
  %9201 = vmatpush1.msra.mxu0 %v8925
  %9202 = vmatprep.subr.mxu0 %v8934
  %9203 = vmatpush1.msra.mxu0 %v8933
  %9204 = vmatprep.subr.mxu0 %v8942
  %9205 = vmatpush1.msra.mxu0 %v8941
  %9206 = vmatprep.subr.mxu0 %v8950
  %9207 = vmatpush1.msra.mxu0 %v8949
  %9208 = vmatprep.subr.mxu0 %v8958
  %9209 = vmatpush1.msra.mxu0 %v8957
  %9210 = vmatprep.subr.mxu0 %v8966
  %9211 = vmatpush1.msra.mxu0 %v8965
  %9212 = vmatprep.subr.mxu0 %v8974
  %9213 = vmatpush1.msra.mxu0 %v8973
  %9214 = vmatprep.subr.mxu0 %v8982
  %9215 = vmatpush1.msra.mxu0 %v8981
  %9216 = vmatprep.subr.mxu0 0.0
  %9217 = vmatpush1.msra.mxu0 0.0
  %9218 = vmatprep.subr.mxu0 0.0
  %9219 = vmatpush1.msra.mxu0 0.0
  %9220 = vmatprep.subr.mxu0 0.0
  %9221 = vmatpush1.msra.mxu0 0.0
  %9222 = vmatprep.subr.mxu0 0.0
  %9223 = vmatpush1.msra.mxu0 0.0
  %9224 = vmatprep.subr.mxu0 0.0
  %9225 = vmatpush1.msra.mxu0 0.0
  %9226 = vmatprep.subr.mxu0 0.0
  %9227 = vmatpush1.msra.mxu0 0.0
  %9228 = vmatprep.subr.mxu0 0.0
  %9229 = vmatpush1.msra.mxu0 0.0
  %9230 = vmatprep.subr.mxu0 0.0
  %9231 = vmatpush1.msra.mxu0 0.0
  %9232 = vmatprep.subr.mxu0 0.0
  %9233 = vmatpush1.msra.mxu0 0.0
  %9234 = vmatprep.subr.mxu0 0.0
  %9235 = vmatpush1.msra.mxu0 0.0
  %9236 = vmatprep.subr.mxu0 0.0
  %9237 = vmatpush1.msra.mxu0 0.0
  %9238 = vmatprep.subr.mxu0 0.0
  %9239 = vmatpush1.msra.mxu0 0.0
  %9240 = vmatprep.subr.mxu0 0.0
  %9241 = vmatpush1.msra.mxu0 0.0
  %9242 = vmatprep.subr.mxu0 0.0
  %9243 = vmatpush1.msra.mxu0 0.0
  %9244 = vmatprep.subr.mxu0 0.0
  %9245 = vmatpush1.msra.mxu0 0.0
  %9246 = vmatprep.subr.mxu0 0.0
  %9247 = vmatpush1.msra.mxu0 0.0
  %9248 = vmatprep.subr.mxu0 0.0
  %9249 = vmatpush1.msra.mxu0 0.0
  %9250 = vmatprep.subr.mxu0 0.0
  %9251 = vmatpush1.msra.mxu0 0.0
  %9252 = vmatprep.subr.mxu0 0.0
  %9253 = vmatpush1.msra.mxu0 0.0
  %9254 = vmatprep.subr.mxu0 0.0
  %9255 = vmatpush1.msra.mxu0 0.0
  %9256 = vmatprep.subr.mxu0 0.0
  %9257 = vmatpush1.msra.mxu0 0.0
  %9258 = vmatprep.subr.mxu0 0.0
  %9259 = vmatpush1.msra.mxu0 0.0
  %9260 = vmatprep.subr.mxu0 0.0
  %9261 = vmatpush1.msra.mxu0 0.0
  %9262 = vmatprep.subr.mxu0 0.0
  %9263 = vmatpush1.msra.mxu0 0.0
  %9264 = vmatprep.mubr.f32.mxu0 0.0
  %9265 = vmatmul.mubr.f32.gmra.mrb[0].mxu0 %v8985
  %v9266 = vpop.f32.mrb[0].mxu0
  %v9267 = vadd.f32 0.0, %v9266
  %v9268 = vpop.f32.mrb[0].mxu0
  %v9269 = vadd.f32 0.0, %v9268
  %9270 = vdwg.mxu0
  %v9272 = vsel %vm8983, %v8918, 0
  %9274 = vmatprep.subr.mxu0 %v8920
  %9275 = vmatpush1.msra.mxu0 %v8919
  %9276 = vmatprep.subr.mxu0 %v8928
  %9277 = vmatpush1.msra.mxu0 %v8927
  %9278 = vmatprep.subr.mxu0 %v8936
  %9279 = vmatpush1.msra.mxu0 %v8935
  %9280 = vmatprep.subr.mxu0 %v8944
  %9281 = vmatpush1.msra.mxu0 %v8943
  %9282 = vmatprep.subr.mxu0 %v8952
  %9283 = vmatpush1.msra.mxu0 %v8951
  %9284 = vmatprep.subr.mxu0 %v8960
  %9285 = vmatpush1.msra.mxu0 %v8959
  %9286 = vmatprep.subr.mxu0 %v8968
  %9287 = vmatpush1.msra.mxu0 %v8967
  %9288 = vmatprep.subr.mxu0 %v8976
  %9289 = vmatpush1.msra.mxu0 %v8975
  %9290 = vmatprep.subr.mxu0 0.0
  %9291 = vmatpush1.msra.mxu0 0.0
  %9292 = vmatprep.subr.mxu0 0.0
  %9293 = vmatpush1.msra.mxu0 0.0
  %9294 = vmatprep.subr.mxu0 0.0
  %9295 = vmatpush1.msra.mxu0 0.0
  %9296 = vmatprep.subr.mxu0 0.0
  %9297 = vmatpush1.msra.mxu0 0.0
  %9298 = vmatprep.subr.mxu0 0.0
  %9299 = vmatpush1.msra.mxu0 0.0
  %9300 = vmatprep.subr.mxu0 0.0
  %9301 = vmatpush1.msra.mxu0 0.0
  %9302 = vmatprep.subr.mxu0 0.0
  %9303 = vmatpush1.msra.mxu0 0.0
  %9304 = vmatprep.subr.mxu0 0.0
  %9305 = vmatpush1.msra.mxu0 0.0
  %9306 = vmatprep.subr.mxu0 0.0
  %9307 = vmatpush1.msra.mxu0 0.0
  %9308 = vmatprep.subr.mxu0 0.0
  %9309 = vmatpush1.msra.mxu0 0.0
  %9310 = vmatprep.subr.mxu0 0.0
  %9311 = vmatpush1.msra.mxu0 0.0
  %9312 = vmatprep.subr.mxu0 0.0
  %9313 = vmatpush1.msra.mxu0 0.0
  %9314 = vmatprep.subr.mxu0 0.0
  %9315 = vmatpush1.msra.mxu0 0.0
  %9316 = vmatprep.subr.mxu0 0.0
  %9317 = vmatpush1.msra.mxu0 0.0
  %9318 = vmatprep.subr.mxu0 0.0
  %9319 = vmatpush1.msra.mxu0 0.0
  %9320 = vmatprep.subr.mxu0 0.0
  %9321 = vmatpush1.msra.mxu0 0.0
  %9322 = vmatprep.subr.mxu0 0.0
  %9323 = vmatpush1.msra.mxu0 0.0
  %9324 = vmatprep.subr.mxu0 0.0
  %9325 = vmatpush1.msra.mxu0 0.0
  %9326 = vmatprep.subr.mxu0 0.0
  %9327 = vmatpush1.msra.mxu0 0.0
  %9328 = vmatprep.subr.mxu0 0.0
  %9329 = vmatpush1.msra.mxu0 0.0
  %9330 = vmatprep.subr.mxu0 0.0
  %9331 = vmatpush1.msra.mxu0 0.0
  %9332 = vmatprep.subr.mxu0 0.0
  %9333 = vmatpush1.msra.mxu0 0.0
  %9334 = vmatprep.subr.mxu0 0.0
  %9335 = vmatpush1.msra.mxu0 0.0
  %9336 = vmatprep.subr.mxu0 0.0
  %9337 = vmatpush1.msra.mxu0 0.0
  %9338 = vmatprep.mubr.f32.mxu0 0.0
  %9339 = vmatmul.mubr.f32.gmra.mrb[0].mxu0 %v9272
  %v9340 = vpop.f32.mrb[0].mxu0
  %v9341 = vadd.f32 0.0, %v9340
  %v9342 = vpop.f32.mrb[0].mxu0
  %v9343 = vadd.f32 0.0, %v9342
  %9344 = vdwg.mxu0
  %9345 = vmatprep.subr.mxu0 %v8922
  %9346 = vmatpush1.msra.mxu0 %v8921
  %9347 = vmatprep.subr.mxu0 %v8930
  %9348 = vmatpush1.msra.mxu0 %v8929
  %9349 = vmatprep.subr.mxu0 %v8938
  %9350 = vmatpush1.msra.mxu0 %v8937
  %9351 = vmatprep.subr.mxu0 %v8946
  %9352 = vmatpush1.msra.mxu0 %v8945
  %9353 = vmatprep.subr.mxu0 %v8954
  %9354 = vmatpush1.msra.mxu0 %v8953
  %9355 = vmatprep.subr.mxu0 %v8962
  %9356 = vmatpush1.msra.mxu0 %v8961
  %9357 = vmatprep.subr.mxu0 %v8970
  %9358 = vmatpush1.msra.mxu0 %v8969
  %9359 = vmatprep.subr.mxu0 %v8978
  %9360 = vmatpush1.msra.mxu0 %v8977
  %9361 = vmatprep.subr.mxu0 0.0
  %9362 = vmatpush1.msra.mxu0 0.0
  %9363 = vmatprep.subr.mxu0 0.0
  %9364 = vmatpush1.msra.mxu0 0.0
  %9365 = vmatprep.subr.mxu0 0.0
  %9366 = vmatpush1.msra.mxu0 0.0
  %9367 = vmatprep.subr.mxu0 0.0
  %9368 = vmatpush1.msra.mxu0 0.0
  %9369 = vmatprep.subr.mxu0 0.0
  %9370 = vmatpush1.msra.mxu0 0.0
  %9371 = vmatprep.subr.mxu0 0.0
  %9372 = vmatpush1.msra.mxu0 0.0
  %9373 = vmatprep.subr.mxu0 0.0
  %9374 = vmatpush1.msra.mxu0 0.0
  %9375 = vmatprep.subr.mxu0 0.0
  %9376 = vmatpush1.msra.mxu0 0.0
  %9377 = vmatprep.subr.mxu0 0.0
  %9378 = vmatpush1.msra.mxu0 0.0
  %9379 = vmatprep.subr.mxu0 0.0
  %9380 = vmatpush1.msra.mxu0 0.0
  %9381 = vmatprep.subr.mxu0 0.0
  %9382 = vmatpush1.msra.mxu0 0.0
  %9383 = vmatprep.subr.mxu0 0.0
  %9384 = vmatpush1.msra.mxu0 0.0
  %9385 = vmatprep.subr.mxu0 0.0
  %9386 = vmatpush1.msra.mxu0 0.0
  %9387 = vmatprep.subr.mxu0 0.0
  %9388 = vmatpush1.msra.mxu0 0.0
  %9389 = vmatprep.subr.mxu0 0.0
  %9390 = vmatpush1.msra.mxu0 0.0
  %9391 = vmatprep.subr.mxu0 0.0
  %9392 = vmatpush1.msra.mxu0 0.0
  %9393 = vmatprep.subr.mxu0 0.0
  %9394 = vmatpush1.msra.mxu0 0.0
  %9395 = vmatprep.subr.mxu0 0.0
  %9396 = vmatpush1.msra.mxu0 0.0
  %9397 = vmatprep.subr.mxu0 0.0
  %9398 = vmatpush1.msra.mxu0 0.0
  %9399 = vmatprep.subr.mxu0 0.0
  %9400 = vmatpush1.msra.mxu0 0.0
  %9401 = vmatprep.subr.mxu0 0.0
  %9402 = vmatpush1.msra.mxu0 0.0
  %9403 = vmatprep.subr.mxu0 0.0
  %9404 = vmatpush1.msra.mxu0 0.0
  %9405 = vmatprep.subr.mxu0 0.0
  %9406 = vmatpush1.msra.mxu0 0.0
  %9407 = vmatprep.subr.mxu0 0.0
  %9408 = vmatpush1.msra.mxu0 0.0
  %9409 = vmatprep.mubr.f32.mxu0 0.0
  %9410 = vmatmul.mubr.f32.gmra.mrb[0].mxu0 %v9272
  %v9411 = vpop.f32.mrb[0].mxu0
  %v9412 = vadd.f32 0.0, %v9411
  %v9413 = vpop.f32.mrb[0].mxu0
  %v9414 = vadd.f32 0.0, %v9413
  %9415 = vdwg.mxu0
  %9416 = vmatprep.subr.mxu0 %v8924
  %9417 = vmatpush1.msra.mxu0 %v8923
  %9418 = vmatprep.subr.mxu0 %v8932
  %9419 = vmatpush1.msra.mxu0 %v8931
  %9420 = vmatprep.subr.mxu0 %v8940
  %9421 = vmatpush1.msra.mxu0 %v8939
  %9422 = vmatprep.subr.mxu0 %v8948
  %9423 = vmatpush1.msra.mxu0 %v8947
  %9424 = vmatprep.subr.mxu0 %v8956
  %9425 = vmatpush1.msra.mxu0 %v8955
  %9426 = vmatprep.subr.mxu0 %v8964
  %9427 = vmatpush1.msra.mxu0 %v8963
  %9428 = vmatprep.subr.mxu0 %v8972
  %9429 = vmatpush1.msra.mxu0 %v8971
  %9430 = vmatprep.subr.mxu0 %v8980
  %9431 = vmatpush1.msra.mxu0 %v8979
  %9432 = vmatprep.subr.mxu0 0.0
  %9433 = vmatpush1.msra.mxu0 0.0
  %9434 = vmatprep.subr.mxu0 0.0
  %9435 = vmatpush1.msra.mxu0 0.0
  %9436 = vmatprep.subr.mxu0 0.0
  %9437 = vmatpush1.msra.mxu0 0.0
  %9438 = vmatprep.subr.mxu0 0.0
  %9439 = vmatpush1.msra.mxu0 0.0
  %9440 = vmatprep.subr.mxu0 0.0
  %9441 = vmatpush1.msra.mxu0 0.0
  %9442 = vmatprep.subr.mxu0 0.0
  %9443 = vmatpush1.msra.mxu0 0.0
  %9444 = vmatprep.subr.mxu0 0.0
  %9445 = vmatpush1.msra.mxu0 0.0
  %9446 = vmatprep.subr.mxu0 0.0
  %9447 = vmatpush1.msra.mxu0 0.0
  %9448 = vmatprep.subr.mxu0 0.0
  %9449 = vmatpush1.msra.mxu0 0.0
  %9450 = vmatprep.subr.mxu0 0.0
  %9451 = vmatpush1.msra.mxu0 0.0
  %9452 = vmatprep.subr.mxu0 0.0
  %9453 = vmatpush1.msra.mxu0 0.0
  %9454 = vmatprep.subr.mxu0 0.0
  %9455 = vmatpush1.msra.mxu0 0.0
  %9456 = vmatprep.subr.mxu0 0.0
  %9457 = vmatpush1.msra.mxu0 0.0
  %9458 = vmatprep.subr.mxu0 0.0
  %9459 = vmatpush1.msra.mxu0 0.0
  %9460 = vmatprep.subr.mxu0 0.0
  %9461 = vmatpush1.msra.mxu0 0.0
  %9462 = vmatprep.subr.mxu0 0.0
  %9463 = vmatpush1.msra.mxu0 0.0
  %9464 = vmatprep.subr.mxu0 0.0
  %9465 = vmatpush1.msra.mxu0 0.0
  %9466 = vmatprep.subr.mxu0 0.0
  %9467 = vmatpush1.msra.mxu0 0.0
  %9468 = vmatprep.subr.mxu0 0.0
  %9469 = vmatpush1.msra.mxu0 0.0
  %9470 = vmatprep.subr.mxu0 0.0
  %9471 = vmatpush1.msra.mxu0 0.0
  %9472 = vmatprep.subr.mxu0 0.0
  %9473 = vmatpush1.msra.mxu0 0.0
  %9474 = vmatprep.subr.mxu0 0.0
  %9475 = vmatpush1.msra.mxu0 0.0
  %9476 = vmatprep.subr.mxu0 0.0
  %9477 = vmatpush1.msra.mxu0 0.0
  %9478 = vmatprep.subr.mxu0 0.0
  %9479 = vmatpush1.msra.mxu0 0.0
  %9480 = vmatprep.mubr.f32.mxu0 0.0
  %9481 = vmatmul.mubr.f32.gmra.mrb[0].mxu0 %v9272
  %v9482 = vpop.f32.mrb[0].mxu0
  %v9483 = vadd.f32 0.0, %v9482
  %v9484 = vpop.f32.mrb[0].mxu0
  %v9485 = vadd.f32 0.0, %v9484
  %9486 = vdwg.mxu0
  %9487 = vmatprep.subr.mxu0 %v8926
  %9488 = vmatpush1.msra.mxu0 %v8925
  %9489 = vmatprep.subr.mxu0 %v8934
  %9490 = vmatpush1.msra.mxu0 %v8933
  %9491 = vmatprep.subr.mxu0 %v8942
  %9492 = vmatpush1.msra.mxu0 %v8941
  %9493 = vmatprep.subr.mxu0 %v8950
  %9494 = vmatpush1.msra.mxu0 %v8949
  %9495 = vmatprep.subr.mxu0 %v8958
  %9496 = vmatpush1.msra.mxu0 %v8957
  %9497 = vmatprep.subr.mxu0 %v8966
  %9498 = vmatpush1.msra.mxu0 %v8965
  %9499 = vmatprep.subr.mxu0 %v8974
  %9500 = vmatpush1.msra.mxu0 %v8973
  %9501 = vmatprep.subr.mxu0 %v8982
  %9502 = vmatpush1.msra.mxu0 %v8981
  %9503 = vmatprep.subr.mxu0 0.0
  %9504 = vmatpush1.msra.mxu0 0.0
  %9505 = vmatprep.subr.mxu0 0.0
  %9506 = vmatpush1.msra.mxu0 0.0
  %9507 = vmatprep.subr.mxu0 0.0
  %9508 = vmatpush1.msra.mxu0 0.0
  %9509 = vmatprep.subr.mxu0 0.0
  %9510 = vmatpush1.msra.mxu0 0.0
  %9511 = vmatprep.subr.mxu0 0.0
  %9512 = vmatpush1.msra.mxu0 0.0
  %9513 = vmatprep.subr.mxu0 0.0
  %9514 = vmatpush1.msra.mxu0 0.0
  %9515 = vmatprep.subr.mxu0 0.0
  %9516 = vmatpush1.msra.mxu0 0.0
  %9517 = vmatprep.subr.mxu0 0.0
  %9518 = vmatpush1.msra.mxu0 0.0
  %9519 = vmatprep.subr.mxu0 0.0
  %9520 = vmatpush1.msra.mxu0 0.0
  %9521 = vmatprep.subr.mxu0 0.0
  %9522 = vmatpush1.msra.mxu0 0.0
  %9523 = vmatprep.subr.mxu0 0.0
  %9524 = vmatpush1.msra.mxu0 0.0
  %9525 = vmatprep.subr.mxu0 0.0
  %9526 = vmatpush1.msra.mxu0 0.0
  %9527 = vmatprep.subr.mxu0 0.0
  %9528 = vmatpush1.msra.mxu0 0.0
  %9529 = vmatprep.subr.mxu0 0.0
  %9530 = vmatpush1.msra.mxu0 0.0
  %9531 = vmatprep.subr.mxu0 0.0
  %9532 = vmatpush1.msra.mxu0 0.0
  %9533 = vmatprep.subr.mxu0 0.0
  %9534 = vmatpush1.msra.mxu0 0.0
  %9535 = vmatprep.subr.mxu0 0.0
  %9536 = vmatpush1.msra.mxu0 0.0
  %9537 = vmatprep.subr.mxu0 0.0
  %9538 = vmatpush1.msra.mxu0 0.0
  %9539 = vmatprep.subr.mxu0 0.0
  %9540 = vmatpush1.msra.mxu0 0.0
  %9541 = vmatprep.subr.mxu0 0.0
  %9542 = vmatpush1.msra.mxu0 0.0
  %9543 = vmatprep.subr.mxu0 0.0
  %9544 = vmatpush1.msra.mxu0 0.0
  %9545 = vmatprep.subr.mxu0 0.0
  %9546 = vmatpush1.msra.mxu0 0.0
  %9547 = vmatprep.subr.mxu0 0.0
  %9548 = vmatpush1.msra.mxu0 0.0
  %9549 = vmatprep.subr.mxu0 0.0
  %9550 = vmatpush1.msra.mxu0 0.0
  %9551 = vmatprep.mubr.f32.mxu0 0.0
  %9552 = vmatmul.mubr.f32.gmra.mrb[0].mxu0 %v9272
  %v9553 = vpop.f32.mrb[0].mxu0
  %v9554 = vadd.f32 0.0, %v9553
  %v9555 = vpop.f32.mrb[0].mxu0
  %v9556 = vadd.f32 0.0, %v9555
  %9557 = vdwg.mxu0
  %v9558 = vmul.f32 %v7204, %v9054
  %v9559 = vmul.f32 %v7206, %v9056
  %v9560 = vmul.f32 %v7488, %v9125
  %v9561 = vmul.f32 %v7490, %v9127
  %v9562 = vmul.f32 %v7772, %v9196
  %v9563 = vmul.f32 %v7774, %v9198
  %v9564 = vmul.f32 %v8056, %v9267
  %v9565 = vmul.f32 %v8058, %v9269
  %v9566 = vadd.f32 %v9558, %v9341
  %v9567 = vadd.f32 %v9559, %v9343
  %v9568 = vadd.f32 %v9560, %v9412
  %v9569 = vadd.f32 %v9561, %v9414
  %v9570 = vadd.f32 %v9562, %v9483
  %v9571 = vadd.f32 %v9563, %v9485
  %v9572 = vadd.f32 %v9564, %v9554
  %v9573 = vadd.f32 %v9565, %v9556
  %vm9574 = vcmp.ge.f32.partialorder %v9566, 0.0
  %vm9575 = vcmp.ge.f32.partialorder %v9567, 0.0
  %vm9576 = vcmp.ge.f32.partialorder %v9568, 0.0
  %vm9577 = vcmp.ge.f32.partialorder %v9569, 0.0
  %vm9578 = vcmp.ge.f32.partialorder %v9570, 0.0
  %vm9579 = vcmp.ge.f32.partialorder %v9571, 0.0
  %vm9580 = vcmp.ge.f32.partialorder %v9572, 0.0
  %vm9581 = vcmp.ge.f32.partialorder %v9573, 0.0
  %v9582 = vmul.f32 %v9566, 0.3
  %v9583 = vmul.f32 %v9567, 0.3
  %v9584 = vmul.f32 %v9568, 0.3
  %v9585 = vmul.f32 %v9569, 0.3
  %v9586 = vmul.f32 %v9570, 0.3
  %v9587 = vmul.f32 %v9571, 0.3
  %v9588 = vmul.f32 %v9572, 0.3
  %v9589 = vmul.f32 %v9573, 0.3
  %v9590 = vsel %vm9574, %v9566, %v9582
  %v9591 = vsel %vm9575, %v9567, %v9583
  %v9592 = vsel %vm9576, %v9568, %v9584
  %v9593 = vsel %vm9577, %v9569, %v9585
  %v9594 = vsel %vm9578, %v9570, %v9586
  %v9595 = vsel %vm9579, %v9571, %v9587
  %v9596 = vsel %vm9580, %v9572, %v9588
  %v9597 = vsel %vm9581, %v9573, %v9589
  %v9598 = vld [vmem:[%s20] sm:$0xff]
  %v9599 = vld [vmem:[%s20 + $0x8] sm:$0xff]
  %v9600 = vld [vmem:[%s20 + $0x10] sm:$0xff]
  %v9601 = vld [vmem:[%s20 + $0x18] sm:$0xff]
  %v9602 = vld [vmem:[%s20 + $0x20] sm:$0xff]
  %v9603 = vld [vmem:[%s20 + $0x28] sm:$0xff]
  %v9604 = vld [vmem:[%s20 + $0x30] sm:$0xff]
  %v9605 = vld [vmem:[%s20 + $0x38] sm:$0xff]
  %v9606 = vld [vmem:[%s20 + $0x40] sm:$0xff]
  %v9607 = vld [vmem:[%s20 + $0x48] sm:$0xff]
  %v9608 = vld [vmem:[%s20 + $0x50] sm:$0xff]
  %v9609 = vld [vmem:[%s20 + $0x58] sm:$0xff]
  %v9610 = vld [vmem:[%s20 + $0x60] sm:$0xff]
  %v9611 = vld [vmem:[%s20 + $0x68] sm:$0xff]
  %v9612 = vld [vmem:[%s20 + $0x70] sm:$0xff]
  %v9613 = vld [vmem:[%s20 + $0x78] sm:$0xff]
  %v9614 = vld [vmem:[%s20 + $0x80] sm:$0xff]
  %v9615 = vld [vmem:[%s20 + $0x88] sm:$0xff]
  %v9616 = vld [vmem:[%s20 + $0x90] sm:$0xff]
  %v9617 = vld [vmem:[%s20 + $0x98] sm:$0xff]
  %v9618 = vld [vmem:[%s20 + $0xa0] sm:$0xff]
  %v9619 = vld [vmem:[%s20 + $0xa8] sm:$0xff]
  %v9620 = vld [vmem:[%s20 + $0xb0] sm:$0xff]
  %v9621 = vld [vmem:[%s20 + $0xb8] sm:$0xff]
  %v9622 = vld [vmem:[%s20 + $0xc0] sm:$0xff]
  %v9623 = vld [vmem:[%s20 + $0xc8] sm:$0xff]
  %v9624 = vld [vmem:[%s20 + $0xd0] sm:$0xff]
  %v9625 = vld [vmem:[%s20 + $0xd8] sm:$0xff]
  %v9626 = vld [vmem:[%s20 + $0xe0] sm:$0xff]
  %v9627 = vld [vmem:[%s20 + $0xe8] sm:$0xff]
  %v9628 = vld [vmem:[%s20 + $0xf0] sm:$0xff]
  %v9629 = vld [vmem:[%s20 + $0xf8] sm:$0xff]
  %v9630 = vld [vmem:[%s20 + $0x100] sm:$0xff]
  %v9631 = vld [vmem:[%s20 + $0x108] sm:$0xff]
  %v9632 = vld [vmem:[%s20 + $0x110] sm:$0xff]
  %v9633 = vld [vmem:[%s20 + $0x118] sm:$0xff]
  %v9634 = vld [vmem:[%s20 + $0x120] sm:$0xff]
  %v9635 = vld [vmem:[%s20 + $0x128] sm:$0xff]
  %v9636 = vld [vmem:[%s20 + $0x130] sm:$0xff]
  %v9637 = vld [vmem:[%s20 + $0x138] sm:$0xff]
  %v9638 = vld [vmem:[%s20 + $0x140] sm:$0xff]
  %v9639 = vld [vmem:[%s20 + $0x148] sm:$0xff]
  %v9640 = vld [vmem:[%s20 + $0x150] sm:$0xff]
  %v9641 = vld [vmem:[%s20 + $0x158] sm:$0xff]
  %v9642 = vld [vmem:[%s20 + $0x160] sm:$0xff]
  %v9643 = vld [vmem:[%s20 + $0x168] sm:$0xff]
  %v9644 = vld [vmem:[%s20 + $0x170] sm:$0xff]
  %v9645 = vld [vmem:[%s20 + $0x178] sm:$0xff]
  %v9646 = vld [vmem:[%s20 + $0x180] sm:$0xff]
  %v9647 = vld [vmem:[%s20 + $0x188] sm:$0xff]
  %v9648 = vld [vmem:[%s20 + $0x190] sm:$0xff]
  %v9649 = vld [vmem:[%s20 + $0x198] sm:$0xff]
  %v9650 = vld [vmem:[%s20 + $0x1a0] sm:$0xff]
  %v9651 = vld [vmem:[%s20 + $0x1a8] sm:$0xff]
  %v9652 = vld [vmem:[%s20 + $0x1b0] sm:$0xff]
  %v9653 = vld [vmem:[%s20 + $0x1b8] sm:$0xff]
  %v9654 = vld [vmem:[%s20 + $0x1c0] sm:$0xff]
  %v9655 = vld [vmem:[%s20 + $0x1c8] sm:$0xff]
  %v9656 = vld [vmem:[%s20 + $0x1d0] sm:$0xff]
  %v9657 = vld [vmem:[%s20 + $0x1d8] sm:$0xff]
  %v9658 = vld [vmem:[%s20 + $0x1e0] sm:$0xff]
  %v9659 = vld [vmem:[%s20 + $0x1e8] sm:$0xff]
  %v9660 = vld [vmem:[%s20 + $0x1f0] sm:$0xff]
  %v9661 = vld [vmem:[%s20 + $0x1f8] sm:$0xff]
  %v9662 = vld [vmem:[%s20 + $0x200] sm:$0xff]
  %v9663 = vld [vmem:[%s20 + $0x208] sm:$0xff]
  %v9664 = vld [vmem:[%s20 + $0x210] sm:$0xff]
  %v9665 = vld [vmem:[%s20 + $0x218] sm:$0xff]
  %v9666 = vld [vmem:[%s20 + $0x220] sm:$0xff]
  %v9667 = vld [vmem:[%s20 + $0x228] sm:$0xff]
  %v9668 = vld [vmem:[%s20 + $0x230] sm:$0xff]
  %v9669 = vld [vmem:[%s20 + $0x238] sm:$0xff]
  %v9670 = vld [vmem:[%s20 + $0x240] sm:$0xff]
  %v9671 = vld [vmem:[%s20 + $0x248] sm:$0xff]
  %v9672 = vld [vmem:[%s20 + $0x250] sm:$0xff]
  %v9673 = vld [vmem:[%s20 + $0x258] sm:$0xff]
  %v9674 = vld [vmem:[%s20 + $0x260] sm:$0xff]
  %v9675 = vld [vmem:[%s20 + $0x268] sm:$0xff]
  %v9676 = vld [vmem:[%s20 + $0x270] sm:$0xff]
  %v9677 = vld [vmem:[%s20 + $0x278] sm:$0xff]
  %v9678 = vld [vmem:[%s20 + $0x280] sm:$0xff]
  %v9679 = vld [vmem:[%s20 + $0x288] sm:$0xff]
  %v9680 = vld [vmem:[%s20 + $0x290] sm:$0xff]
  %v9681 = vld [vmem:[%s20 + $0x298] sm:$0xff]
  %v9682 = vld [vmem:[%s20 + $0x2a0] sm:$0xff]
  %v9683 = vld [vmem:[%s20 + $0x2a8] sm:$0xff]
  %v9684 = vld [vmem:[%s20 + $0x2b0] sm:$0xff]
  %v9685 = vld [vmem:[%s20 + $0x2b8] sm:$0xff]
  %v9686 = vld [vmem:[%s20 + $0x2c0] sm:$0xff]
  %v9687 = vld [vmem:[%s20 + $0x2c8] sm:$0xff]
  %v9688 = vld [vmem:[%s20 + $0x2d0] sm:$0xff]
  %v9689 = vld [vmem:[%s20 + $0x2d8] sm:$0xff]
  %v9690 = vld [vmem:[%s20 + $0x2e0] sm:$0xff]
  %v9691 = vld [vmem:[%s20 + $0x2e8] sm:$0xff]
  %v9692 = vld [vmem:[%s20 + $0x2f0] sm:$0xff]
  %v9693 = vld [vmem:[%s20 + $0x2f8] sm:$0xff]
  %v9694 = vld [vmem:[%s20 + $0x300] sm:$0xff]
  %v9695 = vld [vmem:[%s20 + $0x308] sm:$0xff]
  %v9696 = vld [vmem:[%s20 + $0x310] sm:$0xff]
  %v9697 = vld [vmem:[%s20 + $0x318] sm:$0xff]
  %v9698 = vld [vmem:[%s20 + $0x320] sm:$0xff]
  %v9699 = vld [vmem:[%s20 + $0x328] sm:$0xff]
  %v9700 = vld [vmem:[%s20 + $0x330] sm:$0xff]
  %v9701 = vld [vmem:[%s20 + $0x338] sm:$0xff]
  %v9702 = vld [vmem:[%s20 + $0x340] sm:$0xff]
  %v9703 = vld [vmem:[%s20 + $0x348] sm:$0xff]
  %v9704 = vld [vmem:[%s20 + $0x350] sm:$0xff]
  %v9705 = vld [vmem:[%s20 + $0x358] sm:$0xff]
  %v9706 = vld [vmem:[%s20 + $0x360] sm:$0xff]
  %v9707 = vld [vmem:[%s20 + $0x368] sm:$0xff]
  %v9708 = vld [vmem:[%s20 + $0x370] sm:$0xff]
  %v9709 = vld [vmem:[%s20 + $0x378] sm:$0xff]
  %v9710 = vld [vmem:[%s20 + $0x380] sm:$0xff]
  %v9711 = vld [vmem:[%s20 + $0x388] sm:$0xff]
  %v9712 = vld [vmem:[%s20 + $0x390] sm:$0xff]
  %v9713 = vld [vmem:[%s20 + $0x398] sm:$0xff]
  %v9714 = vld [vmem:[%s20 + $0x3a0] sm:$0xff]
  %v9715 = vld [vmem:[%s20 + $0x3a8] sm:$0xff]
  %v9716 = vld [vmem:[%s20 + $0x3b0] sm:$0xff]
  %v9717 = vld [vmem:[%s20 + $0x3b8] sm:$0xff]
  %v9718 = vld [vmem:[%s20 + $0x3c0] sm:$0xff]
  %v9719 = vld [vmem:[%s20 + $0x3c8] sm:$0xff]
  %v9720 = vld [vmem:[%s20 + $0x3d0] sm:$0xff]
  %v9721 = vld [vmem:[%s20 + $0x3d8] sm:$0xff]
  %v9722 = vld [vmem:[%s20 + $0x3e0] sm:$0xff]
  %v9723 = vld [vmem:[%s20 + $0x3e8] sm:$0xff]
  %v9724 = vld [vmem:[%s20 + $0x3f0] sm:$0xff]
  %v9725 = vld [vmem:[%s20 + $0x3f8] sm:$0xff]
  %v9726 = vld [vmem:[%s21] sm:$0x1]
  %v9728 = vlaneseq
  %v9729 = vshrl.u32 %v9728, 7
  %v9730 = vsub.s32 0, %v9729
  %v9731 = vrot.slane %v9726, %v9730
  %9733 = vmatprep.subr.mxu0 0.0
  %9734 = vmatpush1.msra.mxu0 %v9598
  %9735 = vmatprep.subr.mxu0 0.0
  %9736 = vmatpush1.msra.mxu0 %v9599
  %9737 = vmatprep.subr.mxu0 0.0
  %9738 = vmatpush1.msra.mxu0 %v9600
  %9739 = vmatprep.subr.mxu0 0.0
  %9740 = vmatpush1.msra.mxu0 %v9601
  %9741 = vmatprep.subr.mxu0 0.0
  %9742 = vmatpush1.msra.mxu0 %v9602
  %9743 = vmatprep.subr.mxu0 0.0
  %9744 = vmatpush1.msra.mxu0 %v9603
  %9745 = vmatprep.subr.mxu0 0.0
  %9746 = vmatpush1.msra.mxu0 %v9604
  %9747 = vmatprep.subr.mxu0 0.0
  %9748 = vmatpush1.msra.mxu0 %v9605
  %9749 = vmatprep.subr.mxu0 0.0
  %9750 = vmatpush1.msra.mxu0 %v9606
  %9751 = vmatprep.subr.mxu0 0.0
  %9752 = vmatpush1.msra.mxu0 %v9607
  %9753 = vmatprep.subr.mxu0 0.0
  %9754 = vmatpush1.msra.mxu0 %v9608
  %9755 = vmatprep.subr.mxu0 0.0
  %9756 = vmatpush1.msra.mxu0 %v9609
  %9757 = vmatprep.subr.mxu0 0.0
  %9758 = vmatpush1.msra.mxu0 %v9610
  %9759 = vmatprep.subr.mxu0 0.0
  %9760 = vmatpush1.msra.mxu0 %v9611
  %9761 = vmatprep.subr.mxu0 0.0
  %9762 = vmatpush1.msra.mxu0 %v9612
  %9763 = vmatprep.subr.mxu0 0.0
  %9764 = vmatpush1.msra.mxu0 %v9613
  %9765 = vmatprep.subr.mxu0 0.0
  %9766 = vmatpush1.msra.mxu0 %v9614
  %9767 = vmatprep.subr.mxu0 0.0
  %9768 = vmatpush1.msra.mxu0 %v9615
  %9769 = vmatprep.subr.mxu0 0.0
  %9770 = vmatpush1.msra.mxu0 %v9616
  %9771 = vmatprep.subr.mxu0 0.0
  %9772 = vmatpush1.msra.mxu0 %v9617
  %9773 = vmatprep.subr.mxu0 0.0
  %9774 = vmatpush1.msra.mxu0 %v9618
  %9775 = vmatprep.subr.mxu0 0.0
  %9776 = vmatpush1.msra.mxu0 %v9619
  %9777 = vmatprep.subr.mxu0 0.0
  %9778 = vmatpush1.msra.mxu0 %v9620
  %9779 = vmatprep.subr.mxu0 0.0
  %9780 = vmatpush1.msra.mxu0 %v9621
  %9781 = vmatprep.subr.mxu0 0.0
  %9782 = vmatpush1.msra.mxu0 %v9622
  %9783 = vmatprep.subr.mxu0 0.0
  %9784 = vmatpush1.msra.mxu0 %v9623
  %9785 = vmatprep.subr.mxu0 0.0
  %9786 = vmatpush1.msra.mxu0 %v9624
  %9787 = vmatprep.subr.mxu0 0.0
  %9788 = vmatpush1.msra.mxu0 %v9625
  %9789 = vmatprep.subr.mxu0 0.0
  %9790 = vmatpush1.msra.mxu0 %v9626
  %9791 = vmatprep.subr.mxu0 0.0
  %9792 = vmatpush1.msra.mxu0 %v9627
  %9793 = vmatprep.subr.mxu0 0.0
  %9794 = vmatpush1.msra.mxu0 %v9628
  %9795 = vmatprep.subr.mxu0 0.0
  %9796 = vmatpush1.msra.mxu0 %v9629
  %9797 = vmatprep.mubr.f32.mxu0 %v9591
  %9798 = vmatmul.mubr.f32.gmra.mrb[0].mxu0 %v9590
  %v9799 = vpop.f32.mrb[0].mxu0
  %v9800 = vadd.f32 %v9731, %v9799
  %v9801 = vpop.f32.mrb[0].mxu0
  %9802 = vdwg.mxu0
  %9803 = vmatprep.subr.mxu0 0.0
  %9804 = vmatpush1.msra.mxu0 %v9630
  %9805 = vmatprep.subr.mxu0 0.0
  %9806 = vmatpush1.msra.mxu0 %v9631
  %9807 = vmatprep.subr.mxu0 0.0
  %9808 = vmatpush1.msra.mxu0 %v9632
  %9809 = vmatprep.subr.mxu0 0.0
  %9810 = vmatpush1.msra.mxu0 %v9633
  %9811 = vmatprep.subr.mxu0 0.0
  %9812 = vmatpush1.msra.mxu0 %v9634
  %9813 = vmatprep.subr.mxu0 0.0
  %9814 = vmatpush1.msra.mxu0 %v9635
  %9815 = vmatprep.subr.mxu0 0.0
  %9816 = vmatpush1.msra.mxu0 %v9636
  %9817 = vmatprep.subr.mxu0 0.0
  %9818 = vmatpush1.msra.mxu0 %v9637
  %9819 = vmatprep.subr.mxu0 0.0
  %9820 = vmatpush1.msra.mxu0 %v9638
  %9821 = vmatprep.subr.mxu0 0.0
  %9822 = vmatpush1.msra.mxu0 %v9639
  %9823 = vmatprep.subr.mxu0 0.0
  %9824 = vmatpush1.msra.mxu0 %v9640
  %9825 = vmatprep.subr.mxu0 0.0
  %9826 = vmatpush1.msra.mxu0 %v9641
  %9827 = vmatprep.subr.mxu0 0.0
  %9828 = vmatpush1.msra.mxu0 %v9642
  %9829 = vmatprep.subr.mxu0 0.0
  %9830 = vmatpush1.msra.mxu0 %v9643
  %9831 = vmatprep.subr.mxu0 0.0
  %9832 = vmatpush1.msra.mxu0 %v9644
  %9833 = vmatprep.subr.mxu0 0.0
  %9834 = vmatpush1.msra.mxu0 %v9645
  %9835 = vmatprep.subr.mxu0 0.0
  %9836 = vmatpush1.msra.mxu0 %v9646
  %9837 = vmatprep.subr.mxu0 0.0
  %9838 = vmatpush1.msra.mxu0 %v9647
  %9839 = vmatprep.subr.mxu0 0.0
  %9840 = vmatpush1.msra.mxu0 %v9648
  %9841 = vmatprep.subr.mxu0 0.0
  %9842 = vmatpush1.msra.mxu0 %v9649
  %9843 = vmatprep.subr.mxu0 0.0
  %9844 = vmatpush1.msra.mxu0 %v9650
  %9845 = vmatprep.subr.mxu0 0.0
  %9846 = vmatpush1.msra.mxu0 %v9651
  %9847 = vmatprep.subr.mxu0 0.0
  %9848 = vmatpush1.msra.mxu0 %v9652
  %9849 = vmatprep.subr.mxu0 0.0
  %9850 = vmatpush1.msra.mxu0 %v9653
  %9851 = vmatprep.subr.mxu0 0.0
  %9852 = vmatpush1.msra.mxu0 %v9654
  %9853 = vmatprep.subr.mxu0 0.0
  %9854 = vmatpush1.msra.mxu0 %v9655
  %9855 = vmatprep.subr.mxu0 0.0
  %9856 = vmatpush1.msra.mxu0 %v9656
  %9857 = vmatprep.subr.mxu0 0.0
  %9858 = vmatpush1.msra.mxu0 %v9657
  %9859 = vmatprep.subr.mxu0 0.0
  %9860 = vmatpush1.msra.mxu0 %v9658
  %9861 = vmatprep.subr.mxu0 0.0
  %9862 = vmatpush1.msra.mxu0 %v9659
  %9863 = vmatprep.subr.mxu0 0.0
  %9864 = vmatpush1.msra.mxu0 %v9660
  %9865 = vmatprep.subr.mxu0 0.0
  %9866 = vmatpush1.msra.mxu0 %v9661
  %9867 = vmatprep.mubr.f32.mxu0 %v9593
  %9868 = vmatmul.mubr.f32.gmra.mrb[0].mxu0 %v9592
  %v9869 = vpop.f32.mrb[0].mxu0
  %v9870 = vadd.f32 %v9800, %v9869
  %v9871 = vpop.f32.mrb[0].mxu0
  %9872 = vdwg.mxu0
  %9873 = vmatprep.subr.mxu0 0.0
  %9874 = vmatpush1.msra.mxu0 %v9662
  %9875 = vmatprep.subr.mxu0 0.0
  %9876 = vmatpush1.msra.mxu0 %v9663
  %9877 = vmatprep.subr.mxu0 0.0
  %9878 = vmatpush1.msra.mxu0 %v9664
  %9879 = vmatprep.subr.mxu0 0.0
  %9880 = vmatpush1.msra.mxu0 %v9665
  %9881 = vmatprep.subr.mxu0 0.0
  %9882 = vmatpush1.msra.mxu0 %v9666
  %9883 = vmatprep.subr.mxu0 0.0
  %9884 = vmatpush1.msra.mxu0 %v9667
  %9885 = vmatprep.subr.mxu0 0.0
  %9886 = vmatpush1.msra.mxu0 %v9668
  %9887 = vmatprep.subr.mxu0 0.0
  %9888 = vmatpush1.msra.mxu0 %v9669
  %9889 = vmatprep.subr.mxu0 0.0
  %9890 = vmatpush1.msra.mxu0 %v9670
  %9891 = vmatprep.subr.mxu0 0.0
  %9892 = vmatpush1.msra.mxu0 %v9671
  %9893 = vmatprep.subr.mxu0 0.0
  %9894 = vmatpush1.msra.mxu0 %v9672
  %9895 = vmatprep.subr.mxu0 0.0
  %9896 = vmatpush1.msra.mxu0 %v9673
  %9897 = vmatprep.subr.mxu0 0.0
  %9898 = vmatpush1.msra.mxu0 %v9674
  %9899 = vmatprep.subr.mxu0 0.0
  %9900 = vmatpush1.msra.mxu0 %v9675
  %9901 = vmatprep.subr.mxu0 0.0
  %9902 = vmatpush1.msra.mxu0 %v9676
  %9903 = vmatprep.subr.mxu0 0.0
  %9904 = vmatpush1.msra.mxu0 %v9677
  %9905 = vmatprep.subr.mxu0 0.0
  %9906 = vmatpush1.msra.mxu0 %v9678
  %9907 = vmatprep.subr.mxu0 0.0
  %9908 = vmatpush1.msra.mxu0 %v9679
  %9909 = vmatprep.subr.mxu0 0.0
  %9910 = vmatpush1.msra.mxu0 %v9680
  %9911 = vmatprep.subr.mxu0 0.0
  %9912 = vmatpush1.msra.mxu0 %v9681
  %9913 = vmatprep.subr.mxu0 0.0
  %9914 = vmatpush1.msra.mxu0 %v9682
  %9915 = vmatprep.subr.mxu0 0.0
  %9916 = vmatpush1.msra.mxu0 %v9683
  %9917 = vmatprep.subr.mxu0 0.0
  %9918 = vmatpush1.msra.mxu0 %v9684
  %9919 = vmatprep.subr.mxu0 0.0
  %9920 = vmatpush1.msra.mxu0 %v9685
  %9921 = vmatprep.subr.mxu0 0.0
  %9922 = vmatpush1.msra.mxu0 %v9686
  %9923 = vmatprep.subr.mxu0 0.0
  %9924 = vmatpush1.msra.mxu0 %v9687
  %9925 = vmatprep.subr.mxu0 0.0
  %9926 = vmatpush1.msra.mxu0 %v9688
  %9927 = vmatprep.subr.mxu0 0.0
  %9928 = vmatpush1.msra.mxu0 %v9689
  %9929 = vmatprep.subr.mxu0 0.0
  %9930 = vmatpush1.msra.mxu0 %v9690
  %9931 = vmatprep.subr.mxu0 0.0
  %9932 = vmatpush1.msra.mxu0 %v9691
  %9933 = vmatprep.subr.mxu0 0.0
  %9934 = vmatpush1.msra.mxu0 %v9692
  %9935 = vmatprep.subr.mxu0 0.0
  %9936 = vmatpush1.msra.mxu0 %v9693
  %9937 = vmatprep.mubr.f32.mxu0 %v9595
  %9938 = vmatmul.mubr.f32.gmra.mrb[0].mxu0 %v9594
  %v9939 = vpop.f32.mrb[0].mxu0
  %v9940 = vadd.f32 %v9870, %v9939
  %v9941 = vpop.f32.mrb[0].mxu0
  %9942 = vdwg.mxu0
  %9943 = vmatprep.subr.mxu0 0.0
  %9944 = vmatpush1.msra.mxu0 %v9694
  %9945 = vmatprep.subr.mxu0 0.0
  %9946 = vmatpush1.msra.mxu0 %v9695
  %9947 = vmatprep.subr.mxu0 0.0
  %9948 = vmatpush1.msra.mxu0 %v9696
  %9949 = vmatprep.subr.mxu0 0.0
  %9950 = vmatpush1.msra.mxu0 %v9697
  %9951 = vmatprep.subr.mxu0 0.0
  %9952 = vmatpush1.msra.mxu0 %v9698
  %9953 = vmatprep.subr.mxu0 0.0
  %9954 = vmatpush1.msra.mxu0 %v9699
  %9955 = vmatprep.subr.mxu0 0.0
  %9956 = vmatpush1.msra.mxu0 %v9700
  %9957 = vmatprep.subr.mxu0 0.0
  %9958 = vmatpush1.msra.mxu0 %v9701
  %9959 = vmatprep.subr.mxu0 0.0
  %9960 = vmatpush1.msra.mxu0 %v9702
  %9961 = vmatprep.subr.mxu0 0.0
  %9962 = vmatpush1.msra.mxu0 %v9703
  %9963 = vmatprep.subr.mxu0 0.0
  %9964 = vmatpush1.msra.mxu0 %v9704
  %9965 = vmatprep.subr.mxu0 0.0
  %9966 = vmatpush1.msra.mxu0 %v9705
  %9967 = vmatprep.subr.mxu0 0.0
  %9968 = vmatpush1.msra.mxu0 %v9706
  %9969 = vmatprep.subr.mxu0 0.0
  %9970 = vmatpush1.msra.mxu0 %v9707
  %9971 = vmatprep.subr.mxu0 0.0
  %9972 = vmatpush1.msra.mxu0 %v9708
  %9973 = vmatprep.subr.mxu0 0.0
  %9974 = vmatpush1.msra.mxu0 %v9709
  %9975 = vmatprep.subr.mxu0 0.0
  %9976 = vmatpush1.msra.mxu0 %v9710
  %9977 = vmatprep.subr.mxu0 0.0
  %9978 = vmatpush1.msra.mxu0 %v9711
  %9979 = vmatprep.subr.mxu0 0.0
  %9980 = vmatpush1.msra.mxu0 %v9712
  %9981 = vmatprep.subr.mxu0 0.0
  %9982 = vmatpush1.msra.mxu0 %v9713
  %9983 = vmatprep.subr.mxu0 0.0
  %9984 = vmatpush1.msra.mxu0 %v9714
  %9985 = vmatprep.subr.mxu0 0.0
  %9986 = vmatpush1.msra.mxu0 %v9715
  %9987 = vmatprep.subr.mxu0 0.0
  %9988 = vmatpush1.msra.mxu0 %v9716
  %9989 = vmatprep.subr.mxu0 0.0
  %9990 = vmatpush1.msra.mxu0 %v9717
  %9991 = vmatprep.subr.mxu0 0.0
  %9992 = vmatpush1.msra.mxu0 %v9718
  %9993 = vmatprep.subr.mxu0 0.0
  %9994 = vmatpush1.msra.mxu0 %v9719
  %9995 = vmatprep.subr.mxu0 0.0
  %9996 = vmatpush1.msra.mxu0 %v9720
  %9997 = vmatprep.subr.mxu0 0.0
  %9998 = vmatpush1.msra.mxu0 %v9721
  %9999 = vmatprep.subr.mxu0 0.0
  %10000 = vmatpush1.msra.mxu0 %v9722
  %10001 = vmatprep.subr.mxu0 0.0
  %10002 = vmatpush1.msra.mxu0 %v9723
  %10003 = vmatprep.subr.mxu0 0.0
  %10004 = vmatpush1.msra.mxu0 %v9724
  %10005 = vmatprep.subr.mxu0 0.0
  %10006 = vmatpush1.msra.mxu0 %v9725
  %10007 = vmatprep.mubr.f32.mxu0 %v9597
  %10008 = vmatmul.mubr.f32.gmra.mrb[0].mxu0 %v9596
  %v10009 = vpop.f32.mrb[0].mxu0
  %v10010 = vadd.f32 %v9940, %v10009
  %v10011 = vpop.f32.mrb[0].mxu0
  %10012 = vdwg.mxu0
  %10013 = vst [vmem:[%s22] sm:$0xff] %v10010
  // Predicated region
  $region90: #{segan_discriminator_forward.1} parent=0 // pred_check
    _
  $region91: #{segan_discriminator_forward.1} parent=0 // pred_check_branch
    %10015 = sbr.rel (0) target = $region93
  $region92: #{segan_discriminator_forward.1} parent=0 // pred_region
    _
  $region93: #{segan_discriminator_forward.1} parent=0 // pred_fallthru
    _
  // Predicated region
  $region94: #{segan_discriminator_forward.1} parent=0 // pred_check
    _
  $region95: #{segan_discriminator_forward.1} parent=0 // pred_check_branch
    %10017 = sbr.rel (0) target = $region97
  $region96: #{segan_discriminator_forward.1} parent=0 // pred_region
    _
  $region97: #{segan_discriminator_forward.1} parent=0 // pred_fallthru
    _

</llo_original>
